<compile_context>
chip_gen: v6e
topology: v6e:2x2x1
jax: 0.10.0
libtpu: 0.0.40
codegen_flags: <defaults>
</compile_context>

<pallas_src>
import functools

import jax
import jax.numpy as jnp
from jax.experimental import pallas as pl
from jax.experimental.pallas import tpu as pltpu


# ------------------------------ fused block kernel ---------------------------

def _preact_block_kernel(x_ref, s1_ref, b1_ref, w1_ref, s2_ref, b2_ref, w2_ref,
                         *rest, stride, has_proj, H, W, OH, OW, Cin, Cmid, Cout):
    if has_proj:
        wsc_ref, o_ref, pre_ref, mid_ref, p1_ref, p2_ref = rest
    else:
        o_ref, pre_ref, mid_ref, p1_ref, p2_ref = rest
    rows = OH * OW
    bf16 = jnp.bfloat16
    f32 = jnp.float32

    # ---- BN1 + ReLU into the interior of the zero-padded scratch ------------
    pre = jnp.maximum(x_ref[...] * s1_ref[...] + b1_ref[...], 0.0)
    # Zero only the four border strips (interior is fully overwritten below);
    # done every step so it is safe under "parallel" megacore sharding.
    pre_ref[0:1, :, :] = jnp.zeros((1, W + 2, Cin), f32)
    pre_ref[H + 1:H + 2, :, :] = jnp.zeros((1, W + 2, Cin), f32)
    pre_ref[:, 0:1, :] = jnp.zeros((H + 2, 1, Cin), f32)
    pre_ref[:, W + 1:W + 2, :] = jnp.zeros((H + 2, 1, Cin), f32)
    pre_ref[1:H + 1, 1:W + 1, :] = pre

    def window(ref, di, dj, oh, ow, s):
        # (oh, ow, C) tap window of a padded scratch; strided read for stride-2.
        if s == 1:
            return ref[di:di + oh, dj:dj + ow, :]
        return ref[pl.ds(di, oh, stride=s), pl.ds(dj, ow, stride=s), :]

    # ---- conv1: build (rows, 9*Cin) bf16 im2col patch, ONE MXU matmul -------
    for t in range(9):
        di, dj = t // 3, t % 3
        p1_ref[:, t * Cin:(t + 1) * Cin] = (
            window(pre_ref, di, dj, OH, OW, stride)
            .reshape(rows, Cin).astype(bf16))
    acc = jnp.dot(p1_ref[...], w1_ref[...], preferred_element_type=f32)

    # ---- BN2 + ReLU epilogue into second padded scratch (stays in VMEM) -----
    mid = jnp.maximum(acc * s2_ref[...] + b2_ref[...], 0.0)
    mid_ref[0:1, :, :] = jnp.zeros((1, OW + 2, Cmid), f32)
    mid_ref[OH + 1:OH + 2, :, :] = jnp.zeros((1, OW + 2, Cmid), f32)
    mid_ref[:, 0:1, :] = jnp.zeros((OH + 2, 1, Cmid), f32)
    mid_ref[:, OW + 1:OW + 2, :] = jnp.zeros((OH + 2, 1, Cmid), f32)
    mid_ref[1:OH + 1, 1:OW + 1, :] = mid.reshape(OH, OW, Cmid)

    # ---- conv2: stride-1 im2col patch, ONE MXU matmul ------------------------
    for t in range(9):
        di, dj = t // 3, t % 3
        p2_ref[:, t * Cmid:(t + 1) * Cmid] = (
            window(mid_ref, di, dj, OH, OW, 1)
            .reshape(rows, Cmid).astype(bf16))
    out = jnp.dot(p2_ref[...], w2_ref[...], preferred_element_type=f32)

    # ---- shortcut + residual add epilogue ------------------------------------
    if has_proj:
        # 1x1 stride-s projection of the pre-activation: its input is exactly
        # the center-tap (di=dj=1) columns of the conv1 im2col patch (aligned,
        # no extra strided read).
        sc_in = p1_ref[:, 4 * Cin:5 * Cin]
        out = out + jnp.dot(sc_in, wsc_ref[...], preferred_element_type=f32)
    else:
        # Identity shortcut: re-read x here instead of keeping it live across
        # both conv phases.
        out = out + x_ref[...].reshape(rows, Cin)

    o_ref[...] = out


# ------------------------------ wrappers / glue ------------------------------

def _fold_bn(bn, c):
    """Fold inference-mode BatchNorm (or Identity) into per-channel scale/shift."""
    if bn is None:
        return jnp.ones((1, c), jnp.float32), jnp.zeros((1, c), jnp.float32)
    scale = bn['gamma'] / jnp.sqrt(bn['var'] + 1e-5)
    shift = bn['beta'] - bn['mean'] * scale
    return (scale.reshape(1, c).astype(jnp.float32),
            shift.reshape(1, c).astype(jnp.float32))


def preact_block_nhwc(x, p):
    """Fused PreActBlock forward. x: (N, H, W, Cin) float32, NHWC."""
    N, H, W, Cin = x.shape
    stride = int(p['stride'])
    Cmid = p['w1'].shape[-1]
    Cout = p['w2'].shape[-1]
    has_proj = 'w_sc' in p
    OH = (H + 2 - 3) // stride + 1
    OW = (W + 2 - 3) // stride + 1
    rows = OH * OW
    s1, b1 = _fold_bn(p.get('bn1'), Cin)
    s2, b2 = _fold_bn(p.get('bn2'), Cmid)
    # Pre-reshape the tap-major conv weights to im2col layout (free, wrapper side).
    w1 = p['w1'].reshape(9 * Cin, Cmid)
    w2 = p['w2'].reshape(9 * Cmid, Cout)

    kernel = functools.partial(
        _preact_block_kernel, stride=stride, has_proj=has_proj,
        H=H, W=W, OH=OH, OW=OW, Cin=Cin, Cmid=Cmid, Cout=Cout)

    in_specs = [
        pl.BlockSpec((None, H, W, Cin), lambda n: (n, 0, 0, 0)),   # x (one image)
        pl.BlockSpec((1, Cin), lambda n: (0, 0)),                  # bn1 scale
        pl.BlockSpec((1, Cin), lambda n: (0, 0)),                  # bn1 shift
        pl.BlockSpec((9 * Cin, Cmid), lambda n: (0, 0)),           # conv1 weights (bf16, im2col)
        pl.BlockSpec((1, Cmid), lambda n: (0, 0)),                 # bn2 scale
        pl.BlockSpec((1, Cmid), lambda n: (0, 0)),                 # bn2 shift
        pl.BlockSpec((9 * Cmid, Cout), lambda n: (0, 0)),          # conv2 weights (bf16, im2col)
    ]
    args = [x, s1, b1, w1, s2, b2, w2]
    if has_proj:
        in_specs.append(pl.BlockSpec((Cin, Cout), lambda n: (0, 0)))  # 1x1 projection
        args.append(p['w_sc'])

    y = pl.pallas_call(
        kernel,
        out_shape=jax.ShapeDtypeStruct((N, rows, Cout), jnp.float32),
        grid=(N,),
        in_specs=in_specs,
        out_specs=pl.BlockSpec((None, rows, Cout), lambda n: (n, 0, 0)),
        scratch_shapes=[
            pltpu.VMEM((H + 2, W + 2, Cin), jnp.float32),        # padded pre-activation
            pltpu.VMEM((OH + 2, OW + 2, Cmid), jnp.float32),     # padded conv1 output
            pltpu.VMEM((rows, 9 * Cin), jnp.bfloat16),           # conv1 im2col patch
            pltpu.VMEM((rows, 9 * Cmid), jnp.bfloat16),          # conv2 im2col patch
        ],
        compiler_params=pltpu.CompilerParams(
            dimension_semantics=("parallel",)),   # batch axis -> both v7x TCs
    )(*args)
    return y.reshape(N, OH, OW, Cout)


def preact_block_forward(x_nchw, p):
    """PyTorch-layout entry point: NCHW in -> NCHW out (PreActBlock.forward)."""
    x = jnp.transpose(x_nchw, (0, 2, 3, 1)).astype(jnp.float32)
    y = preact_block_nhwc(x, p)
    return jnp.transpose(y, (0, 3, 1, 2))


# ----------------------- pure-JAX reference (for checking) -------------------

def _ref_preact_block_nhwc(x, p):
    stride = int(p['stride'])
    Cin = x.shape[-1]
    Cmid = p['w1'].shape[-1]
    Cout = p['w2'].shape[-1]
    s1, b1 = _fold_bn(p.get('bn1'), Cin)
    s2, b2 = _fold_bn(p.get('bn2'), Cmid)
    dn = ('NHWC', 'HWIO', 'NHWC')
    pre = jnp.maximum(x * s1[0] + b1[0], 0.0).astype(jnp.bfloat16)
    h = jax.lax.conv_general_dilated(
        pre, p['w1'].reshape(3, 3, Cin, Cmid), (stride, stride), ((1, 1), (1, 1)),
        dimension_numbers=dn, preferred_element_type=jnp.float32)
    h = jnp.maximum(h * s2[0] + b2[0], 0.0).astype(jnp.bfloat16)
    h = jax.lax.conv_general_dilated(
        h, p['w2'].reshape(3, 3, Cmid, Cout), (1, 1), ((1, 1), (1, 1)),
        dimension_numbers=dn, preferred_element_type=jnp.float32)
    if 'w_sc' in p:
        pre_s = pre[:, ::stride, ::stride, :]
        n, oh, ow, _ = pre_s.shape
        sc = jnp.dot(pre_s.reshape(-1, Cin), p['w_sc'],
                     preferred_element_type=jnp.float32).reshape(n, oh, ow, Cout)
    else:
        sc = x
    return h + sc


def ref_preact_block_forward(x_nchw, p):
    x = jnp.transpose(x_nchw, (0, 2, 3, 1)).astype(jnp.float32)
    return jnp.transpose(_ref_preact_block_nhwc(x, p), (0, 3, 1, 2))


# ------------------------------ parameter init -------------------------------

def init_block_params(key, in_planes, planes, stride, enable_batchnorm=True):
    ks = jax.random.split(key, 6)

    def conv_w(k, taps, cin, cout):
        fan_in = taps * cin
        w = jax.random.normal(k, (taps, cin, cout), jnp.float32) * (2.0 / fan_in) ** 0.5
        return w.astype(jnp.bfloat16)   # bf16 weights: native MXU operand dtype

    def bn_init(k, c):
        k1, k2, k3, k4 = jax.random.split(k, 4)
        return {'gamma': 1.0 + 0.1 * jax.random.normal(k1, (c,), jnp.float32),
                'beta': 0.1 * jax.random.normal(k2, (c,), jnp.float32),
                'mean': 0.1 * jax.random.normal(k3, (c,), jnp.float32),
                'var': jnp.abs(1.0 + 0.1 * jax.random.normal(k4, (c,), jnp.float32))}

    p = {
        'stride': stride,
        'bn1': bn_init(ks[0], in_planes) if enable_batchnorm else None,
        'w1': conv_w(ks[1], 9, in_planes, planes),    # (kh*kw, Cin, Cout), tap-major
        'bn2': bn_init(ks[2], planes) if enable_batchnorm else None,
        'w2': conv_w(ks[3], 9, planes, planes),
    }
    if stride != 1 or in_planes != planes:            # 1x1 projection shortcut
        p['w_sc'] = conv_w(ks[4], 1, in_planes, planes)[0]   # (Cin, Cout)
    return p


# ----------------------------------- main -------------------------------------

if __name__ == "__main__":
    key = jax.random.PRNGKey(0)
    kx, ka, kb = jax.random.split(key, 3)

    # Small shapes consistent with the module: batch=2, 64 channels, 16x16 (NCHW).
    x = jax.random.normal(kx, (2, 64, 16, 16), jnp.float32)

    # Block A: in_planes=64, planes=64, stride=1  -> identity-shortcut path.
    pa = init_block_params(ka, 64, 64, stride=1)
    # Block B: in_planes=64, planes=128, stride=2 -> 1x1 projection-shortcut path.
    pb = init_block_params(kb, 64, 128, stride=2)

    ya = preact_block_forward(x, pa)
    yb = preact_block_forward(ya, pb)
    yb = jax.block_until_ready(yb)

    assert ya.shape == (2, 64, 16, 16), ya.shape
    assert yb.shape == (2, 128, 8, 8), yb.shape
    assert bool(jnp.all(jnp.isfinite(ya))) and bool(jnp.all(jnp.isfinite(yb)))

    # Check against a pure-JAX reference using identical bf16-operand /
    # f32-accumulation numerics (block B gets the same input as the kernel).
    ra = ref_preact_block_forward(x, pa)
    rb = ref_preact_block_forward(ya, pb)
    for got, want in ((ya, ra), (yb, rb)):
        err = float(jnp.max(jnp.abs(got - want)))
        tol = 1e-2 * (1.0 + float(jnp.max(jnp.abs(want))))
        assert err < tol, (err, tol)

    print("KERNEL_OK")
</pallas_src>

<mosaic_0001>
module attributes {stable_mosaic.version = 11 : i64} {
  func.func @_preact_block_kernel(%arg0: i32, %arg1: memref<1x16x16x64xf32, #tpu.memory_space<vmem>>, %arg2: memref<1x64xf32, #tpu.memory_space<vmem>>, %arg3: memref<1x64xf32, #tpu.memory_space<vmem>>, %arg4: memref<576x64xbf16, #tpu.memory_space<vmem>>, %arg5: memref<1x64xf32, #tpu.memory_space<vmem>>, %arg6: memref<1x64xf32, #tpu.memory_space<vmem>>, %arg7: memref<576x64xbf16, #tpu.memory_space<vmem>>, %arg8: memref<1x256x64xf32, #tpu.memory_space<vmem>>, %arg9: memref<18x18x64xf32, #tpu.memory_space<vmem>>, %arg10: memref<18x18x64xf32, #tpu.memory_space<vmem>>, %arg11: memref<256x576xbf16, #tpu.memory_space<vmem>>, %arg12: memref<256x576xbf16, #tpu.memory_space<vmem>>) attributes {dimension_semantics = [#tpu.dimension_semantics<parallel>], iteration_bounds = array<i64: 2>, scalar_prefetch = 0 : i64, scratch_operands = 4 : i64, tpu.core_type = #tpu.core_type<tc>, window_params = [{transform_indices = @transform_0, window_bounds = array<i64: 1, 16, 16, 64>}, {pipeline_mode = #tpu.pipeline_mode<synchronous>, transform_indices = @transform_1, window_bounds = array<i64: 1, 64>}, {pipeline_mode = #tpu.pipeline_mode<synchronous>, transform_indices = @transform_2, window_bounds = array<i64: 1, 64>}, {pipeline_mode = #tpu.pipeline_mode<synchronous>, transform_indices = @transform_3, window_bounds = array<i64: 576, 64>}, {pipeline_mode = #tpu.pipeline_mode<synchronous>, transform_indices = @transform_4, window_bounds = array<i64: 1, 64>}, {pipeline_mode = #tpu.pipeline_mode<synchronous>, transform_indices = @transform_5, window_bounds = array<i64: 1, 64>}, {pipeline_mode = #tpu.pipeline_mode<synchronous>, transform_indices = @transform_6, window_bounds = array<i64: 576, 64>}, {transform_indices = @transform_7, window_bounds = array<i64: 1, 256, 64>}]} {
    %c0 = arith.constant 0 : index
    %c0_0 = arith.constant 0 : index
    %c0_1 = arith.constant 0 : index
    %c0_2 = arith.constant 0 : index
    %0 = vector.load %arg1[%c0, %c0_0, %c0_1, %c0_2] : memref<1x16x16x64xf32, #tpu.memory_space<vmem>>, vector<1x16x16x64xf32>
    %1 = vector.shape_cast %0 : vector<1x16x16x64xf32> to vector<16x16x64xf32>
    %c0_3 = arith.constant 0 : index
    %c0_4 = arith.constant 0 : index
    %2 = vector.load %arg2[%c0_3, %c0_4] : memref<1x64xf32, #tpu.memory_space<vmem>>, vector<1x64xf32>
    %3 = vector.shape_cast %2 : vector<1x64xf32> to vector<1x1x64xf32>
    %4 = vector.broadcast %3 : vector<1x1x64xf32> to vector<16x16x64xf32>
    %5 = arith.mulf %1, %4 : vector<16x16x64xf32>
    %c0_5 = arith.constant 0 : index
    %c0_6 = arith.constant 0 : index
    %6 = vector.load %arg3[%c0_5, %c0_6] : memref<1x64xf32, #tpu.memory_space<vmem>>, vector<1x64xf32>
    %7 = vector.shape_cast %6 : vector<1x64xf32> to vector<1x1x64xf32>
    %8 = vector.broadcast %7 : vector<1x1x64xf32> to vector<16x16x64xf32>
    %9 = arith.addf %5, %8 : vector<16x16x64xf32>
    %cst = arith.constant 0.000000e+00 : f32
    %10 = vector.broadcast %cst : f32 to vector<16x16x64xf32>
    %11 = arith.maximumf %9, %10 : vector<16x16x64xf32>
    %cst_7 = arith.constant 0.000000e+00 : f32
    %12 = vector.broadcast %cst_7 : f32 to vector<1x18x64xf32>
    %c0_8 = arith.constant 0 : index
    %c0_9 = arith.constant 0 : index
    %c0_10 = arith.constant 0 : index
    %13 = vector.load %arg9[%c0_8, %c0_9, %c0_10] : memref<18x18x64xf32, #tpu.memory_space<vmem>>, vector<1x18x64xf32>
    tpu.vector_store %arg9[%c0_8, %c0_9, %c0_10], %12 {strides = array<i32>} : memref<18x18x64xf32, #tpu.memory_space<vmem>>, vector<1x18x64xf32>,
    %cst_11 = arith.constant 0.000000e+00 : f32
    %14 = vector.broadcast %cst_11 : f32 to vector<1x18x64xf32>
    %c17 = arith.constant 17 : index
    %c0_12 = arith.constant 0 : index
    %c0_13 = arith.constant 0 : index
    %15 = vector.load %arg9[%c17, %c0_12, %c0_13] : memref<18x18x64xf32, #tpu.memory_space<vmem>>, vector<1x18x64xf32>
    tpu.vector_store %arg9[%c17, %c0_12, %c0_13], %14 {strides = array<i32>} : memref<18x18x64xf32, #tpu.memory_space<vmem>>, vector<1x18x64xf32>,
    %cst_14 = arith.constant 0.000000e+00 : f32
    %16 = vector.broadcast %cst_14 : f32 to vector<18x1x64xf32>
    %c0_15 = arith.constant 0 : index
    %c0_16 = arith.constant 0 : index
    %c0_17 = arith.constant 0 : index
    %17 = vector.load %arg9[%c0_15, %c0_16, %c0_17] : memref<18x18x64xf32, #tpu.memory_space<vmem>>, vector<18x1x64xf32>
    tpu.vector_store %arg9[%c0_15, %c0_16, %c0_17], %16 {strides = array<i32>} : memref<18x18x64xf32, #tpu.memory_space<vmem>>, vector<18x1x64xf32>,
    %cst_18 = arith.constant 0.000000e+00 : f32
    %18 = vector.broadcast %cst_18 : f32 to vector<18x1x64xf32>
    %c0_19 = arith.constant 0 : index
    %c17_20 = arith.constant 17 : index
    %c0_21 = arith.constant 0 : index
    %19 = vector.load %arg9[%c0_19, %c17_20, %c0_21] : memref<18x18x64xf32, #tpu.memory_space<vmem>>, vector<18x1x64xf32>
    tpu.vector_store %arg9[%c0_19, %c17_20, %c0_21], %18 {strides = array<i32>} : memref<18x18x64xf32, #tpu.memory_space<vmem>>, vector<18x1x64xf32>,
    %c1 = arith.constant 1 : index
    %c1_22 = arith.constant 1 : index
    %c0_23 = arith.constant 0 : index
    %20 = vector.load %arg9[%c1, %c1_22, %c0_23] : memref<18x18x64xf32, #tpu.memory_space<vmem>>, vector<16x16x64xf32>
    tpu.vector_store %arg9[%c1, %c1_22, %c0_23], %11 {strides = array<i32>} : memref<18x18x64xf32, #tpu.memory_space<vmem>>, vector<16x16x64xf32>,
    %c0_24 = arith.constant 0 : index
    %c0_25 = arith.constant 0 : index
    %c0_26 = arith.constant 0 : index
    %21 = vector.load %arg9[%c0_24, %c0_25, %c0_26] : memref<18x18x64xf32, #tpu.memory_space<vmem>>, vector<16x16x64xf32>
    %22 = vector.shape_cast %21 : vector<16x16x64xf32> to vector<256x64xf32>
    %23 = arith.truncf %22 : vector<256x64xf32> to vector<256x64xbf16>
    %c0_27 = arith.constant 0 : index
    %c0_28 = arith.constant 0 : index
    %24 = vector.load %arg11[%c0_27, %c0_28] : memref<256x576xbf16, #tpu.memory_space<vmem>>, vector<256x64xbf16>
    tpu.vector_store %arg11[%c0_27, %c0_28], %23 {strides = array<i32>} : memref<256x576xbf16, #tpu.memory_space<vmem>>, vector<256x64xbf16>,
    %c0_29 = arith.constant 0 : index
    %c1_30 = arith.constant 1 : index
    %c0_31 = arith.constant 0 : index
    %25 = vector.load %arg9[%c0_29, %c1_30, %c0_31] : memref<18x18x64xf32, #tpu.memory_space<vmem>>, vector<16x16x64xf32>
    %26 = vector.shape_cast %25 : vector<16x16x64xf32> to vector<256x64xf32>
    %27 = arith.truncf %26 : vector<256x64xf32> to vector<256x64xbf16>
    %c0_32 = arith.constant 0 : index
    %c64 = arith.constant 64 : index
    %28 = vector.load %arg11[%c0_32, %c64] : memref<256x576xbf16, #tpu.memory_space<vmem>>, vector<256x64xbf16>
    tpu.vector_store %arg11[%c0_32, %c64], %27 {strides = array<i32>} : memref<256x576xbf16, #tpu.memory_space<vmem>>, vector<256x64xbf16>,
    %c0_33 = arith.constant 0 : index
    %c2 = arith.constant 2 : index
    %c0_34 = arith.constant 0 : index
    %29 = vector.load %arg9[%c0_33, %c2, %c0_34] : memref<18x18x64xf32, #tpu.memory_space<vmem>>, vector<16x16x64xf32>
    %30 = vector.shape_cast %29 : vector<16x16x64xf32> to vector<256x64xf32>
    %31 = arith.truncf %30 : vector<256x64xf32> to vector<256x64xbf16>
    %c0_35 = arith.constant 0 : index
    %c128 = arith.constant 128 : index
    %32 = vector.load %arg11[%c0_35, %c128] : memref<256x576xbf16, #tpu.memory_space<vmem>>, vector<256x64xbf16>
    tpu.vector_store %arg11[%c0_35, %c128], %31 {strides = array<i32>} : memref<256x576xbf16, #tpu.memory_space<vmem>>, vector<256x64xbf16>,
    %c1_36 = arith.constant 1 : index
    %c0_37 = arith.constant 0 : index
    %c0_38 = arith.constant 0 : index
    %33 = vector.load %arg9[%c1_36, %c0_37, %c0_38] : memref<18x18x64xf32, #tpu.memory_space<vmem>>, vector<16x16x64xf32>
    %34 = vector.shape_cast %33 : vector<16x16x64xf32> to vector<256x64xf32>
    %35 = arith.truncf %34 : vector<256x64xf32> to vector<256x64xbf16>
    %c0_39 = arith.constant 0 : index
    %c192 = arith.constant 192 : index
    %36 = vector.load %arg11[%c0_39, %c192] : memref<256x576xbf16, #tpu.memory_space<vmem>>, vector<256x64xbf16>
    tpu.vector_store %arg11[%c0_39, %c192], %35 {strides = array<i32>} : memref<256x576xbf16, #tpu.memory_space<vmem>>, vector<256x64xbf16>,
    %c1_40 = arith.constant 1 : index
    %c1_41 = arith.constant 1 : index
    %c0_42 = arith.constant 0 : index
    %37 = vector.load %arg9[%c1_40, %c1_41, %c0_42] : memref<18x18x64xf32, #tpu.memory_space<vmem>>, vector<16x16x64xf32>
    %38 = vector.shape_cast %37 : vector<16x16x64xf32> to vector<256x64xf32>
    %39 = arith.truncf %38 : vector<256x64xf32> to vector<256x64xbf16>
    %c0_43 = arith.constant 0 : index
    %c256 = arith.constant 256 : index
    %40 = vector.load %arg11[%c0_43, %c256] : memref<256x576xbf16, #tpu.memory_space<vmem>>, vector<256x64xbf16>
    tpu.vector_store %arg11[%c0_43, %c256], %39 {strides = array<i32>} : memref<256x576xbf16, #tpu.memory_space<vmem>>, vector<256x64xbf16>,
    %c1_44 = arith.constant 1 : index
    %c2_45 = arith.constant 2 : index
    %c0_46 = arith.constant 0 : index
    %41 = vector.load %arg9[%c1_44, %c2_45, %c0_46] : memref<18x18x64xf32, #tpu.memory_space<vmem>>, vector<16x16x64xf32>
    %42 = vector.shape_cast %41 : vector<16x16x64xf32> to vector<256x64xf32>
    %43 = arith.truncf %42 : vector<256x64xf32> to vector<256x64xbf16>
    %c0_47 = arith.constant 0 : index
    %c320 = arith.constant 320 : index
    %44 = vector.load %arg11[%c0_47, %c320] : memref<256x576xbf16, #tpu.memory_space<vmem>>, vector<256x64xbf16>
    tpu.vector_store %arg11[%c0_47, %c320], %43 {strides = array<i32>} : memref<256x576xbf16, #tpu.memory_space<vmem>>, vector<256x64xbf16>,
    %c2_48 = arith.constant 2 : index
    %c0_49 = arith.constant 0 : index
    %c0_50 = arith.constant 0 : index
    %45 = vector.load %arg9[%c2_48, %c0_49, %c0_50] : memref<18x18x64xf32, #tpu.memory_space<vmem>>, vector<16x16x64xf32>
    %46 = vector.shape_cast %45 : vector<16x16x64xf32> to vector<256x64xf32>
    %47 = arith.truncf %46 : vector<256x64xf32> to vector<256x64xbf16>
    %c0_51 = arith.constant 0 : index
    %c384 = arith.constant 384 : index
    %48 = vector.load %arg11[%c0_51, %c384] : memref<256x576xbf16, #tpu.memory_space<vmem>>, vector<256x64xbf16>
    tpu.vector_store %arg11[%c0_51, %c384], %47 {strides = array<i32>} : memref<256x576xbf16, #tpu.memory_space<vmem>>, vector<256x64xbf16>,
    %c2_52 = arith.constant 2 : index
    %c1_53 = arith.constant 1 : index
    %c0_54 = arith.constant 0 : index
    %49 = vector.load %arg9[%c2_52, %c1_53, %c0_54] : memref<18x18x64xf32, #tpu.memory_space<vmem>>, vector<16x16x64xf32>
    %50 = vector.shape_cast %49 : vector<16x16x64xf32> to vector<256x64xf32>
    %51 = arith.truncf %50 : vector<256x64xf32> to vector<256x64xbf16>
    %c0_55 = arith.constant 0 : index
    %c448 = arith.constant 448 : index
    %52 = vector.load %arg11[%c0_55, %c448] : memref<256x576xbf16, #tpu.memory_space<vmem>>, vector<256x64xbf16>
    tpu.vector_store %arg11[%c0_55, %c448], %51 {strides = array<i32>} : memref<256x576xbf16, #tpu.memory_space<vmem>>, vector<256x64xbf16>,
    %c2_56 = arith.constant 2 : index
    %c2_57 = arith.constant 2 : index
    %c0_58 = arith.constant 0 : index
    %53 = vector.load %arg9[%c2_56, %c2_57, %c0_58] : memref<18x18x64xf32, #tpu.memory_space<vmem>>, vector<16x16x64xf32>
    %54 = vector.shape_cast %53 : vector<16x16x64xf32> to vector<256x64xf32>
    %55 = arith.truncf %54 : vector<256x64xf32> to vector<256x64xbf16>
    %c0_59 = arith.constant 0 : index
    %c512 = arith.constant 512 : index
    %56 = vector.load %arg11[%c0_59, %c512] : memref<256x576xbf16, #tpu.memory_space<vmem>>, vector<256x64xbf16>
    tpu.vector_store %arg11[%c0_59, %c512], %55 {strides = array<i32>} : memref<256x576xbf16, #tpu.memory_space<vmem>>, vector<256x64xbf16>,
    %c0_60 = arith.constant 0 : index
    %c0_61 = arith.constant 0 : index
    %57 = vector.load %arg11[%c0_60, %c0_61] : memref<256x576xbf16, #tpu.memory_space<vmem>>, vector<256x576xbf16>
    %c0_62 = arith.constant 0 : index
    %c0_63 = arith.constant 0 : index
    %58 = vector.load %arg4[%c0_62, %c0_63] : memref<576x64xbf16, #tpu.memory_space<vmem>>, vector<576x64xbf16>
    %cst_64 = arith.constant dense<0.000000e+00> : vector<256x64xf32>
    %59 = tpu.matmul %57, %58, %cst_64 {dimension_numbers = #tpu.dot_dimension_numbers<[1], [0], [0], [1], [0, 0, 1, 1], [], []>} : vector<256x576xbf16>, vector<576x64xbf16>, vector<256x64xf32> -> vector<256x64xf32>
    %c0_65 = arith.constant 0 : index
    %c0_66 = arith.constant 0 : index
    %60 = vector.load %arg5[%c0_65, %c0_66] : memref<1x64xf32, #tpu.memory_space<vmem>>, vector<1x64xf32>
    %61 = vector.broadcast %60 : vector<1x64xf32> to vector<256x64xf32>
    %62 = arith.mulf %59, %61 : vector<256x64xf32>
    %c0_67 = arith.constant 0 : index
    %c0_68 = arith.constant 0 : index
    %63 = vector.load %arg6[%c0_67, %c0_68] : memref<1x64xf32, #tpu.memory_space<vmem>>, vector<1x64xf32>
    %64 = vector.broadcast %63 : vector<1x64xf32> to vector<256x64xf32>
    %65 = arith.addf %62, %64 : vector<256x64xf32>
    %cst_69 = arith.constant 0.000000e+00 : f32
    %66 = vector.broadcast %cst_69 : f32 to vector<256x64xf32>
    %67 = arith.maximumf %65, %66 : vector<256x64xf32>
    %cst_70 = arith.constant 0.000000e+00 : f32
    %68 = vector.broadcast %cst_70 : f32 to vector<1x18x64xf32>
    %c0_71 = arith.constant 0 : index
    %c0_72 = arith.constant 0 : index
    %c0_73 = arith.constant 0 : index
    %69 = vector.load %arg10[%c0_71, %c0_72, %c0_73] : memref<18x18x64xf32, #tpu.memory_space<vmem>>, vector<1x18x64xf32>
    tpu.vector_store %arg10[%c0_71, %c0_72, %c0_73], %68 {strides = array<i32>} : memref<18x18x64xf32, #tpu.memory_space<vmem>>, vector<1x18x64xf32>,
    %cst_74 = arith.constant 0.000000e+00 : f32
    %70 = vector.broadcast %cst_74 : f32 to vector<1x18x64xf32>
    %c17_75 = arith.constant 17 : index
    %c0_76 = arith.constant 0 : index
    %c0_77 = arith.constant 0 : index
    %71 = vector.load %arg10[%c17_75, %c0_76, %c0_77] : memref<18x18x64xf32, #tpu.memory_space<vmem>>, vector<1x18x64xf32>
    tpu.vector_store %arg10[%c17_75, %c0_76, %c0_77], %70 {strides = array<i32>} : memref<18x18x64xf32, #tpu.memory_space<vmem>>, vector<1x18x64xf32>,
    %cst_78 = arith.constant 0.000000e+00 : f32
    %72 = vector.broadcast %cst_78 : f32 to vector<18x1x64xf32>
    %c0_79 = arith.constant 0 : index
    %c0_80 = arith.constant 0 : index
    %c0_81 = arith.constant 0 : index
    %73 = vector.load %arg10[%c0_79, %c0_80, %c0_81] : memref<18x18x64xf32, #tpu.memory_space<vmem>>, vector<18x1x64xf32>
    tpu.vector_store %arg10[%c0_79, %c0_80, %c0_81], %72 {strides = array<i32>} : memref<18x18x64xf32, #tpu.memory_space<vmem>>, vector<18x1x64xf32>,
    %cst_82 = arith.constant 0.000000e+00 : f32
    %74 = vector.broadcast %cst_82 : f32 to vector<18x1x64xf32>
    %c0_83 = arith.constant 0 : index
    %c17_84 = arith.constant 17 : index
    %c0_85 = arith.constant 0 : index
    %75 = vector.load %arg10[%c0_83, %c17_84, %c0_85] : memref<18x18x64xf32, #tpu.memory_space<vmem>>, vector<18x1x64xf32>
    tpu.vector_store %arg10[%c0_83, %c17_84, %c0_85], %74 {strides = array<i32>} : memref<18x18x64xf32, #tpu.memory_space<vmem>>, vector<18x1x64xf32>,
    %76 = vector.shape_cast %67 : vector<256x64xf32> to vector<16x16x64xf32>
    %c1_86 = arith.constant 1 : index
    %c1_87 = arith.constant 1 : index
    %c0_88 = arith.constant 0 : index
    %77 = vector.load %arg10[%c1_86, %c1_87, %c0_88] : memref<18x18x64xf32, #tpu.memory_space<vmem>>, vector<16x16x64xf32>
    tpu.vector_store %arg10[%c1_86, %c1_87, %c0_88], %76 {strides = array<i32>} : memref<18x18x64xf32, #tpu.memory_space<vmem>>, vector<16x16x64xf32>,
    %c0_89 = arith.constant 0 : index
    %c0_90 = arith.constant 0 : index
    %c0_91 = arith.constant 0 : index
    %78 = vector.load %arg10[%c0_89, %c0_90, %c0_91] : memref<18x18x64xf32, #tpu.memory_space<vmem>>, vector<16x16x64xf32>
    %79 = vector.shape_cast %78 : vector<16x16x64xf32> to vector<256x64xf32>
    %80 = arith.truncf %79 : vector<256x64xf32> to vector<256x64xbf16>
    %c0_92 = arith.constant 0 : index
    %c0_93 = arith.constant 0 : index
    %81 = vector.load %arg12[%c0_92, %c0_93] : memref<256x576xbf16, #tpu.memory_space<vmem>>, vector<256x64xbf16>
    tpu.vector_store %arg12[%c0_92, %c0_93], %80 {strides = array<i32>} : memref<256x576xbf16, #tpu.memory_space<vmem>>, vector<256x64xbf16>,
    %c0_94 = arith.constant 0 : index
    %c1_95 = arith.constant 1 : index
    %c0_96 = arith.constant 0 : index
    %82 = vector.load %arg10[%c0_94, %c1_95, %c0_96] : memref<18x18x64xf32, #tpu.memory_space<vmem>>, vector<16x16x64xf32>
    %83 = vector.shape_cast %82 : vector<16x16x64xf32> to vector<256x64xf32>
    %84 = arith.truncf %83 : vector<256x64xf32> to vector<256x64xbf16>
    %c0_97 = arith.constant 0 : index
    %c64_98 = arith.constant 64 : index
    %85 = vector.load %arg12[%c0_97, %c64_98] : memref<256x576xbf16, #tpu.memory_space<vmem>>, vector<256x64xbf16>
    tpu.vector_store %arg12[%c0_97, %c64_98], %84 {strides = array<i32>} : memref<256x576xbf16, #tpu.memory_space<vmem>>, vector<256x64xbf16>,
    %c0_99 = arith.constant 0 : index
    %c2_100 = arith.constant 2 : index
    %c0_101 = arith.constant 0 : index
    %86 = vector.load %arg10[%c0_99, %c2_100, %c0_101] : memref<18x18x64xf32, #tpu.memory_space<vmem>>, vector<16x16x64xf32>
    %87 = vector.shape_cast %86 : vector<16x16x64xf32> to vector<256x64xf32>
    %88 = arith.truncf %87 : vector<256x64xf32> to vector<256x64xbf16>
    %c0_102 = arith.constant 0 : index
    %c128_103 = arith.constant 128 : index
    %89 = vector.load %arg12[%c0_102, %c128_103] : memref<256x576xbf16, #tpu.memory_space<vmem>>, vector<256x64xbf16>
    tpu.vector_store %arg12[%c0_102, %c128_103], %88 {strides = array<i32>} : memref<256x576xbf16, #tpu.memory_space<vmem>>, vector<256x64xbf16>,
    %c1_104 = arith.constant 1 : index
    %c0_105 = arith.constant 0 : index
    %c0_106 = arith.constant 0 : index
    %90 = vector.load %arg10[%c1_104, %c0_105, %c0_106] : memref<18x18x64xf32, #tpu.memory_space<vmem>>, vector<16x16x64xf32>
    %91 = vector.shape_cast %90 : vector<16x16x64xf32> to vector<256x64xf32>
    %92 = arith.truncf %91 : vector<256x64xf32> to vector<256x64xbf16>
    %c0_107 = arith.constant 0 : index
    %c192_108 = arith.constant 192 : index
    %93 = vector.load %arg12[%c0_107, %c192_108] : memref<256x576xbf16, #tpu.memory_space<vmem>>, vector<256x64xbf16>
    tpu.vector_store %arg12[%c0_107, %c192_108], %92 {strides = array<i32>} : memref<256x576xbf16, #tpu.memory_space<vmem>>, vector<256x64xbf16>,
    %c1_109 = arith.constant 1 : index
    %c1_110 = arith.constant 1 : index
    %c0_111 = arith.constant 0 : index
    %94 = vector.load %arg10[%c1_109, %c1_110, %c0_111] : memref<18x18x64xf32, #tpu.memory_space<vmem>>, vector<16x16x64xf32>
    %95 = vector.shape_cast %94 : vector<16x16x64xf32> to vector<256x64xf32>
    %96 = arith.truncf %95 : vector<256x64xf32> to vector<256x64xbf16>
    %c0_112 = arith.constant 0 : index
    %c256_113 = arith.constant 256 : index
    %97 = vector.load %arg12[%c0_112, %c256_113] : memref<256x576xbf16, #tpu.memory_space<vmem>>, vector<256x64xbf16>
    tpu.vector_store %arg12[%c0_112, %c256_113], %96 {strides = array<i32>} : memref<256x576xbf16, #tpu.memory_space<vmem>>, vector<256x64xbf16>,
    %c1_114 = arith.constant 1 : index
    %c2_115 = arith.constant 2 : index
    %c0_116 = arith.constant 0 : index
    %98 = vector.load %arg10[%c1_114, %c2_115, %c0_116] : memref<18x18x64xf32, #tpu.memory_space<vmem>>, vector<16x16x64xf32>
    %99 = vector.shape_cast %98 : vector<16x16x64xf32> to vector<256x64xf32>
    %100 = arith.truncf %99 : vector<256x64xf32> to vector<256x64xbf16>
    %c0_117 = arith.constant 0 : index
    %c320_118 = arith.constant 320 : index
    %101 = vector.load %arg12[%c0_117, %c320_118] : memref<256x576xbf16, #tpu.memory_space<vmem>>, vector<256x64xbf16>
    tpu.vector_store %arg12[%c0_117, %c320_118], %100 {strides = array<i32>} : memref<256x576xbf16, #tpu.memory_space<vmem>>, vector<256x64xbf16>,
    %c2_119 = arith.constant 2 : index
    %c0_120 = arith.constant 0 : index
    %c0_121 = arith.constant 0 : index
    %102 = vector.load %arg10[%c2_119, %c0_120, %c0_121] : memref<18x18x64xf32, #tpu.memory_space<vmem>>, vector<16x16x64xf32>
    %103 = vector.shape_cast %102 : vector<16x16x64xf32> to vector<256x64xf32>
    %104 = arith.truncf %103 : vector<256x64xf32> to vector<256x64xbf16>
    %c0_122 = arith.constant 0 : index
    %c384_123 = arith.constant 384 : index
    %105 = vector.load %arg12[%c0_122, %c384_123] : memref<256x576xbf16, #tpu.memory_space<vmem>>, vector<256x64xbf16>
    tpu.vector_store %arg12[%c0_122, %c384_123], %104 {strides = array<i32>} : memref<256x576xbf16, #tpu.memory_space<vmem>>, vector<256x64xbf16>,
    %c2_124 = arith.constant 2 : index
    %c1_125 = arith.constant 1 : index
    %c0_126 = arith.constant 0 : index
    %106 = vector.load %arg10[%c2_124, %c1_125, %c0_126] : memref<18x18x64xf32, #tpu.memory_space<vmem>>, vector<16x16x64xf32>
    %107 = vector.shape_cast %106 : vector<16x16x64xf32> to vector<256x64xf32>
    %108 = arith.truncf %107 : vector<256x64xf32> to vector<256x64xbf16>
    %c0_127 = arith.constant 0 : index
    %c448_128 = arith.constant 448 : index
    %109 = vector.load %arg12[%c0_127, %c448_128] : memref<256x576xbf16, #tpu.memory_space<vmem>>, vector<256x64xbf16>
    tpu.vector_store %arg12[%c0_127, %c448_128], %108 {strides = array<i32>} : memref<256x576xbf16, #tpu.memory_space<vmem>>, vector<256x64xbf16>,
    %c2_129 = arith.constant 2 : index
    %c2_130 = arith.constant 2 : index
    %c0_131 = arith.constant 0 : index
    %110 = vector.load %arg10[%c2_129, %c2_130, %c0_131] : memref<18x18x64xf32, #tpu.memory_space<vmem>>, vector<16x16x64xf32>
    %111 = vector.shape_cast %110 : vector<16x16x64xf32> to vector<256x64xf32>
    %112 = arith.truncf %111 : vector<256x64xf32> to vector<256x64xbf16>
    %c0_132 = arith.constant 0 : index
    %c512_133 = arith.constant 512 : index
    %113 = vector.load %arg12[%c0_132, %c512_133] : memref<256x576xbf16, #tpu.memory_space<vmem>>, vector<256x64xbf16>
    tpu.vector_store %arg12[%c0_132, %c512_133], %112 {strides = array<i32>} : memref<256x576xbf16, #tpu.memory_space<vmem>>, vector<256x64xbf16>,
    %c0_134 = arith.constant 0 : index
    %c0_135 = arith.constant 0 : index
    %114 = vector.load %arg12[%c0_134, %c0_135] : memref<256x576xbf16, #tpu.memory_space<vmem>>, vector<256x576xbf16>
    %c0_136 = arith.constant 0 : index
    %c0_137 = arith.constant 0 : index
    %115 = vector.load %arg7[%c0_136, %c0_137] : memref<576x64xbf16, #tpu.memory_space<vmem>>, vector<576x64xbf16>
    %cst_138 = arith.constant dense<0.000000e+00> : vector<256x64xf32>
    %116 = tpu.matmul %114, %115, %cst_138 {dimension_numbers = #tpu.dot_dimension_numbers<[1], [0], [0], [1], [0, 0, 1, 1], [], []>} : vector<256x576xbf16>, vector<576x64xbf16>, vector<256x64xf32> -> vector<256x64xf32>
    %c0_139 = arith.constant 0 : index
    %c0_140 = arith.constant 0 : index
    %c0_141 = arith.constant 0 : index
    %c0_142 = arith.constant 0 : index
    %117 = vector.load %arg1[%c0_139, %c0_140, %c0_141, %c0_142] : memref<1x16x16x64xf32, #tpu.memory_space<vmem>>, vector<1x16x16x64xf32>
    %118 = vector.shape_cast %117 : vector<1x16x16x64xf32> to vector<16x16x64xf32>
    %119 = vector.shape_cast %118 : vector<16x16x64xf32> to vector<256x64xf32>
    %120 = arith.addf %116, %119 : vector<256x64xf32>
    %c0_143 = arith.constant 0 : index
    %c0_144 = arith.constant 0 : index
    %c0_145 = arith.constant 0 : index
    %121 = vector.load %arg8[%c0_143, %c0_144, %c0_145] : memref<1x256x64xf32, #tpu.memory_space<vmem>>, vector<1x256x64xf32>
    %122 = vector.shape_cast %121 : vector<1x256x64xf32> to vector<256x64xf32>
    %123 = vector.shape_cast %120 : vector<256x64xf32> to vector<1x256x64xf32>
    tpu.vector_store %arg8[%c0_143, %c0_144, %c0_145], %123 {strides = array<i32>} : memref<1x256x64xf32, #tpu.memory_space<vmem>>, vector<1x256x64xf32>,
    return
  }
  func.func @transform_0(%arg0: i32) -> (i32, i32, i32, i32) {
    %c0_i32 = arith.constant 0 : i32
    %c0_i32_0 = arith.constant 0 : i32
    %c0_i32_1 = arith.constant 0 : i32
    %c0_i32_2 = arith.constant 0 : i32
    return %arg0, %c0_i32, %c0_i32_0, %c0_i32_1 : i32, i32, i32, i32
  }
  func.func @transform_1(%arg0: i32) -> (i32, i32) {
    %c0_i32 = arith.constant 0 : i32
    %c0_i32_0 = arith.constant 0 : i32
    %c0_i32_1 = arith.constant 0 : i32
    return %c0_i32, %c0_i32_0 : i32, i32
  }
  func.func @transform_2(%arg0: i32) -> (i32, i32) {
    %c0_i32 = arith.constant 0 : i32
    %c0_i32_0 = arith.constant 0 : i32
    %c0_i32_1 = arith.constant 0 : i32
    return %c0_i32, %c0_i32_0 : i32, i32
  }
  func.func @transform_3(%arg0: i32) -> (i32, i32) {
    %c0_i32 = arith.constant 0 : i32
    %c0_i32_0 = arith.constant 0 : i32
    %c0_i32_1 = arith.constant 0 : i32
    return %c0_i32, %c0_i32_0 : i32, i32
  }
  func.func @transform_4(%arg0: i32) -> (i32, i32) {
    %c0_i32 = arith.constant 0 : i32
    %c0_i32_0 = arith.constant 0 : i32
    %c0_i32_1 = arith.constant 0 : i32
    return %c0_i32, %c0_i32_0 : i32, i32
  }
  func.func @transform_5(%arg0: i32) -> (i32, i32) {
    %c0_i32 = arith.constant 0 : i32
    %c0_i32_0 = arith.constant 0 : i32
    %c0_i32_1 = arith.constant 0 : i32
    return %c0_i32, %c0_i32_0 : i32, i32
  }
  func.func @transform_6(%arg0: i32) -> (i32, i32) {
    %c0_i32 = arith.constant 0 : i32
    %c0_i32_0 = arith.constant 0 : i32
    %c0_i32_1 = arith.constant 0 : i32
    return %c0_i32, %c0_i32_0 : i32, i32
  }
  func.func @transform_7(%arg0: i32) -> (i32, i32, i32) {
    %c0_i32 = arith.constant 0 : i32
    %c0_i32_0 = arith.constant 0 : i32
    %c0_i32_1 = arith.constant 0 : i32
    return %arg0, %c0_i32, %c0_i32_0 : i32, i32, i32
  }
}

</mosaic_0001>

<llo_original>
// kernel: tpu_custom_call.1
$region0: #{tpu_custom_call.1}
  #allocation0 [shape = 'u32[]', space=smem, size = 0x4, offset = 0x4, fixed_abs, tag = 'smem constant byte address 0x4 - core index']
  #allocation1 [shape = 'u32[144,128]{1,0:T(1,128)}', space=vmem, size = 0x12000, scoped, tag = 'internal scratch']
  #allocation2 [shape = 'f32[18,18,64]{2,1,0:T(8,128)}', space=vmem, size = 0x36000, scoped, tag = 'scratch operand']
  #allocation3 [shape = 'f32[18,18,64]{2,1,0:T(8,128)}', space=vmem, size = 0x36000, scoped, tag = 'scratch operand']
  #allocation4 [shape = 'bf16[256,576]{1,0:T(8,128)(2,1)}', space=vmem, size = 0x50000, scoped, tag = 'scratch operand']
  #allocation5 [shape = 'bf16[256,576]{1,0:T(8,128)(2,1)}', space=vmem, size = 0x50000, scoped, tag = 'scratch operand']
  %s0 = inlined_call_operand.vmem [shape: f32[2,16,16,64], index: 0, kind: input, shape index: {}]
  %s1 = inlined_call_operand.vmem [shape: f32[1,64], index: 1, kind: input, shape index: {}]
  %s2 = inlined_call_operand.vmem [shape: f32[1,64], index: 2, kind: input, shape index: {}]
  %s3 = inlined_call_operand.vmem [shape: bf16[576,64], index: 3, kind: input, shape index: {}]
  %s4 = inlined_call_operand.vmem [shape: f32[1,64], index: 4, kind: input, shape index: {}]
  %s5 = inlined_call_operand.vmem [shape: f32[1,64], index: 5, kind: input, shape index: {}]
  %s6 = inlined_call_operand.vmem [shape: bf16[576,64], index: 6, kind: input, shape index: {}]
  %s7 = inlined_call_operand.vmem [shape: f32[2,256,64], index: 7, kind: output, shape index: {}]
  %s8 = sld [smem:[#allocation0]]
  $region61: #{tpu_custom_call.1} parent=0
    _
  %s10 = ssub.s32 1, %s8
  %s11 = scalar_select 0, %s10, %s8
  loop: start=0, step=1, limit=4
  $region2: #{tpu_custom_call.1} parent=0 // loop_pre_header
    _
  $region3: #{tpu_custom_call.1} parent=0 // loop_header
    %s13 = sphi 0, %s17
    %p14 = scmp.ge.s32.totalorder %s13, 4
    %s23 = sphi 0, %s25
    %s26 = sphi 0, %s23
    %s27 = sphi 0, %s26
    %s43 = sphi 0, %s27
    %s47 = sphi 0, %s47
    %s49 = sphi 0, %s47
    %s50 = sphi 0, %s49
    %s64 = sphi 0, %s50
    %s68 = sphi 0, %s68
    %s70 = sphi 0, %s68
    %s71 = sphi 0, %s70
    %s85 = sphi 0, %s71
    %s89 = sphi 0, %s89
    %s91 = sphi 0, %s89
    %s92 = sphi 0, %s91
    %s106 = sphi 0, %s92
    %s110 = sphi 0, %s110
    %s112 = sphi 0, %s110
    %s113 = sphi 0, %s112
    %s127 = sphi 0, %s113
    %s131 = sphi 0, %s131
    %s133 = sphi 0, %s131
    %s134 = sphi 0, %s133
    %s148 = sphi 0, %s134
    %s152 = sphi 0, %s152
    %s154 = sphi 0, %s152
    %s155 = sphi 0, %s154
    %s169 = sphi 0, %s155
    %s175 = sphi 0, %s177
    %s178 = sphi 0, %s175
    %s179 = sphi 0, %s178
    %s195 = sphi 0, %s179
  $region4: #{tpu_custom_call.1} parent=0 // loop_header_branch
    %16 = sbr.rel (%p14) target = $region8
  $region5: #{tpu_custom_call.1} parent=0 // loop_body
    %s18 = ssub.s32 %s13, 1
    %s19 = ssub.s32 %s13, 2
    %s20 = sadd.s32 %s13, 1
    %s21 = ssub.s32 %s13, %s20
    %p22 = scmp.eq.s32.totalorder %s21, 0
    %s24 = sadd.s32 %s23, 1
    %s25 = scalar_select %p22, %s23, %s24
    %p28 = pneg %p22
    %p29 = scmp.eq.s32.totalorder %s13, 1
    %p30 = por %p28, %p29
    %p31 = scmp.ne.s32.totalorder %s23, %s26
    %p32 = scmp.eq.s32.totalorder %s13, 0
    %p33 = por %p31, %p32
    %p34 = scmp.ne.s32.totalorder %s23, %s26
    %p35 = scmp.eq.s32.totalorder %s18, 1
    %p36 = por %p34, %p35
    %p37 = scmp.ne.s32.totalorder %s26, %s27
    %p38 = scmp.eq.s32.totalorder %s18, 0
    %p39 = por %p37, %p38
    %p40 = scmp.ne.s32.totalorder %s26, %s27
    %p41 = scmp.eq.s32.totalorder %s19, 1
    %p42 = por %p40, %p41
    %p44 = scmp.ne.s32.totalorder %s27, %s43
    %p45 = scmp.eq.s32.totalorder %s19, 0
    %p46 = por %p44, %p45
    %s48 = sadd.s32 %s47, 1
    %p51 = scmp.eq.s32.totalorder %s13, 1
    %p52 = scmp.ne.s32.totalorder %s47, %s49
    %p53 = scmp.eq.s32.totalorder %s13, 0
    %p54 = por %p52, %p53
    %p55 = scmp.ne.s32.totalorder %s47, %s49
    %p56 = scmp.eq.s32.totalorder %s18, 1
    %p57 = por %p55, %p56
    %p58 = scmp.ne.s32.totalorder %s49, %s50
    %p59 = scmp.eq.s32.totalorder %s18, 0
    %p60 = por %p58, %p59
    %p61 = scmp.ne.s32.totalorder %s49, %s50
    %p62 = scmp.eq.s32.totalorder %s19, 1
    %p63 = por %p61, %p62
    %p65 = scmp.ne.s32.totalorder %s50, %s64
    %p66 = scmp.eq.s32.totalorder %s19, 0
    %p67 = por %p65, %p66
    %s69 = sadd.s32 %s68, 1
    %p72 = scmp.eq.s32.totalorder %s13, 1
    %p73 = scmp.ne.s32.totalorder %s68, %s70
    %p74 = scmp.eq.s32.totalorder %s13, 0
    %p75 = por %p73, %p74
    %p76 = scmp.ne.s32.totalorder %s68, %s70
    %p77 = scmp.eq.s32.totalorder %s18, 1
    %p78 = por %p76, %p77
    %p79 = scmp.ne.s32.totalorder %s70, %s71
    %p80 = scmp.eq.s32.totalorder %s18, 0
    %p81 = por %p79, %p80
    %p82 = scmp.ne.s32.totalorder %s70, %s71
    %p83 = scmp.eq.s32.totalorder %s19, 1
    %p84 = por %p82, %p83
    %p86 = scmp.ne.s32.totalorder %s71, %s85
    %p87 = scmp.eq.s32.totalorder %s19, 0
    %p88 = por %p86, %p87
    %s90 = sadd.s32 %s89, 1
    %p93 = scmp.eq.s32.totalorder %s13, 1
    %p94 = scmp.ne.s32.totalorder %s89, %s91
    %p95 = scmp.eq.s32.totalorder %s13, 0
    %p96 = por %p94, %p95
    %p97 = scmp.ne.s32.totalorder %s89, %s91
    %p98 = scmp.eq.s32.totalorder %s18, 1
    %p99 = por %p97, %p98
    %p100 = scmp.ne.s32.totalorder %s91, %s92
    %p101 = scmp.eq.s32.totalorder %s18, 0
    %p102 = por %p100, %p101
    %p103 = scmp.ne.s32.totalorder %s91, %s92
    %p104 = scmp.eq.s32.totalorder %s19, 1
    %p105 = por %p103, %p104
    %p107 = scmp.ne.s32.totalorder %s92, %s106
    %p108 = scmp.eq.s32.totalorder %s19, 0
    %p109 = por %p107, %p108
    %s111 = sadd.s32 %s110, 1
    %p114 = scmp.eq.s32.totalorder %s13, 1
    %p115 = scmp.ne.s32.totalorder %s110, %s112
    %p116 = scmp.eq.s32.totalorder %s13, 0
    %p117 = por %p115, %p116
    %p118 = scmp.ne.s32.totalorder %s110, %s112
    %p119 = scmp.eq.s32.totalorder %s18, 1
    %p120 = por %p118, %p119
    %p121 = scmp.ne.s32.totalorder %s112, %s113
    %p122 = scmp.eq.s32.totalorder %s18, 0
    %p123 = por %p121, %p122
    %p124 = scmp.ne.s32.totalorder %s112, %s113
    %p125 = scmp.eq.s32.totalorder %s19, 1
    %p126 = por %p124, %p125
    %p128 = scmp.ne.s32.totalorder %s113, %s127
    %p129 = scmp.eq.s32.totalorder %s19, 0
    %p130 = por %p128, %p129
    %s132 = sadd.s32 %s131, 1
    %p135 = scmp.eq.s32.totalorder %s13, 1
    %p136 = scmp.ne.s32.totalorder %s131, %s133
    %p137 = scmp.eq.s32.totalorder %s13, 0
    %p138 = por %p136, %p137
    %p139 = scmp.ne.s32.totalorder %s131, %s133
    %p140 = scmp.eq.s32.totalorder %s18, 1
    %p141 = por %p139, %p140
    %p142 = scmp.ne.s32.totalorder %s133, %s134
    %p143 = scmp.eq.s32.totalorder %s18, 0
    %p144 = por %p142, %p143
    %p145 = scmp.ne.s32.totalorder %s133, %s134
    %p146 = scmp.eq.s32.totalorder %s19, 1
    %p147 = por %p145, %p146
    %p149 = scmp.ne.s32.totalorder %s134, %s148
    %p150 = scmp.eq.s32.totalorder %s19, 0
    %p151 = por %p149, %p150
    %s153 = sadd.s32 %s152, 1
    %p156 = scmp.eq.s32.totalorder %s13, 1
    %p157 = scmp.ne.s32.totalorder %s152, %s154
    %p158 = scmp.eq.s32.totalorder %s13, 0
    %p159 = por %p157, %p158
    %p160 = scmp.ne.s32.totalorder %s152, %s154
    %p161 = scmp.eq.s32.totalorder %s18, 1
    %p162 = por %p160, %p161
    %p163 = scmp.ne.s32.totalorder %s154, %s155
    %p164 = scmp.eq.s32.totalorder %s18, 0
    %p165 = por %p163, %p164
    %p166 = scmp.ne.s32.totalorder %s154, %s155
    %p167 = scmp.eq.s32.totalorder %s19, 1
    %p168 = por %p166, %p167
    %p170 = scmp.ne.s32.totalorder %s155, %s169
    %p171 = scmp.eq.s32.totalorder %s19, 0
    %p172 = por %p170, %p171
    %s173 = ssub.s32 %s13, %s20
    %p174 = scmp.eq.s32.totalorder %s173, 0
    %s176 = sadd.s32 %s175, 1
    %s177 = scalar_select %p174, %s175, %s176
    %p180 = pneg %p174
    %p181 = scmp.eq.s32.totalorder %s13, 1
    %p182 = por %p180, %p181
    %p183 = scmp.ne.s32.totalorder %s175, %s178
    %p184 = scmp.eq.s32.totalorder %s13, 0
    %p185 = por %p183, %p184
    %p186 = scmp.ne.s32.totalorder %s175, %s178
    %p187 = scmp.eq.s32.totalorder %s18, 1
    %p188 = por %p186, %p187
    %p189 = scmp.ne.s32.totalorder %s178, %s179
    %p190 = scmp.eq.s32.totalorder %s18, 0
    %p191 = por %p189, %p190
    %p192 = scmp.ne.s32.totalorder %s178, %s179
    %p193 = scmp.eq.s32.totalorder %s19, 1
    %p194 = por %p192, %p193
    %p196 = scmp.ne.s32.totalorder %s179, %s195
    %p197 = scmp.eq.s32.totalorder %s19, 0
    %p198 = por %p196, %p197
    %p199 = scmp.le.s32.totalorder 1, %s13
    %p200 = scmp.lt.s32.totalorder %s13, 3
    %p201 = pnand %p199, %p200
    %p202 = pneg %p201
    // Predicated region
    $region9: #{tpu_custom_call.1} parent=5 // pred_check
      _
    $region10: #{tpu_custom_call.1} parent=5 // pred_check_branch
      %204 = sbr.rel (%p201) target = $region12
    $region11: #{tpu_custom_call.1} parent=5 // pred_region
      %s205 = ssub.s32 %s13, 1
      // Predicated region
      $region13: #{tpu_custom_call.1} parent=11 // pred_check
        %p206 = pneg %p60
      $region14: #{tpu_custom_call.1} parent=11 // pred_check_branch
        %208 = sbr.rel (%p206) target = $region16
      $region15: #{tpu_custom_call.1} parent=11 // pred_region
        _
      $region16: #{tpu_custom_call.1} parent=11 // pred_fallthru
        _
      // Predicated region
      $region17: #{tpu_custom_call.1} parent=11 // pred_check
        %p209 = pneg %p81
      $region18: #{tpu_custom_call.1} parent=11 // pred_check_branch
        %211 = sbr.rel (%p209) target = $region20
      $region19: #{tpu_custom_call.1} parent=11 // pred_region
        _
      $region20: #{tpu_custom_call.1} parent=11 // pred_fallthru
        _
      // Predicated region
      $region21: #{tpu_custom_call.1} parent=11 // pred_check
        %p212 = pneg %p102
      $region22: #{tpu_custom_call.1} parent=11 // pred_check_branch
        %214 = sbr.rel (%p212) target = $region24
      $region23: #{tpu_custom_call.1} parent=11 // pred_region
        _
      $region24: #{tpu_custom_call.1} parent=11 // pred_fallthru
        _
      // Predicated region
      $region25: #{tpu_custom_call.1} parent=11 // pred_check
        %p215 = pneg %p123
      $region26: #{tpu_custom_call.1} parent=11 // pred_check_branch
        %217 = sbr.rel (%p215) target = $region28
      $region27: #{tpu_custom_call.1} parent=11 // pred_region
        _
      $region28: #{tpu_custom_call.1} parent=11 // pred_fallthru
        _
      // Predicated region
      $region29: #{tpu_custom_call.1} parent=11 // pred_check
        %p218 = pneg %p144
      $region30: #{tpu_custom_call.1} parent=11 // pred_check_branch
        %220 = sbr.rel (%p218) target = $region32
      $region31: #{tpu_custom_call.1} parent=11 // pred_region
        _
      $region32: #{tpu_custom_call.1} parent=11 // pred_fallthru
        _
      // Predicated region
      $region33: #{tpu_custom_call.1} parent=11 // pred_check
        %p221 = pneg %p165
      $region34: #{tpu_custom_call.1} parent=11 // pred_check_branch
        %223 = sbr.rel (%p221) target = $region36
      $region35: #{tpu_custom_call.1} parent=11 // pred_region
        _
      $region36: #{tpu_custom_call.1} parent=11 // pred_fallthru
        _
    $region12: #{tpu_custom_call.1} parent=5 // pred_fallthru
      _
    %p224 = scmp.lt.s32.totalorder %s13, 2
    // Predicated region
    $region37: #{tpu_custom_call.1} parent=5 // pred_check
      %p225 = pneg %p224
    $region38: #{tpu_custom_call.1} parent=5 // pred_check_branch
      %227 = sbr.rel (%p225) target = $region40
    $region39: #{tpu_custom_call.1} parent=5 // pred_region
      // Predicated region
      $region41: #{tpu_custom_call.1} parent=39 // pred_check
        %p228 = pneg %p33
      $region42: #{tpu_custom_call.1} parent=39 // pred_check_branch
        %230 = sbr.rel (%p228) target = $region44
      $region43: #{tpu_custom_call.1} parent=39 // pred_region
        %p231 = scmp.lt.s32.totalorder %s13, 1
        %s232 = scalar_select %p231, %s13, 1
        %s233 = smul.addr %s232, 32
        %s234 = smul.addr %s233, 8
        %s235 = scalar_lea.vmem %s0, %s234
      $region44: #{tpu_custom_call.1} parent=39 // pred_fallthru
        _
    $region40: #{tpu_custom_call.1} parent=5 // pred_fallthru
      _
    %p236 = scmp.le.s32.totalorder 1, %s13
    %p237 = scmp.lt.s32.totalorder %s13, 3
    %p238 = pnand %p236, %p237
    %p239 = pneg %p238
    // Predicated region
    $region45: #{tpu_custom_call.1} parent=5 // pred_check
      _
    $region46: #{tpu_custom_call.1} parent=5 // pred_check_branch
      %241 = sbr.rel (%p238) target = $region48
    $region47: #{tpu_custom_call.1} parent=5 // pred_region
      %s242 = ssub.s32 %s13, 1
      %p243 = scmp.lt.s32.totalorder %s18, 1
      %s244 = scalar_select %p243, %s18, 1
      %s245 = smul.addr %s244, 32
      %s246 = smul.addr %s245, 8
      %s247 = scalar_lea.vmem %s0, %s246
      %p248 = pneg %p39
      %p249 = pneg %p36
      %p250 = pneg %p60
      %p251 = pneg %p57
      %p252 = pneg %p81
      %p253 = pneg %p78
      %p254 = pneg %p102
      %p255 = pneg %p99
      %p256 = pneg %p123
      %p257 = pneg %p120
      %p258 = pneg %p144
      %p259 = pneg %p141
      %p260 = pneg %p165
      %p261 = pneg %p162
      %p262 = pneg %p191
      %p263 = pneg %p188
      %p264 = scmp.lt.s32.totalorder %s18, 1
      %s265 = scalar_select %p264, %s18, 1
      %s266 = smul.addr %s265, 32
      %s267 = smul.addr %s266, 8
      %s268 = scalar_lea.vmem %s7, %s267
      %p269 = scmp.lt.s32.totalorder %s18, 1
      %s270 = scalar_select %p269, %s18, 1
      %s271 = smul.addr %s270, 32
      %s272 = smul.addr %s271, 8
      %s273 = scalar_lea.vmem %s0, %s272
      %p274 = scmp.lt.s32.totalorder %s18, 1
      %s275 = scalar_select %p274, %s18, 1
      %s276 = smul.addr %s275, 32
      %s277 = smul.addr %s276, 8
      %s278 = scalar_lea.vmem %s7, %s277
      %v280 = vld [vmem:[%s273] sm:$0xff]
      %v281 = vld [vmem:[%s273 + $0x8] sm:$0xff]
      %v282 = vld [vmem:[%s273 + $0x10] sm:$0xff]
      %v283 = vld [vmem:[%s273 + $0x18] sm:$0xff]
      %v284 = vld [vmem:[%s273 + $0x20] sm:$0xff]
      %v285 = vld [vmem:[%s273 + $0x28] sm:$0xff]
      %v286 = vld [vmem:[%s273 + $0x30] sm:$0xff]
      %v287 = vld [vmem:[%s273 + $0x38] sm:$0xff]
      %v288 = vld [vmem:[%s273 + $0x40] sm:$0xff]
      %v289 = vld [vmem:[%s273 + $0x48] sm:$0xff]
      %v290 = vld [vmem:[%s273 + $0x50] sm:$0xff]
      %v291 = vld [vmem:[%s273 + $0x58] sm:$0xff]
      %v292 = vld [vmem:[%s273 + $0x60] sm:$0xff]
      %v293 = vld [vmem:[%s273 + $0x68] sm:$0xff]
      %v294 = vld [vmem:[%s273 + $0x70] sm:$0xff]
      %v295 = vld [vmem:[%s273 + $0x78] sm:$0xff]
      %v296 = vld [vmem:[%s273 + $0x80] sm:$0xff]
      %v297 = vld [vmem:[%s273 + $0x88] sm:$0xff]
      %v298 = vld [vmem:[%s273 + $0x90] sm:$0xff]
      %v299 = vld [vmem:[%s273 + $0x98] sm:$0xff]
      %v300 = vld [vmem:[%s273 + $0xa0] sm:$0xff]
      %v301 = vld [vmem:[%s273 + $0xa8] sm:$0xff]
      %v302 = vld [vmem:[%s273 + $0xb0] sm:$0xff]
      %v303 = vld [vmem:[%s273 + $0xb8] sm:$0xff]
      %v304 = vld [vmem:[%s273 + $0xc0] sm:$0xff]
      %v305 = vld [vmem:[%s273 + $0xc8] sm:$0xff]
      %v306 = vld [vmem:[%s273 + $0xd0] sm:$0xff]
      %v307 = vld [vmem:[%s273 + $0xd8] sm:$0xff]
      %v308 = vld [vmem:[%s273 + $0xe0] sm:$0xff]
      %v309 = vld [vmem:[%s273 + $0xe8] sm:$0xff]
      %v310 = vld [vmem:[%s273 + $0xf0] sm:$0xff]
      %v311 = vld [vmem:[%s273 + $0xf8] sm:$0xff]
      %v312 = vld [vmem:[%s1] sm:$0x1]
      %v314 = vlaneseq
      %v315 = vshrl.u32 %v314, 7
      %v316 = vsub.s32 0, %v315
      %v317 = vrot.slane %v312, %v316
      %v319 = vmul.f32 %v280, %v317
      %v320 = vmul.f32 %v281, %v317
      %v321 = vmul.f32 %v282, %v317
      %v322 = vmul.f32 %v283, %v317
      %v323 = vmul.f32 %v284, %v317
      %v324 = vmul.f32 %v285, %v317
      %v325 = vmul.f32 %v286, %v317
      %v326 = vmul.f32 %v287, %v317
      %v327 = vmul.f32 %v288, %v317
      %v328 = vmul.f32 %v289, %v317
      %v329 = vmul.f32 %v290, %v317
      %v330 = vmul.f32 %v291, %v317
      %v331 = vmul.f32 %v292, %v317
      %v332 = vmul.f32 %v293, %v317
      %v333 = vmul.f32 %v294, %v317
      %v334 = vmul.f32 %v295, %v317
      %v335 = vmul.f32 %v296, %v317
      %v336 = vmul.f32 %v297, %v317
      %v337 = vmul.f32 %v298, %v317
      %v338 = vmul.f32 %v299, %v317
      %v339 = vmul.f32 %v300, %v317
      %v340 = vmul.f32 %v301, %v317
      %v341 = vmul.f32 %v302, %v317
      %v342 = vmul.f32 %v303, %v317
      %v343 = vmul.f32 %v304, %v317
      %v344 = vmul.f32 %v305, %v317
      %v345 = vmul.f32 %v306, %v317
      %v346 = vmul.f32 %v307, %v317
      %v347 = vmul.f32 %v308, %v317
      %v348 = vmul.f32 %v309, %v317
      %v349 = vmul.f32 %v310, %v317
      %v350 = vmul.f32 %v311, %v317
      %v351 = vld [vmem:[%s2] sm:$0x1]
      %v353 = vlaneseq
      %v354 = vshrl.u32 %v353, 7
      %v355 = vsub.s32 0, %v354
      %v356 = vrot.slane %v351, %v355
      %v358 = vadd.f32 %v319, %v356
      %v359 = vadd.f32 %v320, %v356
      %v360 = vadd.f32 %v321, %v356
      %v361 = vadd.f32 %v322, %v356
      %v362 = vadd.f32 %v323, %v356
      %v363 = vadd.f32 %v324, %v356
      %v364 = vadd.f32 %v325, %v356
      %v365 = vadd.f32 %v326, %v356
      %v366 = vadd.f32 %v327, %v356
      %v367 = vadd.f32 %v328, %v356
      %v368 = vadd.f32 %v329, %v356
      %v369 = vadd.f32 %v330, %v356
      %v370 = vadd.f32 %v331, %v356
      %v371 = vadd.f32 %v332, %v356
      %v372 = vadd.f32 %v333, %v356
      %v373 = vadd.f32 %v334, %v356
      %v374 = vadd.f32 %v335, %v356
      %v375 = vadd.f32 %v336, %v356
      %v376 = vadd.f32 %v337, %v356
      %v377 = vadd.f32 %v338, %v356
      %v378 = vadd.f32 %v339, %v356
      %v379 = vadd.f32 %v340, %v356
      %v380 = vadd.f32 %v341, %v356
      %v381 = vadd.f32 %v342, %v356
      %v382 = vadd.f32 %v343, %v356
      %v383 = vadd.f32 %v344, %v356
      %v384 = vadd.f32 %v345, %v356
      %v385 = vadd.f32 %v346, %v356
      %v386 = vadd.f32 %v347, %v356
      %v387 = vadd.f32 %v348, %v356
      %v388 = vadd.f32 %v349, %v356
      %v389 = vadd.f32 %v350, %v356
      %v390 = vmax.f32 %v358, 0.0
      %v391 = vmax.f32 %v359, 0.0
      %v392 = vmax.f32 %v360, 0.0
      %v393 = vmax.f32 %v361, 0.0
      %v394 = vmax.f32 %v362, 0.0
      %v395 = vmax.f32 %v363, 0.0
      %v396 = vmax.f32 %v364, 0.0
      %v397 = vmax.f32 %v365, 0.0
      %v398 = vmax.f32 %v366, 0.0
      %v399 = vmax.f32 %v367, 0.0
      %v400 = vmax.f32 %v368, 0.0
      %v401 = vmax.f32 %v369, 0.0
      %v402 = vmax.f32 %v370, 0.0
      %v403 = vmax.f32 %v371, 0.0
      %v404 = vmax.f32 %v372, 0.0
      %v405 = vmax.f32 %v373, 0.0
      %v406 = vmax.f32 %v374, 0.0
      %v407 = vmax.f32 %v375, 0.0
      %v408 = vmax.f32 %v376, 0.0
      %v409 = vmax.f32 %v377, 0.0
      %v410 = vmax.f32 %v378, 0.0
      %v411 = vmax.f32 %v379, 0.0
      %v412 = vmax.f32 %v380, 0.0
      %v413 = vmax.f32 %v381, 0.0
      %v414 = vmax.f32 %v382, 0.0
      %v415 = vmax.f32 %v383, 0.0
      %v416 = vmax.f32 %v384, 0.0
      %v417 = vmax.f32 %v385, 0.0
      %v418 = vmax.f32 %v386, 0.0
      %v419 = vmax.f32 %v387, 0.0
      %v420 = vmax.f32 %v388, 0.0
      %v421 = vmax.f32 %v389, 0.0
      %vm422 = vcmask 523264
      %423 = vst.msk [vmem:[#allocation2] sm:$0xff] %vm422, 0.0
      %424 = vst.msk [vmem:[#allocation2 + $0x8] sm:$0xff] %vm422, 0.0
      %vm425 = vcmask 517120
      %426 = vst.msk [vmem:[#allocation2 + $0x10] sm:$0x3] %vm425, 0.0
      %s427 = scalar_lea.vmem [#allocation2], 408
      %428 = vst.msk [vmem:[%s427] sm:$0xff] %vm422, 0.0
      %429 = vst.msk [vmem:[%s427 + $0x8] sm:$0xff] %vm422, 0.0
      %430 = vst.msk [vmem:[%s427 + $0x10] sm:$0x3] %vm425, 0.0
      %vm431 = vcmask 516096
      %432 = vst.msk [vmem:[#allocation2] sm:$0x1] %vm431, 0.0
      %433 = vst.msk [vmem:[#allocation2 + $0x18] sm:$0x1] %vm431, 0.0
      %434 = vst.msk [vmem:[#allocation2 + $0x30] sm:$0x1] %vm431, 0.0
      %435 = vst.msk [vmem:[#allocation2 + $0x48] sm:$0x1] %vm431, 0.0
      %436 = vst.msk [vmem:[#allocation2 + $0x60] sm:$0x1] %vm431, 0.0
      %437 = vst.msk [vmem:[#allocation2 + $0x78] sm:$0x1] %vm431, 0.0
      %438 = vst.msk [vmem:[#allocation2 + $0x90] sm:$0x1] %vm431, 0.0
      %439 = vst.msk [vmem:[#allocation2 + $0xa8] sm:$0x1] %vm431, 0.0
      %440 = vst.msk [vmem:[#allocation2 + $0xc0] sm:$0x1] %vm431, 0.0
      %441 = vst.msk [vmem:[#allocation2 + $0xd8] sm:$0x1] %vm431, 0.0
      %442 = vst.msk [vmem:[#allocation2 + $0xf0] sm:$0x1] %vm431, 0.0
      %443 = vst.msk [vmem:[#allocation2 + $0x108] sm:$0x1] %vm431, 0.0
      %444 = vst.msk [vmem:[#allocation2 + $0x120] sm:$0x1] %vm431, 0.0
      %445 = vst.msk [vmem:[#allocation2 + $0x138] sm:$0x1] %vm431, 0.0
      %446 = vst.msk [vmem:[#allocation2 + $0x150] sm:$0x1] %vm431, 0.0
      %447 = vst.msk [vmem:[#allocation2 + $0x168] sm:$0x1] %vm431, 0.0
      %448 = vst.msk [vmem:[#allocation2 + $0x180] sm:$0x1] %vm431, 0.0
      %449 = vst.msk [vmem:[#allocation2 + $0x198] sm:$0x1] %vm431, 0.0
      %450 = vst.msk [vmem:[#allocation2 + $0x11] sm:$0x1] %vm431, 0.0
      %451 = vst.msk [vmem:[#allocation2 + $0x29] sm:$0x1] %vm431, 0.0
      %452 = vst.msk [vmem:[#allocation2 + $0x41] sm:$0x1] %vm431, 0.0
      %453 = vst.msk [vmem:[#allocation2 + $0x59] sm:$0x1] %vm431, 0.0
      %454 = vst.msk [vmem:[#allocation2 + $0x71] sm:$0x1] %vm431, 0.0
      %455 = vst.msk [vmem:[#allocation2 + $0x89] sm:$0x1] %vm431, 0.0
      %456 = vst.msk [vmem:[#allocation2 + $0xa1] sm:$0x1] %vm431, 0.0
      %457 = vst.msk [vmem:[#allocation2 + $0xb9] sm:$0x1] %vm431, 0.0
      %458 = vst.msk [vmem:[#allocation2 + $0xd1] sm:$0x1] %vm431, 0.0
      %459 = vst.msk [vmem:[#allocation2 + $0xe9] sm:$0x1] %vm431, 0.0
      %460 = vst.msk [vmem:[#allocation2 + $0x101] sm:$0x1] %vm431, 0.0
      %461 = vst.msk [vmem:[#allocation2 + $0x119] sm:$0x1] %vm431, 0.0
      %462 = vst.msk [vmem:[#allocation2 + $0x131] sm:$0x1] %vm431, 0.0
      %463 = vst.msk [vmem:[#allocation2 + $0x149] sm:$0x1] %vm431, 0.0
      %464 = vst.msk [vmem:[#allocation2 + $0x161] sm:$0x1] %vm431, 0.0
      %465 = vst.msk [vmem:[#allocation2 + $0x179] sm:$0x1] %vm431, 0.0
      %466 = vst.msk [vmem:[#allocation2 + $0x191] sm:$0x1] %vm431, 0.0
      %467 = vst.msk [vmem:[#allocation2 + $0x1a9] sm:$0x1] %vm431, 0.0
      %s468 = scalar_lea.vmem [#allocation2], 24
      %469 = vst.msk [vmem:[%s468 + $0x1] sm:$0xff] %vm422, %v390
      %470 = vst.msk [vmem:[%s468 + $0x9] sm:$0xff] %vm422, %v391
      %471 = vst.msk [vmem:[%s468 + $0x19] sm:$0xff] %vm422, %v392
      %472 = vst.msk [vmem:[%s468 + $0x21] sm:$0xff] %vm422, %v393
      %473 = vst.msk [vmem:[%s468 + $0x31] sm:$0xff] %vm422, %v394
      %474 = vst.msk [vmem:[%s468 + $0x39] sm:$0xff] %vm422, %v395
      %475 = vst.msk [vmem:[%s468 + $0x49] sm:$0xff] %vm422, %v396
      %476 = vst.msk [vmem:[%s468 + $0x51] sm:$0xff] %vm422, %v397
      %477 = vst.msk [vmem:[%s468 + $0x61] sm:$0xff] %vm422, %v398
      %478 = vst.msk [vmem:[%s468 + $0x69] sm:$0xff] %vm422, %v399
      %479 = vst.msk [vmem:[%s468 + $0x79] sm:$0xff] %vm422, %v400
      %480 = vst.msk [vmem:[%s468 + $0x81] sm:$0xff] %vm422, %v401
      %481 = vst.msk [vmem:[%s468 + $0x91] sm:$0xff] %vm422, %v402
      %482 = vst.msk [vmem:[%s468 + $0x99] sm:$0xff] %vm422, %v403
      %483 = vst.msk [vmem:[%s468 + $0xa9] sm:$0xff] %vm422, %v404
      %484 = vst.msk [vmem:[%s468 + $0xb1] sm:$0xff] %vm422, %v405
      %485 = vst.msk [vmem:[%s468 + $0xc1] sm:$0xff] %vm422, %v406
      %486 = vst.msk [vmem:[%s468 + $0xc9] sm:$0xff] %vm422, %v407
      %487 = vst.msk [vmem:[%s468 + $0xd9] sm:$0xff] %vm422, %v408
      %488 = vst.msk [vmem:[%s468 + $0xe1] sm:$0xff] %vm422, %v409
      %489 = vst.msk [vmem:[%s468 + $0xf1] sm:$0xff] %vm422, %v410
      %490 = vst.msk [vmem:[%s468 + $0xf9] sm:$0xff] %vm422, %v411
      %491 = vst.msk [vmem:[%s468 + $0x109] sm:$0xff] %vm422, %v412
      %492 = vst.msk [vmem:[%s468 + $0x111] sm:$0xff] %vm422, %v413
      %493 = vst.msk [vmem:[%s468 + $0x121] sm:$0xff] %vm422, %v414
      %494 = vst.msk [vmem:[%s468 + $0x129] sm:$0xff] %vm422, %v415
      %495 = vst.msk [vmem:[%s468 + $0x139] sm:$0xff] %vm422, %v416
      %496 = vst.msk [vmem:[%s468 + $0x141] sm:$0xff] %vm422, %v417
      %497 = vst.msk [vmem:[%s468 + $0x151] sm:$0xff] %vm422, %v418
      %498 = vst.msk [vmem:[%s468 + $0x159] sm:$0xff] %vm422, %v419
      %499 = vst.msk [vmem:[%s468 + $0x169] sm:$0xff] %vm422, %v420
      %500 = vst.msk [vmem:[%s468 + $0x171] sm:$0xff] %vm422, %v421
      %v501 = vld [vmem:[#allocation2] sm:$0xff]
      %v502 = vld [vmem:[#allocation2 + $0x8] sm:$0xff]
      %v503 = vld [vmem:[#allocation2 + $0x18] sm:$0xff]
      %v504 = vld [vmem:[#allocation2 + $0x20] sm:$0xff]
      %v505 = vld [vmem:[#allocation2 + $0x30] sm:$0xff]
      %v506 = vld [vmem:[#allocation2 + $0x38] sm:$0xff]
      %v507 = vld [vmem:[#allocation2 + $0x48] sm:$0xff]
      %v508 = vld [vmem:[#allocation2 + $0x50] sm:$0xff]
      %v509 = vld [vmem:[#allocation2 + $0x60] sm:$0xff]
      %v510 = vld [vmem:[#allocation2 + $0x68] sm:$0xff]
      %v511 = vld [vmem:[#allocation2 + $0x78] sm:$0xff]
      %v512 = vld [vmem:[#allocation2 + $0x80] sm:$0xff]
      %v513 = vld [vmem:[#allocation2 + $0x90] sm:$0xff]
      %v514 = vld [vmem:[#allocation2 + $0x98] sm:$0xff]
      %v515 = vld [vmem:[#allocation2 + $0xa8] sm:$0xff]
      %v516 = vld [vmem:[#allocation2 + $0xb0] sm:$0xff]
      %v517 = vld [vmem:[#allocation2 + $0xc0] sm:$0xff]
      %v518 = vld [vmem:[#allocation2 + $0xc8] sm:$0xff]
      %v519 = vld [vmem:[#allocation2 + $0xd8] sm:$0xff]
      %v520 = vld [vmem:[#allocation2 + $0xe0] sm:$0xff]
      %v521 = vld [vmem:[#allocation2 + $0xf0] sm:$0xff]
      %v522 = vld [vmem:[#allocation2 + $0xf8] sm:$0xff]
      %v523 = vld [vmem:[#allocation2 + $0x108] sm:$0xff]
      %v524 = vld [vmem:[#allocation2 + $0x110] sm:$0xff]
      %v525 = vld [vmem:[#allocation2 + $0x120] sm:$0xff]
      %v526 = vld [vmem:[#allocation2 + $0x128] sm:$0xff]
      %v527 = vld [vmem:[#allocation2 + $0x138] sm:$0xff]
      %v528 = vld [vmem:[#allocation2 + $0x140] sm:$0xff]
      %v529 = vld [vmem:[#allocation2 + $0x150] sm:$0xff]
      %v530 = vld [vmem:[#allocation2 + $0x158] sm:$0xff]
      %v531 = vld [vmem:[#allocation2 + $0x168] sm:$0xff]
      %v532 = vld [vmem:[#allocation2 + $0x170] sm:$0xff]
      %v533 = vpack.c.bf16 %v502, %v501
      %v534 = vpack.c.bf16 %v504, %v503
      %v535 = vpack.c.bf16 %v506, %v505
      %v536 = vpack.c.bf16 %v508, %v507
      %v537 = vpack.c.bf16 %v510, %v509
      %v538 = vpack.c.bf16 %v512, %v511
      %v539 = vpack.c.bf16 %v514, %v513
      %v540 = vpack.c.bf16 %v516, %v515
      %v541 = vpack.c.bf16 %v518, %v517
      %v542 = vpack.c.bf16 %v520, %v519
      %v543 = vpack.c.bf16 %v522, %v521
      %v544 = vpack.c.bf16 %v524, %v523
      %v545 = vpack.c.bf16 %v526, %v525
      %v546 = vpack.c.bf16 %v528, %v527
      %v547 = vpack.c.bf16 %v530, %v529
      %v548 = vpack.c.bf16 %v532, %v531
      %v565 = vunpack.c.l.b16 %v533
      %v566 = vunpack.c.h.b16 %v533
      %v567 = vunpack.c.l.b16 %v534
      %v568 = vunpack.c.h.b16 %v534
      %v569 = vunpack.c.l.b16 %v535
      %v570 = vunpack.c.h.b16 %v535
      %v571 = vunpack.c.l.b16 %v536
      %v572 = vunpack.c.h.b16 %v536
      %v573 = vunpack.c.l.b16 %v537
      %v574 = vunpack.c.h.b16 %v537
      %v575 = vunpack.c.l.b16 %v538
      %v576 = vunpack.c.h.b16 %v538
      %v577 = vunpack.c.l.b16 %v539
      %v578 = vunpack.c.h.b16 %v539
      %v579 = vunpack.c.l.b16 %v540
      %v580 = vunpack.c.h.b16 %v540
      %v581 = vunpack.c.l.b16 %v541
      %v582 = vunpack.c.h.b16 %v541
      %v583 = vunpack.c.l.b16 %v542
      %v584 = vunpack.c.h.b16 %v542
      %v585 = vunpack.c.l.b16 %v543
      %v586 = vunpack.c.h.b16 %v543
      %v587 = vunpack.c.l.b16 %v544
      %v588 = vunpack.c.h.b16 %v544
      %v589 = vunpack.c.l.b16 %v545
      %v590 = vunpack.c.h.b16 %v545
      %v591 = vunpack.c.l.b16 %v546
      %v592 = vunpack.c.h.b16 %v546
      %v593 = vunpack.c.l.b16 %v547
      %v594 = vunpack.c.h.b16 %v547
      %v595 = vunpack.c.l.b16 %v548
      %v596 = vunpack.c.h.b16 %v548
      %v597 = vpack.c.b16 %v565, %v565
      %v598 = vpack.c.b16 %v566, %v566
      %v599 = vpack.c.b16 %v567, %v567
      %v600 = vpack.c.b16 %v568, %v568
      %v601 = vpack.c.b16 %v569, %v569
      %v602 = vpack.c.b16 %v570, %v570
      %v603 = vpack.c.b16 %v571, %v571
      %v604 = vpack.c.b16 %v572, %v572
      %v605 = vpack.c.b16 %v573, %v573
      %v606 = vpack.c.b16 %v574, %v574
      %v607 = vpack.c.b16 %v575, %v575
      %v608 = vpack.c.b16 %v576, %v576
      %v609 = vpack.c.b16 %v577, %v577
      %v610 = vpack.c.b16 %v578, %v578
      %v611 = vpack.c.b16 %v579, %v579
      %v612 = vpack.c.b16 %v580, %v580
      %v613 = vpack.c.b16 %v581, %v581
      %v614 = vpack.c.b16 %v582, %v582
      %v615 = vpack.c.b16 %v583, %v583
      %v616 = vpack.c.b16 %v584, %v584
      %v617 = vpack.c.b16 %v585, %v585
      %v618 = vpack.c.b16 %v586, %v586
      %v619 = vpack.c.b16 %v587, %v587
      %v620 = vpack.c.b16 %v588, %v588
      %v621 = vpack.c.b16 %v589, %v589
      %v622 = vpack.c.b16 %v590, %v590
      %v623 = vpack.c.b16 %v591, %v591
      %v624 = vpack.c.b16 %v592, %v592
      %v625 = vpack.c.b16 %v593, %v593
      %v626 = vpack.c.b16 %v594, %v594
      %v627 = vpack.c.b16 %v595, %v595
      %v628 = vpack.c.b16 %v596, %v596
      %vm661 = vcmask 519168
      %662 = vst.msk [vmem:[#allocation4] sm:$0xf] %vm661, %v597
      %663 = vst.msk [vmem:[#allocation4 + $0x14] sm:$0xf] %vm661, %v598
      %664 = vst.msk [vmem:[#allocation4 + $0x28] sm:$0xf] %vm661, %v599
      %665 = vst.msk [vmem:[#allocation4 + $0x3c] sm:$0xf] %vm661, %v600
      %666 = vst.msk [vmem:[#allocation4 + $0x50] sm:$0xf] %vm661, %v601
      %667 = vst.msk [vmem:[#allocation4 + $0x64] sm:$0xf] %vm661, %v602
      %668 = vst.msk [vmem:[#allocation4 + $0x78] sm:$0xf] %vm661, %v603
      %669 = vst.msk [vmem:[#allocation4 + $0x8c] sm:$0xf] %vm661, %v604
      %670 = vst.msk [vmem:[#allocation4 + $0xa0] sm:$0xf] %vm661, %v605
      %671 = vst.msk [vmem:[#allocation4 + $0xb4] sm:$0xf] %vm661, %v606
      %672 = vst.msk [vmem:[#allocation4 + $0xc8] sm:$0xf] %vm661, %v607
      %673 = vst.msk [vmem:[#allocation4 + $0xdc] sm:$0xf] %vm661, %v608
      %674 = vst.msk [vmem:[#allocation4 + $0xf0] sm:$0xf] %vm661, %v609
      %675 = vst.msk [vmem:[#allocation4 + $0x104] sm:$0xf] %vm661, %v610
      %676 = vst.msk [vmem:[#allocation4 + $0x118] sm:$0xf] %vm661, %v611
      %677 = vst.msk [vmem:[#allocation4 + $0x12c] sm:$0xf] %vm661, %v612
      %678 = vst.msk [vmem:[#allocation4 + $0x140] sm:$0xf] %vm661, %v613
      %679 = vst.msk [vmem:[#allocation4 + $0x154] sm:$0xf] %vm661, %v614
      %680 = vst.msk [vmem:[#allocation4 + $0x168] sm:$0xf] %vm661, %v615
      %681 = vst.msk [vmem:[#allocation4 + $0x17c] sm:$0xf] %vm661, %v616
      %682 = vst.msk [vmem:[#allocation4 + $0x190] sm:$0xf] %vm661, %v617
      %683 = vst.msk [vmem:[#allocation4 + $0x1a4] sm:$0xf] %vm661, %v618
      %684 = vst.msk [vmem:[#allocation4 + $0x1b8] sm:$0xf] %vm661, %v619
      %685 = vst.msk [vmem:[#allocation4 + $0x1cc] sm:$0xf] %vm661, %v620
      %686 = vst.msk [vmem:[#allocation4 + $0x1e0] sm:$0xf] %vm661, %v621
      %687 = vst.msk [vmem:[#allocation4 + $0x1f4] sm:$0xf] %vm661, %v622
      %688 = vst.msk [vmem:[#allocation4 + $0x208] sm:$0xf] %vm661, %v623
      %689 = vst.msk [vmem:[#allocation4 + $0x21c] sm:$0xf] %vm661, %v624
      %690 = vst.msk [vmem:[#allocation4 + $0x230] sm:$0xf] %vm661, %v625
      %691 = vst.msk [vmem:[#allocation4 + $0x244] sm:$0xf] %vm661, %v626
      %692 = vst.msk [vmem:[#allocation4 + $0x258] sm:$0xf] %vm661, %v627
      %693 = vst.msk [vmem:[#allocation4 + $0x26c] sm:$0xf] %vm661, %v628
      %v694 = vld [vmem:[#allocation2 + $0x1] sm:$0xff]
      %v695 = vld [vmem:[#allocation2 + $0x9] sm:$0xff]
      %v696 = vld [vmem:[#allocation2 + $0x19] sm:$0xff]
      %v697 = vld [vmem:[#allocation2 + $0x21] sm:$0xff]
      %v698 = vld [vmem:[#allocation2 + $0x31] sm:$0xff]
      %v699 = vld [vmem:[#allocation2 + $0x39] sm:$0xff]
      %v700 = vld [vmem:[#allocation2 + $0x49] sm:$0xff]
      %v701 = vld [vmem:[#allocation2 + $0x51] sm:$0xff]
      %v702 = vld [vmem:[#allocation2 + $0x61] sm:$0xff]
      %v703 = vld [vmem:[#allocation2 + $0x69] sm:$0xff]
      %v704 = vld [vmem:[#allocation2 + $0x79] sm:$0xff]
      %v705 = vld [vmem:[#allocation2 + $0x81] sm:$0xff]
      %v706 = vld [vmem:[#allocation2 + $0x91] sm:$0xff]
      %v707 = vld [vmem:[#allocation2 + $0x99] sm:$0xff]
      %v708 = vld [vmem:[#allocation2 + $0xa9] sm:$0xff]
      %v709 = vld [vmem:[#allocation2 + $0xb1] sm:$0xff]
      %v710 = vld [vmem:[#allocation2 + $0xc1] sm:$0xff]
      %v711 = vld [vmem:[#allocation2 + $0xc9] sm:$0xff]
      %v712 = vld [vmem:[#allocation2 + $0xd9] sm:$0xff]
      %v713 = vld [vmem:[#allocation2 + $0xe1] sm:$0xff]
      %v714 = vld [vmem:[#allocation2 + $0xf1] sm:$0xff]
      %v715 = vld [vmem:[#allocation2 + $0xf9] sm:$0xff]
      %v716 = vld [vmem:[#allocation2 + $0x109] sm:$0xff]
      %v717 = vld [vmem:[#allocation2 + $0x111] sm:$0xff]
      %v718 = vld [vmem:[#allocation2 + $0x121] sm:$0xff]
      %v719 = vld [vmem:[#allocation2 + $0x129] sm:$0xff]
      %v720 = vld [vmem:[#allocation2 + $0x139] sm:$0xff]
      %v721 = vld [vmem:[#allocation2 + $0x141] sm:$0xff]
      %v722 = vld [vmem:[#allocation2 + $0x151] sm:$0xff]
      %v723 = vld [vmem:[#allocation2 + $0x159] sm:$0xff]
      %v724 = vld [vmem:[#allocation2 + $0x169] sm:$0xff]
      %v725 = vld [vmem:[#allocation2 + $0x171] sm:$0xff]
      %v726 = vpack.c.bf16 %v695, %v694
      %v727 = vpack.c.bf16 %v697, %v696
      %v728 = vpack.c.bf16 %v699, %v698
      %v729 = vpack.c.bf16 %v701, %v700
      %v730 = vpack.c.bf16 %v703, %v702
      %v731 = vpack.c.bf16 %v705, %v704
      %v732 = vpack.c.bf16 %v707, %v706
      %v733 = vpack.c.bf16 %v709, %v708
      %v734 = vpack.c.bf16 %v711, %v710
      %v735 = vpack.c.bf16 %v713, %v712
      %v736 = vpack.c.bf16 %v715, %v714
      %v737 = vpack.c.bf16 %v717, %v716
      %v738 = vpack.c.bf16 %v719, %v718
      %v739 = vpack.c.bf16 %v721, %v720
      %v740 = vpack.c.bf16 %v723, %v722
      %v741 = vpack.c.bf16 %v725, %v724
      %v758 = vunpack.c.l.b16 %v726
      %v759 = vunpack.c.h.b16 %v726
      %v760 = vunpack.c.l.b16 %v727
      %v761 = vunpack.c.h.b16 %v727
      %v762 = vunpack.c.l.b16 %v728
      %v763 = vunpack.c.h.b16 %v728
      %v764 = vunpack.c.l.b16 %v729
      %v765 = vunpack.c.h.b16 %v729
      %v766 = vunpack.c.l.b16 %v730
      %v767 = vunpack.c.h.b16 %v730
      %v768 = vunpack.c.l.b16 %v731
      %v769 = vunpack.c.h.b16 %v731
      %v770 = vunpack.c.l.b16 %v732
      %v771 = vunpack.c.h.b16 %v732
      %v772 = vunpack.c.l.b16 %v733
      %v773 = vunpack.c.h.b16 %v733
      %v774 = vunpack.c.l.b16 %v734
      %v775 = vunpack.c.h.b16 %v734
      %v776 = vunpack.c.l.b16 %v735
      %v777 = vunpack.c.h.b16 %v735
      %v778 = vunpack.c.l.b16 %v736
      %v779 = vunpack.c.h.b16 %v736
      %v780 = vunpack.c.l.b16 %v737
      %v781 = vunpack.c.h.b16 %v737
      %v782 = vunpack.c.l.b16 %v738
      %v783 = vunpack.c.h.b16 %v738
      %v784 = vunpack.c.l.b16 %v739
      %v785 = vunpack.c.h.b16 %v739
      %v786 = vunpack.c.l.b16 %v740
      %v787 = vunpack.c.h.b16 %v740
      %v788 = vunpack.c.l.b16 %v741
      %v789 = vunpack.c.h.b16 %v741
      %v790 = vpack.c.b16 %v758, %v758
      %v791 = vpack.c.b16 %v759, %v759
      %v792 = vpack.c.b16 %v760, %v760
      %v793 = vpack.c.b16 %v761, %v761
      %v794 = vpack.c.b16 %v762, %v762
      %v795 = vpack.c.b16 %v763, %v763
      %v796 = vpack.c.b16 %v764, %v764
      %v797 = vpack.c.b16 %v765, %v765
      %v798 = vpack.c.b16 %v766, %v766
      %v799 = vpack.c.b16 %v767, %v767
      %v800 = vpack.c.b16 %v768, %v768
      %v801 = vpack.c.b16 %v769, %v769
      %v802 = vpack.c.b16 %v770, %v770
      %v803 = vpack.c.b16 %v771, %v771
      %v804 = vpack.c.b16 %v772, %v772
      %v805 = vpack.c.b16 %v773, %v773
      %v806 = vpack.c.b16 %v774, %v774
      %v807 = vpack.c.b16 %v775, %v775
      %v808 = vpack.c.b16 %v776, %v776
      %v809 = vpack.c.b16 %v777, %v777
      %v810 = vpack.c.b16 %v778, %v778
      %v811 = vpack.c.b16 %v779, %v779
      %v812 = vpack.c.b16 %v780, %v780
      %v813 = vpack.c.b16 %v781, %v781
      %v814 = vpack.c.b16 %v782, %v782
      %v815 = vpack.c.b16 %v783, %v783
      %v816 = vpack.c.b16 %v784, %v784
      %v817 = vpack.c.b16 %v785, %v785
      %v818 = vpack.c.b16 %v786, %v786
      %v819 = vpack.c.b16 %v787, %v787
      %v820 = vpack.c.b16 %v788, %v788
      %v821 = vpack.c.b16 %v789, %v789
      %822 = vrot.lane.b32.xlu0 %v790, 64
      %v823 = vpop.permute.xlu0 %822
      %824 = vrot.lane.b32.xlu0 %v791, 64
      %v825 = vpop.permute.xlu0 %824
      %826 = vrot.lane.b32.xlu0 %v792, 64
      %v827 = vpop.permute.xlu0 %826
      %828 = vrot.lane.b32.xlu0 %v793, 64
      %v829 = vpop.permute.xlu0 %828
      %830 = vrot.lane.b32.xlu0 %v794, 64
      %v831 = vpop.permute.xlu0 %830
      %832 = vrot.lane.b32.xlu0 %v795, 64
      %v833 = vpop.permute.xlu0 %832
      %834 = vrot.lane.b32.xlu0 %v796, 64
      %v835 = vpop.permute.xlu0 %834
      %836 = vrot.lane.b32.xlu0 %v797, 64
      %v837 = vpop.permute.xlu0 %836
      %838 = vrot.lane.b32.xlu0 %v798, 64
      %v839 = vpop.permute.xlu0 %838
      %840 = vrot.lane.b32.xlu0 %v799, 64
      %v841 = vpop.permute.xlu0 %840
      %842 = vrot.lane.b32.xlu0 %v800, 64
      %v843 = vpop.permute.xlu0 %842
      %844 = vrot.lane.b32.xlu0 %v801, 64
      %v845 = vpop.permute.xlu0 %844
      %846 = vrot.lane.b32.xlu0 %v802, 64
      %v847 = vpop.permute.xlu0 %846
      %848 = vrot.lane.b32.xlu0 %v803, 64
      %v849 = vpop.permute.xlu0 %848
      %850 = vrot.lane.b32.xlu0 %v804, 64
      %v851 = vpop.permute.xlu0 %850
      %852 = vrot.lane.b32.xlu0 %v805, 64
      %v853 = vpop.permute.xlu0 %852
      %854 = vrot.lane.b32.xlu0 %v806, 64
      %v855 = vpop.permute.xlu0 %854
      %856 = vrot.lane.b32.xlu0 %v807, 64
      %v857 = vpop.permute.xlu0 %856
      %858 = vrot.lane.b32.xlu0 %v808, 64
      %v859 = vpop.permute.xlu0 %858
      %860 = vrot.lane.b32.xlu0 %v809, 64
      %v861 = vpop.permute.xlu0 %860
      %862 = vrot.lane.b32.xlu0 %v810, 64
      %v863 = vpop.permute.xlu0 %862
      %864 = vrot.lane.b32.xlu0 %v811, 64
      %v865 = vpop.permute.xlu0 %864
      %866 = vrot.lane.b32.xlu0 %v812, 64
      %v867 = vpop.permute.xlu0 %866
      %868 = vrot.lane.b32.xlu0 %v813, 64
      %v869 = vpop.permute.xlu0 %868
      %870 = vrot.lane.b32.xlu0 %v814, 64
      %v871 = vpop.permute.xlu0 %870
      %872 = vrot.lane.b32.xlu0 %v815, 64
      %v873 = vpop.permute.xlu0 %872
      %874 = vrot.lane.b32.xlu0 %v816, 64
      %v875 = vpop.permute.xlu0 %874
      %876 = vrot.lane.b32.xlu0 %v817, 64
      %v877 = vpop.permute.xlu0 %876
      %878 = vrot.lane.b32.xlu0 %v818, 64
      %v879 = vpop.permute.xlu0 %878
      %880 = vrot.lane.b32.xlu0 %v819, 64
      %v881 = vpop.permute.xlu0 %880
      %882 = vrot.lane.b32.xlu0 %v820, 64
      %v883 = vpop.permute.xlu0 %882
      %884 = vrot.lane.b32.xlu0 %v821, 64
      %v885 = vpop.permute.xlu0 %884
      %vm918 = vcmask 1043968
      %919 = vst.msk [vmem:[#allocation4] sm:$0xf] %vm918, %v823
      %920 = vst.msk [vmem:[#allocation4 + $0x14] sm:$0xf] %vm918, %v825
      %921 = vst.msk [vmem:[#allocation4 + $0x28] sm:$0xf] %vm918, %v827
      %922 = vst.msk [vmem:[#allocation4 + $0x3c] sm:$0xf] %vm918, %v829
      %923 = vst.msk [vmem:[#allocation4 + $0x50] sm:$0xf] %vm918, %v831
      %924 = vst.msk [vmem:[#allocation4 + $0x64] sm:$0xf] %vm918, %v833
      %925 = vst.msk [vmem:[#allocation4 + $0x78] sm:$0xf] %vm918, %v835
      %926 = vst.msk [vmem:[#allocation4 + $0x8c] sm:$0xf] %vm918, %v837
      %927 = vst.msk [vmem:[#allocation4 + $0xa0] sm:$0xf] %vm918, %v839
      %928 = vst.msk [vmem:[#allocation4 + $0xb4] sm:$0xf] %vm918, %v841
      %929 = vst.msk [vmem:[#allocation4 + $0xc8] sm:$0xf] %vm918, %v843
      %930 = vst.msk [vmem:[#allocation4 + $0xdc] sm:$0xf] %vm918, %v845
      %931 = vst.msk [vmem:[#allocation4 + $0xf0] sm:$0xf] %vm918, %v847
      %932 = vst.msk [vmem:[#allocation4 + $0x104] sm:$0xf] %vm918, %v849
      %933 = vst.msk [vmem:[#allocation4 + $0x118] sm:$0xf] %vm918, %v851
      %934 = vst.msk [vmem:[#allocation4 + $0x12c] sm:$0xf] %vm918, %v853
      %935 = vst.msk [vmem:[#allocation4 + $0x140] sm:$0xf] %vm918, %v855
      %936 = vst.msk [vmem:[#allocation4 + $0x154] sm:$0xf] %vm918, %v857
      %937 = vst.msk [vmem:[#allocation4 + $0x168] sm:$0xf] %vm918, %v859
      %938 = vst.msk [vmem:[#allocation4 + $0x17c] sm:$0xf] %vm918, %v861
      %939 = vst.msk [vmem:[#allocation4 + $0x190] sm:$0xf] %vm918, %v863
      %940 = vst.msk [vmem:[#allocation4 + $0x1a4] sm:$0xf] %vm918, %v865
      %941 = vst.msk [vmem:[#allocation4 + $0x1b8] sm:$0xf] %vm918, %v867
      %942 = vst.msk [vmem:[#allocation4 + $0x1cc] sm:$0xf] %vm918, %v869
      %943 = vst.msk [vmem:[#allocation4 + $0x1e0] sm:$0xf] %vm918, %v871
      %944 = vst.msk [vmem:[#allocation4 + $0x1f4] sm:$0xf] %vm918, %v873
      %945 = vst.msk [vmem:[#allocation4 + $0x208] sm:$0xf] %vm918, %v875
      %946 = vst.msk [vmem:[#allocation4 + $0x21c] sm:$0xf] %vm918, %v877
      %947 = vst.msk [vmem:[#allocation4 + $0x230] sm:$0xf] %vm918, %v879
      %948 = vst.msk [vmem:[#allocation4 + $0x244] sm:$0xf] %vm918, %v881
      %949 = vst.msk [vmem:[#allocation4 + $0x258] sm:$0xf] %vm918, %v883
      %950 = vst.msk [vmem:[#allocation4 + $0x26c] sm:$0xf] %vm918, %v885
      %v951 = vld [vmem:[#allocation2 + $0x2] sm:$0xff]
      %v952 = vld [vmem:[#allocation2 + $0xa] sm:$0xff]
      %v953 = vld [vmem:[#allocation2 + $0x1a] sm:$0xff]
      %v954 = vld [vmem:[#allocation2 + $0x22] sm:$0xff]
      %v955 = vld [vmem:[#allocation2 + $0x32] sm:$0xff]
      %v956 = vld [vmem:[#allocation2 + $0x3a] sm:$0xff]
      %v957 = vld [vmem:[#allocation2 + $0x4a] sm:$0xff]
      %v958 = vld [vmem:[#allocation2 + $0x52] sm:$0xff]
      %v959 = vld [vmem:[#allocation2 + $0x62] sm:$0xff]
      %v960 = vld [vmem:[#allocation2 + $0x6a] sm:$0xff]
      %v961 = vld [vmem:[#allocation2 + $0x7a] sm:$0xff]
      %v962 = vld [vmem:[#allocation2 + $0x82] sm:$0xff]
      %v963 = vld [vmem:[#allocation2 + $0x92] sm:$0xff]
      %v964 = vld [vmem:[#allocation2 + $0x9a] sm:$0xff]
      %v965 = vld [vmem:[#allocation2 + $0xaa] sm:$0xff]
      %v966 = vld [vmem:[#allocation2 + $0xb2] sm:$0xff]
      %v967 = vld [vmem:[#allocation2 + $0xc2] sm:$0xff]
      %v968 = vld [vmem:[#allocation2 + $0xca] sm:$0xff]
      %v969 = vld [vmem:[#allocation2 + $0xda] sm:$0xff]
      %v970 = vld [vmem:[#allocation2 + $0xe2] sm:$0xff]
      %v971 = vld [vmem:[#allocation2 + $0xf2] sm:$0xff]
      %v972 = vld [vmem:[#allocation2 + $0xfa] sm:$0xff]
      %v973 = vld [vmem:[#allocation2 + $0x10a] sm:$0xff]
      %v974 = vld [vmem:[#allocation2 + $0x112] sm:$0xff]
      %v975 = vld [vmem:[#allocation2 + $0x122] sm:$0xff]
      %v976 = vld [vmem:[#allocation2 + $0x12a] sm:$0xff]
      %v977 = vld [vmem:[#allocation2 + $0x13a] sm:$0xff]
      %v978 = vld [vmem:[#allocation2 + $0x142] sm:$0xff]
      %v979 = vld [vmem:[#allocation2 + $0x152] sm:$0xff]
      %v980 = vld [vmem:[#allocation2 + $0x15a] sm:$0xff]
      %v981 = vld [vmem:[#allocation2 + $0x16a] sm:$0xff]
      %v982 = vld [vmem:[#allocation2 + $0x172] sm:$0xff]
      %v983 = vpack.c.bf16 %v952, %v951
      %v984 = vpack.c.bf16 %v954, %v953
      %v985 = vpack.c.bf16 %v956, %v955
      %v986 = vpack.c.bf16 %v958, %v957
      %v987 = vpack.c.bf16 %v960, %v959
      %v988 = vpack.c.bf16 %v962, %v961
      %v989 = vpack.c.bf16 %v964, %v963
      %v990 = vpack.c.bf16 %v966, %v965
      %v991 = vpack.c.bf16 %v968, %v967
      %v992 = vpack.c.bf16 %v970, %v969
      %v993 = vpack.c.bf16 %v972, %v971
      %v994 = vpack.c.bf16 %v974, %v973
      %v995 = vpack.c.bf16 %v976, %v975
      %v996 = vpack.c.bf16 %v978, %v977
      %v997 = vpack.c.bf16 %v980, %v979
      %v998 = vpack.c.bf16 %v982, %v981
      %v1015 = vunpack.c.l.b16 %v983
      %v1016 = vunpack.c.h.b16 %v983
      %v1017 = vunpack.c.l.b16 %v984
      %v1018 = vunpack.c.h.b16 %v984
      %v1019 = vunpack.c.l.b16 %v985
      %v1020 = vunpack.c.h.b16 %v985
      %v1021 = vunpack.c.l.b16 %v986
      %v1022 = vunpack.c.h.b16 %v986
      %v1023 = vunpack.c.l.b16 %v987
      %v1024 = vunpack.c.h.b16 %v987
      %v1025 = vunpack.c.l.b16 %v988
      %v1026 = vunpack.c.h.b16 %v988
      %v1027 = vunpack.c.l.b16 %v989
      %v1028 = vunpack.c.h.b16 %v989
      %v1029 = vunpack.c.l.b16 %v990
      %v1030 = vunpack.c.h.b16 %v990
      %v1031 = vunpack.c.l.b16 %v991
      %v1032 = vunpack.c.h.b16 %v991
      %v1033 = vunpack.c.l.b16 %v992
      %v1034 = vunpack.c.h.b16 %v992
      %v1035 = vunpack.c.l.b16 %v993
      %v1036 = vunpack.c.h.b16 %v993
      %v1037 = vunpack.c.l.b16 %v994
      %v1038 = vunpack.c.h.b16 %v994
      %v1039 = vunpack.c.l.b16 %v995
      %v1040 = vunpack.c.h.b16 %v995
      %v1041 = vunpack.c.l.b16 %v996
      %v1042 = vunpack.c.h.b16 %v996
      %v1043 = vunpack.c.l.b16 %v997
      %v1044 = vunpack.c.h.b16 %v997
      %v1045 = vunpack.c.l.b16 %v998
      %v1046 = vunpack.c.h.b16 %v998
      %v1047 = vpack.c.b16 %v1015, %v1015
      %v1048 = vpack.c.b16 %v1016, %v1016
      %v1049 = vpack.c.b16 %v1017, %v1017
      %v1050 = vpack.c.b16 %v1018, %v1018
      %v1051 = vpack.c.b16 %v1019, %v1019
      %v1052 = vpack.c.b16 %v1020, %v1020
      %v1053 = vpack.c.b16 %v1021, %v1021
      %v1054 = vpack.c.b16 %v1022, %v1022
      %v1055 = vpack.c.b16 %v1023, %v1023
      %v1056 = vpack.c.b16 %v1024, %v1024
      %v1057 = vpack.c.b16 %v1025, %v1025
      %v1058 = vpack.c.b16 %v1026, %v1026
      %v1059 = vpack.c.b16 %v1027, %v1027
      %v1060 = vpack.c.b16 %v1028, %v1028
      %v1061 = vpack.c.b16 %v1029, %v1029
      %v1062 = vpack.c.b16 %v1030, %v1030
      %v1063 = vpack.c.b16 %v1031, %v1031
      %v1064 = vpack.c.b16 %v1032, %v1032
      %v1065 = vpack.c.b16 %v1033, %v1033
      %v1066 = vpack.c.b16 %v1034, %v1034
      %v1067 = vpack.c.b16 %v1035, %v1035
      %v1068 = vpack.c.b16 %v1036, %v1036
      %v1069 = vpack.c.b16 %v1037, %v1037
      %v1070 = vpack.c.b16 %v1038, %v1038
      %v1071 = vpack.c.b16 %v1039, %v1039
      %v1072 = vpack.c.b16 %v1040, %v1040
      %v1073 = vpack.c.b16 %v1041, %v1041
      %v1074 = vpack.c.b16 %v1042, %v1042
      %v1075 = vpack.c.b16 %v1043, %v1043
      %v1076 = vpack.c.b16 %v1044, %v1044
      %v1077 = vpack.c.b16 %v1045, %v1045
      %v1078 = vpack.c.b16 %v1046, %v1046
      %1111 = vst.msk [vmem:[#allocation4 + $0x4] sm:$0xf] %vm661, %v1047
      %1112 = vst.msk [vmem:[#allocation4 + $0x18] sm:$0xf] %vm661, %v1048
      %1113 = vst.msk [vmem:[#allocation4 + $0x2c] sm:$0xf] %vm661, %v1049
      %1114 = vst.msk [vmem:[#allocation4 + $0x40] sm:$0xf] %vm661, %v1050
      %1115 = vst.msk [vmem:[#allocation4 + $0x54] sm:$0xf] %vm661, %v1051
      %1116 = vst.msk [vmem:[#allocation4 + $0x68] sm:$0xf] %vm661, %v1052
      %1117 = vst.msk [vmem:[#allocation4 + $0x7c] sm:$0xf] %vm661, %v1053
      %1118 = vst.msk [vmem:[#allocation4 + $0x90] sm:$0xf] %vm661, %v1054
      %1119 = vst.msk [vmem:[#allocation4 + $0xa4] sm:$0xf] %vm661, %v1055
      %1120 = vst.msk [vmem:[#allocation4 + $0xb8] sm:$0xf] %vm661, %v1056
      %1121 = vst.msk [vmem:[#allocation4 + $0xcc] sm:$0xf] %vm661, %v1057
      %1122 = vst.msk [vmem:[#allocation4 + $0xe0] sm:$0xf] %vm661, %v1058
      %1123 = vst.msk [vmem:[#allocation4 + $0xf4] sm:$0xf] %vm661, %v1059
      %1124 = vst.msk [vmem:[#allocation4 + $0x108] sm:$0xf] %vm661, %v1060
      %1125 = vst.msk [vmem:[#allocation4 + $0x11c] sm:$0xf] %vm661, %v1061
      %1126 = vst.msk [vmem:[#allocation4 + $0x130] sm:$0xf] %vm661, %v1062
      %1127 = vst.msk [vmem:[#allocation4 + $0x144] sm:$0xf] %vm661, %v1063
      %1128 = vst.msk [vmem:[#allocation4 + $0x158] sm:$0xf] %vm661, %v1064
      %1129 = vst.msk [vmem:[#allocation4 + $0x16c] sm:$0xf] %vm661, %v1065
      %1130 = vst.msk [vmem:[#allocation4 + $0x180] sm:$0xf] %vm661, %v1066
      %1131 = vst.msk [vmem:[#allocation4 + $0x194] sm:$0xf] %vm661, %v1067
      %1132 = vst.msk [vmem:[#allocation4 + $0x1a8] sm:$0xf] %vm661, %v1068
      %1133 = vst.msk [vmem:[#allocation4 + $0x1bc] sm:$0xf] %vm661, %v1069
      %1134 = vst.msk [vmem:[#allocation4 + $0x1d0] sm:$0xf] %vm661, %v1070
      %1135 = vst.msk [vmem:[#allocation4 + $0x1e4] sm:$0xf] %vm661, %v1071
      %1136 = vst.msk [vmem:[#allocation4 + $0x1f8] sm:$0xf] %vm661, %v1072
      %1137 = vst.msk [vmem:[#allocation4 + $0x20c] sm:$0xf] %vm661, %v1073
      %1138 = vst.msk [vmem:[#allocation4 + $0x220] sm:$0xf] %vm661, %v1074
      %1139 = vst.msk [vmem:[#allocation4 + $0x234] sm:$0xf] %vm661, %v1075
      %1140 = vst.msk [vmem:[#allocation4 + $0x248] sm:$0xf] %vm661, %v1076
      %1141 = vst.msk [vmem:[#allocation4 + $0x25c] sm:$0xf] %vm661, %v1077
      %1142 = vst.msk [vmem:[#allocation4 + $0x270] sm:$0xf] %vm661, %v1078
      %v1143 = vld [vmem:[%s468] sm:$0xff]
      %v1144 = vld [vmem:[%s468 + $0x8] sm:$0xff]
      %v1145 = vld [vmem:[%s468 + $0x18] sm:$0xff]
      %v1146 = vld [vmem:[%s468 + $0x20] sm:$0xff]
      %v1147 = vld [vmem:[%s468 + $0x30] sm:$0xff]
      %v1148 = vld [vmem:[%s468 + $0x38] sm:$0xff]
      %v1149 = vld [vmem:[%s468 + $0x48] sm:$0xff]
      %v1150 = vld [vmem:[%s468 + $0x50] sm:$0xff]
      %v1151 = vld [vmem:[%s468 + $0x60] sm:$0xff]
      %v1152 = vld [vmem:[%s468 + $0x68] sm:$0xff]
      %v1153 = vld [vmem:[%s468 + $0x78] sm:$0xff]
      %v1154 = vld [vmem:[%s468 + $0x80] sm:$0xff]
      %v1155 = vld [vmem:[%s468 + $0x90] sm:$0xff]
      %v1156 = vld [vmem:[%s468 + $0x98] sm:$0xff]
      %v1157 = vld [vmem:[%s468 + $0xa8] sm:$0xff]
      %v1158 = vld [vmem:[%s468 + $0xb0] sm:$0xff]
      %v1159 = vld [vmem:[%s468 + $0xc0] sm:$0xff]
      %v1160 = vld [vmem:[%s468 + $0xc8] sm:$0xff]
      %v1161 = vld [vmem:[%s468 + $0xd8] sm:$0xff]
      %v1162 = vld [vmem:[%s468 + $0xe0] sm:$0xff]
      %v1163 = vld [vmem:[%s468 + $0xf0] sm:$0xff]
      %v1164 = vld [vmem:[%s468 + $0xf8] sm:$0xff]
      %v1165 = vld [vmem:[%s468 + $0x108] sm:$0xff]
      %v1166 = vld [vmem:[%s468 + $0x110] sm:$0xff]
      %v1167 = vld [vmem:[%s468 + $0x120] sm:$0xff]
      %v1168 = vld [vmem:[%s468 + $0x128] sm:$0xff]
      %v1169 = vld [vmem:[%s468 + $0x138] sm:$0xff]
      %v1170 = vld [vmem:[%s468 + $0x140] sm:$0xff]
      %v1171 = vld [vmem:[%s468 + $0x150] sm:$0xff]
      %v1172 = vld [vmem:[%s468 + $0x158] sm:$0xff]
      %v1173 = vld [vmem:[%s468 + $0x168] sm:$0xff]
      %v1174 = vld [vmem:[%s468 + $0x170] sm:$0xff]
      %v1175 = vpack.c.bf16 %v1144, %v1143
      %v1176 = vpack.c.bf16 %v1146, %v1145
      %v1177 = vpack.c.bf16 %v1148, %v1147
      %v1178 = vpack.c.bf16 %v1150, %v1149
      %v1179 = vpack.c.bf16 %v1152, %v1151
      %v1180 = vpack.c.bf16 %v1154, %v1153
      %v1181 = vpack.c.bf16 %v1156, %v1155
      %v1182 = vpack.c.bf16 %v1158, %v1157
      %v1183 = vpack.c.bf16 %v1160, %v1159
      %v1184 = vpack.c.bf16 %v1162, %v1161
      %v1185 = vpack.c.bf16 %v1164, %v1163
      %v1186 = vpack.c.bf16 %v1166, %v1165
      %v1187 = vpack.c.bf16 %v1168, %v1167
      %v1188 = vpack.c.bf16 %v1170, %v1169
      %v1189 = vpack.c.bf16 %v1172, %v1171
      %v1190 = vpack.c.bf16 %v1174, %v1173
      %v1207 = vunpack.c.l.b16 %v1175
      %v1208 = vunpack.c.h.b16 %v1175
      %v1209 = vunpack.c.l.b16 %v1176
      %v1210 = vunpack.c.h.b16 %v1176
      %v1211 = vunpack.c.l.b16 %v1177
      %v1212 = vunpack.c.h.b16 %v1177
      %v1213 = vunpack.c.l.b16 %v1178
      %v1214 = vunpack.c.h.b16 %v1178
      %v1215 = vunpack.c.l.b16 %v1179
      %v1216 = vunpack.c.h.b16 %v1179
      %v1217 = vunpack.c.l.b16 %v1180
      %v1218 = vunpack.c.h.b16 %v1180
      %v1219 = vunpack.c.l.b16 %v1181
      %v1220 = vunpack.c.h.b16 %v1181
      %v1221 = vunpack.c.l.b16 %v1182
      %v1222 = vunpack.c.h.b16 %v1182
      %v1223 = vunpack.c.l.b16 %v1183
      %v1224 = vunpack.c.h.b16 %v1183
      %v1225 = vunpack.c.l.b16 %v1184
      %v1226 = vunpack.c.h.b16 %v1184
      %v1227 = vunpack.c.l.b16 %v1185
      %v1228 = vunpack.c.h.b16 %v1185
      %v1229 = vunpack.c.l.b16 %v1186
      %v1230 = vunpack.c.h.b16 %v1186
      %v1231 = vunpack.c.l.b16 %v1187
      %v1232 = vunpack.c.h.b16 %v1187
      %v1233 = vunpack.c.l.b16 %v1188
      %v1234 = vunpack.c.h.b16 %v1188
      %v1235 = vunpack.c.l.b16 %v1189
      %v1236 = vunpack.c.h.b16 %v1189
      %v1237 = vunpack.c.l.b16 %v1190
      %v1238 = vunpack.c.h.b16 %v1190
      %v1239 = vpack.c.b16 %v1207, %v1207
      %v1240 = vpack.c.b16 %v1208, %v1208
      %v1241 = vpack.c.b16 %v1209, %v1209
      %v1242 = vpack.c.b16 %v1210, %v1210
      %v1243 = vpack.c.b16 %v1211, %v1211
      %v1244 = vpack.c.b16 %v1212, %v1212
      %v1245 = vpack.c.b16 %v1213, %v1213
      %v1246 = vpack.c.b16 %v1214, %v1214
      %v1247 = vpack.c.b16 %v1215, %v1215
      %v1248 = vpack.c.b16 %v1216, %v1216
      %v1249 = vpack.c.b16 %v1217, %v1217
      %v1250 = vpack.c.b16 %v1218, %v1218
      %v1251 = vpack.c.b16 %v1219, %v1219
      %v1252 = vpack.c.b16 %v1220, %v1220
      %v1253 = vpack.c.b16 %v1221, %v1221
      %v1254 = vpack.c.b16 %v1222, %v1222
      %v1255 = vpack.c.b16 %v1223, %v1223
      %v1256 = vpack.c.b16 %v1224, %v1224
      %v1257 = vpack.c.b16 %v1225, %v1225
      %v1258 = vpack.c.b16 %v1226, %v1226
      %v1259 = vpack.c.b16 %v1227, %v1227
      %v1260 = vpack.c.b16 %v1228, %v1228
      %v1261 = vpack.c.b16 %v1229, %v1229
      %v1262 = vpack.c.b16 %v1230, %v1230
      %v1263 = vpack.c.b16 %v1231, %v1231
      %v1264 = vpack.c.b16 %v1232, %v1232
      %v1265 = vpack.c.b16 %v1233, %v1233
      %v1266 = vpack.c.b16 %v1234, %v1234
      %v1267 = vpack.c.b16 %v1235, %v1235
      %v1268 = vpack.c.b16 %v1236, %v1236
      %v1269 = vpack.c.b16 %v1237, %v1237
      %v1270 = vpack.c.b16 %v1238, %v1238
      %1271 = vrot.lane.b32.xlu0 %v1239, 64
      %v1272 = vpop.permute.xlu0 %1271
      %1273 = vrot.lane.b32.xlu0 %v1240, 64
      %v1274 = vpop.permute.xlu0 %1273
      %1275 = vrot.lane.b32.xlu0 %v1241, 64
      %v1276 = vpop.permute.xlu0 %1275
      %1277 = vrot.lane.b32.xlu0 %v1242, 64
      %v1278 = vpop.permute.xlu0 %1277
      %1279 = vrot.lane.b32.xlu0 %v1243, 64
      %v1280 = vpop.permute.xlu0 %1279
      %1281 = vrot.lane.b32.xlu0 %v1244, 64
      %v1282 = vpop.permute.xlu0 %1281
      %1283 = vrot.lane.b32.xlu0 %v1245, 64
      %v1284 = vpop.permute.xlu0 %1283
      %1285 = vrot.lane.b32.xlu0 %v1246, 64
      %v1286 = vpop.permute.xlu0 %1285
      %1287 = vrot.lane.b32.xlu0 %v1247, 64
      %v1288 = vpop.permute.xlu0 %1287
      %1289 = vrot.lane.b32.xlu0 %v1248, 64
      %v1290 = vpop.permute.xlu0 %1289
      %1291 = vrot.lane.b32.xlu0 %v1249, 64
      %v1292 = vpop.permute.xlu0 %1291
      %1293 = vrot.lane.b32.xlu0 %v1250, 64
      %v1294 = vpop.permute.xlu0 %1293
      %1295 = vrot.lane.b32.xlu0 %v1251, 64
      %v1296 = vpop.permute.xlu0 %1295
      %1297 = vrot.lane.b32.xlu0 %v1252, 64
      %v1298 = vpop.permute.xlu0 %1297
      %1299 = vrot.lane.b32.xlu0 %v1253, 64
      %v1300 = vpop.permute.xlu0 %1299
      %1301 = vrot.lane.b32.xlu0 %v1254, 64
      %v1302 = vpop.permute.xlu0 %1301
      %1303 = vrot.lane.b32.xlu0 %v1255, 64
      %v1304 = vpop.permute.xlu0 %1303
      %1305 = vrot.lane.b32.xlu0 %v1256, 64
      %v1306 = vpop.permute.xlu0 %1305
      %1307 = vrot.lane.b32.xlu0 %v1257, 64
      %v1308 = vpop.permute.xlu0 %1307
      %1309 = vrot.lane.b32.xlu0 %v1258, 64
      %v1310 = vpop.permute.xlu0 %1309
      %1311 = vrot.lane.b32.xlu0 %v1259, 64
      %v1312 = vpop.permute.xlu0 %1311
      %1313 = vrot.lane.b32.xlu0 %v1260, 64
      %v1314 = vpop.permute.xlu0 %1313
      %1315 = vrot.lane.b32.xlu0 %v1261, 64
      %v1316 = vpop.permute.xlu0 %1315
      %1317 = vrot.lane.b32.xlu0 %v1262, 64
      %v1318 = vpop.permute.xlu0 %1317
      %1319 = vrot.lane.b32.xlu0 %v1263, 64
      %v1320 = vpop.permute.xlu0 %1319
      %1321 = vrot.lane.b32.xlu0 %v1264, 64
      %v1322 = vpop.permute.xlu0 %1321
      %1323 = vrot.lane.b32.xlu0 %v1265, 64
      %v1324 = vpop.permute.xlu0 %1323
      %1325 = vrot.lane.b32.xlu0 %v1266, 64
      %v1326 = vpop.permute.xlu0 %1325
      %1327 = vrot.lane.b32.xlu0 %v1267, 64
      %v1328 = vpop.permute.xlu0 %1327
      %1329 = vrot.lane.b32.xlu0 %v1268, 64
      %v1330 = vpop.permute.xlu0 %1329
      %1331 = vrot.lane.b32.xlu0 %v1269, 64
      %v1332 = vpop.permute.xlu0 %1331
      %1333 = vrot.lane.b32.xlu0 %v1270, 64
      %v1334 = vpop.permute.xlu0 %1333
      %1367 = vst.msk [vmem:[#allocation4 + $0x4] sm:$0xf] %vm918, %v1272
      %1368 = vst.msk [vmem:[#allocation4 + $0x18] sm:$0xf] %vm918, %v1274
      %1369 = vst.msk [vmem:[#allocation4 + $0x2c] sm:$0xf] %vm918, %v1276
      %1370 = vst.msk [vmem:[#allocation4 + $0x40] sm:$0xf] %vm918, %v1278
      %1371 = vst.msk [vmem:[#allocation4 + $0x54] sm:$0xf] %vm918, %v1280
      %1372 = vst.msk [vmem:[#allocation4 + $0x68] sm:$0xf] %vm918, %v1282
      %1373 = vst.msk [vmem:[#allocation4 + $0x7c] sm:$0xf] %vm918, %v1284
      %1374 = vst.msk [vmem:[#allocation4 + $0x90] sm:$0xf] %vm918, %v1286
      %1375 = vst.msk [vmem:[#allocation4 + $0xa4] sm:$0xf] %vm918, %v1288
      %1376 = vst.msk [vmem:[#allocation4 + $0xb8] sm:$0xf] %vm918, %v1290
      %1377 = vst.msk [vmem:[#allocation4 + $0xcc] sm:$0xf] %vm918, %v1292
      %1378 = vst.msk [vmem:[#allocation4 + $0xe0] sm:$0xf] %vm918, %v1294
      %1379 = vst.msk [vmem:[#allocation4 + $0xf4] sm:$0xf] %vm918, %v1296
      %1380 = vst.msk [vmem:[#allocation4 + $0x108] sm:$0xf] %vm918, %v1298
      %1381 = vst.msk [vmem:[#allocation4 + $0x11c] sm:$0xf] %vm918, %v1300
      %1382 = vst.msk [vmem:[#allocation4 + $0x130] sm:$0xf] %vm918, %v1302
      %1383 = vst.msk [vmem:[#allocation4 + $0x144] sm:$0xf] %vm918, %v1304
      %1384 = vst.msk [vmem:[#allocation4 + $0x158] sm:$0xf] %vm918, %v1306
      %1385 = vst.msk [vmem:[#allocation4 + $0x16c] sm:$0xf] %vm918, %v1308
      %1386 = vst.msk [vmem:[#allocation4 + $0x180] sm:$0xf] %vm918, %v1310
      %1387 = vst.msk [vmem:[#allocation4 + $0x194] sm:$0xf] %vm918, %v1312
      %1388 = vst.msk [vmem:[#allocation4 + $0x1a8] sm:$0xf] %vm918, %v1314
      %1389 = vst.msk [vmem:[#allocation4 + $0x1bc] sm:$0xf] %vm918, %v1316
      %1390 = vst.msk [vmem:[#allocation4 + $0x1d0] sm:$0xf] %vm918, %v1318
      %1391 = vst.msk [vmem:[#allocation4 + $0x1e4] sm:$0xf] %vm918, %v1320
      %1392 = vst.msk [vmem:[#allocation4 + $0x1f8] sm:$0xf] %vm918, %v1322
      %1393 = vst.msk [vmem:[#allocation4 + $0x20c] sm:$0xf] %vm918, %v1324
      %1394 = vst.msk [vmem:[#allocation4 + $0x220] sm:$0xf] %vm918, %v1326
      %1395 = vst.msk [vmem:[#allocation4 + $0x234] sm:$0xf] %vm918, %v1328
      %1396 = vst.msk [vmem:[#allocation4 + $0x248] sm:$0xf] %vm918, %v1330
      %1397 = vst.msk [vmem:[#allocation4 + $0x25c] sm:$0xf] %vm918, %v1332
      %1398 = vst.msk [vmem:[#allocation4 + $0x270] sm:$0xf] %vm918, %v1334
      %v1399 = vld [vmem:[%s468 + $0x1] sm:$0xff]
      %v1400 = vld [vmem:[%s468 + $0x9] sm:$0xff]
      %v1401 = vld [vmem:[%s468 + $0x19] sm:$0xff]
      %v1402 = vld [vmem:[%s468 + $0x21] sm:$0xff]
      %v1403 = vld [vmem:[%s468 + $0x31] sm:$0xff]
      %v1404 = vld [vmem:[%s468 + $0x39] sm:$0xff]
      %v1405 = vld [vmem:[%s468 + $0x49] sm:$0xff]
      %v1406 = vld [vmem:[%s468 + $0x51] sm:$0xff]
      %v1407 = vld [vmem:[%s468 + $0x61] sm:$0xff]
      %v1408 = vld [vmem:[%s468 + $0x69] sm:$0xff]
      %v1409 = vld [vmem:[%s468 + $0x79] sm:$0xff]
      %v1410 = vld [vmem:[%s468 + $0x81] sm:$0xff]
      %v1411 = vld [vmem:[%s468 + $0x91] sm:$0xff]
      %v1412 = vld [vmem:[%s468 + $0x99] sm:$0xff]
      %v1413 = vld [vmem:[%s468 + $0xa9] sm:$0xff]
      %v1414 = vld [vmem:[%s468 + $0xb1] sm:$0xff]
      %v1415 = vld [vmem:[%s468 + $0xc1] sm:$0xff]
      %v1416 = vld [vmem:[%s468 + $0xc9] sm:$0xff]
      %v1417 = vld [vmem:[%s468 + $0xd9] sm:$0xff]
      %v1418 = vld [vmem:[%s468 + $0xe1] sm:$0xff]
      %v1419 = vld [vmem:[%s468 + $0xf1] sm:$0xff]
      %v1420 = vld [vmem:[%s468 + $0xf9] sm:$0xff]
      %v1421 = vld [vmem:[%s468 + $0x109] sm:$0xff]
      %v1422 = vld [vmem:[%s468 + $0x111] sm:$0xff]
      %v1423 = vld [vmem:[%s468 + $0x121] sm:$0xff]
      %v1424 = vld [vmem:[%s468 + $0x129] sm:$0xff]
      %v1425 = vld [vmem:[%s468 + $0x139] sm:$0xff]
      %v1426 = vld [vmem:[%s468 + $0x141] sm:$0xff]
      %v1427 = vld [vmem:[%s468 + $0x151] sm:$0xff]
      %v1428 = vld [vmem:[%s468 + $0x159] sm:$0xff]
      %v1429 = vld [vmem:[%s468 + $0x169] sm:$0xff]
      %v1430 = vld [vmem:[%s468 + $0x171] sm:$0xff]
      %v1431 = vpack.c.bf16 %v1400, %v1399
      %v1432 = vpack.c.bf16 %v1402, %v1401
      %v1433 = vpack.c.bf16 %v1404, %v1403
      %v1434 = vpack.c.bf16 %v1406, %v1405
      %v1435 = vpack.c.bf16 %v1408, %v1407
      %v1436 = vpack.c.bf16 %v1410, %v1409
      %v1437 = vpack.c.bf16 %v1412, %v1411
      %v1438 = vpack.c.bf16 %v1414, %v1413
      %v1439 = vpack.c.bf16 %v1416, %v1415
      %v1440 = vpack.c.bf16 %v1418, %v1417
      %v1441 = vpack.c.bf16 %v1420, %v1419
      %v1442 = vpack.c.bf16 %v1422, %v1421
      %v1443 = vpack.c.bf16 %v1424, %v1423
      %v1444 = vpack.c.bf16 %v1426, %v1425
      %v1445 = vpack.c.bf16 %v1428, %v1427
      %v1446 = vpack.c.bf16 %v1430, %v1429
      %v1463 = vunpack.c.l.b16 %v1431
      %v1464 = vunpack.c.h.b16 %v1431
      %v1465 = vunpack.c.l.b16 %v1432
      %v1466 = vunpack.c.h.b16 %v1432
      %v1467 = vunpack.c.l.b16 %v1433
      %v1468 = vunpack.c.h.b16 %v1433
      %v1469 = vunpack.c.l.b16 %v1434
      %v1470 = vunpack.c.h.b16 %v1434
      %v1471 = vunpack.c.l.b16 %v1435
      %v1472 = vunpack.c.h.b16 %v1435
      %v1473 = vunpack.c.l.b16 %v1436
      %v1474 = vunpack.c.h.b16 %v1436
      %v1475 = vunpack.c.l.b16 %v1437
      %v1476 = vunpack.c.h.b16 %v1437
      %v1477 = vunpack.c.l.b16 %v1438
      %v1478 = vunpack.c.h.b16 %v1438
      %v1479 = vunpack.c.l.b16 %v1439
      %v1480 = vunpack.c.h.b16 %v1439
      %v1481 = vunpack.c.l.b16 %v1440
      %v1482 = vunpack.c.h.b16 %v1440
      %v1483 = vunpack.c.l.b16 %v1441
      %v1484 = vunpack.c.h.b16 %v1441
      %v1485 = vunpack.c.l.b16 %v1442
      %v1486 = vunpack.c.h.b16 %v1442
      %v1487 = vunpack.c.l.b16 %v1443
      %v1488 = vunpack.c.h.b16 %v1443
      %v1489 = vunpack.c.l.b16 %v1444
      %v1490 = vunpack.c.h.b16 %v1444
      %v1491 = vunpack.c.l.b16 %v1445
      %v1492 = vunpack.c.h.b16 %v1445
      %v1493 = vunpack.c.l.b16 %v1446
      %v1494 = vunpack.c.h.b16 %v1446
      %v1495 = vpack.c.b16 %v1463, %v1463
      %v1496 = vpack.c.b16 %v1464, %v1464
      %v1497 = vpack.c.b16 %v1465, %v1465
      %v1498 = vpack.c.b16 %v1466, %v1466
      %v1499 = vpack.c.b16 %v1467, %v1467
      %v1500 = vpack.c.b16 %v1468, %v1468
      %v1501 = vpack.c.b16 %v1469, %v1469
      %v1502 = vpack.c.b16 %v1470, %v1470
      %v1503 = vpack.c.b16 %v1471, %v1471
      %v1504 = vpack.c.b16 %v1472, %v1472
      %v1505 = vpack.c.b16 %v1473, %v1473
      %v1506 = vpack.c.b16 %v1474, %v1474
      %v1507 = vpack.c.b16 %v1475, %v1475
      %v1508 = vpack.c.b16 %v1476, %v1476
      %v1509 = vpack.c.b16 %v1477, %v1477
      %v1510 = vpack.c.b16 %v1478, %v1478
      %v1511 = vpack.c.b16 %v1479, %v1479
      %v1512 = vpack.c.b16 %v1480, %v1480
      %v1513 = vpack.c.b16 %v1481, %v1481
      %v1514 = vpack.c.b16 %v1482, %v1482
      %v1515 = vpack.c.b16 %v1483, %v1483
      %v1516 = vpack.c.b16 %v1484, %v1484
      %v1517 = vpack.c.b16 %v1485, %v1485
      %v1518 = vpack.c.b16 %v1486, %v1486
      %v1519 = vpack.c.b16 %v1487, %v1487
      %v1520 = vpack.c.b16 %v1488, %v1488
      %v1521 = vpack.c.b16 %v1489, %v1489
      %v1522 = vpack.c.b16 %v1490, %v1490
      %v1523 = vpack.c.b16 %v1491, %v1491
      %v1524 = vpack.c.b16 %v1492, %v1492
      %v1525 = vpack.c.b16 %v1493, %v1493
      %v1526 = vpack.c.b16 %v1494, %v1494
      %1559 = vst.msk [vmem:[#allocation4 + $0x8] sm:$0xf] %vm661, %v1495
      %1560 = vst.msk [vmem:[#allocation4 + $0x1c] sm:$0xf] %vm661, %v1496
      %1561 = vst.msk [vmem:[#allocation4 + $0x30] sm:$0xf] %vm661, %v1497
      %1562 = vst.msk [vmem:[#allocation4 + $0x44] sm:$0xf] %vm661, %v1498
      %1563 = vst.msk [vmem:[#allocation4 + $0x58] sm:$0xf] %vm661, %v1499
      %1564 = vst.msk [vmem:[#allocation4 + $0x6c] sm:$0xf] %vm661, %v1500
      %1565 = vst.msk [vmem:[#allocation4 + $0x80] sm:$0xf] %vm661, %v1501
      %1566 = vst.msk [vmem:[#allocation4 + $0x94] sm:$0xf] %vm661, %v1502
      %1567 = vst.msk [vmem:[#allocation4 + $0xa8] sm:$0xf] %vm661, %v1503
      %1568 = vst.msk [vmem:[#allocation4 + $0xbc] sm:$0xf] %vm661, %v1504
      %1569 = vst.msk [vmem:[#allocation4 + $0xd0] sm:$0xf] %vm661, %v1505
      %1570 = vst.msk [vmem:[#allocation4 + $0xe4] sm:$0xf] %vm661, %v1506
      %1571 = vst.msk [vmem:[#allocation4 + $0xf8] sm:$0xf] %vm661, %v1507
      %1572 = vst.msk [vmem:[#allocation4 + $0x10c] sm:$0xf] %vm661, %v1508
      %1573 = vst.msk [vmem:[#allocation4 + $0x120] sm:$0xf] %vm661, %v1509
      %1574 = vst.msk [vmem:[#allocation4 + $0x134] sm:$0xf] %vm661, %v1510
      %1575 = vst.msk [vmem:[#allocation4 + $0x148] sm:$0xf] %vm661, %v1511
      %1576 = vst.msk [vmem:[#allocation4 + $0x15c] sm:$0xf] %vm661, %v1512
      %1577 = vst.msk [vmem:[#allocation4 + $0x170] sm:$0xf] %vm661, %v1513
      %1578 = vst.msk [vmem:[#allocation4 + $0x184] sm:$0xf] %vm661, %v1514
      %1579 = vst.msk [vmem:[#allocation4 + $0x198] sm:$0xf] %vm661, %v1515
      %1580 = vst.msk [vmem:[#allocation4 + $0x1ac] sm:$0xf] %vm661, %v1516
      %1581 = vst.msk [vmem:[#allocation4 + $0x1c0] sm:$0xf] %vm661, %v1517
      %1582 = vst.msk [vmem:[#allocation4 + $0x1d4] sm:$0xf] %vm661, %v1518
      %1583 = vst.msk [vmem:[#allocation4 + $0x1e8] sm:$0xf] %vm661, %v1519
      %1584 = vst.msk [vmem:[#allocation4 + $0x1fc] sm:$0xf] %vm661, %v1520
      %1585 = vst.msk [vmem:[#allocation4 + $0x210] sm:$0xf] %vm661, %v1521
      %1586 = vst.msk [vmem:[#allocation4 + $0x224] sm:$0xf] %vm661, %v1522
      %1587 = vst.msk [vmem:[#allocation4 + $0x238] sm:$0xf] %vm661, %v1523
      %1588 = vst.msk [vmem:[#allocation4 + $0x24c] sm:$0xf] %vm661, %v1524
      %1589 = vst.msk [vmem:[#allocation4 + $0x260] sm:$0xf] %vm661, %v1525
      %1590 = vst.msk [vmem:[#allocation4 + $0x274] sm:$0xf] %vm661, %v1526
      %v1591 = vld [vmem:[%s468 + $0x2] sm:$0xff]
      %v1592 = vld [vmem:[%s468 + $0xa] sm:$0xff]
      %v1593 = vld [vmem:[%s468 + $0x1a] sm:$0xff]
      %v1594 = vld [vmem:[%s468 + $0x22] sm:$0xff]
      %v1595 = vld [vmem:[%s468 + $0x32] sm:$0xff]
      %v1596 = vld [vmem:[%s468 + $0x3a] sm:$0xff]
      %v1597 = vld [vmem:[%s468 + $0x4a] sm:$0xff]
      %v1598 = vld [vmem:[%s468 + $0x52] sm:$0xff]
      %v1599 = vld [vmem:[%s468 + $0x62] sm:$0xff]
      %v1600 = vld [vmem:[%s468 + $0x6a] sm:$0xff]
      %v1601 = vld [vmem:[%s468 + $0x7a] sm:$0xff]
      %v1602 = vld [vmem:[%s468 + $0x82] sm:$0xff]
      %v1603 = vld [vmem:[%s468 + $0x92] sm:$0xff]
      %v1604 = vld [vmem:[%s468 + $0x9a] sm:$0xff]
      %v1605 = vld [vmem:[%s468 + $0xaa] sm:$0xff]
      %v1606 = vld [vmem:[%s468 + $0xb2] sm:$0xff]
      %v1607 = vld [vmem:[%s468 + $0xc2] sm:$0xff]
      %v1608 = vld [vmem:[%s468 + $0xca] sm:$0xff]
      %v1609 = vld [vmem:[%s468 + $0xda] sm:$0xff]
      %v1610 = vld [vmem:[%s468 + $0xe2] sm:$0xff]
      %v1611 = vld [vmem:[%s468 + $0xf2] sm:$0xff]
      %v1612 = vld [vmem:[%s468 + $0xfa] sm:$0xff]
      %v1613 = vld [vmem:[%s468 + $0x10a] sm:$0xff]
      %v1614 = vld [vmem:[%s468 + $0x112] sm:$0xff]
      %v1615 = vld [vmem:[%s468 + $0x122] sm:$0xff]
      %v1616 = vld [vmem:[%s468 + $0x12a] sm:$0xff]
      %v1617 = vld [vmem:[%s468 + $0x13a] sm:$0xff]
      %v1618 = vld [vmem:[%s468 + $0x142] sm:$0xff]
      %v1619 = vld [vmem:[%s468 + $0x152] sm:$0xff]
      %v1620 = vld [vmem:[%s468 + $0x15a] sm:$0xff]
      %v1621 = vld [vmem:[%s468 + $0x16a] sm:$0xff]
      %v1622 = vld [vmem:[%s468 + $0x172] sm:$0xff]
      %v1623 = vpack.c.bf16 %v1592, %v1591
      %v1624 = vpack.c.bf16 %v1594, %v1593
      %v1625 = vpack.c.bf16 %v1596, %v1595
      %v1626 = vpack.c.bf16 %v1598, %v1597
      %v1627 = vpack.c.bf16 %v1600, %v1599
      %v1628 = vpack.c.bf16 %v1602, %v1601
      %v1629 = vpack.c.bf16 %v1604, %v1603
      %v1630 = vpack.c.bf16 %v1606, %v1605
      %v1631 = vpack.c.bf16 %v1608, %v1607
      %v1632 = vpack.c.bf16 %v1610, %v1609
      %v1633 = vpack.c.bf16 %v1612, %v1611
      %v1634 = vpack.c.bf16 %v1614, %v1613
      %v1635 = vpack.c.bf16 %v1616, %v1615
      %v1636 = vpack.c.bf16 %v1618, %v1617
      %v1637 = vpack.c.bf16 %v1620, %v1619
      %v1638 = vpack.c.bf16 %v1622, %v1621
      %v1655 = vunpack.c.l.b16 %v1623
      %v1656 = vunpack.c.h.b16 %v1623
      %v1657 = vunpack.c.l.b16 %v1624
      %v1658 = vunpack.c.h.b16 %v1624
      %v1659 = vunpack.c.l.b16 %v1625
      %v1660 = vunpack.c.h.b16 %v1625
      %v1661 = vunpack.c.l.b16 %v1626
      %v1662 = vunpack.c.h.b16 %v1626
      %v1663 = vunpack.c.l.b16 %v1627
      %v1664 = vunpack.c.h.b16 %v1627
      %v1665 = vunpack.c.l.b16 %v1628
      %v1666 = vunpack.c.h.b16 %v1628
      %v1667 = vunpack.c.l.b16 %v1629
      %v1668 = vunpack.c.h.b16 %v1629
      %v1669 = vunpack.c.l.b16 %v1630
      %v1670 = vunpack.c.h.b16 %v1630
      %v1671 = vunpack.c.l.b16 %v1631
      %v1672 = vunpack.c.h.b16 %v1631
      %v1673 = vunpack.c.l.b16 %v1632
      %v1674 = vunpack.c.h.b16 %v1632
      %v1675 = vunpack.c.l.b16 %v1633
      %v1676 = vunpack.c.h.b16 %v1633
      %v1677 = vunpack.c.l.b16 %v1634
      %v1678 = vunpack.c.h.b16 %v1634
      %v1679 = vunpack.c.l.b16 %v1635
      %v1680 = vunpack.c.h.b16 %v1635
      %v1681 = vunpack.c.l.b16 %v1636
      %v1682 = vunpack.c.h.b16 %v1636
      %v1683 = vunpack.c.l.b16 %v1637
      %v1684 = vunpack.c.h.b16 %v1637
      %v1685 = vunpack.c.l.b16 %v1638
      %v1686 = vunpack.c.h.b16 %v1638
      %v1687 = vpack.c.b16 %v1655, %v1655
      %v1688 = vpack.c.b16 %v1656, %v1656
      %v1689 = vpack.c.b16 %v1657, %v1657
      %v1690 = vpack.c.b16 %v1658, %v1658
      %v1691 = vpack.c.b16 %v1659, %v1659
      %v1692 = vpack.c.b16 %v1660, %v1660
      %v1693 = vpack.c.b16 %v1661, %v1661
      %v1694 = vpack.c.b16 %v1662, %v1662
      %v1695 = vpack.c.b16 %v1663, %v1663
      %v1696 = vpack.c.b16 %v1664, %v1664
      %v1697 = vpack.c.b16 %v1665, %v1665
      %v1698 = vpack.c.b16 %v1666, %v1666
      %v1699 = vpack.c.b16 %v1667, %v1667
      %v1700 = vpack.c.b16 %v1668, %v1668
      %v1701 = vpack.c.b16 %v1669, %v1669
      %v1702 = vpack.c.b16 %v1670, %v1670
      %v1703 = vpack.c.b16 %v1671, %v1671
      %v1704 = vpack.c.b16 %v1672, %v1672
      %v1705 = vpack.c.b16 %v1673, %v1673
      %v1706 = vpack.c.b16 %v1674, %v1674
      %v1707 = vpack.c.b16 %v1675, %v1675
      %v1708 = vpack.c.b16 %v1676, %v1676
      %v1709 = vpack.c.b16 %v1677, %v1677
      %v1710 = vpack.c.b16 %v1678, %v1678
      %v1711 = vpack.c.b16 %v1679, %v1679
      %v1712 = vpack.c.b16 %v1680, %v1680
      %v1713 = vpack.c.b16 %v1681, %v1681
      %v1714 = vpack.c.b16 %v1682, %v1682
      %v1715 = vpack.c.b16 %v1683, %v1683
      %v1716 = vpack.c.b16 %v1684, %v1684
      %v1717 = vpack.c.b16 %v1685, %v1685
      %v1718 = vpack.c.b16 %v1686, %v1686
      %1719 = vrot.lane.b32.xlu0 %v1687, 64
      %v1720 = vpop.permute.xlu0 %1719
      %1721 = vrot.lane.b32.xlu0 %v1688, 64
      %v1722 = vpop.permute.xlu0 %1721
      %1723 = vrot.lane.b32.xlu0 %v1689, 64
      %v1724 = vpop.permute.xlu0 %1723
      %1725 = vrot.lane.b32.xlu0 %v1690, 64
      %v1726 = vpop.permute.xlu0 %1725
      %1727 = vrot.lane.b32.xlu0 %v1691, 64
      %v1728 = vpop.permute.xlu0 %1727
      %1729 = vrot.lane.b32.xlu0 %v1692, 64
      %v1730 = vpop.permute.xlu0 %1729
      %1731 = vrot.lane.b32.xlu0 %v1693, 64
      %v1732 = vpop.permute.xlu0 %1731
      %1733 = vrot.lane.b32.xlu0 %v1694, 64
      %v1734 = vpop.permute.xlu0 %1733
      %1735 = vrot.lane.b32.xlu0 %v1695, 64
      %v1736 = vpop.permute.xlu0 %1735
      %1737 = vrot.lane.b32.xlu0 %v1696, 64
      %v1738 = vpop.permute.xlu0 %1737
      %1739 = vrot.lane.b32.xlu0 %v1697, 64
      %v1740 = vpop.permute.xlu0 %1739
      %1741 = vrot.lane.b32.xlu0 %v1698, 64
      %v1742 = vpop.permute.xlu0 %1741
      %1743 = vrot.lane.b32.xlu0 %v1699, 64
      %v1744 = vpop.permute.xlu0 %1743
      %1745 = vrot.lane.b32.xlu0 %v1700, 64
      %v1746 = vpop.permute.xlu0 %1745
      %1747 = vrot.lane.b32.xlu0 %v1701, 64
      %v1748 = vpop.permute.xlu0 %1747
      %1749 = vrot.lane.b32.xlu0 %v1702, 64
      %v1750 = vpop.permute.xlu0 %1749
      %1751 = vrot.lane.b32.xlu0 %v1703, 64
      %v1752 = vpop.permute.xlu0 %1751
      %1753 = vrot.lane.b32.xlu0 %v1704, 64
      %v1754 = vpop.permute.xlu0 %1753
      %1755 = vrot.lane.b32.xlu0 %v1705, 64
      %v1756 = vpop.permute.xlu0 %1755
      %1757 = vrot.lane.b32.xlu0 %v1706, 64
      %v1758 = vpop.permute.xlu0 %1757
      %1759 = vrot.lane.b32.xlu0 %v1707, 64
      %v1760 = vpop.permute.xlu0 %1759
      %1761 = vrot.lane.b32.xlu0 %v1708, 64
      %v1762 = vpop.permute.xlu0 %1761
      %1763 = vrot.lane.b32.xlu0 %v1709, 64
      %v1764 = vpop.permute.xlu0 %1763
      %1765 = vrot.lane.b32.xlu0 %v1710, 64
      %v1766 = vpop.permute.xlu0 %1765
      %1767 = vrot.lane.b32.xlu0 %v1711, 64
      %v1768 = vpop.permute.xlu0 %1767
      %1769 = vrot.lane.b32.xlu0 %v1712, 64
      %v1770 = vpop.permute.xlu0 %1769
      %1771 = vrot.lane.b32.xlu0 %v1713, 64
      %v1772 = vpop.permute.xlu0 %1771
      %1773 = vrot.lane.b32.xlu0 %v1714, 64
      %v1774 = vpop.permute.xlu0 %1773
      %1775 = vrot.lane.b32.xlu0 %v1715, 64
      %v1776 = vpop.permute.xlu0 %1775
      %1777 = vrot.lane.b32.xlu0 %v1716, 64
      %v1778 = vpop.permute.xlu0 %1777
      %1779 = vrot.lane.b32.xlu0 %v1717, 64
      %v1780 = vpop.permute.xlu0 %1779
      %1781 = vrot.lane.b32.xlu0 %v1718, 64
      %v1782 = vpop.permute.xlu0 %1781
      %1815 = vst.msk [vmem:[#allocation4 + $0x8] sm:$0xf] %vm918, %v1720
      %1816 = vst.msk [vmem:[#allocation4 + $0x1c] sm:$0xf] %vm918, %v1722
      %1817 = vst.msk [vmem:[#allocation4 + $0x30] sm:$0xf] %vm918, %v1724
      %1818 = vst.msk [vmem:[#allocation4 + $0x44] sm:$0xf] %vm918, %v1726
      %1819 = vst.msk [vmem:[#allocation4 + $0x58] sm:$0xf] %vm918, %v1728
      %1820 = vst.msk [vmem:[#allocation4 + $0x6c] sm:$0xf] %vm918, %v1730
      %1821 = vst.msk [vmem:[#allocation4 + $0x80] sm:$0xf] %vm918, %v1732
      %1822 = vst.msk [vmem:[#allocation4 + $0x94] sm:$0xf] %vm918, %v1734
      %1823 = vst.msk [vmem:[#allocation4 + $0xa8] sm:$0xf] %vm918, %v1736
      %1824 = vst.msk [vmem:[#allocation4 + $0xbc] sm:$0xf] %vm918, %v1738
      %1825 = vst.msk [vmem:[#allocation4 + $0xd0] sm:$0xf] %vm918, %v1740
      %1826 = vst.msk [vmem:[#allocation4 + $0xe4] sm:$0xf] %vm918, %v1742
      %1827 = vst.msk [vmem:[#allocation4 + $0xf8] sm:$0xf] %vm918, %v1744
      %1828 = vst.msk [vmem:[#allocation4 + $0x10c] sm:$0xf] %vm918, %v1746
      %1829 = vst.msk [vmem:[#allocation4 + $0x120] sm:$0xf] %vm918, %v1748
      %1830 = vst.msk [vmem:[#allocation4 + $0x134] sm:$0xf] %vm918, %v1750
      %1831 = vst.msk [vmem:[#allocation4 + $0x148] sm:$0xf] %vm918, %v1752
      %1832 = vst.msk [vmem:[#allocation4 + $0x15c] sm:$0xf] %vm918, %v1754
      %1833 = vst.msk [vmem:[#allocation4 + $0x170] sm:$0xf] %vm918, %v1756
      %1834 = vst.msk [vmem:[#allocation4 + $0x184] sm:$0xf] %vm918, %v1758
      %1835 = vst.msk [vmem:[#allocation4 + $0x198] sm:$0xf] %vm918, %v1760
      %1836 = vst.msk [vmem:[#allocation4 + $0x1ac] sm:$0xf] %vm918, %v1762
      %1837 = vst.msk [vmem:[#allocation4 + $0x1c0] sm:$0xf] %vm918, %v1764
      %1838 = vst.msk [vmem:[#allocation4 + $0x1d4] sm:$0xf] %vm918, %v1766
      %1839 = vst.msk [vmem:[#allocation4 + $0x1e8] sm:$0xf] %vm918, %v1768
      %1840 = vst.msk [vmem:[#allocation4 + $0x1fc] sm:$0xf] %vm918, %v1770
      %1841 = vst.msk [vmem:[#allocation4 + $0x210] sm:$0xf] %vm918, %v1772
      %1842 = vst.msk [vmem:[#allocation4 + $0x224] sm:$0xf] %vm918, %v1774
      %1843 = vst.msk [vmem:[#allocation4 + $0x238] sm:$0xf] %vm918, %v1776
      %1844 = vst.msk [vmem:[#allocation4 + $0x24c] sm:$0xf] %vm918, %v1778
      %1845 = vst.msk [vmem:[#allocation4 + $0x260] sm:$0xf] %vm918, %v1780
      %1846 = vst.msk [vmem:[#allocation4 + $0x274] sm:$0xf] %vm918, %v1782
      %s1847 = scalar_lea.vmem [#allocation2], 48
      %v1848 = vld [vmem:[%s1847] sm:$0xff]
      %v1849 = vld [vmem:[%s1847 + $0x8] sm:$0xff]
      %v1850 = vld [vmem:[%s1847 + $0x18] sm:$0xff]
      %v1851 = vld [vmem:[%s1847 + $0x20] sm:$0xff]
      %v1852 = vld [vmem:[%s1847 + $0x30] sm:$0xff]
      %v1853 = vld [vmem:[%s1847 + $0x38] sm:$0xff]
      %v1854 = vld [vmem:[%s1847 + $0x48] sm:$0xff]
      %v1855 = vld [vmem:[%s1847 + $0x50] sm:$0xff]
      %v1856 = vld [vmem:[%s1847 + $0x60] sm:$0xff]
      %v1857 = vld [vmem:[%s1847 + $0x68] sm:$0xff]
      %v1858 = vld [vmem:[%s1847 + $0x78] sm:$0xff]
      %v1859 = vld [vmem:[%s1847 + $0x80] sm:$0xff]
      %v1860 = vld [vmem:[%s1847 + $0x90] sm:$0xff]
      %v1861 = vld [vmem:[%s1847 + $0x98] sm:$0xff]
      %v1862 = vld [vmem:[%s1847 + $0xa8] sm:$0xff]
      %v1863 = vld [vmem:[%s1847 + $0xb0] sm:$0xff]
      %v1864 = vld [vmem:[%s1847 + $0xc0] sm:$0xff]
      %v1865 = vld [vmem:[%s1847 + $0xc8] sm:$0xff]
      %v1866 = vld [vmem:[%s1847 + $0xd8] sm:$0xff]
      %v1867 = vld [vmem:[%s1847 + $0xe0] sm:$0xff]
      %v1868 = vld [vmem:[%s1847 + $0xf0] sm:$0xff]
      %v1869 = vld [vmem:[%s1847 + $0xf8] sm:$0xff]
      %v1870 = vld [vmem:[%s1847 + $0x108] sm:$0xff]
      %v1871 = vld [vmem:[%s1847 + $0x110] sm:$0xff]
      %v1872 = vld [vmem:[%s1847 + $0x120] sm:$0xff]
      %v1873 = vld [vmem:[%s1847 + $0x128] sm:$0xff]
      %v1874 = vld [vmem:[%s1847 + $0x138] sm:$0xff]
      %v1875 = vld [vmem:[%s1847 + $0x140] sm:$0xff]
      %v1876 = vld [vmem:[%s1847 + $0x150] sm:$0xff]
      %v1877 = vld [vmem:[%s1847 + $0x158] sm:$0xff]
      %v1878 = vld [vmem:[%s1847 + $0x168] sm:$0xff]
      %v1879 = vld [vmem:[%s1847 + $0x170] sm:$0xff]
      %v1880 = vpack.c.bf16 %v1849, %v1848
      %v1881 = vpack.c.bf16 %v1851, %v1850
      %v1882 = vpack.c.bf16 %v1853, %v1852
      %v1883 = vpack.c.bf16 %v1855, %v1854
      %v1884 = vpack.c.bf16 %v1857, %v1856
      %v1885 = vpack.c.bf16 %v1859, %v1858
      %v1886 = vpack.c.bf16 %v1861, %v1860
      %v1887 = vpack.c.bf16 %v1863, %v1862
      %v1888 = vpack.c.bf16 %v1865, %v1864
      %v1889 = vpack.c.bf16 %v1867, %v1866
      %v1890 = vpack.c.bf16 %v1869, %v1868
      %v1891 = vpack.c.bf16 %v1871, %v1870
      %v1892 = vpack.c.bf16 %v1873, %v1872
      %v1893 = vpack.c.bf16 %v1875, %v1874
      %v1894 = vpack.c.bf16 %v1877, %v1876
      %v1895 = vpack.c.bf16 %v1879, %v1878
      %v1912 = vunpack.c.l.b16 %v1880
      %v1913 = vunpack.c.h.b16 %v1880
      %v1914 = vunpack.c.l.b16 %v1881
      %v1915 = vunpack.c.h.b16 %v1881
      %v1916 = vunpack.c.l.b16 %v1882
      %v1917 = vunpack.c.h.b16 %v1882
      %v1918 = vunpack.c.l.b16 %v1883
      %v1919 = vunpack.c.h.b16 %v1883
      %v1920 = vunpack.c.l.b16 %v1884
      %v1921 = vunpack.c.h.b16 %v1884
      %v1922 = vunpack.c.l.b16 %v1885
      %v1923 = vunpack.c.h.b16 %v1885
      %v1924 = vunpack.c.l.b16 %v1886
      %v1925 = vunpack.c.h.b16 %v1886
      %v1926 = vunpack.c.l.b16 %v1887
      %v1927 = vunpack.c.h.b16 %v1887
      %v1928 = vunpack.c.l.b16 %v1888
      %v1929 = vunpack.c.h.b16 %v1888
      %v1930 = vunpack.c.l.b16 %v1889
      %v1931 = vunpack.c.h.b16 %v1889
      %v1932 = vunpack.c.l.b16 %v1890
      %v1933 = vunpack.c.h.b16 %v1890
      %v1934 = vunpack.c.l.b16 %v1891
      %v1935 = vunpack.c.h.b16 %v1891
      %v1936 = vunpack.c.l.b16 %v1892
      %v1937 = vunpack.c.h.b16 %v1892
      %v1938 = vunpack.c.l.b16 %v1893
      %v1939 = vunpack.c.h.b16 %v1893
      %v1940 = vunpack.c.l.b16 %v1894
      %v1941 = vunpack.c.h.b16 %v1894
      %v1942 = vunpack.c.l.b16 %v1895
      %v1943 = vunpack.c.h.b16 %v1895
      %v1944 = vpack.c.b16 %v1912, %v1912
      %v1945 = vpack.c.b16 %v1913, %v1913
      %v1946 = vpack.c.b16 %v1914, %v1914
      %v1947 = vpack.c.b16 %v1915, %v1915
      %v1948 = vpack.c.b16 %v1916, %v1916
      %v1949 = vpack.c.b16 %v1917, %v1917
      %v1950 = vpack.c.b16 %v1918, %v1918
      %v1951 = vpack.c.b16 %v1919, %v1919
      %v1952 = vpack.c.b16 %v1920, %v1920
      %v1953 = vpack.c.b16 %v1921, %v1921
      %v1954 = vpack.c.b16 %v1922, %v1922
      %v1955 = vpack.c.b16 %v1923, %v1923
      %v1956 = vpack.c.b16 %v1924, %v1924
      %v1957 = vpack.c.b16 %v1925, %v1925
      %v1958 = vpack.c.b16 %v1926, %v1926
      %v1959 = vpack.c.b16 %v1927, %v1927
      %v1960 = vpack.c.b16 %v1928, %v1928
      %v1961 = vpack.c.b16 %v1929, %v1929
      %v1962 = vpack.c.b16 %v1930, %v1930
      %v1963 = vpack.c.b16 %v1931, %v1931
      %v1964 = vpack.c.b16 %v1932, %v1932
      %v1965 = vpack.c.b16 %v1933, %v1933
      %v1966 = vpack.c.b16 %v1934, %v1934
      %v1967 = vpack.c.b16 %v1935, %v1935
      %v1968 = vpack.c.b16 %v1936, %v1936
      %v1969 = vpack.c.b16 %v1937, %v1937
      %v1970 = vpack.c.b16 %v1938, %v1938
      %v1971 = vpack.c.b16 %v1939, %v1939
      %v1972 = vpack.c.b16 %v1940, %v1940
      %v1973 = vpack.c.b16 %v1941, %v1941
      %v1974 = vpack.c.b16 %v1942, %v1942
      %v1975 = vpack.c.b16 %v1943, %v1943
      %2008 = vst.msk [vmem:[#allocation4 + $0xc] sm:$0xf] %vm661, %v1944
      %2009 = vst.msk [vmem:[#allocation4 + $0x20] sm:$0xf] %vm661, %v1945
      %2010 = vst.msk [vmem:[#allocation4 + $0x34] sm:$0xf] %vm661, %v1946
      %2011 = vst.msk [vmem:[#allocation4 + $0x48] sm:$0xf] %vm661, %v1947
      %2012 = vst.msk [vmem:[#allocation4 + $0x5c] sm:$0xf] %vm661, %v1948
      %2013 = vst.msk [vmem:[#allocation4 + $0x70] sm:$0xf] %vm661, %v1949
      %2014 = vst.msk [vmem:[#allocation4 + $0x84] sm:$0xf] %vm661, %v1950
      %2015 = vst.msk [vmem:[#allocation4 + $0x98] sm:$0xf] %vm661, %v1951
      %2016 = vst.msk [vmem:[#allocation4 + $0xac] sm:$0xf] %vm661, %v1952
      %2017 = vst.msk [vmem:[#allocation4 + $0xc0] sm:$0xf] %vm661, %v1953
      %2018 = vst.msk [vmem:[#allocation4 + $0xd4] sm:$0xf] %vm661, %v1954
      %2019 = vst.msk [vmem:[#allocation4 + $0xe8] sm:$0xf] %vm661, %v1955
      %2020 = vst.msk [vmem:[#allocation4 + $0xfc] sm:$0xf] %vm661, %v1956
      %2021 = vst.msk [vmem:[#allocation4 + $0x110] sm:$0xf] %vm661, %v1957
      %2022 = vst.msk [vmem:[#allocation4 + $0x124] sm:$0xf] %vm661, %v1958
      %2023 = vst.msk [vmem:[#allocation4 + $0x138] sm:$0xf] %vm661, %v1959
      %2024 = vst.msk [vmem:[#allocation4 + $0x14c] sm:$0xf] %vm661, %v1960
      %2025 = vst.msk [vmem:[#allocation4 + $0x160] sm:$0xf] %vm661, %v1961
      %2026 = vst.msk [vmem:[#allocation4 + $0x174] sm:$0xf] %vm661, %v1962
      %2027 = vst.msk [vmem:[#allocation4 + $0x188] sm:$0xf] %vm661, %v1963
      %2028 = vst.msk [vmem:[#allocation4 + $0x19c] sm:$0xf] %vm661, %v1964
      %2029 = vst.msk [vmem:[#allocation4 + $0x1b0] sm:$0xf] %vm661, %v1965
      %2030 = vst.msk [vmem:[#allocation4 + $0x1c4] sm:$0xf] %vm661, %v1966
      %2031 = vst.msk [vmem:[#allocation4 + $0x1d8] sm:$0xf] %vm661, %v1967
      %2032 = vst.msk [vmem:[#allocation4 + $0x1ec] sm:$0xf] %vm661, %v1968
      %2033 = vst.msk [vmem:[#allocation4 + $0x200] sm:$0xf] %vm661, %v1969
      %2034 = vst.msk [vmem:[#allocation4 + $0x214] sm:$0xf] %vm661, %v1970
      %2035 = vst.msk [vmem:[#allocation4 + $0x228] sm:$0xf] %vm661, %v1971
      %2036 = vst.msk [vmem:[#allocation4 + $0x23c] sm:$0xf] %vm661, %v1972
      %2037 = vst.msk [vmem:[#allocation4 + $0x250] sm:$0xf] %vm661, %v1973
      %2038 = vst.msk [vmem:[#allocation4 + $0x264] sm:$0xf] %vm661, %v1974
      %2039 = vst.msk [vmem:[#allocation4 + $0x278] sm:$0xf] %vm661, %v1975
      %v2040 = vld [vmem:[%s1847 + $0x1] sm:$0xff]
      %v2041 = vld [vmem:[%s1847 + $0x9] sm:$0xff]
      %v2042 = vld [vmem:[%s1847 + $0x19] sm:$0xff]
      %v2043 = vld [vmem:[%s1847 + $0x21] sm:$0xff]
      %v2044 = vld [vmem:[%s1847 + $0x31] sm:$0xff]
      %v2045 = vld [vmem:[%s1847 + $0x39] sm:$0xff]
      %v2046 = vld [vmem:[%s1847 + $0x49] sm:$0xff]
      %v2047 = vld [vmem:[%s1847 + $0x51] sm:$0xff]
      %v2048 = vld [vmem:[%s1847 + $0x61] sm:$0xff]
      %v2049 = vld [vmem:[%s1847 + $0x69] sm:$0xff]
      %v2050 = vld [vmem:[%s1847 + $0x79] sm:$0xff]
      %v2051 = vld [vmem:[%s1847 + $0x81] sm:$0xff]
      %v2052 = vld [vmem:[%s1847 + $0x91] sm:$0xff]
      %v2053 = vld [vmem:[%s1847 + $0x99] sm:$0xff]
      %v2054 = vld [vmem:[%s1847 + $0xa9] sm:$0xff]
      %v2055 = vld [vmem:[%s1847 + $0xb1] sm:$0xff]
      %v2056 = vld [vmem:[%s1847 + $0xc1] sm:$0xff]
      %v2057 = vld [vmem:[%s1847 + $0xc9] sm:$0xff]
      %v2058 = vld [vmem:[%s1847 + $0xd9] sm:$0xff]
      %v2059 = vld [vmem:[%s1847 + $0xe1] sm:$0xff]
      %v2060 = vld [vmem:[%s1847 + $0xf1] sm:$0xff]
      %v2061 = vld [vmem:[%s1847 + $0xf9] sm:$0xff]
      %v2062 = vld [vmem:[%s1847 + $0x109] sm:$0xff]
      %v2063 = vld [vmem:[%s1847 + $0x111] sm:$0xff]
      %v2064 = vld [vmem:[%s1847 + $0x121] sm:$0xff]
      %v2065 = vld [vmem:[%s1847 + $0x129] sm:$0xff]
      %v2066 = vld [vmem:[%s1847 + $0x139] sm:$0xff]
      %v2067 = vld [vmem:[%s1847 + $0x141] sm:$0xff]
      %v2068 = vld [vmem:[%s1847 + $0x151] sm:$0xff]
      %v2069 = vld [vmem:[%s1847 + $0x159] sm:$0xff]
      %v2070 = vld [vmem:[%s1847 + $0x169] sm:$0xff]
      %v2071 = vld [vmem:[%s1847 + $0x171] sm:$0xff]
      %v2072 = vpack.c.bf16 %v2041, %v2040
      %v2073 = vpack.c.bf16 %v2043, %v2042
      %v2074 = vpack.c.bf16 %v2045, %v2044
      %v2075 = vpack.c.bf16 %v2047, %v2046
      %v2076 = vpack.c.bf16 %v2049, %v2048
      %v2077 = vpack.c.bf16 %v2051, %v2050
      %v2078 = vpack.c.bf16 %v2053, %v2052
      %v2079 = vpack.c.bf16 %v2055, %v2054
      %v2080 = vpack.c.bf16 %v2057, %v2056
      %v2081 = vpack.c.bf16 %v2059, %v2058
      %v2082 = vpack.c.bf16 %v2061, %v2060
      %v2083 = vpack.c.bf16 %v2063, %v2062
      %v2084 = vpack.c.bf16 %v2065, %v2064
      %v2085 = vpack.c.bf16 %v2067, %v2066
      %v2086 = vpack.c.bf16 %v2069, %v2068
      %v2087 = vpack.c.bf16 %v2071, %v2070
      %v2104 = vunpack.c.l.b16 %v2072
      %v2105 = vunpack.c.h.b16 %v2072
      %v2106 = vunpack.c.l.b16 %v2073
      %v2107 = vunpack.c.h.b16 %v2073
      %v2108 = vunpack.c.l.b16 %v2074
      %v2109 = vunpack.c.h.b16 %v2074
      %v2110 = vunpack.c.l.b16 %v2075
      %v2111 = vunpack.c.h.b16 %v2075
      %v2112 = vunpack.c.l.b16 %v2076
      %v2113 = vunpack.c.h.b16 %v2076
      %v2114 = vunpack.c.l.b16 %v2077
      %v2115 = vunpack.c.h.b16 %v2077
      %v2116 = vunpack.c.l.b16 %v2078
      %v2117 = vunpack.c.h.b16 %v2078
      %v2118 = vunpack.c.l.b16 %v2079
      %v2119 = vunpack.c.h.b16 %v2079
      %v2120 = vunpack.c.l.b16 %v2080
      %v2121 = vunpack.c.h.b16 %v2080
      %v2122 = vunpack.c.l.b16 %v2081
      %v2123 = vunpack.c.h.b16 %v2081
      %v2124 = vunpack.c.l.b16 %v2082
      %v2125 = vunpack.c.h.b16 %v2082
      %v2126 = vunpack.c.l.b16 %v2083
      %v2127 = vunpack.c.h.b16 %v2083
      %v2128 = vunpack.c.l.b16 %v2084
      %v2129 = vunpack.c.h.b16 %v2084
      %v2130 = vunpack.c.l.b16 %v2085
      %v2131 = vunpack.c.h.b16 %v2085
      %v2132 = vunpack.c.l.b16 %v2086
      %v2133 = vunpack.c.h.b16 %v2086
      %v2134 = vunpack.c.l.b16 %v2087
      %v2135 = vunpack.c.h.b16 %v2087
      %v2136 = vpack.c.b16 %v2104, %v2104
      %v2137 = vpack.c.b16 %v2105, %v2105
      %v2138 = vpack.c.b16 %v2106, %v2106
      %v2139 = vpack.c.b16 %v2107, %v2107
      %v2140 = vpack.c.b16 %v2108, %v2108
      %v2141 = vpack.c.b16 %v2109, %v2109
      %v2142 = vpack.c.b16 %v2110, %v2110
      %v2143 = vpack.c.b16 %v2111, %v2111
      %v2144 = vpack.c.b16 %v2112, %v2112
      %v2145 = vpack.c.b16 %v2113, %v2113
      %v2146 = vpack.c.b16 %v2114, %v2114
      %v2147 = vpack.c.b16 %v2115, %v2115
      %v2148 = vpack.c.b16 %v2116, %v2116
      %v2149 = vpack.c.b16 %v2117, %v2117
      %v2150 = vpack.c.b16 %v2118, %v2118
      %v2151 = vpack.c.b16 %v2119, %v2119
      %v2152 = vpack.c.b16 %v2120, %v2120
      %v2153 = vpack.c.b16 %v2121, %v2121
      %v2154 = vpack.c.b16 %v2122, %v2122
      %v2155 = vpack.c.b16 %v2123, %v2123
      %v2156 = vpack.c.b16 %v2124, %v2124
      %v2157 = vpack.c.b16 %v2125, %v2125
      %v2158 = vpack.c.b16 %v2126, %v2126
      %v2159 = vpack.c.b16 %v2127, %v2127
      %v2160 = vpack.c.b16 %v2128, %v2128
      %v2161 = vpack.c.b16 %v2129, %v2129
      %v2162 = vpack.c.b16 %v2130, %v2130
      %v2163 = vpack.c.b16 %v2131, %v2131
      %v2164 = vpack.c.b16 %v2132, %v2132
      %v2165 = vpack.c.b16 %v2133, %v2133
      %v2166 = vpack.c.b16 %v2134, %v2134
      %v2167 = vpack.c.b16 %v2135, %v2135
      %2168 = vrot.lane.b32.xlu0 %v2136, 64
      %v2169 = vpop.permute.xlu0 %2168
      %2170 = vrot.lane.b32.xlu0 %v2137, 64
      %v2171 = vpop.permute.xlu0 %2170
      %2172 = vrot.lane.b32.xlu0 %v2138, 64
      %v2173 = vpop.permute.xlu0 %2172
      %2174 = vrot.lane.b32.xlu0 %v2139, 64
      %v2175 = vpop.permute.xlu0 %2174
      %2176 = vrot.lane.b32.xlu0 %v2140, 64
      %v2177 = vpop.permute.xlu0 %2176
      %2178 = vrot.lane.b32.xlu0 %v2141, 64
      %v2179 = vpop.permute.xlu0 %2178
      %2180 = vrot.lane.b32.xlu0 %v2142, 64
      %v2181 = vpop.permute.xlu0 %2180
      %2182 = vrot.lane.b32.xlu0 %v2143, 64
      %v2183 = vpop.permute.xlu0 %2182
      %2184 = vrot.lane.b32.xlu0 %v2144, 64
      %v2185 = vpop.permute.xlu0 %2184
      %2186 = vrot.lane.b32.xlu0 %v2145, 64
      %v2187 = vpop.permute.xlu0 %2186
      %2188 = vrot.lane.b32.xlu0 %v2146, 64
      %v2189 = vpop.permute.xlu0 %2188
      %2190 = vrot.lane.b32.xlu0 %v2147, 64
      %v2191 = vpop.permute.xlu0 %2190
      %2192 = vrot.lane.b32.xlu0 %v2148, 64
      %v2193 = vpop.permute.xlu0 %2192
      %2194 = vrot.lane.b32.xlu0 %v2149, 64
      %v2195 = vpop.permute.xlu0 %2194
      %2196 = vrot.lane.b32.xlu0 %v2150, 64
      %v2197 = vpop.permute.xlu0 %2196
      %2198 = vrot.lane.b32.xlu0 %v2151, 64
      %v2199 = vpop.permute.xlu0 %2198
      %2200 = vrot.lane.b32.xlu0 %v2152, 64
      %v2201 = vpop.permute.xlu0 %2200
      %2202 = vrot.lane.b32.xlu0 %v2153, 64
      %v2203 = vpop.permute.xlu0 %2202
      %2204 = vrot.lane.b32.xlu0 %v2154, 64
      %v2205 = vpop.permute.xlu0 %2204
      %2206 = vrot.lane.b32.xlu0 %v2155, 64
      %v2207 = vpop.permute.xlu0 %2206
      %2208 = vrot.lane.b32.xlu0 %v2156, 64
      %v2209 = vpop.permute.xlu0 %2208
      %2210 = vrot.lane.b32.xlu0 %v2157, 64
      %v2211 = vpop.permute.xlu0 %2210
      %2212 = vrot.lane.b32.xlu0 %v2158, 64
      %v2213 = vpop.permute.xlu0 %2212
      %2214 = vrot.lane.b32.xlu0 %v2159, 64
      %v2215 = vpop.permute.xlu0 %2214
      %2216 = vrot.lane.b32.xlu0 %v2160, 64
      %v2217 = vpop.permute.xlu0 %2216
      %2218 = vrot.lane.b32.xlu0 %v2161, 64
      %v2219 = vpop.permute.xlu0 %2218
      %2220 = vrot.lane.b32.xlu0 %v2162, 64
      %v2221 = vpop.permute.xlu0 %2220
      %2222 = vrot.lane.b32.xlu0 %v2163, 64
      %v2223 = vpop.permute.xlu0 %2222
      %2224 = vrot.lane.b32.xlu0 %v2164, 64
      %v2225 = vpop.permute.xlu0 %2224
      %2226 = vrot.lane.b32.xlu0 %v2165, 64
      %v2227 = vpop.permute.xlu0 %2226
      %2228 = vrot.lane.b32.xlu0 %v2166, 64
      %v2229 = vpop.permute.xlu0 %2228
      %2230 = vrot.lane.b32.xlu0 %v2167, 64
      %v2231 = vpop.permute.xlu0 %2230
      %2264 = vst.msk [vmem:[#allocation4 + $0xc] sm:$0xf] %vm918, %v2169
      %2265 = vst.msk [vmem:[#allocation4 + $0x20] sm:$0xf] %vm918, %v2171
      %2266 = vst.msk [vmem:[#allocation4 + $0x34] sm:$0xf] %vm918, %v2173
      %2267 = vst.msk [vmem:[#allocation4 + $0x48] sm:$0xf] %vm918, %v2175
      %2268 = vst.msk [vmem:[#allocation4 + $0x5c] sm:$0xf] %vm918, %v2177
      %2269 = vst.msk [vmem:[#allocation4 + $0x70] sm:$0xf] %vm918, %v2179
      %2270 = vst.msk [vmem:[#allocation4 + $0x84] sm:$0xf] %vm918, %v2181
      %2271 = vst.msk [vmem:[#allocation4 + $0x98] sm:$0xf] %vm918, %v2183
      %2272 = vst.msk [vmem:[#allocation4 + $0xac] sm:$0xf] %vm918, %v2185
      %2273 = vst.msk [vmem:[#allocation4 + $0xc0] sm:$0xf] %vm918, %v2187
      %2274 = vst.msk [vmem:[#allocation4 + $0xd4] sm:$0xf] %vm918, %v2189
      %2275 = vst.msk [vmem:[#allocation4 + $0xe8] sm:$0xf] %vm918, %v2191
      %2276 = vst.msk [vmem:[#allocation4 + $0xfc] sm:$0xf] %vm918, %v2193
      %2277 = vst.msk [vmem:[#allocation4 + $0x110] sm:$0xf] %vm918, %v2195
      %2278 = vst.msk [vmem:[#allocation4 + $0x124] sm:$0xf] %vm918, %v2197
      %2279 = vst.msk [vmem:[#allocation4 + $0x138] sm:$0xf] %vm918, %v2199
      %2280 = vst.msk [vmem:[#allocation4 + $0x14c] sm:$0xf] %vm918, %v2201
      %2281 = vst.msk [vmem:[#allocation4 + $0x160] sm:$0xf] %vm918, %v2203
      %2282 = vst.msk [vmem:[#allocation4 + $0x174] sm:$0xf] %vm918, %v2205
      %2283 = vst.msk [vmem:[#allocation4 + $0x188] sm:$0xf] %vm918, %v2207
      %2284 = vst.msk [vmem:[#allocation4 + $0x19c] sm:$0xf] %vm918, %v2209
      %2285 = vst.msk [vmem:[#allocation4 + $0x1b0] sm:$0xf] %vm918, %v2211
      %2286 = vst.msk [vmem:[#allocation4 + $0x1c4] sm:$0xf] %vm918, %v2213
      %2287 = vst.msk [vmem:[#allocation4 + $0x1d8] sm:$0xf] %vm918, %v2215
      %2288 = vst.msk [vmem:[#allocation4 + $0x1ec] sm:$0xf] %vm918, %v2217
      %2289 = vst.msk [vmem:[#allocation4 + $0x200] sm:$0xf] %vm918, %v2219
      %2290 = vst.msk [vmem:[#allocation4 + $0x214] sm:$0xf] %vm918, %v2221
      %2291 = vst.msk [vmem:[#allocation4 + $0x228] sm:$0xf] %vm918, %v2223
      %2292 = vst.msk [vmem:[#allocation4 + $0x23c] sm:$0xf] %vm918, %v2225
      %2293 = vst.msk [vmem:[#allocation4 + $0x250] sm:$0xf] %vm918, %v2227
      %2294 = vst.msk [vmem:[#allocation4 + $0x264] sm:$0xf] %vm918, %v2229
      %2295 = vst.msk [vmem:[#allocation4 + $0x278] sm:$0xf] %vm918, %v2231
      %v2296 = vld [vmem:[%s1847 + $0x2] sm:$0xff]
      %v2297 = vld [vmem:[%s1847 + $0xa] sm:$0xff]
      %v2298 = vld [vmem:[%s1847 + $0x1a] sm:$0xff]
      %v2299 = vld [vmem:[%s1847 + $0x22] sm:$0xff]
      %v2300 = vld [vmem:[%s1847 + $0x32] sm:$0xff]
      %v2301 = vld [vmem:[%s1847 + $0x3a] sm:$0xff]
      %v2302 = vld [vmem:[%s1847 + $0x4a] sm:$0xff]
      %v2303 = vld [vmem:[%s1847 + $0x52] sm:$0xff]
      %v2304 = vld [vmem:[%s1847 + $0x62] sm:$0xff]
      %v2305 = vld [vmem:[%s1847 + $0x6a] sm:$0xff]
      %v2306 = vld [vmem:[%s1847 + $0x7a] sm:$0xff]
      %v2307 = vld [vmem:[%s1847 + $0x82] sm:$0xff]
      %v2308 = vld [vmem:[%s1847 + $0x92] sm:$0xff]
      %v2309 = vld [vmem:[%s1847 + $0x9a] sm:$0xff]
      %v2310 = vld [vmem:[%s1847 + $0xaa] sm:$0xff]
      %v2311 = vld [vmem:[%s1847 + $0xb2] sm:$0xff]
      %v2312 = vld [vmem:[%s1847 + $0xc2] sm:$0xff]
      %v2313 = vld [vmem:[%s1847 + $0xca] sm:$0xff]
      %v2314 = vld [vmem:[%s1847 + $0xda] sm:$0xff]
      %v2315 = vld [vmem:[%s1847 + $0xe2] sm:$0xff]
      %v2316 = vld [vmem:[%s1847 + $0xf2] sm:$0xff]
      %v2317 = vld [vmem:[%s1847 + $0xfa] sm:$0xff]
      %v2318 = vld [vmem:[%s1847 + $0x10a] sm:$0xff]
      %v2319 = vld [vmem:[%s1847 + $0x112] sm:$0xff]
      %v2320 = vld [vmem:[%s1847 + $0x122] sm:$0xff]
      %v2321 = vld [vmem:[%s1847 + $0x12a] sm:$0xff]
      %v2322 = vld [vmem:[%s1847 + $0x13a] sm:$0xff]
      %v2323 = vld [vmem:[%s1847 + $0x142] sm:$0xff]
      %v2324 = vld [vmem:[%s1847 + $0x152] sm:$0xff]
      %v2325 = vld [vmem:[%s1847 + $0x15a] sm:$0xff]
      %v2326 = vld [vmem:[%s1847 + $0x16a] sm:$0xff]
      %v2327 = vld [vmem:[%s1847 + $0x172] sm:$0xff]
      %v2328 = vpack.c.bf16 %v2297, %v2296
      %v2329 = vpack.c.bf16 %v2299, %v2298
      %v2330 = vpack.c.bf16 %v2301, %v2300
      %v2331 = vpack.c.bf16 %v2303, %v2302
      %v2332 = vpack.c.bf16 %v2305, %v2304
      %v2333 = vpack.c.bf16 %v2307, %v2306
      %v2334 = vpack.c.bf16 %v2309, %v2308
      %v2335 = vpack.c.bf16 %v2311, %v2310
      %v2336 = vpack.c.bf16 %v2313, %v2312
      %v2337 = vpack.c.bf16 %v2315, %v2314
      %v2338 = vpack.c.bf16 %v2317, %v2316
      %v2339 = vpack.c.bf16 %v2319, %v2318
      %v2340 = vpack.c.bf16 %v2321, %v2320
      %v2341 = vpack.c.bf16 %v2323, %v2322
      %v2342 = vpack.c.bf16 %v2325, %v2324
      %v2343 = vpack.c.bf16 %v2327, %v2326
      %v2360 = vunpack.c.l.b16 %v2328
      %v2361 = vunpack.c.h.b16 %v2328
      %v2362 = vunpack.c.l.b16 %v2329
      %v2363 = vunpack.c.h.b16 %v2329
      %v2364 = vunpack.c.l.b16 %v2330
      %v2365 = vunpack.c.h.b16 %v2330
      %v2366 = vunpack.c.l.b16 %v2331
      %v2367 = vunpack.c.h.b16 %v2331
      %v2368 = vunpack.c.l.b16 %v2332
      %v2369 = vunpack.c.h.b16 %v2332
      %v2370 = vunpack.c.l.b16 %v2333
      %v2371 = vunpack.c.h.b16 %v2333
      %v2372 = vunpack.c.l.b16 %v2334
      %v2373 = vunpack.c.h.b16 %v2334
      %v2374 = vunpack.c.l.b16 %v2335
      %v2375 = vunpack.c.h.b16 %v2335
      %v2376 = vunpack.c.l.b16 %v2336
      %v2377 = vunpack.c.h.b16 %v2336
      %v2378 = vunpack.c.l.b16 %v2337
      %v2379 = vunpack.c.h.b16 %v2337
      %v2380 = vunpack.c.l.b16 %v2338
      %v2381 = vunpack.c.h.b16 %v2338
      %v2382 = vunpack.c.l.b16 %v2339
      %v2383 = vunpack.c.h.b16 %v2339
      %v2384 = vunpack.c.l.b16 %v2340
      %v2385 = vunpack.c.h.b16 %v2340
      %v2386 = vunpack.c.l.b16 %v2341
      %v2387 = vunpack.c.h.b16 %v2341
      %v2388 = vunpack.c.l.b16 %v2342
      %v2389 = vunpack.c.h.b16 %v2342
      %v2390 = vunpack.c.l.b16 %v2343
      %v2391 = vunpack.c.h.b16 %v2343
      %v2392 = vpack.c.b16 %v2360, %v2360
      %v2393 = vpack.c.b16 %v2361, %v2361
      %v2394 = vpack.c.b16 %v2362, %v2362
      %v2395 = vpack.c.b16 %v2363, %v2363
      %v2396 = vpack.c.b16 %v2364, %v2364
      %v2397 = vpack.c.b16 %v2365, %v2365
      %v2398 = vpack.c.b16 %v2366, %v2366
      %v2399 = vpack.c.b16 %v2367, %v2367
      %v2400 = vpack.c.b16 %v2368, %v2368
      %v2401 = vpack.c.b16 %v2369, %v2369
      %v2402 = vpack.c.b16 %v2370, %v2370
      %v2403 = vpack.c.b16 %v2371, %v2371
      %v2404 = vpack.c.b16 %v2372, %v2372
      %v2405 = vpack.c.b16 %v2373, %v2373
      %v2406 = vpack.c.b16 %v2374, %v2374
      %v2407 = vpack.c.b16 %v2375, %v2375
      %v2408 = vpack.c.b16 %v2376, %v2376
      %v2409 = vpack.c.b16 %v2377, %v2377
      %v2410 = vpack.c.b16 %v2378, %v2378
      %v2411 = vpack.c.b16 %v2379, %v2379
      %v2412 = vpack.c.b16 %v2380, %v2380
      %v2413 = vpack.c.b16 %v2381, %v2381
      %v2414 = vpack.c.b16 %v2382, %v2382
      %v2415 = vpack.c.b16 %v2383, %v2383
      %v2416 = vpack.c.b16 %v2384, %v2384
      %v2417 = vpack.c.b16 %v2385, %v2385
      %v2418 = vpack.c.b16 %v2386, %v2386
      %v2419 = vpack.c.b16 %v2387, %v2387
      %v2420 = vpack.c.b16 %v2388, %v2388
      %v2421 = vpack.c.b16 %v2389, %v2389
      %v2422 = vpack.c.b16 %v2390, %v2390
      %v2423 = vpack.c.b16 %v2391, %v2391
      %2456 = vst.msk [vmem:[#allocation4 + $0x10] sm:$0xf] %vm661, %v2392
      %2457 = vst.msk [vmem:[#allocation4 + $0x24] sm:$0xf] %vm661, %v2393
      %2458 = vst.msk [vmem:[#allocation4 + $0x38] sm:$0xf] %vm661, %v2394
      %2459 = vst.msk [vmem:[#allocation4 + $0x4c] sm:$0xf] %vm661, %v2395
      %2460 = vst.msk [vmem:[#allocation4 + $0x60] sm:$0xf] %vm661, %v2396
      %2461 = vst.msk [vmem:[#allocation4 + $0x74] sm:$0xf] %vm661, %v2397
      %2462 = vst.msk [vmem:[#allocation4 + $0x88] sm:$0xf] %vm661, %v2398
      %2463 = vst.msk [vmem:[#allocation4 + $0x9c] sm:$0xf] %vm661, %v2399
      %2464 = vst.msk [vmem:[#allocation4 + $0xb0] sm:$0xf] %vm661, %v2400
      %2465 = vst.msk [vmem:[#allocation4 + $0xc4] sm:$0xf] %vm661, %v2401
      %2466 = vst.msk [vmem:[#allocation4 + $0xd8] sm:$0xf] %vm661, %v2402
      %2467 = vst.msk [vmem:[#allocation4 + $0xec] sm:$0xf] %vm661, %v2403
      %2468 = vst.msk [vmem:[#allocation4 + $0x100] sm:$0xf] %vm661, %v2404
      %2469 = vst.msk [vmem:[#allocation4 + $0x114] sm:$0xf] %vm661, %v2405
      %2470 = vst.msk [vmem:[#allocation4 + $0x128] sm:$0xf] %vm661, %v2406
      %2471 = vst.msk [vmem:[#allocation4 + $0x13c] sm:$0xf] %vm661, %v2407
      %2472 = vst.msk [vmem:[#allocation4 + $0x150] sm:$0xf] %vm661, %v2408
      %2473 = vst.msk [vmem:[#allocation4 + $0x164] sm:$0xf] %vm661, %v2409
      %2474 = vst.msk [vmem:[#allocation4 + $0x178] sm:$0xf] %vm661, %v2410
      %2475 = vst.msk [vmem:[#allocation4 + $0x18c] sm:$0xf] %vm661, %v2411
      %2476 = vst.msk [vmem:[#allocation4 + $0x1a0] sm:$0xf] %vm661, %v2412
      %2477 = vst.msk [vmem:[#allocation4 + $0x1b4] sm:$0xf] %vm661, %v2413
      %2478 = vst.msk [vmem:[#allocation4 + $0x1c8] sm:$0xf] %vm661, %v2414
      %2479 = vst.msk [vmem:[#allocation4 + $0x1dc] sm:$0xf] %vm661, %v2415
      %2480 = vst.msk [vmem:[#allocation4 + $0x1f0] sm:$0xf] %vm661, %v2416
      %2481 = vst.msk [vmem:[#allocation4 + $0x204] sm:$0xf] %vm661, %v2417
      %2482 = vst.msk [vmem:[#allocation4 + $0x218] sm:$0xf] %vm661, %v2418
      %2483 = vst.msk [vmem:[#allocation4 + $0x22c] sm:$0xf] %vm661, %v2419
      %2484 = vst.msk [vmem:[#allocation4 + $0x240] sm:$0xf] %vm661, %v2420
      %2485 = vst.msk [vmem:[#allocation4 + $0x254] sm:$0xf] %vm661, %v2421
      %2486 = vst.msk [vmem:[#allocation4 + $0x268] sm:$0xf] %vm661, %v2422
      %2487 = vst.msk [vmem:[#allocation4 + $0x27c] sm:$0xf] %vm661, %v2423
      %v2488 = vld [vmem:[#allocation4] sm:$0xff]
      %v2489 = vld [vmem:[#allocation4 + $0x8] sm:$0xff]
      %v2490 = vld [vmem:[#allocation4 + $0x10] sm:$0xf]
      %v2491 = vld [vmem:[#allocation4 + $0x14] sm:$0xff]
      %v2492 = vld [vmem:[#allocation4 + $0x1c] sm:$0xff]
      %v2493 = vld [vmem:[#allocation4 + $0x24] sm:$0xf]
      %v2494 = vld [vmem:[#allocation4 + $0x28] sm:$0xff]
      %v2495 = vld [vmem:[#allocation4 + $0x30] sm:$0xff]
      %v2496 = vld [vmem:[#allocation4 + $0x38] sm:$0xf]
      %v2497 = vld [vmem:[#allocation4 + $0x3c] sm:$0xff]
      %v2498 = vld [vmem:[#allocation4 + $0x44] sm:$0xff]
      %v2499 = vld [vmem:[#allocation4 + $0x4c] sm:$0xf]
      %v2500 = vld [vmem:[#allocation4 + $0x50] sm:$0xff]
      %v2501 = vld [vmem:[#allocation4 + $0x58] sm:$0xff]
      %v2502 = vld [vmem:[#allocation4 + $0x60] sm:$0xf]
      %v2503 = vld [vmem:[#allocation4 + $0x64] sm:$0xff]
      %v2504 = vld [vmem:[#allocation4 + $0x6c] sm:$0xff]
      %v2505 = vld [vmem:[#allocation4 + $0x74] sm:$0xf]
      %v2506 = vld [vmem:[#allocation4 + $0x78] sm:$0xff]
      %v2507 = vld [vmem:[#allocation4 + $0x80] sm:$0xff]
      %v2508 = vld [vmem:[#allocation4 + $0x88] sm:$0xf]
      %v2509 = vld [vmem:[#allocation4 + $0x8c] sm:$0xff]
      %v2510 = vld [vmem:[#allocation4 + $0x94] sm:$0xff]
      %v2511 = vld [vmem:[#allocation4 + $0x9c] sm:$0xf]
      %v2512 = vld [vmem:[#allocation4 + $0xa0] sm:$0xff]
      %v2513 = vld [vmem:[#allocation4 + $0xa8] sm:$0xff]
      %v2514 = vld [vmem:[#allocation4 + $0xb0] sm:$0xf]
      %v2515 = vld [vmem:[#allocation4 + $0xb4] sm:$0xff]
      %v2516 = vld [vmem:[#allocation4 + $0xbc] sm:$0xff]
      %v2517 = vld [vmem:[#allocation4 + $0xc4] sm:$0xf]
      %v2518 = vld [vmem:[#allocation4 + $0xc8] sm:$0xff]
      %v2519 = vld [vmem:[#allocation4 + $0xd0] sm:$0xff]
      %v2520 = vld [vmem:[#allocation4 + $0xd8] sm:$0xf]
      %v2521 = vld [vmem:[#allocation4 + $0xdc] sm:$0xff]
      %v2522 = vld [vmem:[#allocation4 + $0xe4] sm:$0xff]
      %v2523 = vld [vmem:[#allocation4 + $0xec] sm:$0xf]
      %v2524 = vld [vmem:[#allocation4 + $0xf0] sm:$0xff]
      %v2525 = vld [vmem:[#allocation4 + $0xf8] sm:$0xff]
      %v2526 = vld [vmem:[#allocation4 + $0x100] sm:$0xf]
      %v2527 = vld [vmem:[#allocation4 + $0x104] sm:$0xff]
      %v2528 = vld [vmem:[#allocation4 + $0x10c] sm:$0xff]
      %v2529 = vld [vmem:[#allocation4 + $0x114] sm:$0xf]
      %v2530 = vld [vmem:[#allocation4 + $0x118] sm:$0xff]
      %v2531 = vld [vmem:[#allocation4 + $0x120] sm:$0xff]
      %v2532 = vld [vmem:[#allocation4 + $0x128] sm:$0xf]
      %v2533 = vld [vmem:[#allocation4 + $0x12c] sm:$0xff]
      %v2534 = vld [vmem:[#allocation4 + $0x134] sm:$0xff]
      %v2535 = vld [vmem:[#allocation4 + $0x13c] sm:$0xf]
      %v2536 = vld [vmem:[#allocation4 + $0x140] sm:$0xff]
      %v2537 = vld [vmem:[#allocation4 + $0x148] sm:$0xff]
      %v2538 = vld [vmem:[#allocation4 + $0x150] sm:$0xf]
      %v2539 = vld [vmem:[#allocation4 + $0x154] sm:$0xff]
      %v2540 = vld [vmem:[#allocation4 + $0x15c] sm:$0xff]
      %v2541 = vld [vmem:[#allocation4 + $0x164] sm:$0xf]
      %v2542 = vld [vmem:[#allocation4 + $0x168] sm:$0xff]
      %v2543 = vld [vmem:[#allocation4 + $0x170] sm:$0xff]
      %v2544 = vld [vmem:[#allocation4 + $0x178] sm:$0xf]
      %v2545 = vld [vmem:[#allocation4 + $0x17c] sm:$0xff]
      %v2546 = vld [vmem:[#allocation4 + $0x184] sm:$0xff]
      %v2547 = vld [vmem:[#allocation4 + $0x18c] sm:$0xf]
      %v2548 = vld [vmem:[#allocation4 + $0x190] sm:$0xff]
      %v2549 = vld [vmem:[#allocation4 + $0x198] sm:$0xff]
      %v2550 = vld [vmem:[#allocation4 + $0x1a0] sm:$0xf]
      %v2551 = vld [vmem:[#allocation4 + $0x1a4] sm:$0xff]
      %v2552 = vld [vmem:[#allocation4 + $0x1ac] sm:$0xff]
      %v2553 = vld [vmem:[#allocation4 + $0x1b4] sm:$0xf]
      %v2554 = vld [vmem:[#allocation4 + $0x1b8] sm:$0xff]
      %v2555 = vld [vmem:[#allocation4 + $0x1c0] sm:$0xff]
      %v2556 = vld [vmem:[#allocation4 + $0x1c8] sm:$0xf]
      %v2557 = vld [vmem:[#allocation4 + $0x1cc] sm:$0xff]
      %v2558 = vld [vmem:[#allocation4 + $0x1d4] sm:$0xff]
      %v2559 = vld [vmem:[#allocation4 + $0x1dc] sm:$0xf]
      %v2560 = vld [vmem:[#allocation4 + $0x1e0] sm:$0xff]
      %v2561 = vld [vmem:[#allocation4 + $0x1e8] sm:$0xff]
      %v2562 = vld [vmem:[#allocation4 + $0x1f0] sm:$0xf]
      %v2563 = vld [vmem:[#allocation4 + $0x1f4] sm:$0xff]
      %v2564 = vld [vmem:[#allocation4 + $0x1fc] sm:$0xff]
      %v2565 = vld [vmem:[#allocation4 + $0x204] sm:$0xf]
      %v2566 = vld [vmem:[#allocation4 + $0x208] sm:$0xff]
      %v2567 = vld [vmem:[#allocation4 + $0x210] sm:$0xff]
      %v2568 = vld [vmem:[#allocation4 + $0x218] sm:$0xf]
      %v2569 = vld [vmem:[#allocation4 + $0x21c] sm:$0xff]
      %v2570 = vld [vmem:[#allocation4 + $0x224] sm:$0xff]
      %v2571 = vld [vmem:[#allocation4 + $0x22c] sm:$0xf]
      %v2572 = vld [vmem:[#allocation4 + $0x230] sm:$0xff]
      %v2573 = vld [vmem:[#allocation4 + $0x238] sm:$0xff]
      %v2574 = vld [vmem:[#allocation4 + $0x240] sm:$0xf]
      %v2575 = vld [vmem:[#allocation4 + $0x244] sm:$0xff]
      %v2576 = vld [vmem:[#allocation4 + $0x24c] sm:$0xff]
      %v2577 = vld [vmem:[#allocation4 + $0x254] sm:$0xf]
      %v2578 = vld [vmem:[#allocation4 + $0x258] sm:$0xff]
      %v2579 = vld [vmem:[#allocation4 + $0x260] sm:$0xff]
      %v2580 = vld [vmem:[#allocation4 + $0x268] sm:$0xf]
      %v2581 = vld [vmem:[#allocation4 + $0x26c] sm:$0xff]
      %v2582 = vld [vmem:[#allocation4 + $0x274] sm:$0xff]
      %v2583 = vld [vmem:[#allocation4 + $0x27c] sm:$0xf]
      %v2584 = vld [vmem:[%s3] sm:$0xf]
      %v2585 = vld [vmem:[%s3 + $0x4] sm:$0xf]
      %v2586 = vld [vmem:[%s3 + $0x8] sm:$0xf]
      %v2587 = vld [vmem:[%s3 + $0xc] sm:$0xf]
      %v2588 = vld [vmem:[%s3 + $0x10] sm:$0xf]
      %v2589 = vld [vmem:[%s3 + $0x14] sm:$0xf]
      %v2590 = vld [vmem:[%s3 + $0x18] sm:$0xf]
      %v2591 = vld [vmem:[%s3 + $0x1c] sm:$0xf]
      %v2592 = vld [vmem:[%s3 + $0x20] sm:$0xf]
      %v2593 = vld [vmem:[%s3 + $0x24] sm:$0xf]
      %v2594 = vld [vmem:[%s3 + $0x28] sm:$0xf]
      %v2595 = vld [vmem:[%s3 + $0x2c] sm:$0xf]
      %v2596 = vld [vmem:[%s3 + $0x30] sm:$0xf]
      %v2597 = vld [vmem:[%s3 + $0x34] sm:$0xf]
      %v2598 = vld [vmem:[%s3 + $0x38] sm:$0xf]
      %v2599 = vld [vmem:[%s3 + $0x3c] sm:$0xf]
      %v2600 = vld [vmem:[%s3 + $0x40] sm:$0xf]
      %v2601 = vld [vmem:[%s3 + $0x44] sm:$0xf]
      %v2602 = vld [vmem:[%s3 + $0x48] sm:$0xf]
      %v2603 = vld [vmem:[%s3 + $0x4c] sm:$0xf]
      %v2604 = vld [vmem:[%s3 + $0x50] sm:$0xf]
      %v2605 = vld [vmem:[%s3 + $0x54] sm:$0xf]
      %v2606 = vld [vmem:[%s3 + $0x58] sm:$0xf]
      %v2607 = vld [vmem:[%s3 + $0x5c] sm:$0xf]
      %v2608 = vld [vmem:[%s3 + $0x60] sm:$0xf]
      %v2609 = vld [vmem:[%s3 + $0x64] sm:$0xf]
      %v2610 = vld [vmem:[%s3 + $0x68] sm:$0xf]
      %v2611 = vld [vmem:[%s3 + $0x6c] sm:$0xf]
      %v2612 = vld [vmem:[%s3 + $0x70] sm:$0xf]
      %v2613 = vld [vmem:[%s3 + $0x74] sm:$0xf]
      %v2614 = vld [vmem:[%s3 + $0x78] sm:$0xf]
      %v2615 = vld [vmem:[%s3 + $0x7c] sm:$0xf]
      %v2616 = vld [vmem:[%s3 + $0x80] sm:$0xf]
      %v2617 = vld [vmem:[%s3 + $0x84] sm:$0xf]
      %v2618 = vld [vmem:[%s3 + $0x88] sm:$0xf]
      %v2619 = vld [vmem:[%s3 + $0x8c] sm:$0xf]
      %v2620 = vld [vmem:[%s3 + $0x90] sm:$0xf]
      %v2621 = vld [vmem:[%s3 + $0x94] sm:$0xf]
      %v2622 = vld [vmem:[%s3 + $0x98] sm:$0xf]
      %v2623 = vld [vmem:[%s3 + $0x9c] sm:$0xf]
      %v2624 = vld [vmem:[%s3 + $0xa0] sm:$0xf]
      %v2625 = vld [vmem:[%s3 + $0xa4] sm:$0xf]
      %v2626 = vld [vmem:[%s3 + $0xa8] sm:$0xf]
      %v2627 = vld [vmem:[%s3 + $0xac] sm:$0xf]
      %v2628 = vld [vmem:[%s3 + $0xb0] sm:$0xf]
      %v2629 = vld [vmem:[%s3 + $0xb4] sm:$0xf]
      %v2630 = vld [vmem:[%s3 + $0xb8] sm:$0xf]
      %v2631 = vld [vmem:[%s3 + $0xbc] sm:$0xf]
      %v2632 = vld [vmem:[%s3 + $0xc0] sm:$0xf]
      %v2633 = vld [vmem:[%s3 + $0xc4] sm:$0xf]
      %v2634 = vld [vmem:[%s3 + $0xc8] sm:$0xf]
      %v2635 = vld [vmem:[%s3 + $0xcc] sm:$0xf]
      %v2636 = vld [vmem:[%s3 + $0xd0] sm:$0xf]
      %v2637 = vld [vmem:[%s3 + $0xd4] sm:$0xf]
      %v2638 = vld [vmem:[%s3 + $0xd8] sm:$0xf]
      %v2639 = vld [vmem:[%s3 + $0xdc] sm:$0xf]
      %v2640 = vld [vmem:[%s3 + $0xe0] sm:$0xf]
      %v2641 = vld [vmem:[%s3 + $0xe4] sm:$0xf]
      %v2642 = vld [vmem:[%s3 + $0xe8] sm:$0xf]
      %v2643 = vld [vmem:[%s3 + $0xec] sm:$0xf]
      %v2644 = vld [vmem:[%s3 + $0xf0] sm:$0xf]
      %v2645 = vld [vmem:[%s3 + $0xf4] sm:$0xf]
      %v2646 = vld [vmem:[%s3 + $0xf8] sm:$0xf]
      %v2647 = vld [vmem:[%s3 + $0xfc] sm:$0xf]
      %v2648 = vld [vmem:[%s3 + $0x100] sm:$0xf]
      %v2649 = vld [vmem:[%s3 + $0x104] sm:$0xf]
      %v2650 = vld [vmem:[%s3 + $0x108] sm:$0xf]
      %v2651 = vld [vmem:[%s3 + $0x10c] sm:$0xf]
      %v2652 = vld [vmem:[%s3 + $0x110] sm:$0xf]
      %v2653 = vld [vmem:[%s3 + $0x114] sm:$0xf]
      %v2654 = vld [vmem:[%s3 + $0x118] sm:$0xf]
      %v2655 = vld [vmem:[%s3 + $0x11c] sm:$0xf]
      %v2752 = vunpack.c.l.b16 %v2488
      %v2753 = vunpack.c.h.b16 %v2488
      %v2754 = vunpack.c.l.b16 %v2489
      %v2755 = vunpack.c.h.b16 %v2489
      %v2756 = vunpack.c.l.b16 %v2490
      %v2757 = vunpack.c.l.b16 %v2491
      %v2758 = vunpack.c.h.b16 %v2491
      %v2759 = vunpack.c.l.b16 %v2492
      %v2760 = vunpack.c.h.b16 %v2492
      %v2761 = vunpack.c.l.b16 %v2493
      %v2762 = vunpack.c.l.b16 %v2494
      %v2763 = vunpack.c.h.b16 %v2494
      %v2764 = vunpack.c.l.b16 %v2495
      %v2765 = vunpack.c.h.b16 %v2495
      %v2766 = vunpack.c.l.b16 %v2496
      %v2767 = vunpack.c.l.b16 %v2497
      %v2768 = vunpack.c.h.b16 %v2497
      %v2769 = vunpack.c.l.b16 %v2498
      %v2770 = vunpack.c.h.b16 %v2498
      %v2771 = vunpack.c.l.b16 %v2499
      %v2772 = vunpack.c.l.b16 %v2500
      %v2773 = vunpack.c.h.b16 %v2500
      %v2774 = vunpack.c.l.b16 %v2501
      %v2775 = vunpack.c.h.b16 %v2501
      %v2776 = vunpack.c.l.b16 %v2502
      %v2777 = vunpack.c.l.b16 %v2503
      %v2778 = vunpack.c.h.b16 %v2503
      %v2779 = vunpack.c.l.b16 %v2504
      %v2780 = vunpack.c.h.b16 %v2504
      %v2781 = vunpack.c.l.b16 %v2505
      %v2782 = vunpack.c.l.b16 %v2506
      %v2783 = vunpack.c.h.b16 %v2506
      %v2784 = vunpack.c.l.b16 %v2507
      %v2785 = vunpack.c.h.b16 %v2507
      %v2786 = vunpack.c.l.b16 %v2508
      %v2787 = vunpack.c.l.b16 %v2509
      %v2788 = vunpack.c.h.b16 %v2509
      %v2789 = vunpack.c.l.b16 %v2510
      %v2790 = vunpack.c.h.b16 %v2510
      %v2791 = vunpack.c.l.b16 %v2511
      %v2792 = vunpack.c.l.b16 %v2512
      %v2793 = vunpack.c.h.b16 %v2512
      %v2794 = vunpack.c.l.b16 %v2513
      %v2795 = vunpack.c.h.b16 %v2513
      %v2796 = vunpack.c.l.b16 %v2514
      %v2797 = vunpack.c.l.b16 %v2515
      %v2798 = vunpack.c.h.b16 %v2515
      %v2799 = vunpack.c.l.b16 %v2516
      %v2800 = vunpack.c.h.b16 %v2516
      %v2801 = vunpack.c.l.b16 %v2517
      %v2802 = vunpack.c.l.b16 %v2518
      %v2803 = vunpack.c.h.b16 %v2518
      %v2804 = vunpack.c.l.b16 %v2519
      %v2805 = vunpack.c.h.b16 %v2519
      %v2806 = vunpack.c.l.b16 %v2520
      %v2807 = vunpack.c.l.b16 %v2521
      %v2808 = vunpack.c.h.b16 %v2521
      %v2809 = vunpack.c.l.b16 %v2522
      %v2810 = vunpack.c.h.b16 %v2522
      %v2811 = vunpack.c.l.b16 %v2523
      %v2812 = vunpack.c.l.b16 %v2524
      %v2813 = vunpack.c.h.b16 %v2524
      %v2814 = vunpack.c.l.b16 %v2525
      %v2815 = vunpack.c.h.b16 %v2525
      %v2816 = vunpack.c.l.b16 %v2526
      %v2817 = vunpack.c.l.b16 %v2527
      %v2818 = vunpack.c.h.b16 %v2527
      %v2819 = vunpack.c.l.b16 %v2528
      %v2820 = vunpack.c.h.b16 %v2528
      %v2821 = vunpack.c.l.b16 %v2529
      %v2822 = vunpack.c.l.b16 %v2530
      %v2823 = vunpack.c.h.b16 %v2530
      %v2824 = vunpack.c.l.b16 %v2531
      %v2825 = vunpack.c.h.b16 %v2531
      %v2826 = vunpack.c.l.b16 %v2532
      %v2827 = vunpack.c.l.b16 %v2533
      %v2828 = vunpack.c.h.b16 %v2533
      %v2829 = vunpack.c.l.b16 %v2534
      %v2830 = vunpack.c.h.b16 %v2534
      %v2831 = vunpack.c.l.b16 %v2535
      %v2832 = vunpack.c.l.b16 %v2536
      %v2833 = vunpack.c.h.b16 %v2536
      %v2834 = vunpack.c.l.b16 %v2537
      %v2835 = vunpack.c.h.b16 %v2537
      %v2836 = vunpack.c.l.b16 %v2538
      %v2837 = vunpack.c.l.b16 %v2539
      %v2838 = vunpack.c.h.b16 %v2539
      %v2839 = vunpack.c.l.b16 %v2540
      %v2840 = vunpack.c.h.b16 %v2540
      %v2841 = vunpack.c.l.b16 %v2541
      %v2842 = vunpack.c.l.b16 %v2542
      %v2843 = vunpack.c.h.b16 %v2542
      %v2844 = vunpack.c.l.b16 %v2543
      %v2845 = vunpack.c.h.b16 %v2543
      %v2846 = vunpack.c.l.b16 %v2544
      %v2847 = vunpack.c.l.b16 %v2545
      %v2848 = vunpack.c.h.b16 %v2545
      %v2849 = vunpack.c.l.b16 %v2546
      %v2850 = vunpack.c.h.b16 %v2546
      %v2851 = vunpack.c.l.b16 %v2547
      %v2852 = vunpack.c.l.b16 %v2548
      %v2853 = vunpack.c.h.b16 %v2548
      %v2854 = vunpack.c.l.b16 %v2549
      %v2855 = vunpack.c.h.b16 %v2549
      %v2856 = vunpack.c.l.b16 %v2550
      %v2857 = vunpack.c.l.b16 %v2551
      %v2858 = vunpack.c.h.b16 %v2551
      %v2859 = vunpack.c.l.b16 %v2552
      %v2860 = vunpack.c.h.b16 %v2552
      %v2861 = vunpack.c.l.b16 %v2553
      %v2862 = vunpack.c.l.b16 %v2554
      %v2863 = vunpack.c.h.b16 %v2554
      %v2864 = vunpack.c.l.b16 %v2555
      %v2865 = vunpack.c.h.b16 %v2555
      %v2866 = vunpack.c.l.b16 %v2556
      %v2867 = vunpack.c.l.b16 %v2557
      %v2868 = vunpack.c.h.b16 %v2557
      %v2869 = vunpack.c.l.b16 %v2558
      %v2870 = vunpack.c.h.b16 %v2558
      %v2871 = vunpack.c.l.b16 %v2559
      %v2872 = vunpack.c.l.b16 %v2560
      %v2873 = vunpack.c.h.b16 %v2560
      %v2874 = vunpack.c.l.b16 %v2561
      %v2875 = vunpack.c.h.b16 %v2561
      %v2876 = vunpack.c.l.b16 %v2562
      %v2877 = vunpack.c.l.b16 %v2563
      %v2878 = vunpack.c.h.b16 %v2563
      %v2879 = vunpack.c.l.b16 %v2564
      %v2880 = vunpack.c.h.b16 %v2564
      %v2881 = vunpack.c.l.b16 %v2565
      %v2882 = vunpack.c.l.b16 %v2566
      %v2883 = vunpack.c.h.b16 %v2566
      %v2884 = vunpack.c.l.b16 %v2567
      %v2885 = vunpack.c.h.b16 %v2567
      %v2886 = vunpack.c.l.b16 %v2568
      %v2887 = vunpack.c.l.b16 %v2569
      %v2888 = vunpack.c.h.b16 %v2569
      %v2889 = vunpack.c.l.b16 %v2570
      %v2890 = vunpack.c.h.b16 %v2570
      %v2891 = vunpack.c.l.b16 %v2571
      %v2892 = vunpack.c.l.b16 %v2572
      %v2893 = vunpack.c.h.b16 %v2572
      %v2894 = vunpack.c.l.b16 %v2573
      %v2895 = vunpack.c.h.b16 %v2573
      %v2896 = vunpack.c.l.b16 %v2574
      %v2897 = vunpack.c.l.b16 %v2575
      %v2898 = vunpack.c.h.b16 %v2575
      %v2899 = vunpack.c.l.b16 %v2576
      %v2900 = vunpack.c.h.b16 %v2576
      %v2901 = vunpack.c.l.b16 %v2577
      %v2902 = vunpack.c.l.b16 %v2578
      %v2903 = vunpack.c.h.b16 %v2578
      %v2904 = vunpack.c.l.b16 %v2579
      %v2905 = vunpack.c.h.b16 %v2579
      %v2906 = vunpack.c.l.b16 %v2580
      %v2907 = vunpack.c.l.b16 %v2581
      %v2908 = vunpack.c.h.b16 %v2581
      %v2909 = vunpack.c.l.b16 %v2582
      %v2910 = vunpack.c.h.b16 %v2582
      %v2911 = vunpack.c.l.b16 %v2583
      %v2912 = vpack.c.b16 %v2757, %v2752
      %v2913 = vpack.c.b16 %v2758, %v2753
      %v2914 = vpack.c.b16 %v2759, %v2754
      %v2915 = vpack.c.b16 %v2760, %v2755
      %v2916 = vpack.c.b16 %v2761, %v2756
      %v2917 = vpack.c.b16 %v2767, %v2762
      %v2918 = vpack.c.b16 %v2768, %v2763
      %v2919 = vpack.c.b16 %v2769, %v2764
      %v2920 = vpack.c.b16 %v2770, %v2765
      %v2921 = vpack.c.b16 %v2771, %v2766
      %v2922 = vpack.c.b16 %v2777, %v2772
      %v2923 = vpack.c.b16 %v2778, %v2773
      %v2924 = vpack.c.b16 %v2779, %v2774
      %v2925 = vpack.c.b16 %v2780, %v2775
      %v2926 = vpack.c.b16 %v2781, %v2776
      %v2927 = vpack.c.b16 %v2787, %v2782
      %v2928 = vpack.c.b16 %v2788, %v2783
      %v2929 = vpack.c.b16 %v2789, %v2784
      %v2930 = vpack.c.b16 %v2790, %v2785
      %v2931 = vpack.c.b16 %v2791, %v2786
      %v2932 = vpack.c.b16 %v2797, %v2792
      %v2933 = vpack.c.b16 %v2798, %v2793
      %v2934 = vpack.c.b16 %v2799, %v2794
      %v2935 = vpack.c.b16 %v2800, %v2795
      %v2936 = vpack.c.b16 %v2801, %v2796
      %v2937 = vpack.c.b16 %v2807, %v2802
      %v2938 = vpack.c.b16 %v2808, %v2803
      %v2939 = vpack.c.b16 %v2809, %v2804
      %v2940 = vpack.c.b16 %v2810, %v2805
      %v2941 = vpack.c.b16 %v2811, %v2806
      %v2942 = vpack.c.b16 %v2817, %v2812
      %v2943 = vpack.c.b16 %v2818, %v2813
      %v2944 = vpack.c.b16 %v2819, %v2814
      %v2945 = vpack.c.b16 %v2820, %v2815
      %v2946 = vpack.c.b16 %v2821, %v2816
      %v2947 = vpack.c.b16 %v2827, %v2822
      %v2948 = vpack.c.b16 %v2828, %v2823
      %v2949 = vpack.c.b16 %v2829, %v2824
      %v2950 = vpack.c.b16 %v2830, %v2825
      %v2951 = vpack.c.b16 %v2831, %v2826
      %v2952 = vpack.c.b16 %v2837, %v2832
      %v2953 = vpack.c.b16 %v2838, %v2833
      %v2954 = vpack.c.b16 %v2839, %v2834
      %v2955 = vpack.c.b16 %v2840, %v2835
      %v2956 = vpack.c.b16 %v2841, %v2836
      %v2957 = vpack.c.b16 %v2847, %v2842
      %v2958 = vpack.c.b16 %v2848, %v2843
      %v2959 = vpack.c.b16 %v2849, %v2844
      %v2960 = vpack.c.b16 %v2850, %v2845
      %v2961 = vpack.c.b16 %v2851, %v2846
      %v2962 = vpack.c.b16 %v2857, %v2852
      %v2963 = vpack.c.b16 %v2858, %v2853
      %v2964 = vpack.c.b16 %v2859, %v2854
      %v2965 = vpack.c.b16 %v2860, %v2855
      %v2966 = vpack.c.b16 %v2861, %v2856
      %v2967 = vpack.c.b16 %v2867, %v2862
      %v2968 = vpack.c.b16 %v2868, %v2863
      %v2969 = vpack.c.b16 %v2869, %v2864
      %v2970 = vpack.c.b16 %v2870, %v2865
      %v2971 = vpack.c.b16 %v2871, %v2866
      %v2972 = vpack.c.b16 %v2877, %v2872
      %v2973 = vpack.c.b16 %v2878, %v2873
      %v2974 = vpack.c.b16 %v2879, %v2874
      %v2975 = vpack.c.b16 %v2880, %v2875
      %v2976 = vpack.c.b16 %v2881, %v2876
      %v2977 = vpack.c.b16 %v2887, %v2882
      %v2978 = vpack.c.b16 %v2888, %v2883
      %v2979 = vpack.c.b16 %v2889, %v2884
      %v2980 = vpack.c.b16 %v2890, %v2885
      %v2981 = vpack.c.b16 %v2891, %v2886
      %v2982 = vpack.c.b16 %v2897, %v2892
      %v2983 = vpack.c.b16 %v2898, %v2893
      %v2984 = vpack.c.b16 %v2899, %v2894
      %v2985 = vpack.c.b16 %v2900, %v2895
      %v2986 = vpack.c.b16 %v2901, %v2896
      %v2987 = vpack.c.b16 %v2907, %v2902
      %v2988 = vpack.c.b16 %v2908, %v2903
      %v2989 = vpack.c.b16 %v2909, %v2904
      %v2990 = vpack.c.b16 %v2910, %v2905
      %v2991 = vpack.c.b16 %v2911, %v2906
      %v3128 = vunpack.c.l.b16 %v2584
      %v3129 = vunpack.c.l.b16 %v2585
      %v3130 = vunpack.c.l.b16 %v2586
      %v3131 = vunpack.c.l.b16 %v2587
      %v3132 = vunpack.c.l.b16 %v2588
      %v3133 = vunpack.c.l.b16 %v2589
      %v3134 = vunpack.c.l.b16 %v2590
      %v3135 = vunpack.c.l.b16 %v2591
      %v3136 = vunpack.c.l.b16 %v2592
      %v3137 = vunpack.c.l.b16 %v2593
      %v3138 = vunpack.c.l.b16 %v2594
      %v3139 = vunpack.c.l.b16 %v2595
      %v3140 = vunpack.c.l.b16 %v2596
      %v3141 = vunpack.c.l.b16 %v2597
      %v3142 = vunpack.c.l.b16 %v2598
      %v3143 = vunpack.c.l.b16 %v2599
      %v3144 = vunpack.c.l.b16 %v2600
      %v3145 = vunpack.c.l.b16 %v2601
      %v3146 = vunpack.c.l.b16 %v2602
      %v3147 = vunpack.c.l.b16 %v2603
      %v3148 = vunpack.c.l.b16 %v2604
      %v3149 = vunpack.c.l.b16 %v2605
      %v3150 = vunpack.c.l.b16 %v2606
      %v3151 = vunpack.c.l.b16 %v2607
      %v3152 = vunpack.c.l.b16 %v2608
      %v3153 = vunpack.c.l.b16 %v2609
      %v3154 = vunpack.c.l.b16 %v2610
      %v3155 = vunpack.c.l.b16 %v2611
      %v3156 = vunpack.c.l.b16 %v2612
      %v3157 = vunpack.c.l.b16 %v2613
      %v3158 = vunpack.c.l.b16 %v2614
      %v3159 = vunpack.c.l.b16 %v2615
      %v3160 = vunpack.c.l.b16 %v2616
      %v3161 = vunpack.c.l.b16 %v2617
      %v3162 = vunpack.c.l.b16 %v2618
      %v3163 = vunpack.c.l.b16 %v2619
      %v3164 = vunpack.c.l.b16 %v2620
      %v3165 = vunpack.c.l.b16 %v2621
      %v3166 = vunpack.c.l.b16 %v2622
      %v3167 = vunpack.c.l.b16 %v2623
      %v3168 = vunpack.c.l.b16 %v2624
      %v3169 = vunpack.c.l.b16 %v2625
      %v3170 = vunpack.c.l.b16 %v2626
      %v3171 = vunpack.c.l.b16 %v2627
      %v3172 = vunpack.c.l.b16 %v2628
      %v3173 = vunpack.c.l.b16 %v2629
      %v3174 = vunpack.c.l.b16 %v2630
      %v3175 = vunpack.c.l.b16 %v2631
      %v3176 = vunpack.c.l.b16 %v2632
      %v3177 = vunpack.c.l.b16 %v2633
      %v3178 = vunpack.c.l.b16 %v2634
      %v3179 = vunpack.c.l.b16 %v2635
      %v3180 = vunpack.c.l.b16 %v2636
      %v3181 = vunpack.c.l.b16 %v2637
      %v3182 = vunpack.c.l.b16 %v2638
      %v3183 = vunpack.c.l.b16 %v2639
      %v3184 = vunpack.c.l.b16 %v2640
      %v3185 = vunpack.c.l.b16 %v2641
      %v3186 = vunpack.c.l.b16 %v2642
      %v3187 = vunpack.c.l.b16 %v2643
      %v3188 = vunpack.c.l.b16 %v2644
      %v3189 = vunpack.c.l.b16 %v2645
      %v3190 = vunpack.c.l.b16 %v2646
      %v3191 = vunpack.c.l.b16 %v2647
      %v3192 = vunpack.c.l.b16 %v2648
      %v3193 = vunpack.c.l.b16 %v2649
      %v3194 = vunpack.c.l.b16 %v2650
      %v3195 = vunpack.c.l.b16 %v2651
      %v3196 = vunpack.c.l.b16 %v2652
      %v3197 = vunpack.c.l.b16 %v2653
      %v3198 = vunpack.c.l.b16 %v2654
      %v3199 = vunpack.c.l.b16 %v2655
      %v3200 = vpack.c.b16 %v3129, %v3128
      %v3201 = vpack.c.b16 %v3131, %v3130
      %v3202 = vpack.c.b16 %v3133, %v3132
      %v3203 = vpack.c.b16 %v3135, %v3134
      %v3204 = vpack.c.b16 %v3137, %v3136
      %v3205 = vpack.c.b16 %v3139, %v3138
      %v3206 = vpack.c.b16 %v3141, %v3140
      %v3207 = vpack.c.b16 %v3143, %v3142
      %v3208 = vpack.c.b16 %v3145, %v3144
      %v3209 = vpack.c.b16 %v3147, %v3146
      %v3210 = vpack.c.b16 %v3149, %v3148
      %v3211 = vpack.c.b16 %v3151, %v3150
      %v3212 = vpack.c.b16 %v3153, %v3152
      %v3213 = vpack.c.b16 %v3155, %v3154
      %v3214 = vpack.c.b16 %v3157, %v3156
      %v3215 = vpack.c.b16 %v3159, %v3158
      %v3216 = vpack.c.b16 %v3161, %v3160
      %v3217 = vpack.c.b16 %v3163, %v3162
      %v3218 = vpack.c.b16 %v3165, %v3164
      %v3219 = vpack.c.b16 %v3167, %v3166
      %v3220 = vpack.c.b16 %v3169, %v3168
      %v3221 = vpack.c.b16 %v3171, %v3170
      %v3222 = vpack.c.b16 %v3173, %v3172
      %v3223 = vpack.c.b16 %v3175, %v3174
      %v3224 = vpack.c.b16 %v3177, %v3176
      %v3225 = vpack.c.b16 %v3179, %v3178
      %v3226 = vpack.c.b16 %v3181, %v3180
      %v3227 = vpack.c.b16 %v3183, %v3182
      %v3228 = vpack.c.b16 %v3185, %v3184
      %v3229 = vpack.c.b16 %v3187, %v3186
      %v3230 = vpack.c.b16 %v3189, %v3188
      %v3231 = vpack.c.b16 %v3191, %v3190
      %v3232 = vpack.c.b16 %v3193, %v3192
      %v3233 = vpack.c.b16 %v3195, %v3194
      %v3234 = vpack.c.b16 %v3197, %v3196
      %v3235 = vpack.c.b16 %v3199, %v3198
      %v3273 = vsel %vm422, %v2916, 0
      %v3276 = vsel %vm422, %v2921, 0
      %v3279 = vsel %vm422, %v2926, 0
      %v3282 = vsel %vm422, %v2931, 0
      %v3285 = vsel %vm422, %v2936, 0
      %v3288 = vsel %vm422, %v2941, 0
      %v3291 = vsel %vm422, %v2946, 0
      %v3294 = vsel %vm422, %v2951, 0
      %v3297 = vsel %vm422, %v2956, 0
      %v3300 = vsel %vm422, %v2961, 0
      %v3303 = vsel %vm422, %v2966, 0
      %v3306 = vsel %vm422, %v2971, 0
      %v3309 = vsel %vm422, %v2976, 0
      %v3312 = vsel %vm422, %v2981, 0
      %v3315 = vsel %vm422, %v2986, 0
      %v3318 = vsel %vm422, %v2991, 0
      %3320 = vmatprep.subr.bf16.mxu0 0
      %3321 = vmatpush1.bf16.msra.mxu0 %v3207
      %3322 = vmatprep.subr.bf16.mxu0 0
      %3323 = vmatpush1.bf16.msra.mxu0 %v3206
      %3324 = vmatprep.subr.bf16.mxu0 0
      %3325 = vmatpush1.bf16.msra.mxu0 %v3205
      %3326 = vmatprep.subr.bf16.mxu0 0
      %3327 = vmatpush1.bf16.msra.mxu0 %v3204
      %3328 = vmatprep.subr.bf16.mxu0 0
      %3329 = vmatpush1.bf16.msra.mxu0 %v3203
      %3330 = vmatprep.subr.bf16.mxu0 0
      %3331 = vmatpush1.bf16.msra.mxu0 %v3202
      %3332 = vmatprep.subr.bf16.mxu0 0
      %3333 = vmatpush1.bf16.msra.mxu0 %v3201
      %3334 = vmatprep.subr.bf16.mxu0 0
      %3335 = vmatpush1.bf16.msra.mxu0 %v3200
      %3336 = vmatprep.subr.bf16.mxu0 0
      %3337 = vmatpush2.bf16.msra.mxu0 %v3215
      %3338 = vmatprep.subr.bf16.mxu0 0
      %3339 = vmatpush2.bf16.msra.mxu0 %v3214
      %3340 = vmatprep.subr.bf16.mxu0 0
      %3341 = vmatpush2.bf16.msra.mxu0 %v3213
      %3342 = vmatprep.subr.bf16.mxu0 0
      %3343 = vmatpush2.bf16.msra.mxu0 %v3212
      %3344 = vmatprep.subr.bf16.mxu0 0
      %3345 = vmatpush2.bf16.msra.mxu0 %v3211
      %3346 = vmatprep.subr.bf16.mxu0 0
      %3347 = vmatpush2.bf16.msra.mxu0 %v3210
      %3348 = vmatprep.subr.bf16.mxu0 0
      %3349 = vmatpush2.bf16.msra.mxu0 %v3209
      %3350 = vmatprep.subr.bf16.mxu0 0
      %3351 = vmatpush2.bf16.msra.mxu0 %v3208
      %3352 = vmatprep.mubr.bf16.mxu0 %v2913
      %3353 = vmatmul.mubr.bf16.gmra.mxu0 %v2912
      %v3354 = vpop.f32.mrf.mxu0
      %v3355 = vadd.f32 0.0, %v3354
      %v3356 = vpop.f32.mrf.mxu0
      %v3357 = vpop.f32.mrf.mxu0
      %v3358 = vadd.f32 0.0, %v3357
      %v3359 = vpop.f32.mrf.mxu0
      %3360 = vmatprep.mubr.bf16.mxu0 %v2918
      %3361 = vmatmul.mubr.bf16.gmra.mxu0 %v2917
      %v3362 = vpop.f32.mrf.mxu0
      %v3363 = vadd.f32 0.0, %v3362
      %v3364 = vpop.f32.mrf.mxu0
      %v3365 = vpop.f32.mrf.mxu0
      %v3366 = vadd.f32 0.0, %v3365
      %v3367 = vpop.f32.mrf.mxu0
      %3368 = vmatprep.mubr.bf16.mxu0 %v2923
      %3369 = vmatmul.mubr.bf16.gmra.mxu0 %v2922
      %v3370 = vpop.f32.mrf.mxu0
      %v3371 = vadd.f32 0.0, %v3370
      %v3372 = vpop.f32.mrf.mxu0
      %v3373 = vpop.f32.mrf.mxu0
      %v3374 = vadd.f32 0.0, %v3373
      %v3375 = vpop.f32.mrf.mxu0
      %3376 = vmatprep.mubr.bf16.mxu0 %v2928
      %3377 = vmatmul.mubr.bf16.gmra.mxu0 %v2927
      %v3378 = vpop.f32.mrf.mxu0
      %v3379 = vadd.f32 0.0, %v3378
      %v3380 = vpop.f32.mrf.mxu0
      %v3381 = vpop.f32.mrf.mxu0
      %v3382 = vadd.f32 0.0, %v3381
      %v3383 = vpop.f32.mrf.mxu0
      %3384 = vmatprep.mubr.bf16.mxu0 %v2933
      %3385 = vmatmul.mubr.bf16.gmra.mxu0 %v2932
      %v3386 = vpop.f32.mrf.mxu0
      %v3387 = vadd.f32 0.0, %v3386
      %v3388 = vpop.f32.mrf.mxu0
      %v3389 = vpop.f32.mrf.mxu0
      %v3390 = vadd.f32 0.0, %v3389
      %v3391 = vpop.f32.mrf.mxu0
      %3392 = vmatprep.mubr.bf16.mxu0 %v2938
      %3393 = vmatmul.mubr.bf16.gmra.mxu0 %v2937
      %v3394 = vpop.f32.mrf.mxu0
      %v3395 = vadd.f32 0.0, %v3394
      %v3396 = vpop.f32.mrf.mxu0
      %v3397 = vpop.f32.mrf.mxu0
      %v3398 = vadd.f32 0.0, %v3397
      %v3399 = vpop.f32.mrf.mxu0
      %3400 = vmatprep.mubr.bf16.mxu0 %v2943
      %3401 = vmatmul.mubr.bf16.gmra.mxu0 %v2942
      %v3402 = vpop.f32.mrf.mxu0
      %v3403 = vadd.f32 0.0, %v3402
      %v3404 = vpop.f32.mrf.mxu0
      %v3405 = vpop.f32.mrf.mxu0
      %v3406 = vadd.f32 0.0, %v3405
      %v3407 = vpop.f32.mrf.mxu0
      %3408 = vmatprep.mubr.bf16.mxu0 %v2948
      %3409 = vmatmul.mubr.bf16.gmra.mxu0 %v2947
      %v3410 = vpop.f32.mrf.mxu0
      %v3411 = vadd.f32 0.0, %v3410
      %v3412 = vpop.f32.mrf.mxu0
      %v3413 = vpop.f32.mrf.mxu0
      %v3414 = vadd.f32 0.0, %v3413
      %v3415 = vpop.f32.mrf.mxu0
      %3416 = vmatprep.mubr.bf16.mxu0 %v2953
      %3417 = vmatmul.mubr.bf16.gmra.mxu0 %v2952
      %v3418 = vpop.f32.mrf.mxu0
      %v3419 = vadd.f32 0.0, %v3418
      %v3420 = vpop.f32.mrf.mxu0
      %v3421 = vpop.f32.mrf.mxu0
      %v3422 = vadd.f32 0.0, %v3421
      %v3423 = vpop.f32.mrf.mxu0
      %3424 = vmatprep.mubr.bf16.mxu0 %v2958
      %3425 = vmatmul.mubr.bf16.gmra.mxu0 %v2957
      %v3426 = vpop.f32.mrf.mxu0
      %v3427 = vadd.f32 0.0, %v3426
      %v3428 = vpop.f32.mrf.mxu0
      %v3429 = vpop.f32.mrf.mxu0
      %v3430 = vadd.f32 0.0, %v3429
      %v3431 = vpop.f32.mrf.mxu0
      %3432 = vmatprep.mubr.bf16.mxu0 %v2963
      %3433 = vmatmul.mubr.bf16.gmra.mxu0 %v2962
      %v3434 = vpop.f32.mrf.mxu0
      %v3435 = vadd.f32 0.0, %v3434
      %v3436 = vpop.f32.mrf.mxu0
      %v3437 = vpop.f32.mrf.mxu0
      %v3438 = vadd.f32 0.0, %v3437
      %v3439 = vpop.f32.mrf.mxu0
      %3440 = vmatprep.mubr.bf16.mxu0 %v2968
      %3441 = vmatmul.mubr.bf16.gmra.mxu0 %v2967
      %v3442 = vpop.f32.mrf.mxu0
      %v3443 = vadd.f32 0.0, %v3442
      %v3444 = vpop.f32.mrf.mxu0
      %v3445 = vpop.f32.mrf.mxu0
      %v3446 = vadd.f32 0.0, %v3445
      %v3447 = vpop.f32.mrf.mxu0
      %3448 = vmatprep.mubr.bf16.mxu0 %v2973
      %3449 = vmatmul.mubr.bf16.gmra.mxu0 %v2972
      %v3450 = vpop.f32.mrf.mxu0
      %v3451 = vadd.f32 0.0, %v3450
      %v3452 = vpop.f32.mrf.mxu0
      %v3453 = vpop.f32.mrf.mxu0
      %v3454 = vadd.f32 0.0, %v3453
      %v3455 = vpop.f32.mrf.mxu0
      %3456 = vmatprep.mubr.bf16.mxu0 %v2978
      %3457 = vmatmul.mubr.bf16.gmra.mxu0 %v2977
      %v3458 = vpop.f32.mrf.mxu0
      %v3459 = vadd.f32 0.0, %v3458
      %v3460 = vpop.f32.mrf.mxu0
      %v3461 = vpop.f32.mrf.mxu0
      %v3462 = vadd.f32 0.0, %v3461
      %v3463 = vpop.f32.mrf.mxu0
      %3464 = vmatprep.mubr.bf16.mxu0 %v2983
      %3465 = vmatmul.mubr.bf16.gmra.mxu0 %v2982
      %v3466 = vpop.f32.mrf.mxu0
      %v3467 = vadd.f32 0.0, %v3466
      %v3468 = vpop.f32.mrf.mxu0
      %v3469 = vpop.f32.mrf.mxu0
      %v3470 = vadd.f32 0.0, %v3469
      %v3471 = vpop.f32.mrf.mxu0
      %3472 = vmatprep.mubr.bf16.mxu0 %v2988
      %3473 = vmatmul.mubr.bf16.gmra.mxu0 %v2987
      %v3474 = vpop.f32.mrf.mxu0
      %v3475 = vadd.f32 0.0, %v3474
      %v3476 = vpop.f32.mrf.mxu0
      %v3477 = vpop.f32.mrf.mxu0
      %v3478 = vadd.f32 0.0, %v3477
      %v3479 = vpop.f32.mrf.mxu0
      %3480 = vdwg.mxu0
      %3481 = vmatprep.subr.bf16.mxu0 0
      %3482 = vmatpush1.bf16.msra.mxu0 %v3223
      %3483 = vmatprep.subr.bf16.mxu0 0
      %3484 = vmatpush1.bf16.msra.mxu0 %v3222
      %3485 = vmatprep.subr.bf16.mxu0 0
      %3486 = vmatpush1.bf16.msra.mxu0 %v3221
      %3487 = vmatprep.subr.bf16.mxu0 0
      %3488 = vmatpush1.bf16.msra.mxu0 %v3220
      %3489 = vmatprep.subr.bf16.mxu0 0
      %3490 = vmatpush1.bf16.msra.mxu0 %v3219
      %3491 = vmatprep.subr.bf16.mxu0 0
      %3492 = vmatpush1.bf16.msra.mxu0 %v3218
      %3493 = vmatprep.subr.bf16.mxu0 0
      %3494 = vmatpush1.bf16.msra.mxu0 %v3217
      %3495 = vmatprep.subr.bf16.mxu0 0
      %3496 = vmatpush1.bf16.msra.mxu0 %v3216
      %3497 = vmatprep.subr.bf16.mxu0 0
      %3498 = vmatpush2.bf16.msra.mxu0 %v3231
      %3499 = vmatprep.subr.bf16.mxu0 0
      %3500 = vmatpush2.bf16.msra.mxu0 %v3230
      %3501 = vmatprep.subr.bf16.mxu0 0
      %3502 = vmatpush2.bf16.msra.mxu0 %v3229
      %3503 = vmatprep.subr.bf16.mxu0 0
      %3504 = vmatpush2.bf16.msra.mxu0 %v3228
      %3505 = vmatprep.subr.bf16.mxu0 0
      %3506 = vmatpush2.bf16.msra.mxu0 %v3227
      %3507 = vmatprep.subr.bf16.mxu0 0
      %3508 = vmatpush2.bf16.msra.mxu0 %v3226
      %3509 = vmatprep.subr.bf16.mxu0 0
      %3510 = vmatpush2.bf16.msra.mxu0 %v3225
      %3511 = vmatprep.subr.bf16.mxu0 0
      %3512 = vmatpush2.bf16.msra.mxu0 %v3224
      %3513 = vmatprep.mubr.bf16.mxu0 %v2915
      %3514 = vmatmul.mubr.bf16.gmra.mxu0 %v2914
      %v3515 = vpop.f32.mrf.mxu0
      %v3516 = vadd.f32 %v3355, %v3515
      %v3517 = vpop.f32.mrf.mxu0
      %v3518 = vpop.f32.mrf.mxu0
      %v3519 = vadd.f32 %v3358, %v3518
      %v3520 = vpop.f32.mrf.mxu0
      %3521 = vmatprep.mubr.bf16.mxu0 %v2920
      %3522 = vmatmul.mubr.bf16.gmra.mxu0 %v2919
      %v3523 = vpop.f32.mrf.mxu0
      %v3524 = vadd.f32 %v3363, %v3523
      %v3525 = vpop.f32.mrf.mxu0
      %v3526 = vpop.f32.mrf.mxu0
      %v3527 = vadd.f32 %v3366, %v3526
      %v3528 = vpop.f32.mrf.mxu0
      %3529 = vmatprep.mubr.bf16.mxu0 %v2925
      %3530 = vmatmul.mubr.bf16.gmra.mxu0 %v2924
      %v3531 = vpop.f32.mrf.mxu0
      %v3532 = vadd.f32 %v3371, %v3531
      %v3533 = vpop.f32.mrf.mxu0
      %v3534 = vpop.f32.mrf.mxu0
      %v3535 = vadd.f32 %v3374, %v3534
      %v3536 = vpop.f32.mrf.mxu0
      %3537 = vmatprep.mubr.bf16.mxu0 %v2930
      %3538 = vmatmul.mubr.bf16.gmra.mxu0 %v2929
      %v3539 = vpop.f32.mrf.mxu0
      %v3540 = vadd.f32 %v3379, %v3539
      %v3541 = vpop.f32.mrf.mxu0
      %v3542 = vpop.f32.mrf.mxu0
      %v3543 = vadd.f32 %v3382, %v3542
      %v3544 = vpop.f32.mrf.mxu0
      %3545 = vmatprep.mubr.bf16.mxu0 %v2935
      %3546 = vmatmul.mubr.bf16.gmra.mxu0 %v2934
      %v3547 = vpop.f32.mrf.mxu0
      %v3548 = vadd.f32 %v3387, %v3547
      %v3549 = vpop.f32.mrf.mxu0
      %v3550 = vpop.f32.mrf.mxu0
      %v3551 = vadd.f32 %v3390, %v3550
      %v3552 = vpop.f32.mrf.mxu0
      %3553 = vmatprep.mubr.bf16.mxu0 %v2940
      %3554 = vmatmul.mubr.bf16.gmra.mxu0 %v2939
      %v3555 = vpop.f32.mrf.mxu0
      %v3556 = vadd.f32 %v3395, %v3555
      %v3557 = vpop.f32.mrf.mxu0
      %v3558 = vpop.f32.mrf.mxu0
      %v3559 = vadd.f32 %v3398, %v3558
      %v3560 = vpop.f32.mrf.mxu0
      %3561 = vmatprep.mubr.bf16.mxu0 %v2945
      %3562 = vmatmul.mubr.bf16.gmra.mxu0 %v2944
      %v3563 = vpop.f32.mrf.mxu0
      %v3564 = vadd.f32 %v3403, %v3563
      %v3565 = vpop.f32.mrf.mxu0
      %v3566 = vpop.f32.mrf.mxu0
      %v3567 = vadd.f32 %v3406, %v3566
      %v3568 = vpop.f32.mrf.mxu0
      %3569 = vmatprep.mubr.bf16.mxu0 %v2950
      %3570 = vmatmul.mubr.bf16.gmra.mxu0 %v2949
      %v3571 = vpop.f32.mrf.mxu0
      %v3572 = vadd.f32 %v3411, %v3571
      %v3573 = vpop.f32.mrf.mxu0
      %v3574 = vpop.f32.mrf.mxu0
      %v3575 = vadd.f32 %v3414, %v3574
      %v3576 = vpop.f32.mrf.mxu0
      %3577 = vmatprep.mubr.bf16.mxu0 %v2955
      %3578 = vmatmul.mubr.bf16.gmra.mxu0 %v2954
      %v3579 = vpop.f32.mrf.mxu0
      %v3580 = vadd.f32 %v3419, %v3579
      %v3581 = vpop.f32.mrf.mxu0
      %v3582 = vpop.f32.mrf.mxu0
      %v3583 = vadd.f32 %v3422, %v3582
      %v3584 = vpop.f32.mrf.mxu0
      %3585 = vmatprep.mubr.bf16.mxu0 %v2960
      %3586 = vmatmul.mubr.bf16.gmra.mxu0 %v2959
      %v3587 = vpop.f32.mrf.mxu0
      %v3588 = vadd.f32 %v3427, %v3587
      %v3589 = vpop.f32.mrf.mxu0
      %v3590 = vpop.f32.mrf.mxu0
      %v3591 = vadd.f32 %v3430, %v3590
      %v3592 = vpop.f32.mrf.mxu0
      %3593 = vmatprep.mubr.bf16.mxu0 %v2965
      %3594 = vmatmul.mubr.bf16.gmra.mxu0 %v2964
      %v3595 = vpop.f32.mrf.mxu0
      %v3596 = vadd.f32 %v3435, %v3595
      %v3597 = vpop.f32.mrf.mxu0
      %v3598 = vpop.f32.mrf.mxu0
      %v3599 = vadd.f32 %v3438, %v3598
      %v3600 = vpop.f32.mrf.mxu0
      %3601 = vmatprep.mubr.bf16.mxu0 %v2970
      %3602 = vmatmul.mubr.bf16.gmra.mxu0 %v2969
      %v3603 = vpop.f32.mrf.mxu0
      %v3604 = vadd.f32 %v3443, %v3603
      %v3605 = vpop.f32.mrf.mxu0
      %v3606 = vpop.f32.mrf.mxu0
      %v3607 = vadd.f32 %v3446, %v3606
      %v3608 = vpop.f32.mrf.mxu0
      %3609 = vmatprep.mubr.bf16.mxu0 %v2975
      %3610 = vmatmul.mubr.bf16.gmra.mxu0 %v2974
      %v3611 = vpop.f32.mrf.mxu0
      %v3612 = vadd.f32 %v3451, %v3611
      %v3613 = vpop.f32.mrf.mxu0
      %v3614 = vpop.f32.mrf.mxu0
      %v3615 = vadd.f32 %v3454, %v3614
      %v3616 = vpop.f32.mrf.mxu0
      %3617 = vmatprep.mubr.bf16.mxu0 %v2980
      %3618 = vmatmul.mubr.bf16.gmra.mxu0 %v2979
      %v3619 = vpop.f32.mrf.mxu0
      %v3620 = vadd.f32 %v3459, %v3619
      %v3621 = vpop.f32.mrf.mxu0
      %v3622 = vpop.f32.mrf.mxu0
      %v3623 = vadd.f32 %v3462, %v3622
      %v3624 = vpop.f32.mrf.mxu0
      %3625 = vmatprep.mubr.bf16.mxu0 %v2985
      %3626 = vmatmul.mubr.bf16.gmra.mxu0 %v2984
      %v3627 = vpop.f32.mrf.mxu0
      %v3628 = vadd.f32 %v3467, %v3627
      %v3629 = vpop.f32.mrf.mxu0
      %v3630 = vpop.f32.mrf.mxu0
      %v3631 = vadd.f32 %v3470, %v3630
      %v3632 = vpop.f32.mrf.mxu0
      %3633 = vmatprep.mubr.bf16.mxu0 %v2990
      %3634 = vmatmul.mubr.bf16.gmra.mxu0 %v2989
      %v3635 = vpop.f32.mrf.mxu0
      %v3636 = vadd.f32 %v3475, %v3635
      %v3637 = vpop.f32.mrf.mxu0
      %v3638 = vpop.f32.mrf.mxu0
      %v3639 = vadd.f32 %v3478, %v3638
      %v3640 = vpop.f32.mrf.mxu0
      %3641 = vdwg.mxu0
      %3642 = vmatprep.subr.bf16.mxu0 0
      %3643 = vmatpush1.bf16.msra.mxu0 0
      %3644 = vmatprep.subr.bf16.mxu0 0
      %3645 = vmatpush1.bf16.msra.mxu0 0
      %3646 = vmatprep.subr.bf16.mxu0 0
      %3647 = vmatpush1.bf16.msra.mxu0 0
      %3648 = vmatprep.subr.bf16.mxu0 0
      %3649 = vmatpush1.bf16.msra.mxu0 0
      %3650 = vmatprep.subr.bf16.mxu0 0
      %3651 = vmatpush1.bf16.msra.mxu0 %v3235
      %3652 = vmatprep.subr.bf16.mxu0 0
      %3653 = vmatpush1.bf16.msra.mxu0 %v3234
      %3654 = vmatprep.subr.bf16.mxu0 0
      %3655 = vmatpush1.bf16.msra.mxu0 %v3233
      %3656 = vmatprep.subr.bf16.mxu0 0
      %3657 = vmatpush1.bf16.msra.mxu0 %v3232
      %3658 = vmatprep.subr.bf16.mxu0 0
      %3659 = vmatpush2.bf16.msra.mxu0 0
      %3660 = vmatprep.subr.bf16.mxu0 0
      %3661 = vmatpush2.bf16.msra.mxu0 0
      %3662 = vmatprep.subr.bf16.mxu0 0
      %3663 = vmatpush2.bf16.msra.mxu0 0
      %3664 = vmatprep.subr.bf16.mxu0 0
      %3665 = vmatpush2.bf16.msra.mxu0 0
      %3666 = vmatprep.subr.bf16.mxu0 0
      %3667 = vmatpush2.bf16.msra.mxu0 0
      %3668 = vmatprep.subr.bf16.mxu0 0
      %3669 = vmatpush2.bf16.msra.mxu0 0
      %3670 = vmatprep.subr.bf16.mxu0 0
      %3671 = vmatpush2.bf16.msra.mxu0 0
      %3672 = vmatprep.subr.bf16.mxu0 0
      %3673 = vmatpush2.bf16.msra.mxu0 0
      %3674 = vmatprep.mubr.bf16.mxu0 0
      %3675 = vmatmul.mubr.bf16.gmra.mxu0 %v3273
      %v3676 = vpop.f32.mrf.mxu0
      %v3677 = vadd.f32 %v3516, %v3676
      %v3678 = vpop.f32.mrf.mxu0
      %v3679 = vpop.f32.mrf.mxu0
      %v3680 = vadd.f32 %v3519, %v3679
      %v3681 = vpop.f32.mrf.mxu0
      %3682 = vmatprep.mubr.bf16.mxu0 0
      %3683 = vmatmul.mubr.bf16.gmra.mxu0 %v3276
      %v3684 = vpop.f32.mrf.mxu0
      %v3685 = vadd.f32 %v3524, %v3684
      %v3686 = vpop.f32.mrf.mxu0
      %v3687 = vpop.f32.mrf.mxu0
      %v3688 = vadd.f32 %v3527, %v3687
      %v3689 = vpop.f32.mrf.mxu0
      %3690 = vmatprep.mubr.bf16.mxu0 0
      %3691 = vmatmul.mubr.bf16.gmra.mxu0 %v3279
      %v3692 = vpop.f32.mrf.mxu0
      %v3693 = vadd.f32 %v3532, %v3692
      %v3694 = vpop.f32.mrf.mxu0
      %v3695 = vpop.f32.mrf.mxu0
      %v3696 = vadd.f32 %v3535, %v3695
      %v3697 = vpop.f32.mrf.mxu0
      %3698 = vmatprep.mubr.bf16.mxu0 0
      %3699 = vmatmul.mubr.bf16.gmra.mxu0 %v3282
      %v3700 = vpop.f32.mrf.mxu0
      %v3701 = vadd.f32 %v3540, %v3700
      %v3702 = vpop.f32.mrf.mxu0
      %v3703 = vpop.f32.mrf.mxu0
      %v3704 = vadd.f32 %v3543, %v3703
      %v3705 = vpop.f32.mrf.mxu0
      %3706 = vmatprep.mubr.bf16.mxu0 0
      %3707 = vmatmul.mubr.bf16.gmra.mxu0 %v3285
      %v3708 = vpop.f32.mrf.mxu0
      %v3709 = vadd.f32 %v3548, %v3708
      %v3710 = vpop.f32.mrf.mxu0
      %v3711 = vpop.f32.mrf.mxu0
      %v3712 = vadd.f32 %v3551, %v3711
      %v3713 = vpop.f32.mrf.mxu0
      %3714 = vmatprep.mubr.bf16.mxu0 0
      %3715 = vmatmul.mubr.bf16.gmra.mxu0 %v3288
      %v3716 = vpop.f32.mrf.mxu0
      %v3717 = vadd.f32 %v3556, %v3716
      %v3718 = vpop.f32.mrf.mxu0
      %v3719 = vpop.f32.mrf.mxu0
      %v3720 = vadd.f32 %v3559, %v3719
      %v3721 = vpop.f32.mrf.mxu0
      %3722 = vmatprep.mubr.bf16.mxu0 0
      %3723 = vmatmul.mubr.bf16.gmra.mxu0 %v3291
      %v3724 = vpop.f32.mrf.mxu0
      %v3725 = vadd.f32 %v3564, %v3724
      %v3726 = vpop.f32.mrf.mxu0
      %v3727 = vpop.f32.mrf.mxu0
      %v3728 = vadd.f32 %v3567, %v3727
      %v3729 = vpop.f32.mrf.mxu0
      %3730 = vmatprep.mubr.bf16.mxu0 0
      %3731 = vmatmul.mubr.bf16.gmra.mxu0 %v3294
      %v3732 = vpop.f32.mrf.mxu0
      %v3733 = vadd.f32 %v3572, %v3732
      %v3734 = vpop.f32.mrf.mxu0
      %v3735 = vpop.f32.mrf.mxu0
      %v3736 = vadd.f32 %v3575, %v3735
      %v3737 = vpop.f32.mrf.mxu0
      %3738 = vmatprep.mubr.bf16.mxu0 0
      %3739 = vmatmul.mubr.bf16.gmra.mxu0 %v3297
      %v3740 = vpop.f32.mrf.mxu0
      %v3741 = vadd.f32 %v3580, %v3740
      %v3742 = vpop.f32.mrf.mxu0
      %v3743 = vpop.f32.mrf.mxu0
      %v3744 = vadd.f32 %v3583, %v3743
      %v3745 = vpop.f32.mrf.mxu0
      %3746 = vmatprep.mubr.bf16.mxu0 0
      %3747 = vmatmul.mubr.bf16.gmra.mxu0 %v3300
      %v3748 = vpop.f32.mrf.mxu0
      %v3749 = vadd.f32 %v3588, %v3748
      %v3750 = vpop.f32.mrf.mxu0
      %v3751 = vpop.f32.mrf.mxu0
      %v3752 = vadd.f32 %v3591, %v3751
      %v3753 = vpop.f32.mrf.mxu0
      %3754 = vmatprep.mubr.bf16.mxu0 0
      %3755 = vmatmul.mubr.bf16.gmra.mxu0 %v3303
      %v3756 = vpop.f32.mrf.mxu0
      %v3757 = vadd.f32 %v3596, %v3756
      %v3758 = vpop.f32.mrf.mxu0
      %v3759 = vpop.f32.mrf.mxu0
      %v3760 = vadd.f32 %v3599, %v3759
      %v3761 = vpop.f32.mrf.mxu0
      %3762 = vmatprep.mubr.bf16.mxu0 0
      %3763 = vmatmul.mubr.bf16.gmra.mxu0 %v3306
      %v3764 = vpop.f32.mrf.mxu0
      %v3765 = vadd.f32 %v3604, %v3764
      %v3766 = vpop.f32.mrf.mxu0
      %v3767 = vpop.f32.mrf.mxu0
      %v3768 = vadd.f32 %v3607, %v3767
      %v3769 = vpop.f32.mrf.mxu0
      %3770 = vmatprep.mubr.bf16.mxu0 0
      %3771 = vmatmul.mubr.bf16.gmra.mxu0 %v3309
      %v3772 = vpop.f32.mrf.mxu0
      %v3773 = vadd.f32 %v3612, %v3772
      %v3774 = vpop.f32.mrf.mxu0
      %v3775 = vpop.f32.mrf.mxu0
      %v3776 = vadd.f32 %v3615, %v3775
      %v3777 = vpop.f32.mrf.mxu0
      %3778 = vmatprep.mubr.bf16.mxu0 0
      %3779 = vmatmul.mubr.bf16.gmra.mxu0 %v3312
      %v3780 = vpop.f32.mrf.mxu0
      %v3781 = vadd.f32 %v3620, %v3780
      %v3782 = vpop.f32.mrf.mxu0
      %v3783 = vpop.f32.mrf.mxu0
      %v3784 = vadd.f32 %v3623, %v3783
      %v3785 = vpop.f32.mrf.mxu0
      %3786 = vmatprep.mubr.bf16.mxu0 0
      %3787 = vmatmul.mubr.bf16.gmra.mxu0 %v3315
      %v3788 = vpop.f32.mrf.mxu0
      %v3789 = vadd.f32 %v3628, %v3788
      %v3790 = vpop.f32.mrf.mxu0
      %v3791 = vpop.f32.mrf.mxu0
      %v3792 = vadd.f32 %v3631, %v3791
      %v3793 = vpop.f32.mrf.mxu0
      %3794 = vmatprep.mubr.bf16.mxu0 0
      %3795 = vmatmul.mubr.bf16.gmra.mxu0 %v3318
      %v3796 = vpop.f32.mrf.mxu0
      %v3797 = vadd.f32 %v3636, %v3796
      %v3798 = vpop.f32.mrf.mxu0
      %v3799 = vpop.f32.mrf.mxu0
      %v3800 = vadd.f32 %v3639, %v3799
      %v3801 = vpop.f32.mrf.mxu0
      %3802 = vdwg.mxu0
      %v3803 = vld [vmem:[%s4] sm:$0x1]
      %v3805 = vlaneseq
      %v3806 = vshrl.u32 %v3805, 7
      %v3807 = vsub.s32 0, %v3806
      %v3808 = vrot.slane %v3803, %v3807
      %v3810 = vmul.f32 %v3677, %v3808
      %v3811 = vmul.f32 %v3680, %v3808
      %v3812 = vmul.f32 %v3685, %v3808
      %v3813 = vmul.f32 %v3688, %v3808
      %v3814 = vmul.f32 %v3693, %v3808
      %v3815 = vmul.f32 %v3696, %v3808
      %v3816 = vmul.f32 %v3701, %v3808
      %v3817 = vmul.f32 %v3704, %v3808
      %v3818 = vmul.f32 %v3709, %v3808
      %v3819 = vmul.f32 %v3712, %v3808
      %v3820 = vmul.f32 %v3717, %v3808
      %v3821 = vmul.f32 %v3720, %v3808
      %v3822 = vmul.f32 %v3725, %v3808
      %v3823 = vmul.f32 %v3728, %v3808
      %v3824 = vmul.f32 %v3733, %v3808
      %v3825 = vmul.f32 %v3736, %v3808
      %v3826 = vmul.f32 %v3741, %v3808
      %v3827 = vmul.f32 %v3744, %v3808
      %v3828 = vmul.f32 %v3749, %v3808
      %v3829 = vmul.f32 %v3752, %v3808
      %v3830 = vmul.f32 %v3757, %v3808
      %v3831 = vmul.f32 %v3760, %v3808
      %v3832 = vmul.f32 %v3765, %v3808
      %v3833 = vmul.f32 %v3768, %v3808
      %v3834 = vmul.f32 %v3773, %v3808
      %v3835 = vmul.f32 %v3776, %v3808
      %v3836 = vmul.f32 %v3781, %v3808
      %v3837 = vmul.f32 %v3784, %v3808
      %v3838 = vmul.f32 %v3789, %v3808
      %v3839 = vmul.f32 %v3792, %v3808
      %v3840 = vmul.f32 %v3797, %v3808
      %v3841 = vmul.f32 %v3800, %v3808
      %v3842 = vld [vmem:[%s5] sm:$0x1]
      %v3844 = vlaneseq
      %v3845 = vshrl.u32 %v3844, 7
      %v3846 = vsub.s32 0, %v3845
      %v3847 = vrot.slane %v3842, %v3846
      %v3849 = vadd.f32 %v3810, %v3847
      %v3850 = vadd.f32 %v3811, %v3847
      %v3851 = vadd.f32 %v3812, %v3847
      %v3852 = vadd.f32 %v3813, %v3847
      %v3853 = vadd.f32 %v3814, %v3847
      %v3854 = vadd.f32 %v3815, %v3847
      %v3855 = vadd.f32 %v3816, %v3847
      %v3856 = vadd.f32 %v3817, %v3847
      %v3857 = vadd.f32 %v3818, %v3847
      %v3858 = vadd.f32 %v3819, %v3847
      %v3859 = vadd.f32 %v3820, %v3847
      %v3860 = vadd.f32 %v3821, %v3847
      %v3861 = vadd.f32 %v3822, %v3847
      %v3862 = vadd.f32 %v3823, %v3847
      %v3863 = vadd.f32 %v3824, %v3847
      %v3864 = vadd.f32 %v3825, %v3847
      %v3865 = vadd.f32 %v3826, %v3847
      %v3866 = vadd.f32 %v3827, %v3847
      %v3867 = vadd.f32 %v3828, %v3847
      %v3868 = vadd.f32 %v3829, %v3847
      %v3869 = vadd.f32 %v3830, %v3847
      %v3870 = vadd.f32 %v3831, %v3847
      %v3871 = vadd.f32 %v3832, %v3847
      %v3872 = vadd.f32 %v3833, %v3847
      %v3873 = vadd.f32 %v3834, %v3847
      %v3874 = vadd.f32 %v3835, %v3847
      %v3875 = vadd.f32 %v3836, %v3847
      %v3876 = vadd.f32 %v3837, %v3847
      %v3877 = vadd.f32 %v3838, %v3847
      %v3878 = vadd.f32 %v3839, %v3847
      %v3879 = vadd.f32 %v3840, %v3847
      %v3880 = vadd.f32 %v3841, %v3847
      %v3881 = vmax.f32 %v3849, 0.0
      %v3882 = vmax.f32 %v3850, 0.0
      %v3883 = vmax.f32 %v3851, 0.0
      %v3884 = vmax.f32 %v3852, 0.0
      %v3885 = vmax.f32 %v3853, 0.0
      %v3886 = vmax.f32 %v3854, 0.0
      %v3887 = vmax.f32 %v3855, 0.0
      %v3888 = vmax.f32 %v3856, 0.0
      %v3889 = vmax.f32 %v3857, 0.0
      %v3890 = vmax.f32 %v3858, 0.0
      %v3891 = vmax.f32 %v3859, 0.0
      %v3892 = vmax.f32 %v3860, 0.0
      %v3893 = vmax.f32 %v3861, 0.0
      %v3894 = vmax.f32 %v3862, 0.0
      %v3895 = vmax.f32 %v3863, 0.0
      %v3896 = vmax.f32 %v3864, 0.0
      %v3897 = vmax.f32 %v3865, 0.0
      %v3898 = vmax.f32 %v3866, 0.0
      %v3899 = vmax.f32 %v3867, 0.0
      %v3900 = vmax.f32 %v3868, 0.0
      %v3901 = vmax.f32 %v3869, 0.0
      %v3902 = vmax.f32 %v3870, 0.0
      %v3903 = vmax.f32 %v3871, 0.0
      %v3904 = vmax.f32 %v3872, 0.0
      %v3905 = vmax.f32 %v3873, 0.0
      %v3906 = vmax.f32 %v3874, 0.0
      %v3907 = vmax.f32 %v3875, 0.0
      %v3908 = vmax.f32 %v3876, 0.0
      %v3909 = vmax.f32 %v3877, 0.0
      %v3910 = vmax.f32 %v3878, 0.0
      %v3911 = vmax.f32 %v3879, 0.0
      %v3912 = vmax.f32 %v3880, 0.0
      %3913 = vst.msk [vmem:[#allocation3] sm:$0xff] %vm422, 0.0
      %3914 = vst.msk [vmem:[#allocation3 + $0x8] sm:$0xff] %vm422, 0.0
      %3915 = vst.msk [vmem:[#allocation3 + $0x10] sm:$0x3] %vm425, 0.0
      %s3916 = scalar_lea.vmem [#allocation3], 408
      %3917 = vst.msk [vmem:[%s3916] sm:$0xff] %vm422, 0.0
      %3918 = vst.msk [vmem:[%s3916 + $0x8] sm:$0xff] %vm422, 0.0
      %3919 = vst.msk [vmem:[%s3916 + $0x10] sm:$0x3] %vm425, 0.0
      %3920 = vst.msk [vmem:[#allocation3] sm:$0x1] %vm431, 0.0
      %3921 = vst.msk [vmem:[#allocation3 + $0x18] sm:$0x1] %vm431, 0.0
      %3922 = vst.msk [vmem:[#allocation3 + $0x30] sm:$0x1] %vm431, 0.0
      %3923 = vst.msk [vmem:[#allocation3 + $0x48] sm:$0x1] %vm431, 0.0
      %3924 = vst.msk [vmem:[#allocation3 + $0x60] sm:$0x1] %vm431, 0.0
      %3925 = vst.msk [vmem:[#allocation3 + $0x78] sm:$0x1] %vm431, 0.0
      %3926 = vst.msk [vmem:[#allocation3 + $0x90] sm:$0x1] %vm431, 0.0
      %3927 = vst.msk [vmem:[#allocation3 + $0xa8] sm:$0x1] %vm431, 0.0
      %3928 = vst.msk [vmem:[#allocation3 + $0xc0] sm:$0x1] %vm431, 0.0
      %3929 = vst.msk [vmem:[#allocation3 + $0xd8] sm:$0x1] %vm431, 0.0
      %3930 = vst.msk [vmem:[#allocation3 + $0xf0] sm:$0x1] %vm431, 0.0
      %3931 = vst.msk [vmem:[#allocation3 + $0x108] sm:$0x1] %vm431, 0.0
      %3932 = vst.msk [vmem:[#allocation3 + $0x120] sm:$0x1] %vm431, 0.0
      %3933 = vst.msk [vmem:[#allocation3 + $0x138] sm:$0x1] %vm431, 0.0
      %3934 = vst.msk [vmem:[#allocation3 + $0x150] sm:$0x1] %vm431, 0.0
      %3935 = vst.msk [vmem:[#allocation3 + $0x168] sm:$0x1] %vm431, 0.0
      %3936 = vst.msk [vmem:[#allocation3 + $0x180] sm:$0x1] %vm431, 0.0
      %3937 = vst.msk [vmem:[#allocation3 + $0x198] sm:$0x1] %vm431, 0.0
      %3938 = vst.msk [vmem:[#allocation3 + $0x11] sm:$0x1] %vm431, 0.0
      %3939 = vst.msk [vmem:[#allocation3 + $0x29] sm:$0x1] %vm431, 0.0
      %3940 = vst.msk [vmem:[#allocation3 + $0x41] sm:$0x1] %vm431, 0.0
      %3941 = vst.msk [vmem:[#allocation3 + $0x59] sm:$0x1] %vm431, 0.0
      %3942 = vst.msk [vmem:[#allocation3 + $0x71] sm:$0x1] %vm431, 0.0
      %3943 = vst.msk [vmem:[#allocation3 + $0x89] sm:$0x1] %vm431, 0.0
      %3944 = vst.msk [vmem:[#allocation3 + $0xa1] sm:$0x1] %vm431, 0.0
      %3945 = vst.msk [vmem:[#allocation3 + $0xb9] sm:$0x1] %vm431, 0.0
      %3946 = vst.msk [vmem:[#allocation3 + $0xd1] sm:$0x1] %vm431, 0.0
      %3947 = vst.msk [vmem:[#allocation3 + $0xe9] sm:$0x1] %vm431, 0.0
      %3948 = vst.msk [vmem:[#allocation3 + $0x101] sm:$0x1] %vm431, 0.0
      %3949 = vst.msk [vmem:[#allocation3 + $0x119] sm:$0x1] %vm431, 0.0
      %3950 = vst.msk [vmem:[#allocation3 + $0x131] sm:$0x1] %vm431, 0.0
      %3951 = vst.msk [vmem:[#allocation3 + $0x149] sm:$0x1] %vm431, 0.0
      %3952 = vst.msk [vmem:[#allocation3 + $0x161] sm:$0x1] %vm431, 0.0
      %3953 = vst.msk [vmem:[#allocation3 + $0x179] sm:$0x1] %vm431, 0.0
      %3954 = vst.msk [vmem:[#allocation3 + $0x191] sm:$0x1] %vm431, 0.0
      %3955 = vst.msk [vmem:[#allocation3 + $0x1a9] sm:$0x1] %vm431, 0.0
      %s3956 = scalar_lea.vmem [#allocation3], 24
      %3957 = vst.msk [vmem:[%s3956 + $0x1] sm:$0xff] %vm422, %v3881
      %3958 = vst.msk [vmem:[%s3956 + $0x9] sm:$0xff] %vm422, %v3882
      %3959 = vst.msk [vmem:[%s3956 + $0x19] sm:$0xff] %vm422, %v3883
      %3960 = vst.msk [vmem:[%s3956 + $0x21] sm:$0xff] %vm422, %v3884
      %3961 = vst.msk [vmem:[%s3956 + $0x31] sm:$0xff] %vm422, %v3885
      %3962 = vst.msk [vmem:[%s3956 + $0x39] sm:$0xff] %vm422, %v3886
      %3963 = vst.msk [vmem:[%s3956 + $0x49] sm:$0xff] %vm422, %v3887
      %3964 = vst.msk [vmem:[%s3956 + $0x51] sm:$0xff] %vm422, %v3888
      %3965 = vst.msk [vmem:[%s3956 + $0x61] sm:$0xff] %vm422, %v3889
      %3966 = vst.msk [vmem:[%s3956 + $0x69] sm:$0xff] %vm422, %v3890
      %3967 = vst.msk [vmem:[%s3956 + $0x79] sm:$0xff] %vm422, %v3891
      %3968 = vst.msk [vmem:[%s3956 + $0x81] sm:$0xff] %vm422, %v3892
      %3969 = vst.msk [vmem:[%s3956 + $0x91] sm:$0xff] %vm422, %v3893
      %3970 = vst.msk [vmem:[%s3956 + $0x99] sm:$0xff] %vm422, %v3894
      %3971 = vst.msk [vmem:[%s3956 + $0xa9] sm:$0xff] %vm422, %v3895
      %3972 = vst.msk [vmem:[%s3956 + $0xb1] sm:$0xff] %vm422, %v3896
      %3973 = vst.msk [vmem:[%s3956 + $0xc1] sm:$0xff] %vm422, %v3897
      %3974 = vst.msk [vmem:[%s3956 + $0xc9] sm:$0xff] %vm422, %v3898
      %3975 = vst.msk [vmem:[%s3956 + $0xd9] sm:$0xff] %vm422, %v3899
      %3976 = vst.msk [vmem:[%s3956 + $0xe1] sm:$0xff] %vm422, %v3900
      %3977 = vst.msk [vmem:[%s3956 + $0xf1] sm:$0xff] %vm422, %v3901
      %3978 = vst.msk [vmem:[%s3956 + $0xf9] sm:$0xff] %vm422, %v3902
      %3979 = vst.msk [vmem:[%s3956 + $0x109] sm:$0xff] %vm422, %v3903
      %3980 = vst.msk [vmem:[%s3956 + $0x111] sm:$0xff] %vm422, %v3904
      %3981 = vst.msk [vmem:[%s3956 + $0x121] sm:$0xff] %vm422, %v3905
      %3982 = vst.msk [vmem:[%s3956 + $0x129] sm:$0xff] %vm422, %v3906
      %3983 = vst.msk [vmem:[%s3956 + $0x139] sm:$0xff] %vm422, %v3907
      %3984 = vst.msk [vmem:[%s3956 + $0x141] sm:$0xff] %vm422, %v3908
      %3985 = vst.msk [vmem:[%s3956 + $0x151] sm:$0xff] %vm422, %v3909
      %3986 = vst.msk [vmem:[%s3956 + $0x159] sm:$0xff] %vm422, %v3910
      %3987 = vst.msk [vmem:[%s3956 + $0x169] sm:$0xff] %vm422, %v3911
      %3988 = vst.msk [vmem:[%s3956 + $0x171] sm:$0xff] %vm422, %v3912
      %v3989 = vld [vmem:[#allocation3] sm:$0xff]
      %v3990 = vld [vmem:[#allocation3 + $0x8] sm:$0xff]
      %v3991 = vld [vmem:[#allocation3 + $0x18] sm:$0xff]
      %v3992 = vld [vmem:[#allocation3 + $0x20] sm:$0xff]
      %v3993 = vld [vmem:[#allocation3 + $0x30] sm:$0xff]
      %v3994 = vld [vmem:[#allocation3 + $0x38] sm:$0xff]
      %v3995 = vld [vmem:[#allocation3 + $0x48] sm:$0xff]
      %v3996 = vld [vmem:[#allocation3 + $0x50] sm:$0xff]
      %v3997 = vld [vmem:[#allocation3 + $0x60] sm:$0xff]
      %v3998 = vld [vmem:[#allocation3 + $0x68] sm:$0xff]
      %v3999 = vld [vmem:[#allocation3 + $0x78] sm:$0xff]
      %v4000 = vld [vmem:[#allocation3 + $0x80] sm:$0xff]
      %v4001 = vld [vmem:[#allocation3 + $0x90] sm:$0xff]
      %v4002 = vld [vmem:[#allocation3 + $0x98] sm:$0xff]
      %v4003 = vld [vmem:[#allocation3 + $0xa8] sm:$0xff]
      %v4004 = vld [vmem:[#allocation3 + $0xb0] sm:$0xff]
      %v4005 = vld [vmem:[#allocation3 + $0xc0] sm:$0xff]
      %v4006 = vld [vmem:[#allocation3 + $0xc8] sm:$0xff]
      %v4007 = vld [vmem:[#allocation3 + $0xd8] sm:$0xff]
      %v4008 = vld [vmem:[#allocation3 + $0xe0] sm:$0xff]
      %v4009 = vld [vmem:[#allocation3 + $0xf0] sm:$0xff]
      %v4010 = vld [vmem:[#allocation3 + $0xf8] sm:$0xff]
      %v4011 = vld [vmem:[#allocation3 + $0x108] sm:$0xff]
      %v4012 = vld [vmem:[#allocation3 + $0x110] sm:$0xff]
      %v4013 = vld [vmem:[#allocation3 + $0x120] sm:$0xff]
      %v4014 = vld [vmem:[#allocation3 + $0x128] sm:$0xff]
      %v4015 = vld [vmem:[#allocation3 + $0x138] sm:$0xff]
      %v4016 = vld [vmem:[#allocation3 + $0x140] sm:$0xff]
      %v4017 = vld [vmem:[#allocation3 + $0x150] sm:$0xff]
      %v4018 = vld [vmem:[#allocation3 + $0x158] sm:$0xff]
      %v4019 = vld [vmem:[#allocation3 + $0x168] sm:$0xff]
      %v4020 = vld [vmem:[#allocation3 + $0x170] sm:$0xff]
      %v4021 = vpack.c.bf16 %v3990, %v3989
      %v4022 = vpack.c.bf16 %v3992, %v3991
      %v4023 = vpack.c.bf16 %v3994, %v3993
      %v4024 = vpack.c.bf16 %v3996, %v3995
      %v4025 = vpack.c.bf16 %v3998, %v3997
      %v4026 = vpack.c.bf16 %v4000, %v3999
      %v4027 = vpack.c.bf16 %v4002, %v4001
      %v4028 = vpack.c.bf16 %v4004, %v4003
      %v4029 = vpack.c.bf16 %v4006, %v4005
      %v4030 = vpack.c.bf16 %v4008, %v4007
      %v4031 = vpack.c.bf16 %v4010, %v4009
      %v4032 = vpack.c.bf16 %v4012, %v4011
      %v4033 = vpack.c.bf16 %v4014, %v4013
      %v4034 = vpack.c.bf16 %v4016, %v4015
      %v4035 = vpack.c.bf16 %v4018, %v4017
      %v4036 = vpack.c.bf16 %v4020, %v4019
      %v4053 = vunpack.c.l.b16 %v4021
      %v4054 = vunpack.c.h.b16 %v4021
      %v4055 = vunpack.c.l.b16 %v4022
      %v4056 = vunpack.c.h.b16 %v4022
      %v4057 = vunpack.c.l.b16 %v4023
      %v4058 = vunpack.c.h.b16 %v4023
      %v4059 = vunpack.c.l.b16 %v4024
      %v4060 = vunpack.c.h.b16 %v4024
      %v4061 = vunpack.c.l.b16 %v4025
      %v4062 = vunpack.c.h.b16 %v4025
      %v4063 = vunpack.c.l.b16 %v4026
      %v4064 = vunpack.c.h.b16 %v4026
      %v4065 = vunpack.c.l.b16 %v4027
      %v4066 = vunpack.c.h.b16 %v4027
      %v4067 = vunpack.c.l.b16 %v4028
      %v4068 = vunpack.c.h.b16 %v4028
      %v4069 = vunpack.c.l.b16 %v4029
      %v4070 = vunpack.c.h.b16 %v4029
      %v4071 = vunpack.c.l.b16 %v4030
      %v4072 = vunpack.c.h.b16 %v4030
      %v4073 = vunpack.c.l.b16 %v4031
      %v4074 = vunpack.c.h.b16 %v4031
      %v4075 = vunpack.c.l.b16 %v4032
      %v4076 = vunpack.c.h.b16 %v4032
      %v4077 = vunpack.c.l.b16 %v4033
      %v4078 = vunpack.c.h.b16 %v4033
      %v4079 = vunpack.c.l.b16 %v4034
      %v4080 = vunpack.c.h.b16 %v4034
      %v4081 = vunpack.c.l.b16 %v4035
      %v4082 = vunpack.c.h.b16 %v4035
      %v4083 = vunpack.c.l.b16 %v4036
      %v4084 = vunpack.c.h.b16 %v4036
      %v4085 = vpack.c.b16 %v4053, %v4053
      %v4086 = vpack.c.b16 %v4054, %v4054
      %v4087 = vpack.c.b16 %v4055, %v4055
      %v4088 = vpack.c.b16 %v4056, %v4056
      %v4089 = vpack.c.b16 %v4057, %v4057
      %v4090 = vpack.c.b16 %v4058, %v4058
      %v4091 = vpack.c.b16 %v4059, %v4059
      %v4092 = vpack.c.b16 %v4060, %v4060
      %v4093 = vpack.c.b16 %v4061, %v4061
      %v4094 = vpack.c.b16 %v4062, %v4062
      %v4095 = vpack.c.b16 %v4063, %v4063
      %v4096 = vpack.c.b16 %v4064, %v4064
      %v4097 = vpack.c.b16 %v4065, %v4065
      %v4098 = vpack.c.b16 %v4066, %v4066
      %v4099 = vpack.c.b16 %v4067, %v4067
      %v4100 = vpack.c.b16 %v4068, %v4068
      %v4101 = vpack.c.b16 %v4069, %v4069
      %v4102 = vpack.c.b16 %v4070, %v4070
      %v4103 = vpack.c.b16 %v4071, %v4071
      %v4104 = vpack.c.b16 %v4072, %v4072
      %v4105 = vpack.c.b16 %v4073, %v4073
      %v4106 = vpack.c.b16 %v4074, %v4074
      %v4107 = vpack.c.b16 %v4075, %v4075
      %v4108 = vpack.c.b16 %v4076, %v4076
      %v4109 = vpack.c.b16 %v4077, %v4077
      %v4110 = vpack.c.b16 %v4078, %v4078
      %v4111 = vpack.c.b16 %v4079, %v4079
      %v4112 = vpack.c.b16 %v4080, %v4080
      %v4113 = vpack.c.b16 %v4081, %v4081
      %v4114 = vpack.c.b16 %v4082, %v4082
      %v4115 = vpack.c.b16 %v4083, %v4083
      %v4116 = vpack.c.b16 %v4084, %v4084
      %4149 = vst.msk [vmem:[#allocation5] sm:$0xf] %vm661, %v4085
      %4150 = vst.msk [vmem:[#allocation5 + $0x14] sm:$0xf] %vm661, %v4086
      %4151 = vst.msk [vmem:[#allocation5 + $0x28] sm:$0xf] %vm661, %v4087
      %4152 = vst.msk [vmem:[#allocation5 + $0x3c] sm:$0xf] %vm661, %v4088
      %4153 = vst.msk [vmem:[#allocation5 + $0x50] sm:$0xf] %vm661, %v4089
      %4154 = vst.msk [vmem:[#allocation5 + $0x64] sm:$0xf] %vm661, %v4090
      %4155 = vst.msk [vmem:[#allocation5 + $0x78] sm:$0xf] %vm661, %v4091
      %4156 = vst.msk [vmem:[#allocation5 + $0x8c] sm:$0xf] %vm661, %v4092
      %4157 = vst.msk [vmem:[#allocation5 + $0xa0] sm:$0xf] %vm661, %v4093
      %4158 = vst.msk [vmem:[#allocation5 + $0xb4] sm:$0xf] %vm661, %v4094
      %4159 = vst.msk [vmem:[#allocation5 + $0xc8] sm:$0xf] %vm661, %v4095
      %4160 = vst.msk [vmem:[#allocation5 + $0xdc] sm:$0xf] %vm661, %v4096
      %4161 = vst.msk [vmem:[#allocation5 + $0xf0] sm:$0xf] %vm661, %v4097
      %4162 = vst.msk [vmem:[#allocation5 + $0x104] sm:$0xf] %vm661, %v4098
      %4163 = vst.msk [vmem:[#allocation5 + $0x118] sm:$0xf] %vm661, %v4099
      %4164 = vst.msk [vmem:[#allocation5 + $0x12c] sm:$0xf] %vm661, %v4100
      %4165 = vst.msk [vmem:[#allocation5 + $0x140] sm:$0xf] %vm661, %v4101
      %4166 = vst.msk [vmem:[#allocation5 + $0x154] sm:$0xf] %vm661, %v4102
      %4167 = vst.msk [vmem:[#allocation5 + $0x168] sm:$0xf] %vm661, %v4103
      %4168 = vst.msk [vmem:[#allocation5 + $0x17c] sm:$0xf] %vm661, %v4104
      %4169 = vst.msk [vmem:[#allocation5 + $0x190] sm:$0xf] %vm661, %v4105
      %4170 = vst.msk [vmem:[#allocation5 + $0x1a4] sm:$0xf] %vm661, %v4106
      %4171 = vst.msk [vmem:[#allocation5 + $0x1b8] sm:$0xf] %vm661, %v4107
      %4172 = vst.msk [vmem:[#allocation5 + $0x1cc] sm:$0xf] %vm661, %v4108
      %4173 = vst.msk [vmem:[#allocation5 + $0x1e0] sm:$0xf] %vm661, %v4109
      %4174 = vst.msk [vmem:[#allocation5 + $0x1f4] sm:$0xf] %vm661, %v4110
      %4175 = vst.msk [vmem:[#allocation5 + $0x208] sm:$0xf] %vm661, %v4111
      %4176 = vst.msk [vmem:[#allocation5 + $0x21c] sm:$0xf] %vm661, %v4112
      %4177 = vst.msk [vmem:[#allocation5 + $0x230] sm:$0xf] %vm661, %v4113
      %4178 = vst.msk [vmem:[#allocation5 + $0x244] sm:$0xf] %vm661, %v4114
      %4179 = vst.msk [vmem:[#allocation5 + $0x258] sm:$0xf] %vm661, %v4115
      %4180 = vst.msk [vmem:[#allocation5 + $0x26c] sm:$0xf] %vm661, %v4116
      %v4181 = vld [vmem:[#allocation3 + $0x1] sm:$0xff]
      %v4182 = vld [vmem:[#allocation3 + $0x9] sm:$0xff]
      %v4183 = vld [vmem:[#allocation3 + $0x19] sm:$0xff]
      %v4184 = vld [vmem:[#allocation3 + $0x21] sm:$0xff]
      %v4185 = vld [vmem:[#allocation3 + $0x31] sm:$0xff]
      %v4186 = vld [vmem:[#allocation3 + $0x39] sm:$0xff]
      %v4187 = vld [vmem:[#allocation3 + $0x49] sm:$0xff]
      %v4188 = vld [vmem:[#allocation3 + $0x51] sm:$0xff]
      %v4189 = vld [vmem:[#allocation3 + $0x61] sm:$0xff]
      %v4190 = vld [vmem:[#allocation3 + $0x69] sm:$0xff]
      %v4191 = vld [vmem:[#allocation3 + $0x79] sm:$0xff]
      %v4192 = vld [vmem:[#allocation3 + $0x81] sm:$0xff]
      %v4193 = vld [vmem:[#allocation3 + $0x91] sm:$0xff]
      %v4194 = vld [vmem:[#allocation3 + $0x99] sm:$0xff]
      %v4195 = vld [vmem:[#allocation3 + $0xa9] sm:$0xff]
      %v4196 = vld [vmem:[#allocation3 + $0xb1] sm:$0xff]
      %v4197 = vld [vmem:[#allocation3 + $0xc1] sm:$0xff]
      %v4198 = vld [vmem:[#allocation3 + $0xc9] sm:$0xff]
      %v4199 = vld [vmem:[#allocation3 + $0xd9] sm:$0xff]
      %v4200 = vld [vmem:[#allocation3 + $0xe1] sm:$0xff]
      %v4201 = vld [vmem:[#allocation3 + $0xf1] sm:$0xff]
      %v4202 = vld [vmem:[#allocation3 + $0xf9] sm:$0xff]
      %v4203 = vld [vmem:[#allocation3 + $0x109] sm:$0xff]
      %v4204 = vld [vmem:[#allocation3 + $0x111] sm:$0xff]
      %v4205 = vld [vmem:[#allocation3 + $0x121] sm:$0xff]
      %v4206 = vld [vmem:[#allocation3 + $0x129] sm:$0xff]
      %v4207 = vld [vmem:[#allocation3 + $0x139] sm:$0xff]
      %v4208 = vld [vmem:[#allocation3 + $0x141] sm:$0xff]
      %v4209 = vld [vmem:[#allocation3 + $0x151] sm:$0xff]
      %v4210 = vld [vmem:[#allocation3 + $0x159] sm:$0xff]
      %v4211 = vld [vmem:[#allocation3 + $0x169] sm:$0xff]
      %v4212 = vld [vmem:[#allocation3 + $0x171] sm:$0xff]
      %v4213 = vpack.c.bf16 %v4182, %v4181
      %v4214 = vpack.c.bf16 %v4184, %v4183
      %v4215 = vpack.c.bf16 %v4186, %v4185
      %v4216 = vpack.c.bf16 %v4188, %v4187
      %v4217 = vpack.c.bf16 %v4190, %v4189
      %v4218 = vpack.c.bf16 %v4192, %v4191
      %v4219 = vpack.c.bf16 %v4194, %v4193
      %v4220 = vpack.c.bf16 %v4196, %v4195
      %v4221 = vpack.c.bf16 %v4198, %v4197
      %v4222 = vpack.c.bf16 %v4200, %v4199
      %v4223 = vpack.c.bf16 %v4202, %v4201
      %v4224 = vpack.c.bf16 %v4204, %v4203
      %v4225 = vpack.c.bf16 %v4206, %v4205
      %v4226 = vpack.c.bf16 %v4208, %v4207
      %v4227 = vpack.c.bf16 %v4210, %v4209
      %v4228 = vpack.c.bf16 %v4212, %v4211
      %v4245 = vunpack.c.l.b16 %v4213
      %v4246 = vunpack.c.h.b16 %v4213
      %v4247 = vunpack.c.l.b16 %v4214
      %v4248 = vunpack.c.h.b16 %v4214
      %v4249 = vunpack.c.l.b16 %v4215
      %v4250 = vunpack.c.h.b16 %v4215
      %v4251 = vunpack.c.l.b16 %v4216
      %v4252 = vunpack.c.h.b16 %v4216
      %v4253 = vunpack.c.l.b16 %v4217
      %v4254 = vunpack.c.h.b16 %v4217
      %v4255 = vunpack.c.l.b16 %v4218
      %v4256 = vunpack.c.h.b16 %v4218
      %v4257 = vunpack.c.l.b16 %v4219
      %v4258 = vunpack.c.h.b16 %v4219
      %v4259 = vunpack.c.l.b16 %v4220
      %v4260 = vunpack.c.h.b16 %v4220
      %v4261 = vunpack.c.l.b16 %v4221
      %v4262 = vunpack.c.h.b16 %v4221
      %v4263 = vunpack.c.l.b16 %v4222
      %v4264 = vunpack.c.h.b16 %v4222
      %v4265 = vunpack.c.l.b16 %v4223
      %v4266 = vunpack.c.h.b16 %v4223
      %v4267 = vunpack.c.l.b16 %v4224
      %v4268 = vunpack.c.h.b16 %v4224
      %v4269 = vunpack.c.l.b16 %v4225
      %v4270 = vunpack.c.h.b16 %v4225
      %v4271 = vunpack.c.l.b16 %v4226
      %v4272 = vunpack.c.h.b16 %v4226
      %v4273 = vunpack.c.l.b16 %v4227
      %v4274 = vunpack.c.h.b16 %v4227
      %v4275 = vunpack.c.l.b16 %v4228
      %v4276 = vunpack.c.h.b16 %v4228
      %v4277 = vpack.c.b16 %v4245, %v4245
      %v4278 = vpack.c.b16 %v4246, %v4246
      %v4279 = vpack.c.b16 %v4247, %v4247
      %v4280 = vpack.c.b16 %v4248, %v4248
      %v4281 = vpack.c.b16 %v4249, %v4249
      %v4282 = vpack.c.b16 %v4250, %v4250
      %v4283 = vpack.c.b16 %v4251, %v4251
      %v4284 = vpack.c.b16 %v4252, %v4252
      %v4285 = vpack.c.b16 %v4253, %v4253
      %v4286 = vpack.c.b16 %v4254, %v4254
      %v4287 = vpack.c.b16 %v4255, %v4255
      %v4288 = vpack.c.b16 %v4256, %v4256
      %v4289 = vpack.c.b16 %v4257, %v4257
      %v4290 = vpack.c.b16 %v4258, %v4258
      %v4291 = vpack.c.b16 %v4259, %v4259
      %v4292 = vpack.c.b16 %v4260, %v4260
      %v4293 = vpack.c.b16 %v4261, %v4261
      %v4294 = vpack.c.b16 %v4262, %v4262
      %v4295 = vpack.c.b16 %v4263, %v4263
      %v4296 = vpack.c.b16 %v4264, %v4264
      %v4297 = vpack.c.b16 %v4265, %v4265
      %v4298 = vpack.c.b16 %v4266, %v4266
      %v4299 = vpack.c.b16 %v4267, %v4267
      %v4300 = vpack.c.b16 %v4268, %v4268
      %v4301 = vpack.c.b16 %v4269, %v4269
      %v4302 = vpack.c.b16 %v4270, %v4270
      %v4303 = vpack.c.b16 %v4271, %v4271
      %v4304 = vpack.c.b16 %v4272, %v4272
      %v4305 = vpack.c.b16 %v4273, %v4273
      %v4306 = vpack.c.b16 %v4274, %v4274
      %v4307 = vpack.c.b16 %v4275, %v4275
      %v4308 = vpack.c.b16 %v4276, %v4276
      %4309 = vrot.lane.b32.xlu0 %v4277, 64
      %v4310 = vpop.permute.xlu0 %4309
      %4311 = vrot.lane.b32.xlu0 %v4278, 64
      %v4312 = vpop.permute.xlu0 %4311
      %4313 = vrot.lane.b32.xlu0 %v4279, 64
      %v4314 = vpop.permute.xlu0 %4313
      %4315 = vrot.lane.b32.xlu0 %v4280, 64
      %v4316 = vpop.permute.xlu0 %4315
      %4317 = vrot.lane.b32.xlu0 %v4281, 64
      %v4318 = vpop.permute.xlu0 %4317
      %4319 = vrot.lane.b32.xlu0 %v4282, 64
      %v4320 = vpop.permute.xlu0 %4319
      %4321 = vrot.lane.b32.xlu0 %v4283, 64
      %v4322 = vpop.permute.xlu0 %4321
      %4323 = vrot.lane.b32.xlu0 %v4284, 64
      %v4324 = vpop.permute.xlu0 %4323
      %4325 = vrot.lane.b32.xlu0 %v4285, 64
      %v4326 = vpop.permute.xlu0 %4325
      %4327 = vrot.lane.b32.xlu0 %v4286, 64
      %v4328 = vpop.permute.xlu0 %4327
      %4329 = vrot.lane.b32.xlu0 %v4287, 64
      %v4330 = vpop.permute.xlu0 %4329
      %4331 = vrot.lane.b32.xlu0 %v4288, 64
      %v4332 = vpop.permute.xlu0 %4331
      %4333 = vrot.lane.b32.xlu0 %v4289, 64
      %v4334 = vpop.permute.xlu0 %4333
      %4335 = vrot.lane.b32.xlu0 %v4290, 64
      %v4336 = vpop.permute.xlu0 %4335
      %4337 = vrot.lane.b32.xlu0 %v4291, 64
      %v4338 = vpop.permute.xlu0 %4337
      %4339 = vrot.lane.b32.xlu0 %v4292, 64
      %v4340 = vpop.permute.xlu0 %4339
      %4341 = vrot.lane.b32.xlu0 %v4293, 64
      %v4342 = vpop.permute.xlu0 %4341
      %4343 = vrot.lane.b32.xlu0 %v4294, 64
      %v4344 = vpop.permute.xlu0 %4343
      %4345 = vrot.lane.b32.xlu0 %v4295, 64
      %v4346 = vpop.permute.xlu0 %4345
      %4347 = vrot.lane.b32.xlu0 %v4296, 64
      %v4348 = vpop.permute.xlu0 %4347
      %4349 = vrot.lane.b32.xlu0 %v4297, 64
      %v4350 = vpop.permute.xlu0 %4349
      %4351 = vrot.lane.b32.xlu0 %v4298, 64
      %v4352 = vpop.permute.xlu0 %4351
      %4353 = vrot.lane.b32.xlu0 %v4299, 64
      %v4354 = vpop.permute.xlu0 %4353
      %4355 = vrot.lane.b32.xlu0 %v4300, 64
      %v4356 = vpop.permute.xlu0 %4355
      %4357 = vrot.lane.b32.xlu0 %v4301, 64
      %v4358 = vpop.permute.xlu0 %4357
      %4359 = vrot.lane.b32.xlu0 %v4302, 64
      %v4360 = vpop.permute.xlu0 %4359
      %4361 = vrot.lane.b32.xlu0 %v4303, 64
      %v4362 = vpop.permute.xlu0 %4361
      %4363 = vrot.lane.b32.xlu0 %v4304, 64
      %v4364 = vpop.permute.xlu0 %4363
      %4365 = vrot.lane.b32.xlu0 %v4305, 64
      %v4366 = vpop.permute.xlu0 %4365
      %4367 = vrot.lane.b32.xlu0 %v4306, 64
      %v4368 = vpop.permute.xlu0 %4367
      %4369 = vrot.lane.b32.xlu0 %v4307, 64
      %v4370 = vpop.permute.xlu0 %4369
      %4371 = vrot.lane.b32.xlu0 %v4308, 64
      %v4372 = vpop.permute.xlu0 %4371
      %4405 = vst.msk [vmem:[#allocation5] sm:$0xf] %vm918, %v4310
      %4406 = vst.msk [vmem:[#allocation5 + $0x14] sm:$0xf] %vm918, %v4312
      %4407 = vst.msk [vmem:[#allocation5 + $0x28] sm:$0xf] %vm918, %v4314
      %4408 = vst.msk [vmem:[#allocation5 + $0x3c] sm:$0xf] %vm918, %v4316
      %4409 = vst.msk [vmem:[#allocation5 + $0x50] sm:$0xf] %vm918, %v4318
      %4410 = vst.msk [vmem:[#allocation5 + $0x64] sm:$0xf] %vm918, %v4320
      %4411 = vst.msk [vmem:[#allocation5 + $0x78] sm:$0xf] %vm918, %v4322
      %4412 = vst.msk [vmem:[#allocation5 + $0x8c] sm:$0xf] %vm918, %v4324
      %4413 = vst.msk [vmem:[#allocation5 + $0xa0] sm:$0xf] %vm918, %v4326
      %4414 = vst.msk [vmem:[#allocation5 + $0xb4] sm:$0xf] %vm918, %v4328
      %4415 = vst.msk [vmem:[#allocation5 + $0xc8] sm:$0xf] %vm918, %v4330
      %4416 = vst.msk [vmem:[#allocation5 + $0xdc] sm:$0xf] %vm918, %v4332
      %4417 = vst.msk [vmem:[#allocation5 + $0xf0] sm:$0xf] %vm918, %v4334
      %4418 = vst.msk [vmem:[#allocation5 + $0x104] sm:$0xf] %vm918, %v4336
      %4419 = vst.msk [vmem:[#allocation5 + $0x118] sm:$0xf] %vm918, %v4338
      %4420 = vst.msk [vmem:[#allocation5 + $0x12c] sm:$0xf] %vm918, %v4340
      %4421 = vst.msk [vmem:[#allocation5 + $0x140] sm:$0xf] %vm918, %v4342
      %4422 = vst.msk [vmem:[#allocation5 + $0x154] sm:$0xf] %vm918, %v4344
      %4423 = vst.msk [vmem:[#allocation5 + $0x168] sm:$0xf] %vm918, %v4346
      %4424 = vst.msk [vmem:[#allocation5 + $0x17c] sm:$0xf] %vm918, %v4348
      %4425 = vst.msk [vmem:[#allocation5 + $0x190] sm:$0xf] %vm918, %v4350
      %4426 = vst.msk [vmem:[#allocation5 + $0x1a4] sm:$0xf] %vm918, %v4352
      %4427 = vst.msk [vmem:[#allocation5 + $0x1b8] sm:$0xf] %vm918, %v4354
      %4428 = vst.msk [vmem:[#allocation5 + $0x1cc] sm:$0xf] %vm918, %v4356
      %4429 = vst.msk [vmem:[#allocation5 + $0x1e0] sm:$0xf] %vm918, %v4358
      %4430 = vst.msk [vmem:[#allocation5 + $0x1f4] sm:$0xf] %vm918, %v4360
      %4431 = vst.msk [vmem:[#allocation5 + $0x208] sm:$0xf] %vm918, %v4362
      %4432 = vst.msk [vmem:[#allocation5 + $0x21c] sm:$0xf] %vm918, %v4364
      %4433 = vst.msk [vmem:[#allocation5 + $0x230] sm:$0xf] %vm918, %v4366
      %4434 = vst.msk [vmem:[#allocation5 + $0x244] sm:$0xf] %vm918, %v4368
      %4435 = vst.msk [vmem:[#allocation5 + $0x258] sm:$0xf] %vm918, %v4370
      %4436 = vst.msk [vmem:[#allocation5 + $0x26c] sm:$0xf] %vm918, %v4372
      %v4437 = vld [vmem:[#allocation3 + $0x2] sm:$0xff]
      %v4438 = vld [vmem:[#allocation3 + $0xa] sm:$0xff]
      %v4439 = vld [vmem:[#allocation3 + $0x1a] sm:$0xff]
      %v4440 = vld [vmem:[#allocation3 + $0x22] sm:$0xff]
      %v4441 = vld [vmem:[#allocation3 + $0x32] sm:$0xff]
      %v4442 = vld [vmem:[#allocation3 + $0x3a] sm:$0xff]
      %v4443 = vld [vmem:[#allocation3 + $0x4a] sm:$0xff]
      %v4444 = vld [vmem:[#allocation3 + $0x52] sm:$0xff]
      %v4445 = vld [vmem:[#allocation3 + $0x62] sm:$0xff]
      %v4446 = vld [vmem:[#allocation3 + $0x6a] sm:$0xff]
      %v4447 = vld [vmem:[#allocation3 + $0x7a] sm:$0xff]
      %v4448 = vld [vmem:[#allocation3 + $0x82] sm:$0xff]
      %v4449 = vld [vmem:[#allocation3 + $0x92] sm:$0xff]
      %v4450 = vld [vmem:[#allocation3 + $0x9a] sm:$0xff]
      %v4451 = vld [vmem:[#allocation3 + $0xaa] sm:$0xff]
      %v4452 = vld [vmem:[#allocation3 + $0xb2] sm:$0xff]
      %v4453 = vld [vmem:[#allocation3 + $0xc2] sm:$0xff]
      %v4454 = vld [vmem:[#allocation3 + $0xca] sm:$0xff]
      %v4455 = vld [vmem:[#allocation3 + $0xda] sm:$0xff]
      %v4456 = vld [vmem:[#allocation3 + $0xe2] sm:$0xff]
      %v4457 = vld [vmem:[#allocation3 + $0xf2] sm:$0xff]
      %v4458 = vld [vmem:[#allocation3 + $0xfa] sm:$0xff]
      %v4459 = vld [vmem:[#allocation3 + $0x10a] sm:$0xff]
      %v4460 = vld [vmem:[#allocation3 + $0x112] sm:$0xff]
      %v4461 = vld [vmem:[#allocation3 + $0x122] sm:$0xff]
      %v4462 = vld [vmem:[#allocation3 + $0x12a] sm:$0xff]
      %v4463 = vld [vmem:[#allocation3 + $0x13a] sm:$0xff]
      %v4464 = vld [vmem:[#allocation3 + $0x142] sm:$0xff]
      %v4465 = vld [vmem:[#allocation3 + $0x152] sm:$0xff]
      %v4466 = vld [vmem:[#allocation3 + $0x15a] sm:$0xff]
      %v4467 = vld [vmem:[#allocation3 + $0x16a] sm:$0xff]
      %v4468 = vld [vmem:[#allocation3 + $0x172] sm:$0xff]
      %v4469 = vpack.c.bf16 %v4438, %v4437
      %v4470 = vpack.c.bf16 %v4440, %v4439
      %v4471 = vpack.c.bf16 %v4442, %v4441
      %v4472 = vpack.c.bf16 %v4444, %v4443
      %v4473 = vpack.c.bf16 %v4446, %v4445
      %v4474 = vpack.c.bf16 %v4448, %v4447
      %v4475 = vpack.c.bf16 %v4450, %v4449
      %v4476 = vpack.c.bf16 %v4452, %v4451
      %v4477 = vpack.c.bf16 %v4454, %v4453
      %v4478 = vpack.c.bf16 %v4456, %v4455
      %v4479 = vpack.c.bf16 %v4458, %v4457
      %v4480 = vpack.c.bf16 %v4460, %v4459
      %v4481 = vpack.c.bf16 %v4462, %v4461
      %v4482 = vpack.c.bf16 %v4464, %v4463
      %v4483 = vpack.c.bf16 %v4466, %v4465
      %v4484 = vpack.c.bf16 %v4468, %v4467
      %v4501 = vunpack.c.l.b16 %v4469
      %v4502 = vunpack.c.h.b16 %v4469
      %v4503 = vunpack.c.l.b16 %v4470
      %v4504 = vunpack.c.h.b16 %v4470
      %v4505 = vunpack.c.l.b16 %v4471
      %v4506 = vunpack.c.h.b16 %v4471
      %v4507 = vunpack.c.l.b16 %v4472
      %v4508 = vunpack.c.h.b16 %v4472
      %v4509 = vunpack.c.l.b16 %v4473
      %v4510 = vunpack.c.h.b16 %v4473
      %v4511 = vunpack.c.l.b16 %v4474
      %v4512 = vunpack.c.h.b16 %v4474
      %v4513 = vunpack.c.l.b16 %v4475
      %v4514 = vunpack.c.h.b16 %v4475
      %v4515 = vunpack.c.l.b16 %v4476
      %v4516 = vunpack.c.h.b16 %v4476
      %v4517 = vunpack.c.l.b16 %v4477
      %v4518 = vunpack.c.h.b16 %v4477
      %v4519 = vunpack.c.l.b16 %v4478
      %v4520 = vunpack.c.h.b16 %v4478
      %v4521 = vunpack.c.l.b16 %v4479
      %v4522 = vunpack.c.h.b16 %v4479
      %v4523 = vunpack.c.l.b16 %v4480
      %v4524 = vunpack.c.h.b16 %v4480
      %v4525 = vunpack.c.l.b16 %v4481
      %v4526 = vunpack.c.h.b16 %v4481
      %v4527 = vunpack.c.l.b16 %v4482
      %v4528 = vunpack.c.h.b16 %v4482
      %v4529 = vunpack.c.l.b16 %v4483
      %v4530 = vunpack.c.h.b16 %v4483
      %v4531 = vunpack.c.l.b16 %v4484
      %v4532 = vunpack.c.h.b16 %v4484
      %v4533 = vpack.c.b16 %v4501, %v4501
      %v4534 = vpack.c.b16 %v4502, %v4502
      %v4535 = vpack.c.b16 %v4503, %v4503
      %v4536 = vpack.c.b16 %v4504, %v4504
      %v4537 = vpack.c.b16 %v4505, %v4505
      %v4538 = vpack.c.b16 %v4506, %v4506
      %v4539 = vpack.c.b16 %v4507, %v4507
      %v4540 = vpack.c.b16 %v4508, %v4508
      %v4541 = vpack.c.b16 %v4509, %v4509
      %v4542 = vpack.c.b16 %v4510, %v4510
      %v4543 = vpack.c.b16 %v4511, %v4511
      %v4544 = vpack.c.b16 %v4512, %v4512
      %v4545 = vpack.c.b16 %v4513, %v4513
      %v4546 = vpack.c.b16 %v4514, %v4514
      %v4547 = vpack.c.b16 %v4515, %v4515
      %v4548 = vpack.c.b16 %v4516, %v4516
      %v4549 = vpack.c.b16 %v4517, %v4517
      %v4550 = vpack.c.b16 %v4518, %v4518
      %v4551 = vpack.c.b16 %v4519, %v4519
      %v4552 = vpack.c.b16 %v4520, %v4520
      %v4553 = vpack.c.b16 %v4521, %v4521
      %v4554 = vpack.c.b16 %v4522, %v4522
      %v4555 = vpack.c.b16 %v4523, %v4523
      %v4556 = vpack.c.b16 %v4524, %v4524
      %v4557 = vpack.c.b16 %v4525, %v4525
      %v4558 = vpack.c.b16 %v4526, %v4526
      %v4559 = vpack.c.b16 %v4527, %v4527
      %v4560 = vpack.c.b16 %v4528, %v4528
      %v4561 = vpack.c.b16 %v4529, %v4529
      %v4562 = vpack.c.b16 %v4530, %v4530
      %v4563 = vpack.c.b16 %v4531, %v4531
      %v4564 = vpack.c.b16 %v4532, %v4532
      %4597 = vst.msk [vmem:[#allocation5 + $0x4] sm:$0xf] %vm661, %v4533
      %4598 = vst.msk [vmem:[#allocation5 + $0x18] sm:$0xf] %vm661, %v4534
      %4599 = vst.msk [vmem:[#allocation5 + $0x2c] sm:$0xf] %vm661, %v4535
      %4600 = vst.msk [vmem:[#allocation5 + $0x40] sm:$0xf] %vm661, %v4536
      %4601 = vst.msk [vmem:[#allocation5 + $0x54] sm:$0xf] %vm661, %v4537
      %4602 = vst.msk [vmem:[#allocation5 + $0x68] sm:$0xf] %vm661, %v4538
      %4603 = vst.msk [vmem:[#allocation5 + $0x7c] sm:$0xf] %vm661, %v4539
      %4604 = vst.msk [vmem:[#allocation5 + $0x90] sm:$0xf] %vm661, %v4540
      %4605 = vst.msk [vmem:[#allocation5 + $0xa4] sm:$0xf] %vm661, %v4541
      %4606 = vst.msk [vmem:[#allocation5 + $0xb8] sm:$0xf] %vm661, %v4542
      %4607 = vst.msk [vmem:[#allocation5 + $0xcc] sm:$0xf] %vm661, %v4543
      %4608 = vst.msk [vmem:[#allocation5 + $0xe0] sm:$0xf] %vm661, %v4544
      %4609 = vst.msk [vmem:[#allocation5 + $0xf4] sm:$0xf] %vm661, %v4545
      %4610 = vst.msk [vmem:[#allocation5 + $0x108] sm:$0xf] %vm661, %v4546
      %4611 = vst.msk [vmem:[#allocation5 + $0x11c] sm:$0xf] %vm661, %v4547
      %4612 = vst.msk [vmem:[#allocation5 + $0x130] sm:$0xf] %vm661, %v4548
      %4613 = vst.msk [vmem:[#allocation5 + $0x144] sm:$0xf] %vm661, %v4549
      %4614 = vst.msk [vmem:[#allocation5 + $0x158] sm:$0xf] %vm661, %v4550
      %4615 = vst.msk [vmem:[#allocation5 + $0x16c] sm:$0xf] %vm661, %v4551
      %4616 = vst.msk [vmem:[#allocation5 + $0x180] sm:$0xf] %vm661, %v4552
      %4617 = vst.msk [vmem:[#allocation5 + $0x194] sm:$0xf] %vm661, %v4553
      %4618 = vst.msk [vmem:[#allocation5 + $0x1a8] sm:$0xf] %vm661, %v4554
      %4619 = vst.msk [vmem:[#allocation5 + $0x1bc] sm:$0xf] %vm661, %v4555
      %4620 = vst.msk [vmem:[#allocation5 + $0x1d0] sm:$0xf] %vm661, %v4556
      %4621 = vst.msk [vmem:[#allocation5 + $0x1e4] sm:$0xf] %vm661, %v4557
      %4622 = vst.msk [vmem:[#allocation5 + $0x1f8] sm:$0xf] %vm661, %v4558
      %4623 = vst.msk [vmem:[#allocation5 + $0x20c] sm:$0xf] %vm661, %v4559
      %4624 = vst.msk [vmem:[#allocation5 + $0x220] sm:$0xf] %vm661, %v4560
      %4625 = vst.msk [vmem:[#allocation5 + $0x234] sm:$0xf] %vm661, %v4561
      %4626 = vst.msk [vmem:[#allocation5 + $0x248] sm:$0xf] %vm661, %v4562
      %4627 = vst.msk [vmem:[#allocation5 + $0x25c] sm:$0xf] %vm661, %v4563
      %4628 = vst.msk [vmem:[#allocation5 + $0x270] sm:$0xf] %vm661, %v4564
      %v4629 = vld [vmem:[%s3956] sm:$0xff]
      %v4630 = vld [vmem:[%s3956 + $0x8] sm:$0xff]
      %v4631 = vld [vmem:[%s3956 + $0x18] sm:$0xff]
      %v4632 = vld [vmem:[%s3956 + $0x20] sm:$0xff]
      %v4633 = vld [vmem:[%s3956 + $0x30] sm:$0xff]
      %v4634 = vld [vmem:[%s3956 + $0x38] sm:$0xff]
      %v4635 = vld [vmem:[%s3956 + $0x48] sm:$0xff]
      %v4636 = vld [vmem:[%s3956 + $0x50] sm:$0xff]
      %v4637 = vld [vmem:[%s3956 + $0x60] sm:$0xff]
      %v4638 = vld [vmem:[%s3956 + $0x68] sm:$0xff]
      %v4639 = vld [vmem:[%s3956 + $0x78] sm:$0xff]
      %v4640 = vld [vmem:[%s3956 + $0x80] sm:$0xff]
      %v4641 = vld [vmem:[%s3956 + $0x90] sm:$0xff]
      %v4642 = vld [vmem:[%s3956 + $0x98] sm:$0xff]
      %v4643 = vld [vmem:[%s3956 + $0xa8] sm:$0xff]
      %v4644 = vld [vmem:[%s3956 + $0xb0] sm:$0xff]
      %v4645 = vld [vmem:[%s3956 + $0xc0] sm:$0xff]
      %v4646 = vld [vmem:[%s3956 + $0xc8] sm:$0xff]
      %v4647 = vld [vmem:[%s3956 + $0xd8] sm:$0xff]
      %v4648 = vld [vmem:[%s3956 + $0xe0] sm:$0xff]
      %v4649 = vld [vmem:[%s3956 + $0xf0] sm:$0xff]
      %v4650 = vld [vmem:[%s3956 + $0xf8] sm:$0xff]
      %v4651 = vld [vmem:[%s3956 + $0x108] sm:$0xff]
      %v4652 = vld [vmem:[%s3956 + $0x110] sm:$0xff]
      %v4653 = vld [vmem:[%s3956 + $0x120] sm:$0xff]
      %v4654 = vld [vmem:[%s3956 + $0x128] sm:$0xff]
      %v4655 = vld [vmem:[%s3956 + $0x138] sm:$0xff]
      %v4656 = vld [vmem:[%s3956 + $0x140] sm:$0xff]
      %v4657 = vld [vmem:[%s3956 + $0x150] sm:$0xff]
      %v4658 = vld [vmem:[%s3956 + $0x158] sm:$0xff]
      %v4659 = vld [vmem:[%s3956 + $0x168] sm:$0xff]
      %v4660 = vld [vmem:[%s3956 + $0x170] sm:$0xff]
      %v4661 = vpack.c.bf16 %v4630, %v4629
      %v4662 = vpack.c.bf16 %v4632, %v4631
      %v4663 = vpack.c.bf16 %v4634, %v4633
      %v4664 = vpack.c.bf16 %v4636, %v4635
      %v4665 = vpack.c.bf16 %v4638, %v4637
      %v4666 = vpack.c.bf16 %v4640, %v4639
      %v4667 = vpack.c.bf16 %v4642, %v4641
      %v4668 = vpack.c.bf16 %v4644, %v4643
      %v4669 = vpack.c.bf16 %v4646, %v4645
      %v4670 = vpack.c.bf16 %v4648, %v4647
      %v4671 = vpack.c.bf16 %v4650, %v4649
      %v4672 = vpack.c.bf16 %v4652, %v4651
      %v4673 = vpack.c.bf16 %v4654, %v4653
      %v4674 = vpack.c.bf16 %v4656, %v4655
      %v4675 = vpack.c.bf16 %v4658, %v4657
      %v4676 = vpack.c.bf16 %v4660, %v4659
      %v4693 = vunpack.c.l.b16 %v4661
      %v4694 = vunpack.c.h.b16 %v4661
      %v4695 = vunpack.c.l.b16 %v4662
      %v4696 = vunpack.c.h.b16 %v4662
      %v4697 = vunpack.c.l.b16 %v4663
      %v4698 = vunpack.c.h.b16 %v4663
      %v4699 = vunpack.c.l.b16 %v4664
      %v4700 = vunpack.c.h.b16 %v4664
      %v4701 = vunpack.c.l.b16 %v4665
      %v4702 = vunpack.c.h.b16 %v4665
      %v4703 = vunpack.c.l.b16 %v4666
      %v4704 = vunpack.c.h.b16 %v4666
      %v4705 = vunpack.c.l.b16 %v4667
      %v4706 = vunpack.c.h.b16 %v4667
      %v4707 = vunpack.c.l.b16 %v4668
      %v4708 = vunpack.c.h.b16 %v4668
      %v4709 = vunpack.c.l.b16 %v4669
      %v4710 = vunpack.c.h.b16 %v4669
      %v4711 = vunpack.c.l.b16 %v4670
      %v4712 = vunpack.c.h.b16 %v4670
      %v4713 = vunpack.c.l.b16 %v4671
      %v4714 = vunpack.c.h.b16 %v4671
      %v4715 = vunpack.c.l.b16 %v4672
      %v4716 = vunpack.c.h.b16 %v4672
      %v4717 = vunpack.c.l.b16 %v4673
      %v4718 = vunpack.c.h.b16 %v4673
      %v4719 = vunpack.c.l.b16 %v4674
      %v4720 = vunpack.c.h.b16 %v4674
      %v4721 = vunpack.c.l.b16 %v4675
      %v4722 = vunpack.c.h.b16 %v4675
      %v4723 = vunpack.c.l.b16 %v4676
      %v4724 = vunpack.c.h.b16 %v4676
      %v4725 = vpack.c.b16 %v4693, %v4693
      %v4726 = vpack.c.b16 %v4694, %v4694
      %v4727 = vpack.c.b16 %v4695, %v4695
      %v4728 = vpack.c.b16 %v4696, %v4696
      %v4729 = vpack.c.b16 %v4697, %v4697
      %v4730 = vpack.c.b16 %v4698, %v4698
      %v4731 = vpack.c.b16 %v4699, %v4699
      %v4732 = vpack.c.b16 %v4700, %v4700
      %v4733 = vpack.c.b16 %v4701, %v4701
      %v4734 = vpack.c.b16 %v4702, %v4702
      %v4735 = vpack.c.b16 %v4703, %v4703
      %v4736 = vpack.c.b16 %v4704, %v4704
      %v4737 = vpack.c.b16 %v4705, %v4705
      %v4738 = vpack.c.b16 %v4706, %v4706
      %v4739 = vpack.c.b16 %v4707, %v4707
      %v4740 = vpack.c.b16 %v4708, %v4708
      %v4741 = vpack.c.b16 %v4709, %v4709
      %v4742 = vpack.c.b16 %v4710, %v4710
      %v4743 = vpack.c.b16 %v4711, %v4711
      %v4744 = vpack.c.b16 %v4712, %v4712
      %v4745 = vpack.c.b16 %v4713, %v4713
      %v4746 = vpack.c.b16 %v4714, %v4714
      %v4747 = vpack.c.b16 %v4715, %v4715
      %v4748 = vpack.c.b16 %v4716, %v4716
      %v4749 = vpack.c.b16 %v4717, %v4717
      %v4750 = vpack.c.b16 %v4718, %v4718
      %v4751 = vpack.c.b16 %v4719, %v4719
      %v4752 = vpack.c.b16 %v4720, %v4720
      %v4753 = vpack.c.b16 %v4721, %v4721
      %v4754 = vpack.c.b16 %v4722, %v4722
      %v4755 = vpack.c.b16 %v4723, %v4723
      %v4756 = vpack.c.b16 %v4724, %v4724
      %4757 = vrot.lane.b32.xlu0 %v4725, 64
      %v4758 = vpop.permute.xlu0 %4757
      %4759 = vrot.lane.b32.xlu0 %v4726, 64
      %v4760 = vpop.permute.xlu0 %4759
      %4761 = vrot.lane.b32.xlu0 %v4727, 64
      %v4762 = vpop.permute.xlu0 %4761
      %4763 = vrot.lane.b32.xlu0 %v4728, 64
      %v4764 = vpop.permute.xlu0 %4763
      %4765 = vrot.lane.b32.xlu0 %v4729, 64
      %v4766 = vpop.permute.xlu0 %4765
      %4767 = vrot.lane.b32.xlu0 %v4730, 64
      %v4768 = vpop.permute.xlu0 %4767
      %4769 = vrot.lane.b32.xlu0 %v4731, 64
      %v4770 = vpop.permute.xlu0 %4769
      %4771 = vrot.lane.b32.xlu0 %v4732, 64
      %v4772 = vpop.permute.xlu0 %4771
      %4773 = vrot.lane.b32.xlu0 %v4733, 64
      %v4774 = vpop.permute.xlu0 %4773
      %4775 = vrot.lane.b32.xlu0 %v4734, 64
      %v4776 = vpop.permute.xlu0 %4775
      %4777 = vrot.lane.b32.xlu0 %v4735, 64
      %v4778 = vpop.permute.xlu0 %4777
      %4779 = vrot.lane.b32.xlu0 %v4736, 64
      %v4780 = vpop.permute.xlu0 %4779
      %4781 = vrot.lane.b32.xlu0 %v4737, 64
      %v4782 = vpop.permute.xlu0 %4781
      %4783 = vrot.lane.b32.xlu0 %v4738, 64
      %v4784 = vpop.permute.xlu0 %4783
      %4785 = vrot.lane.b32.xlu0 %v4739, 64
      %v4786 = vpop.permute.xlu0 %4785
      %4787 = vrot.lane.b32.xlu0 %v4740, 64
      %v4788 = vpop.permute.xlu0 %4787
      %4789 = vrot.lane.b32.xlu0 %v4741, 64
      %v4790 = vpop.permute.xlu0 %4789
      %4791 = vrot.lane.b32.xlu0 %v4742, 64
      %v4792 = vpop.permute.xlu0 %4791
      %4793 = vrot.lane.b32.xlu0 %v4743, 64
      %v4794 = vpop.permute.xlu0 %4793
      %4795 = vrot.lane.b32.xlu0 %v4744, 64
      %v4796 = vpop.permute.xlu0 %4795
      %4797 = vrot.lane.b32.xlu0 %v4745, 64
      %v4798 = vpop.permute.xlu0 %4797
      %4799 = vrot.lane.b32.xlu0 %v4746, 64
      %v4800 = vpop.permute.xlu0 %4799
      %4801 = vrot.lane.b32.xlu0 %v4747, 64
      %v4802 = vpop.permute.xlu0 %4801
      %4803 = vrot.lane.b32.xlu0 %v4748, 64
      %v4804 = vpop.permute.xlu0 %4803
      %4805 = vrot.lane.b32.xlu0 %v4749, 64
      %v4806 = vpop.permute.xlu0 %4805
      %4807 = vrot.lane.b32.xlu0 %v4750, 64
      %v4808 = vpop.permute.xlu0 %4807
      %4809 = vrot.lane.b32.xlu0 %v4751, 64
      %v4810 = vpop.permute.xlu0 %4809
      %4811 = vrot.lane.b32.xlu0 %v4752, 64
      %v4812 = vpop.permute.xlu0 %4811
      %4813 = vrot.lane.b32.xlu0 %v4753, 64
      %v4814 = vpop.permute.xlu0 %4813
      %4815 = vrot.lane.b32.xlu0 %v4754, 64
      %v4816 = vpop.permute.xlu0 %4815
      %4817 = vrot.lane.b32.xlu0 %v4755, 64
      %v4818 = vpop.permute.xlu0 %4817
      %4819 = vrot.lane.b32.xlu0 %v4756, 64
      %v4820 = vpop.permute.xlu0 %4819
      %4853 = vst.msk [vmem:[#allocation5 + $0x4] sm:$0xf] %vm918, %v4758
      %4854 = vst.msk [vmem:[#allocation5 + $0x18] sm:$0xf] %vm918, %v4760
      %4855 = vst.msk [vmem:[#allocation5 + $0x2c] sm:$0xf] %vm918, %v4762
      %4856 = vst.msk [vmem:[#allocation5 + $0x40] sm:$0xf] %vm918, %v4764
      %4857 = vst.msk [vmem:[#allocation5 + $0x54] sm:$0xf] %vm918, %v4766
      %4858 = vst.msk [vmem:[#allocation5 + $0x68] sm:$0xf] %vm918, %v4768
      %4859 = vst.msk [vmem:[#allocation5 + $0x7c] sm:$0xf] %vm918, %v4770
      %4860 = vst.msk [vmem:[#allocation5 + $0x90] sm:$0xf] %vm918, %v4772
      %4861 = vst.msk [vmem:[#allocation5 + $0xa4] sm:$0xf] %vm918, %v4774
      %4862 = vst.msk [vmem:[#allocation5 + $0xb8] sm:$0xf] %vm918, %v4776
      %4863 = vst.msk [vmem:[#allocation5 + $0xcc] sm:$0xf] %vm918, %v4778
      %4864 = vst.msk [vmem:[#allocation5 + $0xe0] sm:$0xf] %vm918, %v4780
      %4865 = vst.msk [vmem:[#allocation5 + $0xf4] sm:$0xf] %vm918, %v4782
      %4866 = vst.msk [vmem:[#allocation5 + $0x108] sm:$0xf] %vm918, %v4784
      %4867 = vst.msk [vmem:[#allocation5 + $0x11c] sm:$0xf] %vm918, %v4786
      %4868 = vst.msk [vmem:[#allocation5 + $0x130] sm:$0xf] %vm918, %v4788
      %4869 = vst.msk [vmem:[#allocation5 + $0x144] sm:$0xf] %vm918, %v4790
      %4870 = vst.msk [vmem:[#allocation5 + $0x158] sm:$0xf] %vm918, %v4792
      %4871 = vst.msk [vmem:[#allocation5 + $0x16c] sm:$0xf] %vm918, %v4794
      %4872 = vst.msk [vmem:[#allocation5 + $0x180] sm:$0xf] %vm918, %v4796
      %4873 = vst.msk [vmem:[#allocation5 + $0x194] sm:$0xf] %vm918, %v4798
      %4874 = vst.msk [vmem:[#allocation5 + $0x1a8] sm:$0xf] %vm918, %v4800
      %4875 = vst.msk [vmem:[#allocation5 + $0x1bc] sm:$0xf] %vm918, %v4802
      %4876 = vst.msk [vmem:[#allocation5 + $0x1d0] sm:$0xf] %vm918, %v4804
      %4877 = vst.msk [vmem:[#allocation5 + $0x1e4] sm:$0xf] %vm918, %v4806
      %4878 = vst.msk [vmem:[#allocation5 + $0x1f8] sm:$0xf] %vm918, %v4808
      %4879 = vst.msk [vmem:[#allocation5 + $0x20c] sm:$0xf] %vm918, %v4810
      %4880 = vst.msk [vmem:[#allocation5 + $0x220] sm:$0xf] %vm918, %v4812
      %4881 = vst.msk [vmem:[#allocation5 + $0x234] sm:$0xf] %vm918, %v4814
      %4882 = vst.msk [vmem:[#allocation5 + $0x248] sm:$0xf] %vm918, %v4816
      %4883 = vst.msk [vmem:[#allocation5 + $0x25c] sm:$0xf] %vm918, %v4818
      %4884 = vst.msk [vmem:[#allocation5 + $0x270] sm:$0xf] %vm918, %v4820
      %v4885 = vld [vmem:[%s3956 + $0x1] sm:$0xff]
      %v4886 = vld [vmem:[%s3956 + $0x9] sm:$0xff]
      %v4887 = vld [vmem:[%s3956 + $0x19] sm:$0xff]
      %v4888 = vld [vmem:[%s3956 + $0x21] sm:$0xff]
      %v4889 = vld [vmem:[%s3956 + $0x31] sm:$0xff]
      %v4890 = vld [vmem:[%s3956 + $0x39] sm:$0xff]
      %v4891 = vld [vmem:[%s3956 + $0x49] sm:$0xff]
      %v4892 = vld [vmem:[%s3956 + $0x51] sm:$0xff]
      %v4893 = vld [vmem:[%s3956 + $0x61] sm:$0xff]
      %v4894 = vld [vmem:[%s3956 + $0x69] sm:$0xff]
      %v4895 = vld [vmem:[%s3956 + $0x79] sm:$0xff]
      %v4896 = vld [vmem:[%s3956 + $0x81] sm:$0xff]
      %v4897 = vld [vmem:[%s3956 + $0x91] sm:$0xff]
      %v4898 = vld [vmem:[%s3956 + $0x99] sm:$0xff]
      %v4899 = vld [vmem:[%s3956 + $0xa9] sm:$0xff]
      %v4900 = vld [vmem:[%s3956 + $0xb1] sm:$0xff]
      %v4901 = vld [vmem:[%s3956 + $0xc1] sm:$0xff]
      %v4902 = vld [vmem:[%s3956 + $0xc9] sm:$0xff]
      %v4903 = vld [vmem:[%s3956 + $0xd9] sm:$0xff]
      %v4904 = vld [vmem:[%s3956 + $0xe1] sm:$0xff]
      %v4905 = vld [vmem:[%s3956 + $0xf1] sm:$0xff]
      %v4906 = vld [vmem:[%s3956 + $0xf9] sm:$0xff]
      %v4907 = vld [vmem:[%s3956 + $0x109] sm:$0xff]
      %v4908 = vld [vmem:[%s3956 + $0x111] sm:$0xff]
      %v4909 = vld [vmem:[%s3956 + $0x121] sm:$0xff]
      %v4910 = vld [vmem:[%s3956 + $0x129] sm:$0xff]
      %v4911 = vld [vmem:[%s3956 + $0x139] sm:$0xff]
      %v4912 = vld [vmem:[%s3956 + $0x141] sm:$0xff]
      %v4913 = vld [vmem:[%s3956 + $0x151] sm:$0xff]
      %v4914 = vld [vmem:[%s3956 + $0x159] sm:$0xff]
      %v4915 = vld [vmem:[%s3956 + $0x169] sm:$0xff]
      %v4916 = vld [vmem:[%s3956 + $0x171] sm:$0xff]
      %v4917 = vpack.c.bf16 %v4886, %v4885
      %v4918 = vpack.c.bf16 %v4888, %v4887
      %v4919 = vpack.c.bf16 %v4890, %v4889
      %v4920 = vpack.c.bf16 %v4892, %v4891
      %v4921 = vpack.c.bf16 %v4894, %v4893
      %v4922 = vpack.c.bf16 %v4896, %v4895
      %v4923 = vpack.c.bf16 %v4898, %v4897
      %v4924 = vpack.c.bf16 %v4900, %v4899
      %v4925 = vpack.c.bf16 %v4902, %v4901
      %v4926 = vpack.c.bf16 %v4904, %v4903
      %v4927 = vpack.c.bf16 %v4906, %v4905
      %v4928 = vpack.c.bf16 %v4908, %v4907
      %v4929 = vpack.c.bf16 %v4910, %v4909
      %v4930 = vpack.c.bf16 %v4912, %v4911
      %v4931 = vpack.c.bf16 %v4914, %v4913
      %v4932 = vpack.c.bf16 %v4916, %v4915
      %v4949 = vunpack.c.l.b16 %v4917
      %v4950 = vunpack.c.h.b16 %v4917
      %v4951 = vunpack.c.l.b16 %v4918
      %v4952 = vunpack.c.h.b16 %v4918
      %v4953 = vunpack.c.l.b16 %v4919
      %v4954 = vunpack.c.h.b16 %v4919
      %v4955 = vunpack.c.l.b16 %v4920
      %v4956 = vunpack.c.h.b16 %v4920
      %v4957 = vunpack.c.l.b16 %v4921
      %v4958 = vunpack.c.h.b16 %v4921
      %v4959 = vunpack.c.l.b16 %v4922
      %v4960 = vunpack.c.h.b16 %v4922
      %v4961 = vunpack.c.l.b16 %v4923
      %v4962 = vunpack.c.h.b16 %v4923
      %v4963 = vunpack.c.l.b16 %v4924
      %v4964 = vunpack.c.h.b16 %v4924
      %v4965 = vunpack.c.l.b16 %v4925
      %v4966 = vunpack.c.h.b16 %v4925
      %v4967 = vunpack.c.l.b16 %v4926
      %v4968 = vunpack.c.h.b16 %v4926
      %v4969 = vunpack.c.l.b16 %v4927
      %v4970 = vunpack.c.h.b16 %v4927
      %v4971 = vunpack.c.l.b16 %v4928
      %v4972 = vunpack.c.h.b16 %v4928
      %v4973 = vunpack.c.l.b16 %v4929
      %v4974 = vunpack.c.h.b16 %v4929
      %v4975 = vunpack.c.l.b16 %v4930
      %v4976 = vunpack.c.h.b16 %v4930
      %v4977 = vunpack.c.l.b16 %v4931
      %v4978 = vunpack.c.h.b16 %v4931
      %v4979 = vunpack.c.l.b16 %v4932
      %v4980 = vunpack.c.h.b16 %v4932
      %v4981 = vpack.c.b16 %v4949, %v4949
      %v4982 = vpack.c.b16 %v4950, %v4950
      %v4983 = vpack.c.b16 %v4951, %v4951
      %v4984 = vpack.c.b16 %v4952, %v4952
      %v4985 = vpack.c.b16 %v4953, %v4953
      %v4986 = vpack.c.b16 %v4954, %v4954
      %v4987 = vpack.c.b16 %v4955, %v4955
      %v4988 = vpack.c.b16 %v4956, %v4956
      %v4989 = vpack.c.b16 %v4957, %v4957
      %v4990 = vpack.c.b16 %v4958, %v4958
      %v4991 = vpack.c.b16 %v4959, %v4959
      %v4992 = vpack.c.b16 %v4960, %v4960
      %v4993 = vpack.c.b16 %v4961, %v4961
      %v4994 = vpack.c.b16 %v4962, %v4962
      %v4995 = vpack.c.b16 %v4963, %v4963
      %v4996 = vpack.c.b16 %v4964, %v4964
      %v4997 = vpack.c.b16 %v4965, %v4965
      %v4998 = vpack.c.b16 %v4966, %v4966
      %v4999 = vpack.c.b16 %v4967, %v4967
      %v5000 = vpack.c.b16 %v4968, %v4968
      %v5001 = vpack.c.b16 %v4969, %v4969
      %v5002 = vpack.c.b16 %v4970, %v4970
      %v5003 = vpack.c.b16 %v4971, %v4971
      %v5004 = vpack.c.b16 %v4972, %v4972
      %v5005 = vpack.c.b16 %v4973, %v4973
      %v5006 = vpack.c.b16 %v4974, %v4974
      %v5007 = vpack.c.b16 %v4975, %v4975
      %v5008 = vpack.c.b16 %v4976, %v4976
      %v5009 = vpack.c.b16 %v4977, %v4977
      %v5010 = vpack.c.b16 %v4978, %v4978
      %v5011 = vpack.c.b16 %v4979, %v4979
      %v5012 = vpack.c.b16 %v4980, %v4980
      %5045 = vst.msk [vmem:[#allocation5 + $0x8] sm:$0xf] %vm661, %v4981
      %5046 = vst.msk [vmem:[#allocation5 + $0x1c] sm:$0xf] %vm661, %v4982
      %5047 = vst.msk [vmem:[#allocation5 + $0x30] sm:$0xf] %vm661, %v4983
      %5048 = vst.msk [vmem:[#allocation5 + $0x44] sm:$0xf] %vm661, %v4984
      %5049 = vst.msk [vmem:[#allocation5 + $0x58] sm:$0xf] %vm661, %v4985
      %5050 = vst.msk [vmem:[#allocation5 + $0x6c] sm:$0xf] %vm661, %v4986
      %5051 = vst.msk [vmem:[#allocation5 + $0x80] sm:$0xf] %vm661, %v4987
      %5052 = vst.msk [vmem:[#allocation5 + $0x94] sm:$0xf] %vm661, %v4988
      %5053 = vst.msk [vmem:[#allocation5 + $0xa8] sm:$0xf] %vm661, %v4989
      %5054 = vst.msk [vmem:[#allocation5 + $0xbc] sm:$0xf] %vm661, %v4990
      %5055 = vst.msk [vmem:[#allocation5 + $0xd0] sm:$0xf] %vm661, %v4991
      %5056 = vst.msk [vmem:[#allocation5 + $0xe4] sm:$0xf] %vm661, %v4992
      %5057 = vst.msk [vmem:[#allocation5 + $0xf8] sm:$0xf] %vm661, %v4993
      %5058 = vst.msk [vmem:[#allocation5 + $0x10c] sm:$0xf] %vm661, %v4994
      %5059 = vst.msk [vmem:[#allocation5 + $0x120] sm:$0xf] %vm661, %v4995
      %5060 = vst.msk [vmem:[#allocation5 + $0x134] sm:$0xf] %vm661, %v4996
      %5061 = vst.msk [vmem:[#allocation5 + $0x148] sm:$0xf] %vm661, %v4997
      %5062 = vst.msk [vmem:[#allocation5 + $0x15c] sm:$0xf] %vm661, %v4998
      %5063 = vst.msk [vmem:[#allocation5 + $0x170] sm:$0xf] %vm661, %v4999
      %5064 = vst.msk [vmem:[#allocation5 + $0x184] sm:$0xf] %vm661, %v5000
      %5065 = vst.msk [vmem:[#allocation5 + $0x198] sm:$0xf] %vm661, %v5001
      %5066 = vst.msk [vmem:[#allocation5 + $0x1ac] sm:$0xf] %vm661, %v5002
      %5067 = vst.msk [vmem:[#allocation5 + $0x1c0] sm:$0xf] %vm661, %v5003
      %5068 = vst.msk [vmem:[#allocation5 + $0x1d4] sm:$0xf] %vm661, %v5004
      %5069 = vst.msk [vmem:[#allocation5 + $0x1e8] sm:$0xf] %vm661, %v5005
      %5070 = vst.msk [vmem:[#allocation5 + $0x1fc] sm:$0xf] %vm661, %v5006
      %5071 = vst.msk [vmem:[#allocation5 + $0x210] sm:$0xf] %vm661, %v5007
      %5072 = vst.msk [vmem:[#allocation5 + $0x224] sm:$0xf] %vm661, %v5008
      %5073 = vst.msk [vmem:[#allocation5 + $0x238] sm:$0xf] %vm661, %v5009
      %5074 = vst.msk [vmem:[#allocation5 + $0x24c] sm:$0xf] %vm661, %v5010
      %5075 = vst.msk [vmem:[#allocation5 + $0x260] sm:$0xf] %vm661, %v5011
      %5076 = vst.msk [vmem:[#allocation5 + $0x274] sm:$0xf] %vm661, %v5012
      %v5077 = vld [vmem:[%s3956 + $0x2] sm:$0xff]
      %v5078 = vld [vmem:[%s3956 + $0xa] sm:$0xff]
      %v5079 = vld [vmem:[%s3956 + $0x1a] sm:$0xff]
      %v5080 = vld [vmem:[%s3956 + $0x22] sm:$0xff]
      %v5081 = vld [vmem:[%s3956 + $0x32] sm:$0xff]
      %v5082 = vld [vmem:[%s3956 + $0x3a] sm:$0xff]
      %v5083 = vld [vmem:[%s3956 + $0x4a] sm:$0xff]
      %v5084 = vld [vmem:[%s3956 + $0x52] sm:$0xff]
      %v5085 = vld [vmem:[%s3956 + $0x62] sm:$0xff]
      %v5086 = vld [vmem:[%s3956 + $0x6a] sm:$0xff]
      %v5087 = vld [vmem:[%s3956 + $0x7a] sm:$0xff]
      %v5088 = vld [vmem:[%s3956 + $0x82] sm:$0xff]
      %v5089 = vld [vmem:[%s3956 + $0x92] sm:$0xff]
      %v5090 = vld [vmem:[%s3956 + $0x9a] sm:$0xff]
      %v5091 = vld [vmem:[%s3956 + $0xaa] sm:$0xff]
      %v5092 = vld [vmem:[%s3956 + $0xb2] sm:$0xff]
      %v5093 = vld [vmem:[%s3956 + $0xc2] sm:$0xff]
      %v5094 = vld [vmem:[%s3956 + $0xca] sm:$0xff]
      %v5095 = vld [vmem:[%s3956 + $0xda] sm:$0xff]
      %v5096 = vld [vmem:[%s3956 + $0xe2] sm:$0xff]
      %v5097 = vld [vmem:[%s3956 + $0xf2] sm:$0xff]
      %v5098 = vld [vmem:[%s3956 + $0xfa] sm:$0xff]
      %v5099 = vld [vmem:[%s3956 + $0x10a] sm:$0xff]
      %v5100 = vld [vmem:[%s3956 + $0x112] sm:$0xff]
      %v5101 = vld [vmem:[%s3956 + $0x122] sm:$0xff]
      %v5102 = vld [vmem:[%s3956 + $0x12a] sm:$0xff]
      %v5103 = vld [vmem:[%s3956 + $0x13a] sm:$0xff]
      %v5104 = vld [vmem:[%s3956 + $0x142] sm:$0xff]
      %v5105 = vld [vmem:[%s3956 + $0x152] sm:$0xff]
      %v5106 = vld [vmem:[%s3956 + $0x15a] sm:$0xff]
      %v5107 = vld [vmem:[%s3956 + $0x16a] sm:$0xff]
      %v5108 = vld [vmem:[%s3956 + $0x172] sm:$0xff]
      %v5109 = vpack.c.bf16 %v5078, %v5077
      %v5110 = vpack.c.bf16 %v5080, %v5079
      %v5111 = vpack.c.bf16 %v5082, %v5081
      %v5112 = vpack.c.bf16 %v5084, %v5083
      %v5113 = vpack.c.bf16 %v5086, %v5085
      %v5114 = vpack.c.bf16 %v5088, %v5087
      %v5115 = vpack.c.bf16 %v5090, %v5089
      %v5116 = vpack.c.bf16 %v5092, %v5091
      %v5117 = vpack.c.bf16 %v5094, %v5093
      %v5118 = vpack.c.bf16 %v5096, %v5095
      %v5119 = vpack.c.bf16 %v5098, %v5097
      %v5120 = vpack.c.bf16 %v5100, %v5099
      %v5121 = vpack.c.bf16 %v5102, %v5101
      %v5122 = vpack.c.bf16 %v5104, %v5103
      %v5123 = vpack.c.bf16 %v5106, %v5105
      %v5124 = vpack.c.bf16 %v5108, %v5107
      %v5141 = vunpack.c.l.b16 %v5109
      %v5142 = vunpack.c.h.b16 %v5109
      %v5143 = vunpack.c.l.b16 %v5110
      %v5144 = vunpack.c.h.b16 %v5110
      %v5145 = vunpack.c.l.b16 %v5111
      %v5146 = vunpack.c.h.b16 %v5111
      %v5147 = vunpack.c.l.b16 %v5112
      %v5148 = vunpack.c.h.b16 %v5112
      %v5149 = vunpack.c.l.b16 %v5113
      %v5150 = vunpack.c.h.b16 %v5113
      %v5151 = vunpack.c.l.b16 %v5114
      %v5152 = vunpack.c.h.b16 %v5114
      %v5153 = vunpack.c.l.b16 %v5115
      %v5154 = vunpack.c.h.b16 %v5115
      %v5155 = vunpack.c.l.b16 %v5116
      %v5156 = vunpack.c.h.b16 %v5116
      %v5157 = vunpack.c.l.b16 %v5117
      %v5158 = vunpack.c.h.b16 %v5117
      %v5159 = vunpack.c.l.b16 %v5118
      %v5160 = vunpack.c.h.b16 %v5118
      %v5161 = vunpack.c.l.b16 %v5119
      %v5162 = vunpack.c.h.b16 %v5119
      %v5163 = vunpack.c.l.b16 %v5120
      %v5164 = vunpack.c.h.b16 %v5120
      %v5165 = vunpack.c.l.b16 %v5121
      %v5166 = vunpack.c.h.b16 %v5121
      %v5167 = vunpack.c.l.b16 %v5122
      %v5168 = vunpack.c.h.b16 %v5122
      %v5169 = vunpack.c.l.b16 %v5123
      %v5170 = vunpack.c.h.b16 %v5123
      %v5171 = vunpack.c.l.b16 %v5124
      %v5172 = vunpack.c.h.b16 %v5124
      %v5173 = vpack.c.b16 %v5141, %v5141
      %v5174 = vpack.c.b16 %v5142, %v5142
      %v5175 = vpack.c.b16 %v5143, %v5143
      %v5176 = vpack.c.b16 %v5144, %v5144
      %v5177 = vpack.c.b16 %v5145, %v5145
      %v5178 = vpack.c.b16 %v5146, %v5146
      %v5179 = vpack.c.b16 %v5147, %v5147
      %v5180 = vpack.c.b16 %v5148, %v5148
      %v5181 = vpack.c.b16 %v5149, %v5149
      %v5182 = vpack.c.b16 %v5150, %v5150
      %v5183 = vpack.c.b16 %v5151, %v5151
      %v5184 = vpack.c.b16 %v5152, %v5152
      %v5185 = vpack.c.b16 %v5153, %v5153
      %v5186 = vpack.c.b16 %v5154, %v5154
      %v5187 = vpack.c.b16 %v5155, %v5155
      %v5188 = vpack.c.b16 %v5156, %v5156
      %v5189 = vpack.c.b16 %v5157, %v5157
      %v5190 = vpack.c.b16 %v5158, %v5158
      %v5191 = vpack.c.b16 %v5159, %v5159
      %v5192 = vpack.c.b16 %v5160, %v5160
      %v5193 = vpack.c.b16 %v5161, %v5161
      %v5194 = vpack.c.b16 %v5162, %v5162
      %v5195 = vpack.c.b16 %v5163, %v5163
      %v5196 = vpack.c.b16 %v5164, %v5164
      %v5197 = vpack.c.b16 %v5165, %v5165
      %v5198 = vpack.c.b16 %v5166, %v5166
      %v5199 = vpack.c.b16 %v5167, %v5167
      %v5200 = vpack.c.b16 %v5168, %v5168
      %v5201 = vpack.c.b16 %v5169, %v5169
      %v5202 = vpack.c.b16 %v5170, %v5170
      %v5203 = vpack.c.b16 %v5171, %v5171
      %v5204 = vpack.c.b16 %v5172, %v5172
      %5205 = vrot.lane.b32.xlu0 %v5173, 64
      %v5206 = vpop.permute.xlu0 %5205
      %5207 = vrot.lane.b32.xlu0 %v5174, 64
      %v5208 = vpop.permute.xlu0 %5207
      %5209 = vrot.lane.b32.xlu0 %v5175, 64
      %v5210 = vpop.permute.xlu0 %5209
      %5211 = vrot.lane.b32.xlu0 %v5176, 64
      %v5212 = vpop.permute.xlu0 %5211
      %5213 = vrot.lane.b32.xlu0 %v5177, 64
      %v5214 = vpop.permute.xlu0 %5213
      %5215 = vrot.lane.b32.xlu0 %v5178, 64
      %v5216 = vpop.permute.xlu0 %5215
      %5217 = vrot.lane.b32.xlu0 %v5179, 64
      %v5218 = vpop.permute.xlu0 %5217
      %5219 = vrot.lane.b32.xlu0 %v5180, 64
      %v5220 = vpop.permute.xlu0 %5219
      %5221 = vrot.lane.b32.xlu0 %v5181, 64
      %v5222 = vpop.permute.xlu0 %5221
      %5223 = vrot.lane.b32.xlu0 %v5182, 64
      %v5224 = vpop.permute.xlu0 %5223
      %5225 = vrot.lane.b32.xlu0 %v5183, 64
      %v5226 = vpop.permute.xlu0 %5225
      %5227 = vrot.lane.b32.xlu0 %v5184, 64
      %v5228 = vpop.permute.xlu0 %5227
      %5229 = vrot.lane.b32.xlu0 %v5185, 64
      %v5230 = vpop.permute.xlu0 %5229
      %5231 = vrot.lane.b32.xlu0 %v5186, 64
      %v5232 = vpop.permute.xlu0 %5231
      %5233 = vrot.lane.b32.xlu0 %v5187, 64
      %v5234 = vpop.permute.xlu0 %5233
      %5235 = vrot.lane.b32.xlu0 %v5188, 64
      %v5236 = vpop.permute.xlu0 %5235
      %5237 = vrot.lane.b32.xlu0 %v5189, 64
      %v5238 = vpop.permute.xlu0 %5237
      %5239 = vrot.lane.b32.xlu0 %v5190, 64
      %v5240 = vpop.permute.xlu0 %5239
      %5241 = vrot.lane.b32.xlu0 %v5191, 64
      %v5242 = vpop.permute.xlu0 %5241
      %5243 = vrot.lane.b32.xlu0 %v5192, 64
      %v5244 = vpop.permute.xlu0 %5243
      %5245 = vrot.lane.b32.xlu0 %v5193, 64
      %v5246 = vpop.permute.xlu0 %5245
      %5247 = vrot.lane.b32.xlu0 %v5194, 64
      %v5248 = vpop.permute.xlu0 %5247
      %5249 = vrot.lane.b32.xlu0 %v5195, 64
      %v5250 = vpop.permute.xlu0 %5249
      %5251 = vrot.lane.b32.xlu0 %v5196, 64
      %v5252 = vpop.permute.xlu0 %5251
      %5253 = vrot.lane.b32.xlu0 %v5197, 64
      %v5254 = vpop.permute.xlu0 %5253
      %5255 = vrot.lane.b32.xlu0 %v5198, 64
      %v5256 = vpop.permute.xlu0 %5255
      %5257 = vrot.lane.b32.xlu0 %v5199, 64
      %v5258 = vpop.permute.xlu0 %5257
      %5259 = vrot.lane.b32.xlu0 %v5200, 64
      %v5260 = vpop.permute.xlu0 %5259
      %5261 = vrot.lane.b32.xlu0 %v5201, 64
      %v5262 = vpop.permute.xlu0 %5261
      %5263 = vrot.lane.b32.xlu0 %v5202, 64
      %v5264 = vpop.permute.xlu0 %5263
      %5265 = vrot.lane.b32.xlu0 %v5203, 64
      %v5266 = vpop.permute.xlu0 %5265
      %5267 = vrot.lane.b32.xlu0 %v5204, 64
      %v5268 = vpop.permute.xlu0 %5267
      %5301 = vst.msk [vmem:[#allocation5 + $0x8] sm:$0xf] %vm918, %v5206
      %5302 = vst.msk [vmem:[#allocation5 + $0x1c] sm:$0xf] %vm918, %v5208
      %5303 = vst.msk [vmem:[#allocation5 + $0x30] sm:$0xf] %vm918, %v5210
      %5304 = vst.msk [vmem:[#allocation5 + $0x44] sm:$0xf] %vm918, %v5212
      %5305 = vst.msk [vmem:[#allocation5 + $0x58] sm:$0xf] %vm918, %v5214
      %5306 = vst.msk [vmem:[#allocation5 + $0x6c] sm:$0xf] %vm918, %v5216
      %5307 = vst.msk [vmem:[#allocation5 + $0x80] sm:$0xf] %vm918, %v5218
      %5308 = vst.msk [vmem:[#allocation5 + $0x94] sm:$0xf] %vm918, %v5220
      %5309 = vst.msk [vmem:[#allocation5 + $0xa8] sm:$0xf] %vm918, %v5222
      %5310 = vst.msk [vmem:[#allocation5 + $0xbc] sm:$0xf] %vm918, %v5224
      %5311 = vst.msk [vmem:[#allocation5 + $0xd0] sm:$0xf] %vm918, %v5226
      %5312 = vst.msk [vmem:[#allocation5 + $0xe4] sm:$0xf] %vm918, %v5228
      %5313 = vst.msk [vmem:[#allocation5 + $0xf8] sm:$0xf] %vm918, %v5230
      %5314 = vst.msk [vmem:[#allocation5 + $0x10c] sm:$0xf] %vm918, %v5232
      %5315 = vst.msk [vmem:[#allocation5 + $0x120] sm:$0xf] %vm918, %v5234
      %5316 = vst.msk [vmem:[#allocation5 + $0x134] sm:$0xf] %vm918, %v5236
      %5317 = vst.msk [vmem:[#allocation5 + $0x148] sm:$0xf] %vm918, %v5238
      %5318 = vst.msk [vmem:[#allocation5 + $0x15c] sm:$0xf] %vm918, %v5240
      %5319 = vst.msk [vmem:[#allocation5 + $0x170] sm:$0xf] %vm918, %v5242
      %5320 = vst.msk [vmem:[#allocation5 + $0x184] sm:$0xf] %vm918, %v5244
      %5321 = vst.msk [vmem:[#allocation5 + $0x198] sm:$0xf] %vm918, %v5246
      %5322 = vst.msk [vmem:[#allocation5 + $0x1ac] sm:$0xf] %vm918, %v5248
      %5323 = vst.msk [vmem:[#allocation5 + $0x1c0] sm:$0xf] %vm918, %v5250
      %5324 = vst.msk [vmem:[#allocation5 + $0x1d4] sm:$0xf] %vm918, %v5252
      %5325 = vst.msk [vmem:[#allocation5 + $0x1e8] sm:$0xf] %vm918, %v5254
      %5326 = vst.msk [vmem:[#allocation5 + $0x1fc] sm:$0xf] %vm918, %v5256
      %5327 = vst.msk [vmem:[#allocation5 + $0x210] sm:$0xf] %vm918, %v5258
      %5328 = vst.msk [vmem:[#allocation5 + $0x224] sm:$0xf] %vm918, %v5260
      %5329 = vst.msk [vmem:[#allocation5 + $0x238] sm:$0xf] %vm918, %v5262
      %5330 = vst.msk [vmem:[#allocation5 + $0x24c] sm:$0xf] %vm918, %v5264
      %5331 = vst.msk [vmem:[#allocation5 + $0x260] sm:$0xf] %vm918, %v5266
      %5332 = vst.msk [vmem:[#allocation5 + $0x274] sm:$0xf] %vm918, %v5268
      %s5333 = scalar_lea.vmem [#allocation3], 48
      %v5334 = vld [vmem:[%s5333] sm:$0xff]
      %v5335 = vld [vmem:[%s5333 + $0x8] sm:$0xff]
      %v5336 = vld [vmem:[%s5333 + $0x18] sm:$0xff]
      %v5337 = vld [vmem:[%s5333 + $0x20] sm:$0xff]
      %v5338 = vld [vmem:[%s5333 + $0x30] sm:$0xff]
      %v5339 = vld [vmem:[%s5333 + $0x38] sm:$0xff]
      %v5340 = vld [vmem:[%s5333 + $0x48] sm:$0xff]
      %v5341 = vld [vmem:[%s5333 + $0x50] sm:$0xff]
      %v5342 = vld [vmem:[%s5333 + $0x60] sm:$0xff]
      %v5343 = vld [vmem:[%s5333 + $0x68] sm:$0xff]
      %v5344 = vld [vmem:[%s5333 + $0x78] sm:$0xff]
      %v5345 = vld [vmem:[%s5333 + $0x80] sm:$0xff]
      %v5346 = vld [vmem:[%s5333 + $0x90] sm:$0xff]
      %v5347 = vld [vmem:[%s5333 + $0x98] sm:$0xff]
      %v5348 = vld [vmem:[%s5333 + $0xa8] sm:$0xff]
      %v5349 = vld [vmem:[%s5333 + $0xb0] sm:$0xff]
      %v5350 = vld [vmem:[%s5333 + $0xc0] sm:$0xff]
      %v5351 = vld [vmem:[%s5333 + $0xc8] sm:$0xff]
      %v5352 = vld [vmem:[%s5333 + $0xd8] sm:$0xff]
      %v5353 = vld [vmem:[%s5333 + $0xe0] sm:$0xff]
      %v5354 = vld [vmem:[%s5333 + $0xf0] sm:$0xff]
      %v5355 = vld [vmem:[%s5333 + $0xf8] sm:$0xff]
      %v5356 = vld [vmem:[%s5333 + $0x108] sm:$0xff]
      %v5357 = vld [vmem:[%s5333 + $0x110] sm:$0xff]
      %v5358 = vld [vmem:[%s5333 + $0x120] sm:$0xff]
      %v5359 = vld [vmem:[%s5333 + $0x128] sm:$0xff]
      %v5360 = vld [vmem:[%s5333 + $0x138] sm:$0xff]
      %v5361 = vld [vmem:[%s5333 + $0x140] sm:$0xff]
      %v5362 = vld [vmem:[%s5333 + $0x150] sm:$0xff]
      %v5363 = vld [vmem:[%s5333 + $0x158] sm:$0xff]
      %v5364 = vld [vmem:[%s5333 + $0x168] sm:$0xff]
      %v5365 = vld [vmem:[%s5333 + $0x170] sm:$0xff]
      %v5366 = vpack.c.bf16 %v5335, %v5334
      %v5367 = vpack.c.bf16 %v5337, %v5336
      %v5368 = vpack.c.bf16 %v5339, %v5338
      %v5369 = vpack.c.bf16 %v5341, %v5340
      %v5370 = vpack.c.bf16 %v5343, %v5342
      %v5371 = vpack.c.bf16 %v5345, %v5344
      %v5372 = vpack.c.bf16 %v5347, %v5346
      %v5373 = vpack.c.bf16 %v5349, %v5348
      %v5374 = vpack.c.bf16 %v5351, %v5350
      %v5375 = vpack.c.bf16 %v5353, %v5352
      %v5376 = vpack.c.bf16 %v5355, %v5354
      %v5377 = vpack.c.bf16 %v5357, %v5356
      %v5378 = vpack.c.bf16 %v5359, %v5358
      %v5379 = vpack.c.bf16 %v5361, %v5360
      %v5380 = vpack.c.bf16 %v5363, %v5362
      %v5381 = vpack.c.bf16 %v5365, %v5364
      %v5398 = vunpack.c.l.b16 %v5366
      %v5399 = vunpack.c.h.b16 %v5366
      %v5400 = vunpack.c.l.b16 %v5367
      %v5401 = vunpack.c.h.b16 %v5367
      %v5402 = vunpack.c.l.b16 %v5368
      %v5403 = vunpack.c.h.b16 %v5368
      %v5404 = vunpack.c.l.b16 %v5369
      %v5405 = vunpack.c.h.b16 %v5369
      %v5406 = vunpack.c.l.b16 %v5370
      %v5407 = vunpack.c.h.b16 %v5370
      %v5408 = vunpack.c.l.b16 %v5371
      %v5409 = vunpack.c.h.b16 %v5371
      %v5410 = vunpack.c.l.b16 %v5372
      %v5411 = vunpack.c.h.b16 %v5372
      %v5412 = vunpack.c.l.b16 %v5373
      %v5413 = vunpack.c.h.b16 %v5373
      %v5414 = vunpack.c.l.b16 %v5374
      %v5415 = vunpack.c.h.b16 %v5374
      %v5416 = vunpack.c.l.b16 %v5375
      %v5417 = vunpack.c.h.b16 %v5375
      %v5418 = vunpack.c.l.b16 %v5376
      %v5419 = vunpack.c.h.b16 %v5376
      %v5420 = vunpack.c.l.b16 %v5377
      %v5421 = vunpack.c.h.b16 %v5377
      %v5422 = vunpack.c.l.b16 %v5378
      %v5423 = vunpack.c.h.b16 %v5378
      %v5424 = vunpack.c.l.b16 %v5379
      %v5425 = vunpack.c.h.b16 %v5379
      %v5426 = vunpack.c.l.b16 %v5380
      %v5427 = vunpack.c.h.b16 %v5380
      %v5428 = vunpack.c.l.b16 %v5381
      %v5429 = vunpack.c.h.b16 %v5381
      %v5430 = vpack.c.b16 %v5398, %v5398
      %v5431 = vpack.c.b16 %v5399, %v5399
      %v5432 = vpack.c.b16 %v5400, %v5400
      %v5433 = vpack.c.b16 %v5401, %v5401
      %v5434 = vpack.c.b16 %v5402, %v5402
      %v5435 = vpack.c.b16 %v5403, %v5403
      %v5436 = vpack.c.b16 %v5404, %v5404
      %v5437 = vpack.c.b16 %v5405, %v5405
      %v5438 = vpack.c.b16 %v5406, %v5406
      %v5439 = vpack.c.b16 %v5407, %v5407
      %v5440 = vpack.c.b16 %v5408, %v5408
      %v5441 = vpack.c.b16 %v5409, %v5409
      %v5442 = vpack.c.b16 %v5410, %v5410
      %v5443 = vpack.c.b16 %v5411, %v5411
      %v5444 = vpack.c.b16 %v5412, %v5412
      %v5445 = vpack.c.b16 %v5413, %v5413
      %v5446 = vpack.c.b16 %v5414, %v5414
      %v5447 = vpack.c.b16 %v5415, %v5415
      %v5448 = vpack.c.b16 %v5416, %v5416
      %v5449 = vpack.c.b16 %v5417, %v5417
      %v5450 = vpack.c.b16 %v5418, %v5418
      %v5451 = vpack.c.b16 %v5419, %v5419
      %v5452 = vpack.c.b16 %v5420, %v5420
      %v5453 = vpack.c.b16 %v5421, %v5421
      %v5454 = vpack.c.b16 %v5422, %v5422
      %v5455 = vpack.c.b16 %v5423, %v5423
      %v5456 = vpack.c.b16 %v5424, %v5424
      %v5457 = vpack.c.b16 %v5425, %v5425
      %v5458 = vpack.c.b16 %v5426, %v5426
      %v5459 = vpack.c.b16 %v5427, %v5427
      %v5460 = vpack.c.b16 %v5428, %v5428
      %v5461 = vpack.c.b16 %v5429, %v5429
      %5494 = vst.msk [vmem:[#allocation5 + $0xc] sm:$0xf] %vm661, %v5430
      %5495 = vst.msk [vmem:[#allocation5 + $0x20] sm:$0xf] %vm661, %v5431
      %5496 = vst.msk [vmem:[#allocation5 + $0x34] sm:$0xf] %vm661, %v5432
      %5497 = vst.msk [vmem:[#allocation5 + $0x48] sm:$0xf] %vm661, %v5433
      %5498 = vst.msk [vmem:[#allocation5 + $0x5c] sm:$0xf] %vm661, %v5434
      %5499 = vst.msk [vmem:[#allocation5 + $0x70] sm:$0xf] %vm661, %v5435
      %5500 = vst.msk [vmem:[#allocation5 + $0x84] sm:$0xf] %vm661, %v5436
      %5501 = vst.msk [vmem:[#allocation5 + $0x98] sm:$0xf] %vm661, %v5437
      %5502 = vst.msk [vmem:[#allocation5 + $0xac] sm:$0xf] %vm661, %v5438
      %5503 = vst.msk [vmem:[#allocation5 + $0xc0] sm:$0xf] %vm661, %v5439
      %5504 = vst.msk [vmem:[#allocation5 + $0xd4] sm:$0xf] %vm661, %v5440
      %5505 = vst.msk [vmem:[#allocation5 + $0xe8] sm:$0xf] %vm661, %v5441
      %5506 = vst.msk [vmem:[#allocation5 + $0xfc] sm:$0xf] %vm661, %v5442
      %5507 = vst.msk [vmem:[#allocation5 + $0x110] sm:$0xf] %vm661, %v5443
      %5508 = vst.msk [vmem:[#allocation5 + $0x124] sm:$0xf] %vm661, %v5444
      %5509 = vst.msk [vmem:[#allocation5 + $0x138] sm:$0xf] %vm661, %v5445
      %5510 = vst.msk [vmem:[#allocation5 + $0x14c] sm:$0xf] %vm661, %v5446
      %5511 = vst.msk [vmem:[#allocation5 + $0x160] sm:$0xf] %vm661, %v5447
      %5512 = vst.msk [vmem:[#allocation5 + $0x174] sm:$0xf] %vm661, %v5448
      %5513 = vst.msk [vmem:[#allocation5 + $0x188] sm:$0xf] %vm661, %v5449
      %5514 = vst.msk [vmem:[#allocation5 + $0x19c] sm:$0xf] %vm661, %v5450
      %5515 = vst.msk [vmem:[#allocation5 + $0x1b0] sm:$0xf] %vm661, %v5451
      %5516 = vst.msk [vmem:[#allocation5 + $0x1c4] sm:$0xf] %vm661, %v5452
      %5517 = vst.msk [vmem:[#allocation5 + $0x1d8] sm:$0xf] %vm661, %v5453
      %5518 = vst.msk [vmem:[#allocation5 + $0x1ec] sm:$0xf] %vm661, %v5454
      %5519 = vst.msk [vmem:[#allocation5 + $0x200] sm:$0xf] %vm661, %v5455
      %5520 = vst.msk [vmem:[#allocation5 + $0x214] sm:$0xf] %vm661, %v5456
      %5521 = vst.msk [vmem:[#allocation5 + $0x228] sm:$0xf] %vm661, %v5457
      %5522 = vst.msk [vmem:[#allocation5 + $0x23c] sm:$0xf] %vm661, %v5458
      %5523 = vst.msk [vmem:[#allocation5 + $0x250] sm:$0xf] %vm661, %v5459
      %5524 = vst.msk [vmem:[#allocation5 + $0x264] sm:$0xf] %vm661, %v5460
      %5525 = vst.msk [vmem:[#allocation5 + $0x278] sm:$0xf] %vm661, %v5461
      %v5526 = vld [vmem:[%s5333 + $0x1] sm:$0xff]
      %v5527 = vld [vmem:[%s5333 + $0x9] sm:$0xff]
      %v5528 = vld [vmem:[%s5333 + $0x19] sm:$0xff]
      %v5529 = vld [vmem:[%s5333 + $0x21] sm:$0xff]
      %v5530 = vld [vmem:[%s5333 + $0x31] sm:$0xff]
      %v5531 = vld [vmem:[%s5333 + $0x39] sm:$0xff]
      %v5532 = vld [vmem:[%s5333 + $0x49] sm:$0xff]
      %v5533 = vld [vmem:[%s5333 + $0x51] sm:$0xff]
      %v5534 = vld [vmem:[%s5333 + $0x61] sm:$0xff]
      %v5535 = vld [vmem:[%s5333 + $0x69] sm:$0xff]
      %v5536 = vld [vmem:[%s5333 + $0x79] sm:$0xff]
      %v5537 = vld [vmem:[%s5333 + $0x81] sm:$0xff]
      %v5538 = vld [vmem:[%s5333 + $0x91] sm:$0xff]
      %v5539 = vld [vmem:[%s5333 + $0x99] sm:$0xff]
      %v5540 = vld [vmem:[%s5333 + $0xa9] sm:$0xff]
      %v5541 = vld [vmem:[%s5333 + $0xb1] sm:$0xff]
      %v5542 = vld [vmem:[%s5333 + $0xc1] sm:$0xff]
      %v5543 = vld [vmem:[%s5333 + $0xc9] sm:$0xff]
      %v5544 = vld [vmem:[%s5333 + $0xd9] sm:$0xff]
      %v5545 = vld [vmem:[%s5333 + $0xe1] sm:$0xff]
      %v5546 = vld [vmem:[%s5333 + $0xf1] sm:$0xff]
      %v5547 = vld [vmem:[%s5333 + $0xf9] sm:$0xff]
      %v5548 = vld [vmem:[%s5333 + $0x109] sm:$0xff]
      %v5549 = vld [vmem:[%s5333 + $0x111] sm:$0xff]
      %v5550 = vld [vmem:[%s5333 + $0x121] sm:$0xff]
      %v5551 = vld [vmem:[%s5333 + $0x129] sm:$0xff]
      %v5552 = vld [vmem:[%s5333 + $0x139] sm:$0xff]
      %v5553 = vld [vmem:[%s5333 + $0x141] sm:$0xff]
      %v5554 = vld [vmem:[%s5333 + $0x151] sm:$0xff]
      %v5555 = vld [vmem:[%s5333 + $0x159] sm:$0xff]
      %v5556 = vld [vmem:[%s5333 + $0x169] sm:$0xff]
      %v5557 = vld [vmem:[%s5333 + $0x171] sm:$0xff]
      %v5558 = vpack.c.bf16 %v5527, %v5526
      %v5559 = vpack.c.bf16 %v5529, %v5528
      %v5560 = vpack.c.bf16 %v5531, %v5530
      %v5561 = vpack.c.bf16 %v5533, %v5532
      %v5562 = vpack.c.bf16 %v5535, %v5534
      %v5563 = vpack.c.bf16 %v5537, %v5536
      %v5564 = vpack.c.bf16 %v5539, %v5538
      %v5565 = vpack.c.bf16 %v5541, %v5540
      %v5566 = vpack.c.bf16 %v5543, %v5542
      %v5567 = vpack.c.bf16 %v5545, %v5544
      %v5568 = vpack.c.bf16 %v5547, %v5546
      %v5569 = vpack.c.bf16 %v5549, %v5548
      %v5570 = vpack.c.bf16 %v5551, %v5550
      %v5571 = vpack.c.bf16 %v5553, %v5552
      %v5572 = vpack.c.bf16 %v5555, %v5554
      %v5573 = vpack.c.bf16 %v5557, %v5556
      %v5590 = vunpack.c.l.b16 %v5558
      %v5591 = vunpack.c.h.b16 %v5558
      %v5592 = vunpack.c.l.b16 %v5559
      %v5593 = vunpack.c.h.b16 %v5559
      %v5594 = vunpack.c.l.b16 %v5560
      %v5595 = vunpack.c.h.b16 %v5560
      %v5596 = vunpack.c.l.b16 %v5561
      %v5597 = vunpack.c.h.b16 %v5561
      %v5598 = vunpack.c.l.b16 %v5562
      %v5599 = vunpack.c.h.b16 %v5562
      %v5600 = vunpack.c.l.b16 %v5563
      %v5601 = vunpack.c.h.b16 %v5563
      %v5602 = vunpack.c.l.b16 %v5564
      %v5603 = vunpack.c.h.b16 %v5564
      %v5604 = vunpack.c.l.b16 %v5565
      %v5605 = vunpack.c.h.b16 %v5565
      %v5606 = vunpack.c.l.b16 %v5566
      %v5607 = vunpack.c.h.b16 %v5566
      %v5608 = vunpack.c.l.b16 %v5567
      %v5609 = vunpack.c.h.b16 %v5567
      %v5610 = vunpack.c.l.b16 %v5568
      %v5611 = vunpack.c.h.b16 %v5568
      %v5612 = vunpack.c.l.b16 %v5569
      %v5613 = vunpack.c.h.b16 %v5569
      %v5614 = vunpack.c.l.b16 %v5570
      %v5615 = vunpack.c.h.b16 %v5570
      %v5616 = vunpack.c.l.b16 %v5571
      %v5617 = vunpack.c.h.b16 %v5571
      %v5618 = vunpack.c.l.b16 %v5572
      %v5619 = vunpack.c.h.b16 %v5572
      %v5620 = vunpack.c.l.b16 %v5573
      %v5621 = vunpack.c.h.b16 %v5573
      %v5622 = vpack.c.b16 %v5590, %v5590
      %v5623 = vpack.c.b16 %v5591, %v5591
      %v5624 = vpack.c.b16 %v5592, %v5592
      %v5625 = vpack.c.b16 %v5593, %v5593
      %v5626 = vpack.c.b16 %v5594, %v5594
      %v5627 = vpack.c.b16 %v5595, %v5595
      %v5628 = vpack.c.b16 %v5596, %v5596
      %v5629 = vpack.c.b16 %v5597, %v5597
      %v5630 = vpack.c.b16 %v5598, %v5598
      %v5631 = vpack.c.b16 %v5599, %v5599
      %v5632 = vpack.c.b16 %v5600, %v5600
      %v5633 = vpack.c.b16 %v5601, %v5601
      %v5634 = vpack.c.b16 %v5602, %v5602
      %v5635 = vpack.c.b16 %v5603, %v5603
      %v5636 = vpack.c.b16 %v5604, %v5604
      %v5637 = vpack.c.b16 %v5605, %v5605
      %v5638 = vpack.c.b16 %v5606, %v5606
      %v5639 = vpack.c.b16 %v5607, %v5607
      %v5640 = vpack.c.b16 %v5608, %v5608
      %v5641 = vpack.c.b16 %v5609, %v5609
      %v5642 = vpack.c.b16 %v5610, %v5610
      %v5643 = vpack.c.b16 %v5611, %v5611
      %v5644 = vpack.c.b16 %v5612, %v5612
      %v5645 = vpack.c.b16 %v5613, %v5613
      %v5646 = vpack.c.b16 %v5614, %v5614
      %v5647 = vpack.c.b16 %v5615, %v5615
      %v5648 = vpack.c.b16 %v5616, %v5616
      %v5649 = vpack.c.b16 %v5617, %v5617
      %v5650 = vpack.c.b16 %v5618, %v5618
      %v5651 = vpack.c.b16 %v5619, %v5619
      %v5652 = vpack.c.b16 %v5620, %v5620
      %v5653 = vpack.c.b16 %v5621, %v5621
      %5654 = vrot.lane.b32.xlu0 %v5622, 64
      %v5655 = vpop.permute.xlu0 %5654
      %5656 = vrot.lane.b32.xlu0 %v5623, 64
      %v5657 = vpop.permute.xlu0 %5656
      %5658 = vrot.lane.b32.xlu0 %v5624, 64
      %v5659 = vpop.permute.xlu0 %5658
      %5660 = vrot.lane.b32.xlu0 %v5625, 64
      %v5661 = vpop.permute.xlu0 %5660
      %5662 = vrot.lane.b32.xlu0 %v5626, 64
      %v5663 = vpop.permute.xlu0 %5662
      %5664 = vrot.lane.b32.xlu0 %v5627, 64
      %v5665 = vpop.permute.xlu0 %5664
      %5666 = vrot.lane.b32.xlu0 %v5628, 64
      %v5667 = vpop.permute.xlu0 %5666
      %5668 = vrot.lane.b32.xlu0 %v5629, 64
      %v5669 = vpop.permute.xlu0 %5668
      %5670 = vrot.lane.b32.xlu0 %v5630, 64
      %v5671 = vpop.permute.xlu0 %5670
      %5672 = vrot.lane.b32.xlu0 %v5631, 64
      %v5673 = vpop.permute.xlu0 %5672
      %5674 = vrot.lane.b32.xlu0 %v5632, 64
      %v5675 = vpop.permute.xlu0 %5674
      %5676 = vrot.lane.b32.xlu0 %v5633, 64
      %v5677 = vpop.permute.xlu0 %5676
      %5678 = vrot.lane.b32.xlu0 %v5634, 64
      %v5679 = vpop.permute.xlu0 %5678
      %5680 = vrot.lane.b32.xlu0 %v5635, 64
      %v5681 = vpop.permute.xlu0 %5680
      %5682 = vrot.lane.b32.xlu0 %v5636, 64
      %v5683 = vpop.permute.xlu0 %5682
      %5684 = vrot.lane.b32.xlu0 %v5637, 64
      %v5685 = vpop.permute.xlu0 %5684
      %5686 = vrot.lane.b32.xlu0 %v5638, 64
      %v5687 = vpop.permute.xlu0 %5686
      %5688 = vrot.lane.b32.xlu0 %v5639, 64
      %v5689 = vpop.permute.xlu0 %5688
      %5690 = vrot.lane.b32.xlu0 %v5640, 64
      %v5691 = vpop.permute.xlu0 %5690
      %5692 = vrot.lane.b32.xlu0 %v5641, 64
      %v5693 = vpop.permute.xlu0 %5692
      %5694 = vrot.lane.b32.xlu0 %v5642, 64
      %v5695 = vpop.permute.xlu0 %5694
      %5696 = vrot.lane.b32.xlu0 %v5643, 64
      %v5697 = vpop.permute.xlu0 %5696
      %5698 = vrot.lane.b32.xlu0 %v5644, 64
      %v5699 = vpop.permute.xlu0 %5698
      %5700 = vrot.lane.b32.xlu0 %v5645, 64
      %v5701 = vpop.permute.xlu0 %5700
      %5702 = vrot.lane.b32.xlu0 %v5646, 64
      %v5703 = vpop.permute.xlu0 %5702
      %5704 = vrot.lane.b32.xlu0 %v5647, 64
      %v5705 = vpop.permute.xlu0 %5704
      %5706 = vrot.lane.b32.xlu0 %v5648, 64
      %v5707 = vpop.permute.xlu0 %5706
      %5708 = vrot.lane.b32.xlu0 %v5649, 64
      %v5709 = vpop.permute.xlu0 %5708
      %5710 = vrot.lane.b32.xlu0 %v5650, 64
      %v5711 = vpop.permute.xlu0 %5710
      %5712 = vrot.lane.b32.xlu0 %v5651, 64
      %v5713 = vpop.permute.xlu0 %5712
      %5714 = vrot.lane.b32.xlu0 %v5652, 64
      %v5715 = vpop.permute.xlu0 %5714
      %5716 = vrot.lane.b32.xlu0 %v5653, 64
      %v5717 = vpop.permute.xlu0 %5716
      %5750 = vst.msk [vmem:[#allocation5 + $0xc] sm:$0xf] %vm918, %v5655
      %5751 = vst.msk [vmem:[#allocation5 + $0x20] sm:$0xf] %vm918, %v5657
      %5752 = vst.msk [vmem:[#allocation5 + $0x34] sm:$0xf] %vm918, %v5659
      %5753 = vst.msk [vmem:[#allocation5 + $0x48] sm:$0xf] %vm918, %v5661
      %5754 = vst.msk [vmem:[#allocation5 + $0x5c] sm:$0xf] %vm918, %v5663
      %5755 = vst.msk [vmem:[#allocation5 + $0x70] sm:$0xf] %vm918, %v5665
      %5756 = vst.msk [vmem:[#allocation5 + $0x84] sm:$0xf] %vm918, %v5667
      %5757 = vst.msk [vmem:[#allocation5 + $0x98] sm:$0xf] %vm918, %v5669
      %5758 = vst.msk [vmem:[#allocation5 + $0xac] sm:$0xf] %vm918, %v5671
      %5759 = vst.msk [vmem:[#allocation5 + $0xc0] sm:$0xf] %vm918, %v5673
      %5760 = vst.msk [vmem:[#allocation5 + $0xd4] sm:$0xf] %vm918, %v5675
      %5761 = vst.msk [vmem:[#allocation5 + $0xe8] sm:$0xf] %vm918, %v5677
      %5762 = vst.msk [vmem:[#allocation5 + $0xfc] sm:$0xf] %vm918, %v5679
      %5763 = vst.msk [vmem:[#allocation5 + $0x110] sm:$0xf] %vm918, %v5681
      %5764 = vst.msk [vmem:[#allocation5 + $0x124] sm:$0xf] %vm918, %v5683
      %5765 = vst.msk [vmem:[#allocation5 + $0x138] sm:$0xf] %vm918, %v5685
      %5766 = vst.msk [vmem:[#allocation5 + $0x14c] sm:$0xf] %vm918, %v5687
      %5767 = vst.msk [vmem:[#allocation5 + $0x160] sm:$0xf] %vm918, %v5689
      %5768 = vst.msk [vmem:[#allocation5 + $0x174] sm:$0xf] %vm918, %v5691
      %5769 = vst.msk [vmem:[#allocation5 + $0x188] sm:$0xf] %vm918, %v5693
      %5770 = vst.msk [vmem:[#allocation5 + $0x19c] sm:$0xf] %vm918, %v5695
      %5771 = vst.msk [vmem:[#allocation5 + $0x1b0] sm:$0xf] %vm918, %v5697
      %5772 = vst.msk [vmem:[#allocation5 + $0x1c4] sm:$0xf] %vm918, %v5699
      %5773 = vst.msk [vmem:[#allocation5 + $0x1d8] sm:$0xf] %vm918, %v5701
      %5774 = vst.msk [vmem:[#allocation5 + $0x1ec] sm:$0xf] %vm918, %v5703
      %5775 = vst.msk [vmem:[#allocation5 + $0x200] sm:$0xf] %vm918, %v5705
      %5776 = vst.msk [vmem:[#allocation5 + $0x214] sm:$0xf] %vm918, %v5707
      %5777 = vst.msk [vmem:[#allocation5 + $0x228] sm:$0xf] %vm918, %v5709
      %5778 = vst.msk [vmem:[#allocation5 + $0x23c] sm:$0xf] %vm918, %v5711
      %5779 = vst.msk [vmem:[#allocation5 + $0x250] sm:$0xf] %vm918, %v5713
      %5780 = vst.msk [vmem:[#allocation5 + $0x264] sm:$0xf] %vm918, %v5715
      %5781 = vst.msk [vmem:[#allocation5 + $0x278] sm:$0xf] %vm918, %v5717
      %v5782 = vld [vmem:[%s5333 + $0x2] sm:$0xff]
      %v5783 = vld [vmem:[%s5333 + $0xa] sm:$0xff]
      %v5784 = vld [vmem:[%s5333 + $0x1a] sm:$0xff]
      %v5785 = vld [vmem:[%s5333 + $0x22] sm:$0xff]
      %v5786 = vld [vmem:[%s5333 + $0x32] sm:$0xff]
      %v5787 = vld [vmem:[%s5333 + $0x3a] sm:$0xff]
      %v5788 = vld [vmem:[%s5333 + $0x4a] sm:$0xff]
      %v5789 = vld [vmem:[%s5333 + $0x52] sm:$0xff]
      %v5790 = vld [vmem:[%s5333 + $0x62] sm:$0xff]
      %v5791 = vld [vmem:[%s5333 + $0x6a] sm:$0xff]
      %v5792 = vld [vmem:[%s5333 + $0x7a] sm:$0xff]
      %v5793 = vld [vmem:[%s5333 + $0x82] sm:$0xff]
      %v5794 = vld [vmem:[%s5333 + $0x92] sm:$0xff]
      %v5795 = vld [vmem:[%s5333 + $0x9a] sm:$0xff]
      %v5796 = vld [vmem:[%s5333 + $0xaa] sm:$0xff]
      %v5797 = vld [vmem:[%s5333 + $0xb2] sm:$0xff]
      %v5798 = vld [vmem:[%s5333 + $0xc2] sm:$0xff]
      %v5799 = vld [vmem:[%s5333 + $0xca] sm:$0xff]
      %v5800 = vld [vmem:[%s5333 + $0xda] sm:$0xff]
      %v5801 = vld [vmem:[%s5333 + $0xe2] sm:$0xff]
      %v5802 = vld [vmem:[%s5333 + $0xf2] sm:$0xff]
      %v5803 = vld [vmem:[%s5333 + $0xfa] sm:$0xff]
      %v5804 = vld [vmem:[%s5333 + $0x10a] sm:$0xff]
      %v5805 = vld [vmem:[%s5333 + $0x112] sm:$0xff]
      %v5806 = vld [vmem:[%s5333 + $0x122] sm:$0xff]
      %v5807 = vld [vmem:[%s5333 + $0x12a] sm:$0xff]
      %v5808 = vld [vmem:[%s5333 + $0x13a] sm:$0xff]
      %v5809 = vld [vmem:[%s5333 + $0x142] sm:$0xff]
      %v5810 = vld [vmem:[%s5333 + $0x152] sm:$0xff]
      %v5811 = vld [vmem:[%s5333 + $0x15a] sm:$0xff]
      %v5812 = vld [vmem:[%s5333 + $0x16a] sm:$0xff]
      %v5813 = vld [vmem:[%s5333 + $0x172] sm:$0xff]
      %v5814 = vpack.c.bf16 %v5783, %v5782
      %v5815 = vpack.c.bf16 %v5785, %v5784
      %v5816 = vpack.c.bf16 %v5787, %v5786
      %v5817 = vpack.c.bf16 %v5789, %v5788
      %v5818 = vpack.c.bf16 %v5791, %v5790
      %v5819 = vpack.c.bf16 %v5793, %v5792
      %v5820 = vpack.c.bf16 %v5795, %v5794
      %v5821 = vpack.c.bf16 %v5797, %v5796
      %v5822 = vpack.c.bf16 %v5799, %v5798
      %v5823 = vpack.c.bf16 %v5801, %v5800
      %v5824 = vpack.c.bf16 %v5803, %v5802
      %v5825 = vpack.c.bf16 %v5805, %v5804
      %v5826 = vpack.c.bf16 %v5807, %v5806
      %v5827 = vpack.c.bf16 %v5809, %v5808
      %v5828 = vpack.c.bf16 %v5811, %v5810
      %v5829 = vpack.c.bf16 %v5813, %v5812
      %v5846 = vunpack.c.l.b16 %v5814
      %v5847 = vunpack.c.h.b16 %v5814
      %v5848 = vunpack.c.l.b16 %v5815
      %v5849 = vunpack.c.h.b16 %v5815
      %v5850 = vunpack.c.l.b16 %v5816
      %v5851 = vunpack.c.h.b16 %v5816
      %v5852 = vunpack.c.l.b16 %v5817
      %v5853 = vunpack.c.h.b16 %v5817
      %v5854 = vunpack.c.l.b16 %v5818
      %v5855 = vunpack.c.h.b16 %v5818
      %v5856 = vunpack.c.l.b16 %v5819
      %v5857 = vunpack.c.h.b16 %v5819
      %v5858 = vunpack.c.l.b16 %v5820
      %v5859 = vunpack.c.h.b16 %v5820
      %v5860 = vunpack.c.l.b16 %v5821
      %v5861 = vunpack.c.h.b16 %v5821
      %v5862 = vunpack.c.l.b16 %v5822
      %v5863 = vunpack.c.h.b16 %v5822
      %v5864 = vunpack.c.l.b16 %v5823
      %v5865 = vunpack.c.h.b16 %v5823
      %v5866 = vunpack.c.l.b16 %v5824
      %v5867 = vunpack.c.h.b16 %v5824
      %v5868 = vunpack.c.l.b16 %v5825
      %v5869 = vunpack.c.h.b16 %v5825
      %v5870 = vunpack.c.l.b16 %v5826
      %v5871 = vunpack.c.h.b16 %v5826
      %v5872 = vunpack.c.l.b16 %v5827
      %v5873 = vunpack.c.h.b16 %v5827
      %v5874 = vunpack.c.l.b16 %v5828
      %v5875 = vunpack.c.h.b16 %v5828
      %v5876 = vunpack.c.l.b16 %v5829
      %v5877 = vunpack.c.h.b16 %v5829
      %v5878 = vpack.c.b16 %v5846, %v5846
      %v5879 = vpack.c.b16 %v5847, %v5847
      %v5880 = vpack.c.b16 %v5848, %v5848
      %v5881 = vpack.c.b16 %v5849, %v5849
      %v5882 = vpack.c.b16 %v5850, %v5850
      %v5883 = vpack.c.b16 %v5851, %v5851
      %v5884 = vpack.c.b16 %v5852, %v5852
      %v5885 = vpack.c.b16 %v5853, %v5853
      %v5886 = vpack.c.b16 %v5854, %v5854
      %v5887 = vpack.c.b16 %v5855, %v5855
      %v5888 = vpack.c.b16 %v5856, %v5856
      %v5889 = vpack.c.b16 %v5857, %v5857
      %v5890 = vpack.c.b16 %v5858, %v5858
      %v5891 = vpack.c.b16 %v5859, %v5859
      %v5892 = vpack.c.b16 %v5860, %v5860
      %v5893 = vpack.c.b16 %v5861, %v5861
      %v5894 = vpack.c.b16 %v5862, %v5862
      %v5895 = vpack.c.b16 %v5863, %v5863
      %v5896 = vpack.c.b16 %v5864, %v5864
      %v5897 = vpack.c.b16 %v5865, %v5865
      %v5898 = vpack.c.b16 %v5866, %v5866
      %v5899 = vpack.c.b16 %v5867, %v5867
      %v5900 = vpack.c.b16 %v5868, %v5868
      %v5901 = vpack.c.b16 %v5869, %v5869
      %v5902 = vpack.c.b16 %v5870, %v5870
      %v5903 = vpack.c.b16 %v5871, %v5871
      %v5904 = vpack.c.b16 %v5872, %v5872
      %v5905 = vpack.c.b16 %v5873, %v5873
      %v5906 = vpack.c.b16 %v5874, %v5874
      %v5907 = vpack.c.b16 %v5875, %v5875
      %v5908 = vpack.c.b16 %v5876, %v5876
      %v5909 = vpack.c.b16 %v5877, %v5877
      %5942 = vst.msk [vmem:[#allocation5 + $0x10] sm:$0xf] %vm661, %v5878
      %5943 = vst.msk [vmem:[#allocation5 + $0x24] sm:$0xf] %vm661, %v5879
      %5944 = vst.msk [vmem:[#allocation5 + $0x38] sm:$0xf] %vm661, %v5880
      %5945 = vst.msk [vmem:[#allocation5 + $0x4c] sm:$0xf] %vm661, %v5881
      %5946 = vst.msk [vmem:[#allocation5 + $0x60] sm:$0xf] %vm661, %v5882
      %5947 = vst.msk [vmem:[#allocation5 + $0x74] sm:$0xf] %vm661, %v5883
      %5948 = vst.msk [vmem:[#allocation5 + $0x88] sm:$0xf] %vm661, %v5884
      %5949 = vst.msk [vmem:[#allocation5 + $0x9c] sm:$0xf] %vm661, %v5885
      %5950 = vst.msk [vmem:[#allocation5 + $0xb0] sm:$0xf] %vm661, %v5886
      %5951 = vst.msk [vmem:[#allocation5 + $0xc4] sm:$0xf] %vm661, %v5887
      %5952 = vst.msk [vmem:[#allocation5 + $0xd8] sm:$0xf] %vm661, %v5888
      %5953 = vst.msk [vmem:[#allocation5 + $0xec] sm:$0xf] %vm661, %v5889
      %5954 = vst.msk [vmem:[#allocation5 + $0x100] sm:$0xf] %vm661, %v5890
      %5955 = vst.msk [vmem:[#allocation5 + $0x114] sm:$0xf] %vm661, %v5891
      %5956 = vst.msk [vmem:[#allocation5 + $0x128] sm:$0xf] %vm661, %v5892
      %5957 = vst.msk [vmem:[#allocation5 + $0x13c] sm:$0xf] %vm661, %v5893
      %5958 = vst.msk [vmem:[#allocation5 + $0x150] sm:$0xf] %vm661, %v5894
      %5959 = vst.msk [vmem:[#allocation5 + $0x164] sm:$0xf] %vm661, %v5895
      %5960 = vst.msk [vmem:[#allocation5 + $0x178] sm:$0xf] %vm661, %v5896
      %5961 = vst.msk [vmem:[#allocation5 + $0x18c] sm:$0xf] %vm661, %v5897
      %5962 = vst.msk [vmem:[#allocation5 + $0x1a0] sm:$0xf] %vm661, %v5898
      %5963 = vst.msk [vmem:[#allocation5 + $0x1b4] sm:$0xf] %vm661, %v5899
      %5964 = vst.msk [vmem:[#allocation5 + $0x1c8] sm:$0xf] %vm661, %v5900
      %5965 = vst.msk [vmem:[#allocation5 + $0x1dc] sm:$0xf] %vm661, %v5901
      %5966 = vst.msk [vmem:[#allocation5 + $0x1f0] sm:$0xf] %vm661, %v5902
      %5967 = vst.msk [vmem:[#allocation5 + $0x204] sm:$0xf] %vm661, %v5903
      %5968 = vst.msk [vmem:[#allocation5 + $0x218] sm:$0xf] %vm661, %v5904
      %5969 = vst.msk [vmem:[#allocation5 + $0x22c] sm:$0xf] %vm661, %v5905
      %5970 = vst.msk [vmem:[#allocation5 + $0x240] sm:$0xf] %vm661, %v5906
      %5971 = vst.msk [vmem:[#allocation5 + $0x254] sm:$0xf] %vm661, %v5907
      %5972 = vst.msk [vmem:[#allocation5 + $0x268] sm:$0xf] %vm661, %v5908
      %5973 = vst.msk [vmem:[#allocation5 + $0x27c] sm:$0xf] %vm661, %v5909
      %v5974 = vld [vmem:[#allocation5] sm:$0xff]
      %v5975 = vld [vmem:[#allocation5 + $0x8] sm:$0xff]
      %v5976 = vld [vmem:[#allocation5 + $0x10] sm:$0xf]
      %v5977 = vld [vmem:[#allocation5 + $0x14] sm:$0xff]
      %v5978 = vld [vmem:[#allocation5 + $0x1c] sm:$0xff]
      %v5979 = vld [vmem:[#allocation5 + $0x24] sm:$0xf]
      %v5980 = vld [vmem:[#allocation5 + $0x28] sm:$0xff]
      %v5981 = vld [vmem:[#allocation5 + $0x30] sm:$0xff]
      %v5982 = vld [vmem:[#allocation5 + $0x38] sm:$0xf]
      %v5983 = vld [vmem:[#allocation5 + $0x3c] sm:$0xff]
      %v5984 = vld [vmem:[#allocation5 + $0x44] sm:$0xff]
      %v5985 = vld [vmem:[#allocation5 + $0x4c] sm:$0xf]
      %v5986 = vld [vmem:[#allocation5 + $0x50] sm:$0xff]
      %v5987 = vld [vmem:[#allocation5 + $0x58] sm:$0xff]
      %v5988 = vld [vmem:[#allocation5 + $0x60] sm:$0xf]
      %v5989 = vld [vmem:[#allocation5 + $0x64] sm:$0xff]
      %v5990 = vld [vmem:[#allocation5 + $0x6c] sm:$0xff]
      %v5991 = vld [vmem:[#allocation5 + $0x74] sm:$0xf]
      %v5992 = vld [vmem:[#allocation5 + $0x78] sm:$0xff]
      %v5993 = vld [vmem:[#allocation5 + $0x80] sm:$0xff]
      %v5994 = vld [vmem:[#allocation5 + $0x88] sm:$0xf]
      %v5995 = vld [vmem:[#allocation5 + $0x8c] sm:$0xff]
      %v5996 = vld [vmem:[#allocation5 + $0x94] sm:$0xff]
      %v5997 = vld [vmem:[#allocation5 + $0x9c] sm:$0xf]
      %v5998 = vld [vmem:[#allocation5 + $0xa0] sm:$0xff]
      %v5999 = vld [vmem:[#allocation5 + $0xa8] sm:$0xff]
      %v6000 = vld [vmem:[#allocation5 + $0xb0] sm:$0xf]
      %v6001 = vld [vmem:[#allocation5 + $0xb4] sm:$0xff]
      %v6002 = vld [vmem:[#allocation5 + $0xbc] sm:$0xff]
      %v6003 = vld [vmem:[#allocation5 + $0xc4] sm:$0xf]
      %v6004 = vld [vmem:[#allocation5 + $0xc8] sm:$0xff]
      %v6005 = vld [vmem:[#allocation5 + $0xd0] sm:$0xff]
      %v6006 = vld [vmem:[#allocation5 + $0xd8] sm:$0xf]
      %v6007 = vld [vmem:[#allocation5 + $0xdc] sm:$0xff]
      %v6008 = vld [vmem:[#allocation5 + $0xe4] sm:$0xff]
      %v6009 = vld [vmem:[#allocation5 + $0xec] sm:$0xf]
      %v6010 = vld [vmem:[#allocation5 + $0xf0] sm:$0xff]
      %v6011 = vld [vmem:[#allocation5 + $0xf8] sm:$0xff]
      %v6012 = vld [vmem:[#allocation5 + $0x100] sm:$0xf]
      %v6013 = vld [vmem:[#allocation5 + $0x104] sm:$0xff]
      %v6014 = vld [vmem:[#allocation5 + $0x10c] sm:$0xff]
      %v6015 = vld [vmem:[#allocation5 + $0x114] sm:$0xf]
      %v6016 = vld [vmem:[#allocation5 + $0x118] sm:$0xff]
      %v6017 = vld [vmem:[#allocation5 + $0x120] sm:$0xff]
      %v6018 = vld [vmem:[#allocation5 + $0x128] sm:$0xf]
      %v6019 = vld [vmem:[#allocation5 + $0x12c] sm:$0xff]
      %v6020 = vld [vmem:[#allocation5 + $0x134] sm:$0xff]
      %v6021 = vld [vmem:[#allocation5 + $0x13c] sm:$0xf]
      %v6022 = vld [vmem:[#allocation5 + $0x140] sm:$0xff]
      %v6023 = vld [vmem:[#allocation5 + $0x148] sm:$0xff]
      %v6024 = vld [vmem:[#allocation5 + $0x150] sm:$0xf]
      %v6025 = vld [vmem:[#allocation5 + $0x154] sm:$0xff]
      %v6026 = vld [vmem:[#allocation5 + $0x15c] sm:$0xff]
      %v6027 = vld [vmem:[#allocation5 + $0x164] sm:$0xf]
      %v6028 = vld [vmem:[#allocation5 + $0x168] sm:$0xff]
      %v6029 = vld [vmem:[#allocation5 + $0x170] sm:$0xff]
      %v6030 = vld [vmem:[#allocation5 + $0x178] sm:$0xf]
      %v6031 = vld [vmem:[#allocation5 + $0x17c] sm:$0xff]
      %v6032 = vld [vmem:[#allocation5 + $0x184] sm:$0xff]
      %v6033 = vld [vmem:[#allocation5 + $0x18c] sm:$0xf]
      %v6034 = vld [vmem:[#allocation5 + $0x190] sm:$0xff]
      %v6035 = vld [vmem:[#allocation5 + $0x198] sm:$0xff]
      %v6036 = vld [vmem:[#allocation5 + $0x1a0] sm:$0xf]
      %v6037 = vld [vmem:[#allocation5 + $0x1a4] sm:$0xff]
      %v6038 = vld [vmem:[#allocation5 + $0x1ac] sm:$0xff]
      %v6039 = vld [vmem:[#allocation5 + $0x1b4] sm:$0xf]
      %v6040 = vld [vmem:[#allocation5 + $0x1b8] sm:$0xff]
      %v6041 = vld [vmem:[#allocation5 + $0x1c0] sm:$0xff]
      %v6042 = vld [vmem:[#allocation5 + $0x1c8] sm:$0xf]
      %v6043 = vld [vmem:[#allocation5 + $0x1cc] sm:$0xff]
      %v6044 = vld [vmem:[#allocation5 + $0x1d4] sm:$0xff]
      %v6045 = vld [vmem:[#allocation5 + $0x1dc] sm:$0xf]
      %v6046 = vld [vmem:[#allocation5 + $0x1e0] sm:$0xff]
      %v6047 = vld [vmem:[#allocation5 + $0x1e8] sm:$0xff]
      %v6048 = vld [vmem:[#allocation5 + $0x1f0] sm:$0xf]
      %v6049 = vld [vmem:[#allocation5 + $0x1f4] sm:$0xff]
      %v6050 = vld [vmem:[#allocation5 + $0x1fc] sm:$0xff]
      %v6051 = vld [vmem:[#allocation5 + $0x204] sm:$0xf]
      %v6052 = vld [vmem:[#allocation5 + $0x208] sm:$0xff]
      %v6053 = vld [vmem:[#allocation5 + $0x210] sm:$0xff]
      %v6054 = vld [vmem:[#allocation5 + $0x218] sm:$0xf]
      %v6055 = vld [vmem:[#allocation5 + $0x21c] sm:$0xff]
      %v6056 = vld [vmem:[#allocation5 + $0x224] sm:$0xff]
      %v6057 = vld [vmem:[#allocation5 + $0x22c] sm:$0xf]
      %v6058 = vld [vmem:[#allocation5 + $0x230] sm:$0xff]
      %v6059 = vld [vmem:[#allocation5 + $0x238] sm:$0xff]
      %v6060 = vld [vmem:[#allocation5 + $0x240] sm:$0xf]
      %v6061 = vld [vmem:[#allocation5 + $0x244] sm:$0xff]
      %v6062 = vld [vmem:[#allocation5 + $0x24c] sm:$0xff]
      %v6063 = vld [vmem:[#allocation5 + $0x254] sm:$0xf]
      %v6064 = vld [vmem:[#allocation5 + $0x258] sm:$0xff]
      %v6065 = vld [vmem:[#allocation5 + $0x260] sm:$0xff]
      %v6066 = vld [vmem:[#allocation5 + $0x268] sm:$0xf]
      %v6067 = vld [vmem:[#allocation5 + $0x26c] sm:$0xff]
      %v6068 = vld [vmem:[#allocation5 + $0x274] sm:$0xff]
      %v6069 = vld [vmem:[#allocation5 + $0x27c] sm:$0xf]
      %v6070 = vld [vmem:[%s6] sm:$0xf]
      %v6071 = vld [vmem:[%s6 + $0x4] sm:$0xf]
      %v6072 = vld [vmem:[%s6 + $0x8] sm:$0xf]
      %v6073 = vld [vmem:[%s6 + $0xc] sm:$0xf]
      %v6074 = vld [vmem:[%s6 + $0x10] sm:$0xf]
      %v6075 = vld [vmem:[%s6 + $0x14] sm:$0xf]
      %v6076 = vld [vmem:[%s6 + $0x18] sm:$0xf]
      %v6077 = vld [vmem:[%s6 + $0x1c] sm:$0xf]
      %v6078 = vld [vmem:[%s6 + $0x20] sm:$0xf]
      %v6079 = vld [vmem:[%s6 + $0x24] sm:$0xf]
      %v6080 = vld [vmem:[%s6 + $0x28] sm:$0xf]
      %v6081 = vld [vmem:[%s6 + $0x2c] sm:$0xf]
      %v6082 = vld [vmem:[%s6 + $0x30] sm:$0xf]
      %v6083 = vld [vmem:[%s6 + $0x34] sm:$0xf]
      %v6084 = vld [vmem:[%s6 + $0x38] sm:$0xf]
      %v6085 = vld [vmem:[%s6 + $0x3c] sm:$0xf]
      %v6086 = vld [vmem:[%s6 + $0x40] sm:$0xf]
      %v6087 = vld [vmem:[%s6 + $0x44] sm:$0xf]
      %v6088 = vld [vmem:[%s6 + $0x48] sm:$0xf]
      %v6089 = vld [vmem:[%s6 + $0x4c] sm:$0xf]
      %v6090 = vld [vmem:[%s6 + $0x50] sm:$0xf]
      %v6091 = vld [vmem:[%s6 + $0x54] sm:$0xf]
      %v6092 = vld [vmem:[%s6 + $0x58] sm:$0xf]
      %v6093 = vld [vmem:[%s6 + $0x5c] sm:$0xf]
      %v6094 = vld [vmem:[%s6 + $0x60] sm:$0xf]
      %v6095 = vld [vmem:[%s6 + $0x64] sm:$0xf]
      %v6096 = vld [vmem:[%s6 + $0x68] sm:$0xf]
      %v6097 = vld [vmem:[%s6 + $0x6c] sm:$0xf]
      %v6098 = vld [vmem:[%s6 + $0x70] sm:$0xf]
      %v6099 = vld [vmem:[%s6 + $0x74] sm:$0xf]
      %v6100 = vld [vmem:[%s6 + $0x78] sm:$0xf]
      %v6101 = vld [vmem:[%s6 + $0x7c] sm:$0xf]
      %v6102 = vld [vmem:[%s6 + $0x80] sm:$0xf]
      %v6103 = vld [vmem:[%s6 + $0x84] sm:$0xf]
      %v6104 = vld [vmem:[%s6 + $0x88] sm:$0xf]
      %v6105 = vld [vmem:[%s6 + $0x8c] sm:$0xf]
      %v6106 = vld [vmem:[%s6 + $0x90] sm:$0xf]
      %v6107 = vld [vmem:[%s6 + $0x94] sm:$0xf]
      %v6108 = vld [vmem:[%s6 + $0x98] sm:$0xf]
      %v6109 = vld [vmem:[%s6 + $0x9c] sm:$0xf]
      %v6110 = vld [vmem:[%s6 + $0xa0] sm:$0xf]
      %v6111 = vld [vmem:[%s6 + $0xa4] sm:$0xf]
      %v6112 = vld [vmem:[%s6 + $0xa8] sm:$0xf]
      %v6113 = vld [vmem:[%s6 + $0xac] sm:$0xf]
      %v6114 = vld [vmem:[%s6 + $0xb0] sm:$0xf]
      %v6115 = vld [vmem:[%s6 + $0xb4] sm:$0xf]
      %v6116 = vld [vmem:[%s6 + $0xb8] sm:$0xf]
      %v6117 = vld [vmem:[%s6 + $0xbc] sm:$0xf]
      %v6118 = vld [vmem:[%s6 + $0xc0] sm:$0xf]
      %v6119 = vld [vmem:[%s6 + $0xc4] sm:$0xf]
      %v6120 = vld [vmem:[%s6 + $0xc8] sm:$0xf]
      %v6121 = vld [vmem:[%s6 + $0xcc] sm:$0xf]
      %v6122 = vld [vmem:[%s6 + $0xd0] sm:$0xf]
      %v6123 = vld [vmem:[%s6 + $0xd4] sm:$0xf]
      %v6124 = vld [vmem:[%s6 + $0xd8] sm:$0xf]
      %v6125 = vld [vmem:[%s6 + $0xdc] sm:$0xf]
      %v6126 = vld [vmem:[%s6 + $0xe0] sm:$0xf]
      %v6127 = vld [vmem:[%s6 + $0xe4] sm:$0xf]
      %v6128 = vld [vmem:[%s6 + $0xe8] sm:$0xf]
      %v6129 = vld [vmem:[%s6 + $0xec] sm:$0xf]
      %v6130 = vld [vmem:[%s6 + $0xf0] sm:$0xf]
      %v6131 = vld [vmem:[%s6 + $0xf4] sm:$0xf]
      %v6132 = vld [vmem:[%s6 + $0xf8] sm:$0xf]
      %v6133 = vld [vmem:[%s6 + $0xfc] sm:$0xf]
      %v6134 = vld [vmem:[%s6 + $0x100] sm:$0xf]
      %v6135 = vld [vmem:[%s6 + $0x104] sm:$0xf]
      %v6136 = vld [vmem:[%s6 + $0x108] sm:$0xf]
      %v6137 = vld [vmem:[%s6 + $0x10c] sm:$0xf]
      %v6138 = vld [vmem:[%s6 + $0x110] sm:$0xf]
      %v6139 = vld [vmem:[%s6 + $0x114] sm:$0xf]
      %v6140 = vld [vmem:[%s6 + $0x118] sm:$0xf]
      %v6141 = vld [vmem:[%s6 + $0x11c] sm:$0xf]
      %v6142 = vld [vmem:[%s273] sm:$0xff]
      %v6143 = vld [vmem:[%s273 + $0x8] sm:$0xff]
      %v6144 = vld [vmem:[%s273 + $0x10] sm:$0xff]
      %v6145 = vld [vmem:[%s273 + $0x18] sm:$0xff]
      %v6146 = vld [vmem:[%s273 + $0x20] sm:$0xff]
      %v6147 = vld [vmem:[%s273 + $0x28] sm:$0xff]
      %v6148 = vld [vmem:[%s273 + $0x30] sm:$0xff]
      %v6149 = vld [vmem:[%s273 + $0x38] sm:$0xff]
      %v6150 = vld [vmem:[%s273 + $0x40] sm:$0xff]
      %v6151 = vld [vmem:[%s273 + $0x48] sm:$0xff]
      %v6152 = vld [vmem:[%s273 + $0x50] sm:$0xff]
      %v6153 = vld [vmem:[%s273 + $0x58] sm:$0xff]
      %v6154 = vld [vmem:[%s273 + $0x60] sm:$0xff]
      %v6155 = vld [vmem:[%s273 + $0x68] sm:$0xff]
      %v6156 = vld [vmem:[%s273 + $0x70] sm:$0xff]
      %v6157 = vld [vmem:[%s273 + $0x78] sm:$0xff]
      %v6158 = vld [vmem:[%s273 + $0x80] sm:$0xff]
      %v6159 = vld [vmem:[%s273 + $0x88] sm:$0xff]
      %v6160 = vld [vmem:[%s273 + $0x90] sm:$0xff]
      %v6161 = vld [vmem:[%s273 + $0x98] sm:$0xff]
      %v6162 = vld [vmem:[%s273 + $0xa0] sm:$0xff]
      %v6163 = vld [vmem:[%s273 + $0xa8] sm:$0xff]
      %v6164 = vld [vmem:[%s273 + $0xb0] sm:$0xff]
      %v6165 = vld [vmem:[%s273 + $0xb8] sm:$0xff]
      %v6166 = vld [vmem:[%s273 + $0xc0] sm:$0xff]
      %v6167 = vld [vmem:[%s273 + $0xc8] sm:$0xff]
      %v6168 = vld [vmem:[%s273 + $0xd0] sm:$0xff]
      %v6169 = vld [vmem:[%s273 + $0xd8] sm:$0xff]
      %v6170 = vld [vmem:[%s273 + $0xe0] sm:$0xff]
      %v6171 = vld [vmem:[%s273 + $0xe8] sm:$0xff]
      %v6172 = vld [vmem:[%s273 + $0xf0] sm:$0xff]
      %v6173 = vld [vmem:[%s273 + $0xf8] sm:$0xff]
      %v6270 = vunpack.c.l.b16 %v5974
      %v6271 = vunpack.c.h.b16 %v5974
      %v6272 = vunpack.c.l.b16 %v5975
      %v6273 = vunpack.c.h.b16 %v5975
      %v6274 = vunpack.c.l.b16 %v5976
      %v6275 = vunpack.c.l.b16 %v5977
      %v6276 = vunpack.c.h.b16 %v5977
      %v6277 = vunpack.c.l.b16 %v5978
      %v6278 = vunpack.c.h.b16 %v5978
      %v6279 = vunpack.c.l.b16 %v5979
      %v6280 = vunpack.c.l.b16 %v5980
      %v6281 = vunpack.c.h.b16 %v5980
      %v6282 = vunpack.c.l.b16 %v5981
      %v6283 = vunpack.c.h.b16 %v5981
      %v6284 = vunpack.c.l.b16 %v5982
      %v6285 = vunpack.c.l.b16 %v5983
      %v6286 = vunpack.c.h.b16 %v5983
      %v6287 = vunpack.c.l.b16 %v5984
      %v6288 = vunpack.c.h.b16 %v5984
      %v6289 = vunpack.c.l.b16 %v5985
      %v6290 = vunpack.c.l.b16 %v5986
      %v6291 = vunpack.c.h.b16 %v5986
      %v6292 = vunpack.c.l.b16 %v5987
      %v6293 = vunpack.c.h.b16 %v5987
      %v6294 = vunpack.c.l.b16 %v5988
      %v6295 = vunpack.c.l.b16 %v5989
      %v6296 = vunpack.c.h.b16 %v5989
      %v6297 = vunpack.c.l.b16 %v5990
      %v6298 = vunpack.c.h.b16 %v5990
      %v6299 = vunpack.c.l.b16 %v5991
      %v6300 = vunpack.c.l.b16 %v5992
      %v6301 = vunpack.c.h.b16 %v5992
      %v6302 = vunpack.c.l.b16 %v5993
      %v6303 = vunpack.c.h.b16 %v5993
      %v6304 = vunpack.c.l.b16 %v5994
      %v6305 = vunpack.c.l.b16 %v5995
      %v6306 = vunpack.c.h.b16 %v5995
      %v6307 = vunpack.c.l.b16 %v5996
      %v6308 = vunpack.c.h.b16 %v5996
      %v6309 = vunpack.c.l.b16 %v5997
      %v6310 = vunpack.c.l.b16 %v5998
      %v6311 = vunpack.c.h.b16 %v5998
      %v6312 = vunpack.c.l.b16 %v5999
      %v6313 = vunpack.c.h.b16 %v5999
      %v6314 = vunpack.c.l.b16 %v6000
      %v6315 = vunpack.c.l.b16 %v6001
      %v6316 = vunpack.c.h.b16 %v6001
      %v6317 = vunpack.c.l.b16 %v6002
      %v6318 = vunpack.c.h.b16 %v6002
      %v6319 = vunpack.c.l.b16 %v6003
      %v6320 = vunpack.c.l.b16 %v6004
      %v6321 = vunpack.c.h.b16 %v6004
      %v6322 = vunpack.c.l.b16 %v6005
      %v6323 = vunpack.c.h.b16 %v6005
      %v6324 = vunpack.c.l.b16 %v6006
      %v6325 = vunpack.c.l.b16 %v6007
      %v6326 = vunpack.c.h.b16 %v6007
      %v6327 = vunpack.c.l.b16 %v6008
      %v6328 = vunpack.c.h.b16 %v6008
      %v6329 = vunpack.c.l.b16 %v6009
      %v6330 = vunpack.c.l.b16 %v6010
      %v6331 = vunpack.c.h.b16 %v6010
      %v6332 = vunpack.c.l.b16 %v6011
      %v6333 = vunpack.c.h.b16 %v6011
      %v6334 = vunpack.c.l.b16 %v6012
      %v6335 = vunpack.c.l.b16 %v6013
      %v6336 = vunpack.c.h.b16 %v6013
      %v6337 = vunpack.c.l.b16 %v6014
      %v6338 = vunpack.c.h.b16 %v6014
      %v6339 = vunpack.c.l.b16 %v6015
      %v6340 = vunpack.c.l.b16 %v6016
      %v6341 = vunpack.c.h.b16 %v6016
      %v6342 = vunpack.c.l.b16 %v6017
      %v6343 = vunpack.c.h.b16 %v6017
      %v6344 = vunpack.c.l.b16 %v6018
      %v6345 = vunpack.c.l.b16 %v6019
      %v6346 = vunpack.c.h.b16 %v6019
      %v6347 = vunpack.c.l.b16 %v6020
      %v6348 = vunpack.c.h.b16 %v6020
      %v6349 = vunpack.c.l.b16 %v6021
      %v6350 = vunpack.c.l.b16 %v6022
      %v6351 = vunpack.c.h.b16 %v6022
      %v6352 = vunpack.c.l.b16 %v6023
      %v6353 = vunpack.c.h.b16 %v6023
      %v6354 = vunpack.c.l.b16 %v6024
      %v6355 = vunpack.c.l.b16 %v6025
      %v6356 = vunpack.c.h.b16 %v6025
      %v6357 = vunpack.c.l.b16 %v6026
      %v6358 = vunpack.c.h.b16 %v6026
      %v6359 = vunpack.c.l.b16 %v6027
      %v6360 = vunpack.c.l.b16 %v6028
      %v6361 = vunpack.c.h.b16 %v6028
      %v6362 = vunpack.c.l.b16 %v6029
      %v6363 = vunpack.c.h.b16 %v6029
      %v6364 = vunpack.c.l.b16 %v6030
      %v6365 = vunpack.c.l.b16 %v6031
      %v6366 = vunpack.c.h.b16 %v6031
      %v6367 = vunpack.c.l.b16 %v6032
      %v6368 = vunpack.c.h.b16 %v6032
      %v6369 = vunpack.c.l.b16 %v6033
      %v6370 = vunpack.c.l.b16 %v6034
      %v6371 = vunpack.c.h.b16 %v6034
      %v6372 = vunpack.c.l.b16 %v6035
      %v6373 = vunpack.c.h.b16 %v6035
      %v6374 = vunpack.c.l.b16 %v6036
      %v6375 = vunpack.c.l.b16 %v6037
      %v6376 = vunpack.c.h.b16 %v6037
      %v6377 = vunpack.c.l.b16 %v6038
      %v6378 = vunpack.c.h.b16 %v6038
      %v6379 = vunpack.c.l.b16 %v6039
      %v6380 = vunpack.c.l.b16 %v6040
      %v6381 = vunpack.c.h.b16 %v6040
      %v6382 = vunpack.c.l.b16 %v6041
      %v6383 = vunpack.c.h.b16 %v6041
      %v6384 = vunpack.c.l.b16 %v6042
      %v6385 = vunpack.c.l.b16 %v6043
      %v6386 = vunpack.c.h.b16 %v6043
      %v6387 = vunpack.c.l.b16 %v6044
      %v6388 = vunpack.c.h.b16 %v6044
      %v6389 = vunpack.c.l.b16 %v6045
      %v6390 = vunpack.c.l.b16 %v6046
      %v6391 = vunpack.c.h.b16 %v6046
      %v6392 = vunpack.c.l.b16 %v6047
      %v6393 = vunpack.c.h.b16 %v6047
      %v6394 = vunpack.c.l.b16 %v6048
      %v6395 = vunpack.c.l.b16 %v6049
      %v6396 = vunpack.c.h.b16 %v6049
      %v6397 = vunpack.c.l.b16 %v6050
      %v6398 = vunpack.c.h.b16 %v6050
      %v6399 = vunpack.c.l.b16 %v6051
      %v6400 = vunpack.c.l.b16 %v6052
      %v6401 = vunpack.c.h.b16 %v6052
      %v6402 = vunpack.c.l.b16 %v6053
      %v6403 = vunpack.c.h.b16 %v6053
      %v6404 = vunpack.c.l.b16 %v6054
      %v6405 = vunpack.c.l.b16 %v6055
      %v6406 = vunpack.c.h.b16 %v6055
      %v6407 = vunpack.c.l.b16 %v6056
      %v6408 = vunpack.c.h.b16 %v6056
      %v6409 = vunpack.c.l.b16 %v6057
      %v6410 = vunpack.c.l.b16 %v6058
      %v6411 = vunpack.c.h.b16 %v6058
      %v6412 = vunpack.c.l.b16 %v6059
      %v6413 = vunpack.c.h.b16 %v6059
      %v6414 = vunpack.c.l.b16 %v6060
      %v6415 = vunpack.c.l.b16 %v6061
      %v6416 = vunpack.c.h.b16 %v6061
      %v6417 = vunpack.c.l.b16 %v6062
      %v6418 = vunpack.c.h.b16 %v6062
      %v6419 = vunpack.c.l.b16 %v6063
      %v6420 = vunpack.c.l.b16 %v6064
      %v6421 = vunpack.c.h.b16 %v6064
      %v6422 = vunpack.c.l.b16 %v6065
      %v6423 = vunpack.c.h.b16 %v6065
      %v6424 = vunpack.c.l.b16 %v6066
      %v6425 = vunpack.c.l.b16 %v6067
      %v6426 = vunpack.c.h.b16 %v6067
      %v6427 = vunpack.c.l.b16 %v6068
      %v6428 = vunpack.c.h.b16 %v6068
      %v6429 = vunpack.c.l.b16 %v6069
      %v6430 = vpack.c.b16 %v6275, %v6270
      %v6431 = vpack.c.b16 %v6276, %v6271
      %v6432 = vpack.c.b16 %v6277, %v6272
      %v6433 = vpack.c.b16 %v6278, %v6273
      %v6434 = vpack.c.b16 %v6279, %v6274
      %v6435 = vpack.c.b16 %v6285, %v6280
      %v6436 = vpack.c.b16 %v6286, %v6281
      %v6437 = vpack.c.b16 %v6287, %v6282
      %v6438 = vpack.c.b16 %v6288, %v6283
      %v6439 = vpack.c.b16 %v6289, %v6284
      %v6440 = vpack.c.b16 %v6295, %v6290
      %v6441 = vpack.c.b16 %v6296, %v6291
      %v6442 = vpack.c.b16 %v6297, %v6292
      %v6443 = vpack.c.b16 %v6298, %v6293
      %v6444 = vpack.c.b16 %v6299, %v6294
      %v6445 = vpack.c.b16 %v6305, %v6300
      %v6446 = vpack.c.b16 %v6306, %v6301
      %v6447 = vpack.c.b16 %v6307, %v6302
      %v6448 = vpack.c.b16 %v6308, %v6303
      %v6449 = vpack.c.b16 %v6309, %v6304
      %v6450 = vpack.c.b16 %v6315, %v6310
      %v6451 = vpack.c.b16 %v6316, %v6311
      %v6452 = vpack.c.b16 %v6317, %v6312
      %v6453 = vpack.c.b16 %v6318, %v6313
      %v6454 = vpack.c.b16 %v6319, %v6314
      %v6455 = vpack.c.b16 %v6325, %v6320
      %v6456 = vpack.c.b16 %v6326, %v6321
      %v6457 = vpack.c.b16 %v6327, %v6322
      %v6458 = vpack.c.b16 %v6328, %v6323
      %v6459 = vpack.c.b16 %v6329, %v6324
      %v6460 = vpack.c.b16 %v6335, %v6330
      %v6461 = vpack.c.b16 %v6336, %v6331
      %v6462 = vpack.c.b16 %v6337, %v6332
      %v6463 = vpack.c.b16 %v6338, %v6333
      %v6464 = vpack.c.b16 %v6339, %v6334
      %v6465 = vpack.c.b16 %v6345, %v6340
      %v6466 = vpack.c.b16 %v6346, %v6341
      %v6467 = vpack.c.b16 %v6347, %v6342
      %v6468 = vpack.c.b16 %v6348, %v6343
      %v6469 = vpack.c.b16 %v6349, %v6344
      %v6470 = vpack.c.b16 %v6355, %v6350
      %v6471 = vpack.c.b16 %v6356, %v6351
      %v6472 = vpack.c.b16 %v6357, %v6352
      %v6473 = vpack.c.b16 %v6358, %v6353
      %v6474 = vpack.c.b16 %v6359, %v6354
      %v6475 = vpack.c.b16 %v6365, %v6360
      %v6476 = vpack.c.b16 %v6366, %v6361
      %v6477 = vpack.c.b16 %v6367, %v6362
      %v6478 = vpack.c.b16 %v6368, %v6363
      %v6479 = vpack.c.b16 %v6369, %v6364
      %v6480 = vpack.c.b16 %v6375, %v6370
      %v6481 = vpack.c.b16 %v6376, %v6371
      %v6482 = vpack.c.b16 %v6377, %v6372
      %v6483 = vpack.c.b16 %v6378, %v6373
      %v6484 = vpack.c.b16 %v6379, %v6374
      %v6485 = vpack.c.b16 %v6385, %v6380
      %v6486 = vpack.c.b16 %v6386, %v6381
      %v6487 = vpack.c.b16 %v6387, %v6382
      %v6488 = vpack.c.b16 %v6388, %v6383
      %v6489 = vpack.c.b16 %v6389, %v6384
      %v6490 = vpack.c.b16 %v6395, %v6390
      %v6491 = vpack.c.b16 %v6396, %v6391
      %v6492 = vpack.c.b16 %v6397, %v6392
      %v6493 = vpack.c.b16 %v6398, %v6393
      %v6494 = vpack.c.b16 %v6399, %v6394
      %v6495 = vpack.c.b16 %v6405, %v6400
      %v6496 = vpack.c.b16 %v6406, %v6401
      %v6497 = vpack.c.b16 %v6407, %v6402
      %v6498 = vpack.c.b16 %v6408, %v6403
      %v6499 = vpack.c.b16 %v6409, %v6404
      %v6500 = vpack.c.b16 %v6415, %v6410
      %v6501 = vpack.c.b16 %v6416, %v6411
      %v6502 = vpack.c.b16 %v6417, %v6412
      %v6503 = vpack.c.b16 %v6418, %v6413
      %v6504 = vpack.c.b16 %v6419, %v6414
      %v6505 = vpack.c.b16 %v6425, %v6420
      %v6506 = vpack.c.b16 %v6426, %v6421
      %v6507 = vpack.c.b16 %v6427, %v6422
      %v6508 = vpack.c.b16 %v6428, %v6423
      %v6509 = vpack.c.b16 %v6429, %v6424
      %v6646 = vunpack.c.l.b16 %v6070
      %v6647 = vunpack.c.l.b16 %v6071
      %v6648 = vunpack.c.l.b16 %v6072
      %v6649 = vunpack.c.l.b16 %v6073
      %v6650 = vunpack.c.l.b16 %v6074
      %v6651 = vunpack.c.l.b16 %v6075
      %v6652 = vunpack.c.l.b16 %v6076
      %v6653 = vunpack.c.l.b16 %v6077
      %v6654 = vunpack.c.l.b16 %v6078
      %v6655 = vunpack.c.l.b16 %v6079
      %v6656 = vunpack.c.l.b16 %v6080
      %v6657 = vunpack.c.l.b16 %v6081
      %v6658 = vunpack.c.l.b16 %v6082
      %v6659 = vunpack.c.l.b16 %v6083
      %v6660 = vunpack.c.l.b16 %v6084
      %v6661 = vunpack.c.l.b16 %v6085
      %v6662 = vunpack.c.l.b16 %v6086
      %v6663 = vunpack.c.l.b16 %v6087
      %v6664 = vunpack.c.l.b16 %v6088
      %v6665 = vunpack.c.l.b16 %v6089
      %v6666 = vunpack.c.l.b16 %v6090
      %v6667 = vunpack.c.l.b16 %v6091
      %v6668 = vunpack.c.l.b16 %v6092
      %v6669 = vunpack.c.l.b16 %v6093
      %v6670 = vunpack.c.l.b16 %v6094
      %v6671 = vunpack.c.l.b16 %v6095
      %v6672 = vunpack.c.l.b16 %v6096
      %v6673 = vunpack.c.l.b16 %v6097
      %v6674 = vunpack.c.l.b16 %v6098
      %v6675 = vunpack.c.l.b16 %v6099
      %v6676 = vunpack.c.l.b16 %v6100
      %v6677 = vunpack.c.l.b16 %v6101
      %v6678 = vunpack.c.l.b16 %v6102
      %v6679 = vunpack.c.l.b16 %v6103
      %v6680 = vunpack.c.l.b16 %v6104
      %v6681 = vunpack.c.l.b16 %v6105
      %v6682 = vunpack.c.l.b16 %v6106
      %v6683 = vunpack.c.l.b16 %v6107
      %v6684 = vunpack.c.l.b16 %v6108
      %v6685 = vunpack.c.l.b16 %v6109
      %v6686 = vunpack.c.l.b16 %v6110
      %v6687 = vunpack.c.l.b16 %v6111
      %v6688 = vunpack.c.l.b16 %v6112
      %v6689 = vunpack.c.l.b16 %v6113
      %v6690 = vunpack.c.l.b16 %v6114
      %v6691 = vunpack.c.l.b16 %v6115
      %v6692 = vunpack.c.l.b16 %v6116
      %v6693 = vunpack.c.l.b16 %v6117
      %v6694 = vunpack.c.l.b16 %v6118
      %v6695 = vunpack.c.l.b16 %v6119
      %v6696 = vunpack.c.l.b16 %v6120
      %v6697 = vunpack.c.l.b16 %v6121
      %v6698 = vunpack.c.l.b16 %v6122
      %v6699 = vunpack.c.l.b16 %v6123
      %v6700 = vunpack.c.l.b16 %v6124
      %v6701 = vunpack.c.l.b16 %v6125
      %v6702 = vunpack.c.l.b16 %v6126
      %v6703 = vunpack.c.l.b16 %v6127
      %v6704 = vunpack.c.l.b16 %v6128
      %v6705 = vunpack.c.l.b16 %v6129
      %v6706 = vunpack.c.l.b16 %v6130
      %v6707 = vunpack.c.l.b16 %v6131
      %v6708 = vunpack.c.l.b16 %v6132
      %v6709 = vunpack.c.l.b16 %v6133
      %v6710 = vunpack.c.l.b16 %v6134
      %v6711 = vunpack.c.l.b16 %v6135
      %v6712 = vunpack.c.l.b16 %v6136
      %v6713 = vunpack.c.l.b16 %v6137
      %v6714 = vunpack.c.l.b16 %v6138
      %v6715 = vunpack.c.l.b16 %v6139
      %v6716 = vunpack.c.l.b16 %v6140
      %v6717 = vunpack.c.l.b16 %v6141
      %v6718 = vpack.c.b16 %v6647, %v6646
      %v6719 = vpack.c.b16 %v6649, %v6648
      %v6720 = vpack.c.b16 %v6651, %v6650
      %v6721 = vpack.c.b16 %v6653, %v6652
      %v6722 = vpack.c.b16 %v6655, %v6654
      %v6723 = vpack.c.b16 %v6657, %v6656
      %v6724 = vpack.c.b16 %v6659, %v6658
      %v6725 = vpack.c.b16 %v6661, %v6660
      %v6726 = vpack.c.b16 %v6663, %v6662
      %v6727 = vpack.c.b16 %v6665, %v6664
      %v6728 = vpack.c.b16 %v6667, %v6666
      %v6729 = vpack.c.b16 %v6669, %v6668
      %v6730 = vpack.c.b16 %v6671, %v6670
      %v6731 = vpack.c.b16 %v6673, %v6672
      %v6732 = vpack.c.b16 %v6675, %v6674
      %v6733 = vpack.c.b16 %v6677, %v6676
      %v6734 = vpack.c.b16 %v6679, %v6678
      %v6735 = vpack.c.b16 %v6681, %v6680
      %v6736 = vpack.c.b16 %v6683, %v6682
      %v6737 = vpack.c.b16 %v6685, %v6684
      %v6738 = vpack.c.b16 %v6687, %v6686
      %v6739 = vpack.c.b16 %v6689, %v6688
      %v6740 = vpack.c.b16 %v6691, %v6690
      %v6741 = vpack.c.b16 %v6693, %v6692
      %v6742 = vpack.c.b16 %v6695, %v6694
      %v6743 = vpack.c.b16 %v6697, %v6696
      %v6744 = vpack.c.b16 %v6699, %v6698
      %v6745 = vpack.c.b16 %v6701, %v6700
      %v6746 = vpack.c.b16 %v6703, %v6702
      %v6747 = vpack.c.b16 %v6705, %v6704
      %v6748 = vpack.c.b16 %v6707, %v6706
      %v6749 = vpack.c.b16 %v6709, %v6708
      %v6750 = vpack.c.b16 %v6711, %v6710
      %v6751 = vpack.c.b16 %v6713, %v6712
      %v6752 = vpack.c.b16 %v6715, %v6714
      %v6753 = vpack.c.b16 %v6717, %v6716
      %v6791 = vsel %vm422, %v6434, 0
      %v6794 = vsel %vm422, %v6439, 0
      %v6797 = vsel %vm422, %v6444, 0
      %v6800 = vsel %vm422, %v6449, 0
      %v6803 = vsel %vm422, %v6454, 0
      %v6806 = vsel %vm422, %v6459, 0
      %v6809 = vsel %vm422, %v6464, 0
      %v6812 = vsel %vm422, %v6469, 0
      %v6815 = vsel %vm422, %v6474, 0
      %v6818 = vsel %vm422, %v6479, 0
      %v6821 = vsel %vm422, %v6484, 0
      %v6824 = vsel %vm422, %v6489, 0
      %v6827 = vsel %vm422, %v6494, 0
      %v6830 = vsel %vm422, %v6499, 0
      %v6833 = vsel %vm422, %v6504, 0
      %v6836 = vsel %vm422, %v6509, 0
      %6838 = vmatprep.subr.bf16.mxu0 0
      %6839 = vmatpush1.bf16.msra.mxu0 %v6725
      %6840 = vmatprep.subr.bf16.mxu0 0
      %6841 = vmatpush1.bf16.msra.mxu0 %v6724
      %6842 = vmatprep.subr.bf16.mxu0 0
      %6843 = vmatpush1.bf16.msra.mxu0 %v6723
      %6844 = vmatprep.subr.bf16.mxu0 0
      %6845 = vmatpush1.bf16.msra.mxu0 %v6722
      %6846 = vmatprep.subr.bf16.mxu0 0
      %6847 = vmatpush1.bf16.msra.mxu0 %v6721
      %6848 = vmatprep.subr.bf16.mxu0 0
      %6849 = vmatpush1.bf16.msra.mxu0 %v6720
      %6850 = vmatprep.subr.bf16.mxu0 0
      %6851 = vmatpush1.bf16.msra.mxu0 %v6719
      %6852 = vmatprep.subr.bf16.mxu0 0
      %6853 = vmatpush1.bf16.msra.mxu0 %v6718
      %6854 = vmatprep.subr.bf16.mxu0 0
      %6855 = vmatpush2.bf16.msra.mxu0 %v6733
      %6856 = vmatprep.subr.bf16.mxu0 0
      %6857 = vmatpush2.bf16.msra.mxu0 %v6732
      %6858 = vmatprep.subr.bf16.mxu0 0
      %6859 = vmatpush2.bf16.msra.mxu0 %v6731
      %6860 = vmatprep.subr.bf16.mxu0 0
      %6861 = vmatpush2.bf16.msra.mxu0 %v6730
      %6862 = vmatprep.subr.bf16.mxu0 0
      %6863 = vmatpush2.bf16.msra.mxu0 %v6729
      %6864 = vmatprep.subr.bf16.mxu0 0
      %6865 = vmatpush2.bf16.msra.mxu0 %v6728
      %6866 = vmatprep.subr.bf16.mxu0 0
      %6867 = vmatpush2.bf16.msra.mxu0 %v6727
      %6868 = vmatprep.subr.bf16.mxu0 0
      %6869 = vmatpush2.bf16.msra.mxu0 %v6726
      %6870 = vmatprep.mubr.bf16.mxu0 %v6431
      %6871 = vmatmul.mubr.bf16.gmra.mxu0 %v6430
      %v6872 = vpop.f32.mrf.mxu0
      %v6873 = vadd.f32 %v6142, %v6872
      %v6874 = vpop.f32.mrf.mxu0
      %v6875 = vpop.f32.mrf.mxu0
      %v6876 = vadd.f32 %v6143, %v6875
      %v6877 = vpop.f32.mrf.mxu0
      %6878 = vmatprep.mubr.bf16.mxu0 %v6436
      %6879 = vmatmul.mubr.bf16.gmra.mxu0 %v6435
      %v6880 = vpop.f32.mrf.mxu0
      %v6881 = vadd.f32 %v6144, %v6880
      %v6882 = vpop.f32.mrf.mxu0
      %v6883 = vpop.f32.mrf.mxu0
      %v6884 = vadd.f32 %v6145, %v6883
      %v6885 = vpop.f32.mrf.mxu0
      %6886 = vmatprep.mubr.bf16.mxu0 %v6441
      %6887 = vmatmul.mubr.bf16.gmra.mxu0 %v6440
      %v6888 = vpop.f32.mrf.mxu0
      %v6889 = vadd.f32 %v6146, %v6888
      %v6890 = vpop.f32.mrf.mxu0
      %v6891 = vpop.f32.mrf.mxu0
      %v6892 = vadd.f32 %v6147, %v6891
      %v6893 = vpop.f32.mrf.mxu0
      %6894 = vmatprep.mubr.bf16.mxu0 %v6446
      %6895 = vmatmul.mubr.bf16.gmra.mxu0 %v6445
      %v6896 = vpop.f32.mrf.mxu0
      %v6897 = vadd.f32 %v6148, %v6896
      %v6898 = vpop.f32.mrf.mxu0
      %v6899 = vpop.f32.mrf.mxu0
      %v6900 = vadd.f32 %v6149, %v6899
      %v6901 = vpop.f32.mrf.mxu0
      %6902 = vmatprep.mubr.bf16.mxu0 %v6451
      %6903 = vmatmul.mubr.bf16.gmra.mxu0 %v6450
      %v6904 = vpop.f32.mrf.mxu0
      %v6905 = vadd.f32 %v6150, %v6904
      %v6906 = vpop.f32.mrf.mxu0
      %v6907 = vpop.f32.mrf.mxu0
      %v6908 = vadd.f32 %v6151, %v6907
      %v6909 = vpop.f32.mrf.mxu0
      %6910 = vmatprep.mubr.bf16.mxu0 %v6456
      %6911 = vmatmul.mubr.bf16.gmra.mxu0 %v6455
      %v6912 = vpop.f32.mrf.mxu0
      %v6913 = vadd.f32 %v6152, %v6912
      %v6914 = vpop.f32.mrf.mxu0
      %v6915 = vpop.f32.mrf.mxu0
      %v6916 = vadd.f32 %v6153, %v6915
      %v6917 = vpop.f32.mrf.mxu0
      %6918 = vmatprep.mubr.bf16.mxu0 %v6461
      %6919 = vmatmul.mubr.bf16.gmra.mxu0 %v6460
      %v6920 = vpop.f32.mrf.mxu0
      %v6921 = vadd.f32 %v6154, %v6920
      %v6922 = vpop.f32.mrf.mxu0
      %v6923 = vpop.f32.mrf.mxu0
      %v6924 = vadd.f32 %v6155, %v6923
      %v6925 = vpop.f32.mrf.mxu0
      %6926 = vmatprep.mubr.bf16.mxu0 %v6466
      %6927 = vmatmul.mubr.bf16.gmra.mxu0 %v6465
      %v6928 = vpop.f32.mrf.mxu0
      %v6929 = vadd.f32 %v6156, %v6928
      %v6930 = vpop.f32.mrf.mxu0
      %v6931 = vpop.f32.mrf.mxu0
      %v6932 = vadd.f32 %v6157, %v6931
      %v6933 = vpop.f32.mrf.mxu0
      %6934 = vmatprep.mubr.bf16.mxu0 %v6471
      %6935 = vmatmul.mubr.bf16.gmra.mxu0 %v6470
      %v6936 = vpop.f32.mrf.mxu0
      %v6937 = vadd.f32 %v6158, %v6936
      %v6938 = vpop.f32.mrf.mxu0
      %v6939 = vpop.f32.mrf.mxu0
      %v6940 = vadd.f32 %v6159, %v6939
      %v6941 = vpop.f32.mrf.mxu0
      %6942 = vmatprep.mubr.bf16.mxu0 %v6476
      %6943 = vmatmul.mubr.bf16.gmra.mxu0 %v6475
      %v6944 = vpop.f32.mrf.mxu0
      %v6945 = vadd.f32 %v6160, %v6944
      %v6946 = vpop.f32.mrf.mxu0
      %v6947 = vpop.f32.mrf.mxu0
      %v6948 = vadd.f32 %v6161, %v6947
      %v6949 = vpop.f32.mrf.mxu0
      %6950 = vmatprep.mubr.bf16.mxu0 %v6481
      %6951 = vmatmul.mubr.bf16.gmra.mxu0 %v6480
      %v6952 = vpop.f32.mrf.mxu0
      %v6953 = vadd.f32 %v6162, %v6952
      %v6954 = vpop.f32.mrf.mxu0
      %v6955 = vpop.f32.mrf.mxu0
      %v6956 = vadd.f32 %v6163, %v6955
      %v6957 = vpop.f32.mrf.mxu0
      %6958 = vmatprep.mubr.bf16.mxu0 %v6486
      %6959 = vmatmul.mubr.bf16.gmra.mxu0 %v6485
      %v6960 = vpop.f32.mrf.mxu0
      %v6961 = vadd.f32 %v6164, %v6960
      %v6962 = vpop.f32.mrf.mxu0
      %v6963 = vpop.f32.mrf.mxu0
      %v6964 = vadd.f32 %v6165, %v6963
      %v6965 = vpop.f32.mrf.mxu0
      %6966 = vmatprep.mubr.bf16.mxu0 %v6491
      %6967 = vmatmul.mubr.bf16.gmra.mxu0 %v6490
      %v6968 = vpop.f32.mrf.mxu0
      %v6969 = vadd.f32 %v6166, %v6968
      %v6970 = vpop.f32.mrf.mxu0
      %v6971 = vpop.f32.mrf.mxu0
      %v6972 = vadd.f32 %v6167, %v6971
      %v6973 = vpop.f32.mrf.mxu0
      %6974 = vmatprep.mubr.bf16.mxu0 %v6496
      %6975 = vmatmul.mubr.bf16.gmra.mxu0 %v6495
      %v6976 = vpop.f32.mrf.mxu0
      %v6977 = vadd.f32 %v6168, %v6976
      %v6978 = vpop.f32.mrf.mxu0
      %v6979 = vpop.f32.mrf.mxu0
      %v6980 = vadd.f32 %v6169, %v6979
      %v6981 = vpop.f32.mrf.mxu0
      %6982 = vmatprep.mubr.bf16.mxu0 %v6501
      %6983 = vmatmul.mubr.bf16.gmra.mxu0 %v6500
      %v6984 = vpop.f32.mrf.mxu0
      %v6985 = vadd.f32 %v6170, %v6984
      %v6986 = vpop.f32.mrf.mxu0
      %v6987 = vpop.f32.mrf.mxu0
      %v6988 = vadd.f32 %v6171, %v6987
      %v6989 = vpop.f32.mrf.mxu0
      %6990 = vmatprep.mubr.bf16.mxu0 %v6506
      %6991 = vmatmul.mubr.bf16.gmra.mxu0 %v6505
      %v6992 = vpop.f32.mrf.mxu0
      %v6993 = vadd.f32 %v6172, %v6992
      %v6994 = vpop.f32.mrf.mxu0
      %v6995 = vpop.f32.mrf.mxu0
      %v6996 = vadd.f32 %v6173, %v6995
      %v6997 = vpop.f32.mrf.mxu0
      %6998 = vdwg.mxu0
      %6999 = vmatprep.subr.bf16.mxu0 0
      %7000 = vmatpush1.bf16.msra.mxu0 %v6741
      %7001 = vmatprep.subr.bf16.mxu0 0
      %7002 = vmatpush1.bf16.msra.mxu0 %v6740
      %7003 = vmatprep.subr.bf16.mxu0 0
      %7004 = vmatpush1.bf16.msra.mxu0 %v6739
      %7005 = vmatprep.subr.bf16.mxu0 0
      %7006 = vmatpush1.bf16.msra.mxu0 %v6738
      %7007 = vmatprep.subr.bf16.mxu0 0
      %7008 = vmatpush1.bf16.msra.mxu0 %v6737
      %7009 = vmatprep.subr.bf16.mxu0 0
      %7010 = vmatpush1.bf16.msra.mxu0 %v6736
      %7011 = vmatprep.subr.bf16.mxu0 0
      %7012 = vmatpush1.bf16.msra.mxu0 %v6735
      %7013 = vmatprep.subr.bf16.mxu0 0
      %7014 = vmatpush1.bf16.msra.mxu0 %v6734
      %7015 = vmatprep.subr.bf16.mxu0 0
      %7016 = vmatpush2.bf16.msra.mxu0 %v6749
      %7017 = vmatprep.subr.bf16.mxu0 0
      %7018 = vmatpush2.bf16.msra.mxu0 %v6748
      %7019 = vmatprep.subr.bf16.mxu0 0
      %7020 = vmatpush2.bf16.msra.mxu0 %v6747
      %7021 = vmatprep.subr.bf16.mxu0 0
      %7022 = vmatpush2.bf16.msra.mxu0 %v6746
      %7023 = vmatprep.subr.bf16.mxu0 0
      %7024 = vmatpush2.bf16.msra.mxu0 %v6745
      %7025 = vmatprep.subr.bf16.mxu0 0
      %7026 = vmatpush2.bf16.msra.mxu0 %v6744
      %7027 = vmatprep.subr.bf16.mxu0 0
      %7028 = vmatpush2.bf16.msra.mxu0 %v6743
      %7029 = vmatprep.subr.bf16.mxu0 0
      %7030 = vmatpush2.bf16.msra.mxu0 %v6742
      %7031 = vmatprep.mubr.bf16.mxu0 %v6433
      %7032 = vmatmul.mubr.bf16.gmra.mxu0 %v6432
      %v7033 = vpop.f32.mrf.mxu0
      %v7034 = vadd.f32 %v6873, %v7033
      %v7035 = vpop.f32.mrf.mxu0
      %v7036 = vpop.f32.mrf.mxu0
      %v7037 = vadd.f32 %v6876, %v7036
      %v7038 = vpop.f32.mrf.mxu0
      %7039 = vmatprep.mubr.bf16.mxu0 %v6438
      %7040 = vmatmul.mubr.bf16.gmra.mxu0 %v6437
      %v7041 = vpop.f32.mrf.mxu0
      %v7042 = vadd.f32 %v6881, %v7041
      %v7043 = vpop.f32.mrf.mxu0
      %v7044 = vpop.f32.mrf.mxu0
      %v7045 = vadd.f32 %v6884, %v7044
      %v7046 = vpop.f32.mrf.mxu0
      %7047 = vmatprep.mubr.bf16.mxu0 %v6443
      %7048 = vmatmul.mubr.bf16.gmra.mxu0 %v6442
      %v7049 = vpop.f32.mrf.mxu0
      %v7050 = vadd.f32 %v6889, %v7049
      %v7051 = vpop.f32.mrf.mxu0
      %v7052 = vpop.f32.mrf.mxu0
      %v7053 = vadd.f32 %v6892, %v7052
      %v7054 = vpop.f32.mrf.mxu0
      %7055 = vmatprep.mubr.bf16.mxu0 %v6448
      %7056 = vmatmul.mubr.bf16.gmra.mxu0 %v6447
      %v7057 = vpop.f32.mrf.mxu0
      %v7058 = vadd.f32 %v6897, %v7057
      %v7059 = vpop.f32.mrf.mxu0
      %v7060 = vpop.f32.mrf.mxu0
      %v7061 = vadd.f32 %v6900, %v7060
      %v7062 = vpop.f32.mrf.mxu0
      %7063 = vmatprep.mubr.bf16.mxu0 %v6453
      %7064 = vmatmul.mubr.bf16.gmra.mxu0 %v6452
      %v7065 = vpop.f32.mrf.mxu0
      %v7066 = vadd.f32 %v6905, %v7065
      %v7067 = vpop.f32.mrf.mxu0
      %v7068 = vpop.f32.mrf.mxu0
      %v7069 = vadd.f32 %v6908, %v7068
      %v7070 = vpop.f32.mrf.mxu0
      %7071 = vmatprep.mubr.bf16.mxu0 %v6458
      %7072 = vmatmul.mubr.bf16.gmra.mxu0 %v6457
      %v7073 = vpop.f32.mrf.mxu0
      %v7074 = vadd.f32 %v6913, %v7073
      %v7075 = vpop.f32.mrf.mxu0
      %v7076 = vpop.f32.mrf.mxu0
      %v7077 = vadd.f32 %v6916, %v7076
      %v7078 = vpop.f32.mrf.mxu0
      %7079 = vmatprep.mubr.bf16.mxu0 %v6463
      %7080 = vmatmul.mubr.bf16.gmra.mxu0 %v6462
      %v7081 = vpop.f32.mrf.mxu0
      %v7082 = vadd.f32 %v6921, %v7081
      %v7083 = vpop.f32.mrf.mxu0
      %v7084 = vpop.f32.mrf.mxu0
      %v7085 = vadd.f32 %v6924, %v7084
      %v7086 = vpop.f32.mrf.mxu0
      %7087 = vmatprep.mubr.bf16.mxu0 %v6468
      %7088 = vmatmul.mubr.bf16.gmra.mxu0 %v6467
      %v7089 = vpop.f32.mrf.mxu0
      %v7090 = vadd.f32 %v6929, %v7089
      %v7091 = vpop.f32.mrf.mxu0
      %v7092 = vpop.f32.mrf.mxu0
      %v7093 = vadd.f32 %v6932, %v7092
      %v7094 = vpop.f32.mrf.mxu0
      %7095 = vmatprep.mubr.bf16.mxu0 %v6473
      %7096 = vmatmul.mubr.bf16.gmra.mxu0 %v6472
      %v7097 = vpop.f32.mrf.mxu0
      %v7098 = vadd.f32 %v6937, %v7097
      %v7099 = vpop.f32.mrf.mxu0
      %v7100 = vpop.f32.mrf.mxu0
      %v7101 = vadd.f32 %v6940, %v7100
      %v7102 = vpop.f32.mrf.mxu0
      %7103 = vmatprep.mubr.bf16.mxu0 %v6478
      %7104 = vmatmul.mubr.bf16.gmra.mxu0 %v6477
      %v7105 = vpop.f32.mrf.mxu0
      %v7106 = vadd.f32 %v6945, %v7105
      %v7107 = vpop.f32.mrf.mxu0
      %v7108 = vpop.f32.mrf.mxu0
      %v7109 = vadd.f32 %v6948, %v7108
      %v7110 = vpop.f32.mrf.mxu0
      %7111 = vmatprep.mubr.bf16.mxu0 %v6483
      %7112 = vmatmul.mubr.bf16.gmra.mxu0 %v6482
      %v7113 = vpop.f32.mrf.mxu0
      %v7114 = vadd.f32 %v6953, %v7113
      %v7115 = vpop.f32.mrf.mxu0
      %v7116 = vpop.f32.mrf.mxu0
      %v7117 = vadd.f32 %v6956, %v7116
      %v7118 = vpop.f32.mrf.mxu0
      %7119 = vmatprep.mubr.bf16.mxu0 %v6488
      %7120 = vmatmul.mubr.bf16.gmra.mxu0 %v6487
      %v7121 = vpop.f32.mrf.mxu0
      %v7122 = vadd.f32 %v6961, %v7121
      %v7123 = vpop.f32.mrf.mxu0
      %v7124 = vpop.f32.mrf.mxu0
      %v7125 = vadd.f32 %v6964, %v7124
      %v7126 = vpop.f32.mrf.mxu0
      %7127 = vmatprep.mubr.bf16.mxu0 %v6493
      %7128 = vmatmul.mubr.bf16.gmra.mxu0 %v6492
      %v7129 = vpop.f32.mrf.mxu0
      %v7130 = vadd.f32 %v6969, %v7129
      %v7131 = vpop.f32.mrf.mxu0
      %v7132 = vpop.f32.mrf.mxu0
      %v7133 = vadd.f32 %v6972, %v7132
      %v7134 = vpop.f32.mrf.mxu0
      %7135 = vmatprep.mubr.bf16.mxu0 %v6498
      %7136 = vmatmul.mubr.bf16.gmra.mxu0 %v6497
      %v7137 = vpop.f32.mrf.mxu0
      %v7138 = vadd.f32 %v6977, %v7137
      %v7139 = vpop.f32.mrf.mxu0
      %v7140 = vpop.f32.mrf.mxu0
      %v7141 = vadd.f32 %v6980, %v7140
      %v7142 = vpop.f32.mrf.mxu0
      %7143 = vmatprep.mubr.bf16.mxu0 %v6503
      %7144 = vmatmul.mubr.bf16.gmra.mxu0 %v6502
      %v7145 = vpop.f32.mrf.mxu0
      %v7146 = vadd.f32 %v6985, %v7145
      %v7147 = vpop.f32.mrf.mxu0
      %v7148 = vpop.f32.mrf.mxu0
      %v7149 = vadd.f32 %v6988, %v7148
      %v7150 = vpop.f32.mrf.mxu0
      %7151 = vmatprep.mubr.bf16.mxu0 %v6508
      %7152 = vmatmul.mubr.bf16.gmra.mxu0 %v6507
      %v7153 = vpop.f32.mrf.mxu0
      %v7154 = vadd.f32 %v6993, %v7153
      %v7155 = vpop.f32.mrf.mxu0
      %v7156 = vpop.f32.mrf.mxu0
      %v7157 = vadd.f32 %v6996, %v7156
      %v7158 = vpop.f32.mrf.mxu0
      %7159 = vdwg.mxu0
      %7160 = vmatprep.subr.bf16.mxu0 0
      %7161 = vmatpush1.bf16.msra.mxu0 0
      %7162 = vmatprep.subr.bf16.mxu0 0
      %7163 = vmatpush1.bf16.msra.mxu0 0
      %7164 = vmatprep.subr.bf16.mxu0 0
      %7165 = vmatpush1.bf16.msra.mxu0 0
      %7166 = vmatprep.subr.bf16.mxu0 0
      %7167 = vmatpush1.bf16.msra.mxu0 0
      %7168 = vmatprep.subr.bf16.mxu0 0
      %7169 = vmatpush1.bf16.msra.mxu0 %v6753
      %7170 = vmatprep.subr.bf16.mxu0 0
      %7171 = vmatpush1.bf16.msra.mxu0 %v6752
      %7172 = vmatprep.subr.bf16.mxu0 0
      %7173 = vmatpush1.bf16.msra.mxu0 %v6751
      %7174 = vmatprep.subr.bf16.mxu0 0
      %7175 = vmatpush1.bf16.msra.mxu0 %v6750
      %7176 = vmatprep.subr.bf16.mxu0 0
      %7177 = vmatpush2.bf16.msra.mxu0 0
      %7178 = vmatprep.subr.bf16.mxu0 0
      %7179 = vmatpush2.bf16.msra.mxu0 0
      %7180 = vmatprep.subr.bf16.mxu0 0
      %7181 = vmatpush2.bf16.msra.mxu0 0
      %7182 = vmatprep.subr.bf16.mxu0 0
      %7183 = vmatpush2.bf16.msra.mxu0 0
      %7184 = vmatprep.subr.bf16.mxu0 0
      %7185 = vmatpush2.bf16.msra.mxu0 0
      %7186 = vmatprep.subr.bf16.mxu0 0
      %7187 = vmatpush2.bf16.msra.mxu0 0
      %7188 = vmatprep.subr.bf16.mxu0 0
      %7189 = vmatpush2.bf16.msra.mxu0 0
      %7190 = vmatprep.subr.bf16.mxu0 0
      %7191 = vmatpush2.bf16.msra.mxu0 0
      %7192 = vmatprep.mubr.bf16.mxu0 0
      %7193 = vmatmul.mubr.bf16.gmra.mxu0 %v6791
      %v7194 = vpop.f32.mrf.mxu0
      %v7195 = vadd.f32 %v7034, %v7194
      %v7196 = vpop.f32.mrf.mxu0
      %v7197 = vpop.f32.mrf.mxu0
      %v7198 = vadd.f32 %v7037, %v7197
      %v7199 = vpop.f32.mrf.mxu0
      %7200 = vmatprep.mubr.bf16.mxu0 0
      %7201 = vmatmul.mubr.bf16.gmra.mxu0 %v6794
      %v7202 = vpop.f32.mrf.mxu0
      %v7203 = vadd.f32 %v7042, %v7202
      %v7204 = vpop.f32.mrf.mxu0
      %v7205 = vpop.f32.mrf.mxu0
      %v7206 = vadd.f32 %v7045, %v7205
      %v7207 = vpop.f32.mrf.mxu0
      %7208 = vmatprep.mubr.bf16.mxu0 0
      %7209 = vmatmul.mubr.bf16.gmra.mxu0 %v6797
      %v7210 = vpop.f32.mrf.mxu0
      %v7211 = vadd.f32 %v7050, %v7210
      %v7212 = vpop.f32.mrf.mxu0
      %v7213 = vpop.f32.mrf.mxu0
      %v7214 = vadd.f32 %v7053, %v7213
      %v7215 = vpop.f32.mrf.mxu0
      %7216 = vmatprep.mubr.bf16.mxu0 0
      %7217 = vmatmul.mubr.bf16.gmra.mxu0 %v6800
      %v7218 = vpop.f32.mrf.mxu0
      %v7219 = vadd.f32 %v7058, %v7218
      %v7220 = vpop.f32.mrf.mxu0
      %v7221 = vpop.f32.mrf.mxu0
      %v7222 = vadd.f32 %v7061, %v7221
      %v7223 = vpop.f32.mrf.mxu0
      %7224 = vmatprep.mubr.bf16.mxu0 0
      %7225 = vmatmul.mubr.bf16.gmra.mxu0 %v6803
      %v7226 = vpop.f32.mrf.mxu0
      %v7227 = vadd.f32 %v7066, %v7226
      %v7228 = vpop.f32.mrf.mxu0
      %v7229 = vpop.f32.mrf.mxu0
      %v7230 = vadd.f32 %v7069, %v7229
      %v7231 = vpop.f32.mrf.mxu0
      %7232 = vmatprep.mubr.bf16.mxu0 0
      %7233 = vmatmul.mubr.bf16.gmra.mxu0 %v6806
      %v7234 = vpop.f32.mrf.mxu0
      %v7235 = vadd.f32 %v7074, %v7234
      %v7236 = vpop.f32.mrf.mxu0
      %v7237 = vpop.f32.mrf.mxu0
      %v7238 = vadd.f32 %v7077, %v7237
      %v7239 = vpop.f32.mrf.mxu0
      %7240 = vmatprep.mubr.bf16.mxu0 0
      %7241 = vmatmul.mubr.bf16.gmra.mxu0 %v6809
      %v7242 = vpop.f32.mrf.mxu0
      %v7243 = vadd.f32 %v7082, %v7242
      %v7244 = vpop.f32.mrf.mxu0
      %v7245 = vpop.f32.mrf.mxu0
      %v7246 = vadd.f32 %v7085, %v7245
      %v7247 = vpop.f32.mrf.mxu0
      %7248 = vmatprep.mubr.bf16.mxu0 0
      %7249 = vmatmul.mubr.bf16.gmra.mxu0 %v6812
      %v7250 = vpop.f32.mrf.mxu0
      %v7251 = vadd.f32 %v7090, %v7250
      %v7252 = vpop.f32.mrf.mxu0
      %v7253 = vpop.f32.mrf.mxu0
      %v7254 = vadd.f32 %v7093, %v7253
      %v7255 = vpop.f32.mrf.mxu0
      %7256 = vmatprep.mubr.bf16.mxu0 0
      %7257 = vmatmul.mubr.bf16.gmra.mxu0 %v6815
      %v7258 = vpop.f32.mrf.mxu0
      %v7259 = vadd.f32 %v7098, %v7258
      %v7260 = vpop.f32.mrf.mxu0
      %v7261 = vpop.f32.mrf.mxu0
      %v7262 = vadd.f32 %v7101, %v7261
      %v7263 = vpop.f32.mrf.mxu0
      %7264 = vmatprep.mubr.bf16.mxu0 0
      %7265 = vmatmul.mubr.bf16.gmra.mxu0 %v6818
      %v7266 = vpop.f32.mrf.mxu0
      %v7267 = vadd.f32 %v7106, %v7266
      %v7268 = vpop.f32.mrf.mxu0
      %v7269 = vpop.f32.mrf.mxu0
      %v7270 = vadd.f32 %v7109, %v7269
      %v7271 = vpop.f32.mrf.mxu0
      %7272 = vmatprep.mubr.bf16.mxu0 0
      %7273 = vmatmul.mubr.bf16.gmra.mxu0 %v6821
      %v7274 = vpop.f32.mrf.mxu0
      %v7275 = vadd.f32 %v7114, %v7274
      %v7276 = vpop.f32.mrf.mxu0
      %v7277 = vpop.f32.mrf.mxu0
      %v7278 = vadd.f32 %v7117, %v7277
      %v7279 = vpop.f32.mrf.mxu0
      %7280 = vmatprep.mubr.bf16.mxu0 0
      %7281 = vmatmul.mubr.bf16.gmra.mxu0 %v6824
      %v7282 = vpop.f32.mrf.mxu0
      %v7283 = vadd.f32 %v7122, %v7282
      %v7284 = vpop.f32.mrf.mxu0
      %v7285 = vpop.f32.mrf.mxu0
      %v7286 = vadd.f32 %v7125, %v7285
      %v7287 = vpop.f32.mrf.mxu0
      %7288 = vmatprep.mubr.bf16.mxu0 0
      %7289 = vmatmul.mubr.bf16.gmra.mxu0 %v6827
      %v7290 = vpop.f32.mrf.mxu0
      %v7291 = vadd.f32 %v7130, %v7290
      %v7292 = vpop.f32.mrf.mxu0
      %v7293 = vpop.f32.mrf.mxu0
      %v7294 = vadd.f32 %v7133, %v7293
      %v7295 = vpop.f32.mrf.mxu0
      %7296 = vmatprep.mubr.bf16.mxu0 0
      %7297 = vmatmul.mubr.bf16.gmra.mxu0 %v6830
      %v7298 = vpop.f32.mrf.mxu0
      %v7299 = vadd.f32 %v7138, %v7298
      %v7300 = vpop.f32.mrf.mxu0
      %v7301 = vpop.f32.mrf.mxu0
      %v7302 = vadd.f32 %v7141, %v7301
      %v7303 = vpop.f32.mrf.mxu0
      %7304 = vmatprep.mubr.bf16.mxu0 0
      %7305 = vmatmul.mubr.bf16.gmra.mxu0 %v6833
      %v7306 = vpop.f32.mrf.mxu0
      %v7307 = vadd.f32 %v7146, %v7306
      %v7308 = vpop.f32.mrf.mxu0
      %v7309 = vpop.f32.mrf.mxu0
      %v7310 = vadd.f32 %v7149, %v7309
      %v7311 = vpop.f32.mrf.mxu0
      %7312 = vmatprep.mubr.bf16.mxu0 0
      %7313 = vmatmul.mubr.bf16.gmra.mxu0 %v6836
      %v7314 = vpop.f32.mrf.mxu0
      %v7315 = vadd.f32 %v7154, %v7314
      %v7316 = vpop.f32.mrf.mxu0
      %v7317 = vpop.f32.mrf.mxu0
      %v7318 = vadd.f32 %v7157, %v7317
      %v7319 = vpop.f32.mrf.mxu0
      %7320 = vdwg.mxu0
      %7321 = vst.msk [vmem:[%s278] sm:$0xff] %vm422, %v7195
      %7322 = vst.msk [vmem:[%s278 + $0x8] sm:$0xff] %vm422, %v7198
      %7323 = vst.msk [vmem:[%s278 + $0x10] sm:$0xff] %vm422, %v7203
      %7324 = vst.msk [vmem:[%s278 + $0x18] sm:$0xff] %vm422, %v7206
      %7325 = vst.msk [vmem:[%s278 + $0x20] sm:$0xff] %vm422, %v7211
      %7326 = vst.msk [vmem:[%s278 + $0x28] sm:$0xff] %vm422, %v7214
      %7327 = vst.msk [vmem:[%s278 + $0x30] sm:$0xff] %vm422, %v7219
      %7328 = vst.msk [vmem:[%s278 + $0x38] sm:$0xff] %vm422, %v7222
      %7329 = vst.msk [vmem:[%s278 + $0x40] sm:$0xff] %vm422, %v7227
      %7330 = vst.msk [vmem:[%s278 + $0x48] sm:$0xff] %vm422, %v7230
      %7331 = vst.msk [vmem:[%s278 + $0x50] sm:$0xff] %vm422, %v7235
      %7332 = vst.msk [vmem:[%s278 + $0x58] sm:$0xff] %vm422, %v7238
      %7333 = vst.msk [vmem:[%s278 + $0x60] sm:$0xff] %vm422, %v7243
      %7334 = vst.msk [vmem:[%s278 + $0x68] sm:$0xff] %vm422, %v7246
      %7335 = vst.msk [vmem:[%s278 + $0x70] sm:$0xff] %vm422, %v7251
      %7336 = vst.msk [vmem:[%s278 + $0x78] sm:$0xff] %vm422, %v7254
      %7337 = vst.msk [vmem:[%s278 + $0x80] sm:$0xff] %vm422, %v7259
      %7338 = vst.msk [vmem:[%s278 + $0x88] sm:$0xff] %vm422, %v7262
      %7339 = vst.msk [vmem:[%s278 + $0x90] sm:$0xff] %vm422, %v7267
      %7340 = vst.msk [vmem:[%s278 + $0x98] sm:$0xff] %vm422, %v7270
      %7341 = vst.msk [vmem:[%s278 + $0xa0] sm:$0xff] %vm422, %v7275
      %7342 = vst.msk [vmem:[%s278 + $0xa8] sm:$0xff] %vm422, %v7278
      %7343 = vst.msk [vmem:[%s278 + $0xb0] sm:$0xff] %vm422, %v7283
      %7344 = vst.msk [vmem:[%s278 + $0xb8] sm:$0xff] %vm422, %v7286
      %7345 = vst.msk [vmem:[%s278 + $0xc0] sm:$0xff] %vm422, %v7291
      %7346 = vst.msk [vmem:[%s278 + $0xc8] sm:$0xff] %vm422, %v7294
      %7347 = vst.msk [vmem:[%s278 + $0xd0] sm:$0xff] %vm422, %v7299
      %7348 = vst.msk [vmem:[%s278 + $0xd8] sm:$0xff] %vm422, %v7302
      %7349 = vst.msk [vmem:[%s278 + $0xe0] sm:$0xff] %vm422, %v7307
      %7350 = vst.msk [vmem:[%s278 + $0xe8] sm:$0xff] %vm422, %v7310
      %7351 = vst.msk [vmem:[%s278 + $0xf0] sm:$0xff] %vm422, %v7315
      %7352 = vst.msk [vmem:[%s278 + $0xf8] sm:$0xff] %vm422, %v7318
      %p7353 = scmp.lt.s32.totalorder %s18, 1
      %s7354 = scalar_select %p7353, %s18, 1
      %s7355 = smul.addr %s7354, 32
      %s7356 = smul.addr %s7355, 8
      %s7357 = scalar_lea.vmem %s7, %s7356
      // Predicated region
      $region49: #{tpu_custom_call.1} parent=47 // pred_check
        %p7358 = pneg %p188
      $region50: #{tpu_custom_call.1} parent=47 // pred_check_branch
        %7360 = sbr.rel (%p7358) target = $region52
      $region51: #{tpu_custom_call.1} parent=47 // pred_region
        _
      $region52: #{tpu_custom_call.1} parent=47 // pred_fallthru
        _
    $region48: #{tpu_custom_call.1} parent=5 // pred_fallthru
      _
    %p7361 = scmp.le.s32.totalorder 2, %s13
    // Predicated region
    $region53: #{tpu_custom_call.1} parent=5 // pred_check
      %p7362 = pneg %p7361
    $region54: #{tpu_custom_call.1} parent=5 // pred_check_branch
      %7364 = sbr.rel (%p7362) target = $region56
    $region55: #{tpu_custom_call.1} parent=5 // pred_region
      %s7365 = ssub.s32 %s13, 2
      // Predicated region
      $region57: #{tpu_custom_call.1} parent=55 // pred_check
        %p7366 = pneg %p194
      $region58: #{tpu_custom_call.1} parent=55 // pred_check_branch
        %7368 = sbr.rel (%p7366) target = $region60
      $region59: #{tpu_custom_call.1} parent=55 // pred_region
        %p7369 = scmp.lt.s32.totalorder %s19, 1
        %s7370 = scalar_select %p7369, %s19, 1
        %s7371 = smul.addr %s7370, 32
        %s7372 = smul.addr %s7371, 8
        %s7373 = scalar_lea.vmem %s7, %s7372
      $region60: #{tpu_custom_call.1} parent=55 // pred_fallthru
        _
    $region56: #{tpu_custom_call.1} parent=5 // pred_fallthru
      _
  $region6: #{tpu_custom_call.1} parent=0 // loop_footer
    %s17 = sadd.s32 1, %s13
  $region7: #{tpu_custom_call.1} parent=0 // loop_footer_branch
    %12 = sbr.rel target = $region3
  $region8: #{tpu_custom_call.1} parent=0 // loop_exit
    _

</llo_original>
